<compile_context>
chip_gen: v7x
topology: tpu7x:2x2x1
jax: 0.10.0
libtpu: 0.0.40
codegen_flags: <defaults>
</compile_context>

<pallas_src>
import jax
import jax.numpy as jnp
from jax.experimental import pallas as pl
from jax.experimental.pallas import tpu as pltpu

K = 5      # unfold kernel size
PAD = 2    # unfold padding


def _round_lanes(n):
    return ((n + 127) // 128) * 128


def neighbor_sample(x, max_tile_bytes=8 * 1024 * 1024):
    """nn.Unfold(5, padding=2) -> permute(0, 2, 1) -> reshape(b*h*w, c, 5, 5)."""
    b, c, h, w = x.shape
    hw = h * w
    kk = K * K
    ckk = c * kk
    padn = PAD * w + PAD            # max |flat offset| of a (+-2, +-2) neighbour
    itemsize = jnp.dtype(x.dtype).itemsize

    # ---- pick a row-aligned spatial tile size under a conservative VMEM budget ----
    def vmem_estimate(rows):
        t = rows * w
        out_b = 2 * t * _round_lanes(ckk) * itemsize          # double-buffered output
        stage_b = t * _round_lanes(ckk) * itemsize             # staging scratch
        in_b = 2 * (t + 2 * padn) * _round_lanes(c) * itemsize  # double-buffered input
        p_b = 2 * ckk * _round_lanes(ckk) * itemsize           # permutation matrix
        return out_b + stage_b + in_b + p_b

    divs = [d for d in range(1, h + 1) if h % d == 0]
    aligned = [d for d in divs if (d * w) % 8 == 0] or divs    # keep sublane-aligned tiles
    fitting = [d for d in aligned if vmem_estimate(d) <= max_tile_bytes]
    rows_per_tile = max(fitting) if fitting else min(aligned)
    tile_hw = rows_per_tile * w
    n_tiles = h // rows_per_tile

    # ---- cheap input-side prep in XLA (touches only the 1x-sized input) ----------
    # channel-minor + zero-padded along the flattened spatial axis, then pre-sliced
    # into overlapping halo windows (one per spatial tile).
    x_cm = jnp.transpose(x.reshape(b, c, hw), (0, 2, 1))              # (b, hw, c)
    x_pad = jnp.pad(x_cm, ((0, 0), (padn, padn), (0, 0)))             # (b, hw+2*padn, c)
    x_tiles = jnp.stack(
        [x_pad[:, t * tile_hw: t * tile_hw + tile_hw + 2 * padn, :]
         for t in range(n_tiles)], axis=1)                            # (b, n_tiles, T+2*padn, c)
    x_tiles = x_tiles.reshape(b * n_tiles, tile_hw + 2 * padn, c)

    # constant 0/1 permutation: staged column (kidx*c + c') -> output column (c'*25 + kidx)
    src = jnp.arange(ckk, dtype=jnp.int32)
    dst = (src % c) * kk + src // c
    perm = (dst[:, None] == jnp.arange(ckk, dtype=jnp.int32)[None, :]).astype(x.dtype)

    T = tile_hw

    def kernel(x_ref, p_ref, o_ref, stage_ref):
        # x_ref:     (1, T + 2*padn, c)   padded channel-minor halo window (this tile)
        # p_ref:     (25c, 25c)           constant permutation matrix (same block every step)
        # o_ref:     (T, 25c)             output rows, final layout
        # stage_ref: (T, 25c)             kidx-major staging scratch in VMEM
        # x coordinate of each output row in this tile (tiles start at row boundaries).
        colx = jax.lax.broadcasted_iota(jnp.int32, (T, 1), 0) % w     # hoisted
        for kj in range(K):                      # column offset (outer: reuse the mask)
            dx = kj - PAD
            xv = colx + dx
            valid = (xv >= 0) & (xv < w)         # row-wrap guard for the flattened pad
            for ki in range(K):                  # row offset
                dy = ki - PAD
                kidx = ki * K + kj               # nn.Unfold's in-channel order
                start = padn + dy * w + dx       # static, in [0, 2*padn]
                # row r of `shifted` holds the pixel at flat position r + dy*w + dx
                # (zero if that flat position is outside the image, via the pad)
                shifted = x_ref[0, pl.ds(start, T), :]                # (T, c)
                patch = jnp.where(valid, shifted, jnp.zeros_like(shifted))
                # stage kidx-major: channels of this offset land at lanes [kidx*c, kidx*c+c)
                stage_ref[:, kidx * c:(kidx + 1) * c] = patch
        # single MXU permutation: kidx-major staged columns -> c'*25 + kidx output columns
        o_ref[...] = jnp.dot(stage_ref[...], p_ref[...],
                             preferred_element_type=jnp.float32).astype(o_ref.dtype)

    out2d = pl.pallas_call(
        kernel,
        out_shape=jax.ShapeDtypeStruct((b * hw, ckk), x.dtype),
        grid=(b * n_tiles,),
        in_specs=[
            pl.BlockSpec((1, tile_hw + 2 * padn, c), lambda i: (i, 0, 0)),
            pl.BlockSpec((ckk, ckk), lambda i: (0, 0)),
        ],
        out_specs=pl.BlockSpec((tile_hw, ckk), lambda i: (i, 0)),
        scratch_shapes=[pltpu.VMEM((tile_hw, ckk), x.dtype)],
        compiler_params=pltpu.CompilerParams(
            dimension_semantics=("parallel",)),
    )(x_tiles, perm)

    # final reshape is metadata-only: row-major (b*hw, c*25) == (b*hw, c, 5, 5)
    return out2d.reshape(b * hw, c, K, K)


def _reference(x):
    # Pure-JAX reference of the PyTorch forward, for a sanity check.
    b, c, h, w = x.shape
    xp = jnp.pad(x, ((0, 0), (0, 0), (PAD, PAD), (PAD, PAD)))
    patches = jnp.stack(
        [xp[:, :, ki:ki + h, kj:kj + w] for ki in range(K) for kj in range(K)],
        axis=2)                                           # (b, c, 25, h, w)
    u = patches.reshape(b, c, K, K, h, w)
    return jnp.transpose(u, (0, 4, 5, 1, 2, 3)).reshape(b * h * w, c, K, K)


if __name__ == "__main__":
    key = jax.random.PRNGKey(0)
    x = jax.random.normal(key, (2, 4, 16, 16), dtype=jnp.float32)

    out = neighbor_sample(x)
    out = jax.block_until_ready(out)

    ref = _reference(x)
    assert out.shape == (2 * 16 * 16, 4, K, K), out.shape
    assert jnp.allclose(out, ref, atol=1e-6), "mismatch vs reference"
    print("KERNEL_OK")
</pallas_src>

<mosaic_0001>
module attributes {stable_mosaic.version = 11 : i64} {
  func.func @kernel(%arg0: i32, %arg1: memref<1x324x4xf32, #tpu.memory_space<vmem>>, %arg2: memref<100x100xf32, #tpu.memory_space<vmem>>, %arg3: memref<256x100xf32, #tpu.memory_space<vmem>>, %arg4: memref<256x100xf32, #tpu.memory_space<vmem>>) attributes {dimension_semantics = [#tpu.dimension_semantics<parallel>], iteration_bounds = array<i64: 2>, scalar_prefetch = 0 : i64, scratch_operands = 1 : i64, tpu.core_type = #tpu.core_type<tc>, window_params = [{transform_indices = @transform_0, window_bounds = array<i64: 1, 324, 4>}, {pipeline_mode = #tpu.pipeline_mode<synchronous>, transform_indices = @transform_1, window_bounds = array<i64: 100, 100>}, {transform_indices = @transform_2, window_bounds = array<i64: 256, 100>}]} {
    %0 = tpu.iota {dimensions = array<i32: 0>} : vector<256x1xi32>
    %c16_i32 = arith.constant 16 : i32
    %c0_i32 = arith.constant 0 : i32
    %1 = arith.cmpi eq, %c16_i32, %c0_i32 : i32
    %c1_i32 = arith.constant 1 : i32
    %2 = arith.select %1, %c1_i32, %c16_i32 : i32
    %3 = vector.broadcast %2 : i32 to vector<256x1xi32>
    %4 = arith.remsi %0, %3 : vector<256x1xi32>
    %c0_i32_0 = arith.constant 0 : i32
    %5 = vector.broadcast %c0_i32_0 : i32 to vector<256x1xi32>
    %6 = arith.cmpi ne, %4, %5 : vector<256x1xi32>
    %c0_i32_1 = arith.constant 0 : i32
    %7 = vector.broadcast %c0_i32_1 : i32 to vector<256x1xi32>
    %8 = arith.cmpi slt, %4, %7 : vector<256x1xi32>
    %c0_i32_2 = arith.constant 0 : i32
    %9 = arith.cmpi slt, %2, %c0_i32_2 : i32
    %10 = vector.broadcast %9 : i1 to vector<256x1xi1>
    %11 = vector.broadcast %10 : vector<256x1xi1> to vector<256x1xi1>
    %12 = arith.xori %8, %11 : vector<256x1xi1>
    %13 = arith.andi %12, %6 : vector<256x1xi1>
    %14 = vector.broadcast %2 : i32 to vector<256x1xi32>
    %15 = arith.addi %4, %14 : vector<256x1xi32>
    %16 = arith.select %13, %15, %4 : vector<256x1xi1>, vector<256x1xi32>
    %c-2_i32 = arith.constant -2 : i32
    %17 = vector.broadcast %c-2_i32 : i32 to vector<256x1xi32>
    %18 = arith.addi %16, %17 : vector<256x1xi32>
    %c0_i32_3 = arith.constant 0 : i32
    %19 = vector.broadcast %c0_i32_3 : i32 to vector<256x1xi32>
    %20 = arith.cmpi sge, %18, %19 : vector<256x1xi32>
    %c16_i32_4 = arith.constant 16 : i32
    %21 = vector.broadcast %c16_i32_4 : i32 to vector<256x1xi32>
    %22 = arith.cmpi slt, %18, %21 : vector<256x1xi32>
    %23 = arith.andi %20, %22 : vector<256x1xi1>
    %c0 = arith.constant 0 : index
    %c0_5 = arith.constant 0 : index
    %c0_6 = arith.constant 0 : index
    %24 = vector.load %arg1[%c0, %c0_5, %c0_6] : memref<1x324x4xf32, #tpu.memory_space<vmem>>, vector<1x256x4xf32>
    %25 = vector.shape_cast %24 : vector<1x256x4xf32> to vector<256x4xf32>
    %cst = arith.constant 0.000000e+00 : f32
    %26 = vector.broadcast %cst : f32 to vector<256x4xf32>
    %27 = vector.shape_cast %23 : vector<256x1xi1> to vector<256x1xi1>
    %28 = vector.broadcast %27 : vector<256x1xi1> to vector<256x4xi1>
    %29 = arith.select %28, %25, %26 : vector<256x4xi1>, vector<256x4xf32>
    %c0_7 = arith.constant 0 : index
    %c0_8 = arith.constant 0 : index
    %30 = vector.load %arg4[%c0_7, %c0_8] : memref<256x100xf32, #tpu.memory_space<vmem>>, vector<256x4xf32>
    tpu.vector_store %arg4[%c0_7, %c0_8], %29 {strides = array<i32>} : memref<256x100xf32, #tpu.memory_space<vmem>>, vector<256x4xf32>,
    %c0_9 = arith.constant 0 : index
    %c16 = arith.constant 16 : index
    %c0_10 = arith.constant 0 : index
    %31 = vector.load %arg1[%c0_9, %c16, %c0_10] : memref<1x324x4xf32, #tpu.memory_space<vmem>>, vector<1x256x4xf32>
    %32 = vector.shape_cast %31 : vector<1x256x4xf32> to vector<256x4xf32>
    %cst_11 = arith.constant 0.000000e+00 : f32
    %33 = vector.broadcast %cst_11 : f32 to vector<256x4xf32>
    %34 = vector.shape_cast %23 : vector<256x1xi1> to vector<256x1xi1>
    %35 = vector.broadcast %34 : vector<256x1xi1> to vector<256x4xi1>
    %36 = arith.select %35, %32, %33 : vector<256x4xi1>, vector<256x4xf32>
    %c0_12 = arith.constant 0 : index
    %c20 = arith.constant 20 : index
    %37 = vector.load %arg4[%c0_12, %c20] : memref<256x100xf32, #tpu.memory_space<vmem>>, vector<256x4xf32>
    tpu.vector_store %arg4[%c0_12, %c20], %36 {strides = array<i32>} : memref<256x100xf32, #tpu.memory_space<vmem>>, vector<256x4xf32>,
    %c0_13 = arith.constant 0 : index
    %c32 = arith.constant 32 : index
    %c0_14 = arith.constant 0 : index
    %38 = vector.load %arg1[%c0_13, %c32, %c0_14] : memref<1x324x4xf32, #tpu.memory_space<vmem>>, vector<1x256x4xf32>
    %39 = vector.shape_cast %38 : vector<1x256x4xf32> to vector<256x4xf32>
    %cst_15 = arith.constant 0.000000e+00 : f32
    %40 = vector.broadcast %cst_15 : f32 to vector<256x4xf32>
    %41 = vector.shape_cast %23 : vector<256x1xi1> to vector<256x1xi1>
    %42 = vector.broadcast %41 : vector<256x1xi1> to vector<256x4xi1>
    %43 = arith.select %42, %39, %40 : vector<256x4xi1>, vector<256x4xf32>
    %c0_16 = arith.constant 0 : index
    %c40 = arith.constant 40 : index
    %44 = vector.load %arg4[%c0_16, %c40] : memref<256x100xf32, #tpu.memory_space<vmem>>, vector<256x4xf32>
    tpu.vector_store %arg4[%c0_16, %c40], %43 {strides = array<i32>} : memref<256x100xf32, #tpu.memory_space<vmem>>, vector<256x4xf32>,
    %c0_17 = arith.constant 0 : index
    %c48 = arith.constant 48 : index
    %c0_18 = arith.constant 0 : index
    %45 = vector.load %arg1[%c0_17, %c48, %c0_18] : memref<1x324x4xf32, #tpu.memory_space<vmem>>, vector<1x256x4xf32>
    %46 = vector.shape_cast %45 : vector<1x256x4xf32> to vector<256x4xf32>
    %cst_19 = arith.constant 0.000000e+00 : f32
    %47 = vector.broadcast %cst_19 : f32 to vector<256x4xf32>
    %48 = vector.shape_cast %23 : vector<256x1xi1> to vector<256x1xi1>
    %49 = vector.broadcast %48 : vector<256x1xi1> to vector<256x4xi1>
    %50 = arith.select %49, %46, %47 : vector<256x4xi1>, vector<256x4xf32>
    %c0_20 = arith.constant 0 : index
    %c60 = arith.constant 60 : index
    %51 = vector.load %arg4[%c0_20, %c60] : memref<256x100xf32, #tpu.memory_space<vmem>>, vector<256x4xf32>
    tpu.vector_store %arg4[%c0_20, %c60], %50 {strides = array<i32>} : memref<256x100xf32, #tpu.memory_space<vmem>>, vector<256x4xf32>,
    %c0_21 = arith.constant 0 : index
    %c64 = arith.constant 64 : index
    %c0_22 = arith.constant 0 : index
    %52 = vector.load %arg1[%c0_21, %c64, %c0_22] : memref<1x324x4xf32, #tpu.memory_space<vmem>>, vector<1x256x4xf32>
    %53 = vector.shape_cast %52 : vector<1x256x4xf32> to vector<256x4xf32>
    %cst_23 = arith.constant 0.000000e+00 : f32
    %54 = vector.broadcast %cst_23 : f32 to vector<256x4xf32>
    %55 = vector.shape_cast %23 : vector<256x1xi1> to vector<256x1xi1>
    %56 = vector.broadcast %55 : vector<256x1xi1> to vector<256x4xi1>
    %57 = arith.select %56, %53, %54 : vector<256x4xi1>, vector<256x4xf32>
    %c0_24 = arith.constant 0 : index
    %c80 = arith.constant 80 : index
    %58 = vector.load %arg4[%c0_24, %c80] : memref<256x100xf32, #tpu.memory_space<vmem>>, vector<256x4xf32>
    tpu.vector_store %arg4[%c0_24, %c80], %57 {strides = array<i32>} : memref<256x100xf32, #tpu.memory_space<vmem>>, vector<256x4xf32>,
    %c-1_i32 = arith.constant -1 : i32
    %59 = vector.broadcast %c-1_i32 : i32 to vector<256x1xi32>
    %60 = arith.addi %16, %59 : vector<256x1xi32>
    %c0_i32_25 = arith.constant 0 : i32
    %61 = vector.broadcast %c0_i32_25 : i32 to vector<256x1xi32>
    %62 = arith.cmpi sge, %60, %61 : vector<256x1xi32>
    %c16_i32_26 = arith.constant 16 : i32
    %63 = vector.broadcast %c16_i32_26 : i32 to vector<256x1xi32>
    %64 = arith.cmpi slt, %60, %63 : vector<256x1xi32>
    %65 = arith.andi %62, %64 : vector<256x1xi1>
    %c0_27 = arith.constant 0 : index
    %c1 = arith.constant 1 : index
    %c0_28 = arith.constant 0 : index
    %66 = vector.load %arg1[%c0_27, %c1, %c0_28] : memref<1x324x4xf32, #tpu.memory_space<vmem>>, vector<1x256x4xf32>
    %67 = vector.shape_cast %66 : vector<1x256x4xf32> to vector<256x4xf32>
    %cst_29 = arith.constant 0.000000e+00 : f32
    %68 = vector.broadcast %cst_29 : f32 to vector<256x4xf32>
    %69 = vector.shape_cast %65 : vector<256x1xi1> to vector<256x1xi1>
    %70 = vector.broadcast %69 : vector<256x1xi1> to vector<256x4xi1>
    %71 = arith.select %70, %67, %68 : vector<256x4xi1>, vector<256x4xf32>
    %c0_30 = arith.constant 0 : index
    %c4 = arith.constant 4 : index
    %72 = vector.load %arg4[%c0_30, %c4] : memref<256x100xf32, #tpu.memory_space<vmem>>, vector<256x4xf32>
    tpu.vector_store %arg4[%c0_30, %c4], %71 {strides = array<i32>} : memref<256x100xf32, #tpu.memory_space<vmem>>, vector<256x4xf32>,
    %c0_31 = arith.constant 0 : index
    %c17 = arith.constant 17 : index
    %c0_32 = arith.constant 0 : index
    %73 = vector.load %arg1[%c0_31, %c17, %c0_32] : memref<1x324x4xf32, #tpu.memory_space<vmem>>, vector<1x256x4xf32>
    %74 = vector.shape_cast %73 : vector<1x256x4xf32> to vector<256x4xf32>
    %cst_33 = arith.constant 0.000000e+00 : f32
    %75 = vector.broadcast %cst_33 : f32 to vector<256x4xf32>
    %76 = vector.shape_cast %65 : vector<256x1xi1> to vector<256x1xi1>
    %77 = vector.broadcast %76 : vector<256x1xi1> to vector<256x4xi1>
    %78 = arith.select %77, %74, %75 : vector<256x4xi1>, vector<256x4xf32>
    %c0_34 = arith.constant 0 : index
    %c24 = arith.constant 24 : index
    %79 = vector.load %arg4[%c0_34, %c24] : memref<256x100xf32, #tpu.memory_space<vmem>>, vector<256x4xf32>
    tpu.vector_store %arg4[%c0_34, %c24], %78 {strides = array<i32>} : memref<256x100xf32, #tpu.memory_space<vmem>>, vector<256x4xf32>,
    %c0_35 = arith.constant 0 : index
    %c33 = arith.constant 33 : index
    %c0_36 = arith.constant 0 : index
    %80 = vector.load %arg1[%c0_35, %c33, %c0_36] : memref<1x324x4xf32, #tpu.memory_space<vmem>>, vector<1x256x4xf32>
    %81 = vector.shape_cast %80 : vector<1x256x4xf32> to vector<256x4xf32>
    %cst_37 = arith.constant 0.000000e+00 : f32
    %82 = vector.broadcast %cst_37 : f32 to vector<256x4xf32>
    %83 = vector.shape_cast %65 : vector<256x1xi1> to vector<256x1xi1>
    %84 = vector.broadcast %83 : vector<256x1xi1> to vector<256x4xi1>
    %85 = arith.select %84, %81, %82 : vector<256x4xi1>, vector<256x4xf32>
    %c0_38 = arith.constant 0 : index
    %c44 = arith.constant 44 : index
    %86 = vector.load %arg4[%c0_38, %c44] : memref<256x100xf32, #tpu.memory_space<vmem>>, vector<256x4xf32>
    tpu.vector_store %arg4[%c0_38, %c44], %85 {strides = array<i32>} : memref<256x100xf32, #tpu.memory_space<vmem>>, vector<256x4xf32>,
    %c0_39 = arith.constant 0 : index
    %c49 = arith.constant 49 : index
    %c0_40 = arith.constant 0 : index
    %87 = vector.load %arg1[%c0_39, %c49, %c0_40] : memref<1x324x4xf32, #tpu.memory_space<vmem>>, vector<1x256x4xf32>
    %88 = vector.shape_cast %87 : vector<1x256x4xf32> to vector<256x4xf32>
    %cst_41 = arith.constant 0.000000e+00 : f32
    %89 = vector.broadcast %cst_41 : f32 to vector<256x4xf32>
    %90 = vector.shape_cast %65 : vector<256x1xi1> to vector<256x1xi1>
    %91 = vector.broadcast %90 : vector<256x1xi1> to vector<256x4xi1>
    %92 = arith.select %91, %88, %89 : vector<256x4xi1>, vector<256x4xf32>
    %c0_42 = arith.constant 0 : index
    %c64_43 = arith.constant 64 : index
    %93 = vector.load %arg4[%c0_42, %c64_43] : memref<256x100xf32, #tpu.memory_space<vmem>>, vector<256x4xf32>
    tpu.vector_store %arg4[%c0_42, %c64_43], %92 {strides = array<i32>} : memref<256x100xf32, #tpu.memory_space<vmem>>, vector<256x4xf32>,
    %c0_44 = arith.constant 0 : index
    %c65 = arith.constant 65 : index
    %c0_45 = arith.constant 0 : index
    %94 = vector.load %arg1[%c0_44, %c65, %c0_45] : memref<1x324x4xf32, #tpu.memory_space<vmem>>, vector<1x256x4xf32>
    %95 = vector.shape_cast %94 : vector<1x256x4xf32> to vector<256x4xf32>
    %cst_46 = arith.constant 0.000000e+00 : f32
    %96 = vector.broadcast %cst_46 : f32 to vector<256x4xf32>
    %97 = vector.shape_cast %65 : vector<256x1xi1> to vector<256x1xi1>
    %98 = vector.broadcast %97 : vector<256x1xi1> to vector<256x4xi1>
    %99 = arith.select %98, %95, %96 : vector<256x4xi1>, vector<256x4xf32>
    %c0_47 = arith.constant 0 : index
    %c84 = arith.constant 84 : index
    %100 = vector.load %arg4[%c0_47, %c84] : memref<256x100xf32, #tpu.memory_space<vmem>>, vector<256x4xf32>
    tpu.vector_store %arg4[%c0_47, %c84], %99 {strides = array<i32>} : memref<256x100xf32, #tpu.memory_space<vmem>>, vector<256x4xf32>,
    %c0_i32_48 = arith.constant 0 : i32
    %101 = vector.broadcast %c0_i32_48 : i32 to vector<256x1xi32>
    %102 = arith.addi %16, %101 : vector<256x1xi32>
    %c0_i32_49 = arith.constant 0 : i32
    %103 = vector.broadcast %c0_i32_49 : i32 to vector<256x1xi32>
    %104 = arith.cmpi sge, %102, %103 : vector<256x1xi32>
    %c16_i32_50 = arith.constant 16 : i32
    %105 = vector.broadcast %c16_i32_50 : i32 to vector<256x1xi32>
    %106 = arith.cmpi slt, %102, %105 : vector<256x1xi32>
    %107 = arith.andi %104, %106 : vector<256x1xi1>
    %c0_51 = arith.constant 0 : index
    %c2 = arith.constant 2 : index
    %c0_52 = arith.constant 0 : index
    %108 = vector.load %arg1[%c0_51, %c2, %c0_52] : memref<1x324x4xf32, #tpu.memory_space<vmem>>, vector<1x256x4xf32>
    %109 = vector.shape_cast %108 : vector<1x256x4xf32> to vector<256x4xf32>
    %cst_53 = arith.constant 0.000000e+00 : f32
    %110 = vector.broadcast %cst_53 : f32 to vector<256x4xf32>
    %111 = vector.shape_cast %107 : vector<256x1xi1> to vector<256x1xi1>
    %112 = vector.broadcast %111 : vector<256x1xi1> to vector<256x4xi1>
    %113 = arith.select %112, %109, %110 : vector<256x4xi1>, vector<256x4xf32>
    %c0_54 = arith.constant 0 : index
    %c8 = arith.constant 8 : index
    %114 = vector.load %arg4[%c0_54, %c8] : memref<256x100xf32, #tpu.memory_space<vmem>>, vector<256x4xf32>
    tpu.vector_store %arg4[%c0_54, %c8], %113 {strides = array<i32>} : memref<256x100xf32, #tpu.memory_space<vmem>>, vector<256x4xf32>,
    %c0_55 = arith.constant 0 : index
    %c18 = arith.constant 18 : index
    %c0_56 = arith.constant 0 : index
    %115 = vector.load %arg1[%c0_55, %c18, %c0_56] : memref<1x324x4xf32, #tpu.memory_space<vmem>>, vector<1x256x4xf32>
    %116 = vector.shape_cast %115 : vector<1x256x4xf32> to vector<256x4xf32>
    %cst_57 = arith.constant 0.000000e+00 : f32
    %117 = vector.broadcast %cst_57 : f32 to vector<256x4xf32>
    %118 = vector.shape_cast %107 : vector<256x1xi1> to vector<256x1xi1>
    %119 = vector.broadcast %118 : vector<256x1xi1> to vector<256x4xi1>
    %120 = arith.select %119, %116, %117 : vector<256x4xi1>, vector<256x4xf32>
    %c0_58 = arith.constant 0 : index
    %c28 = arith.constant 28 : index
    %121 = vector.load %arg4[%c0_58, %c28] : memref<256x100xf32, #tpu.memory_space<vmem>>, vector<256x4xf32>
    tpu.vector_store %arg4[%c0_58, %c28], %120 {strides = array<i32>} : memref<256x100xf32, #tpu.memory_space<vmem>>, vector<256x4xf32>,
    %c0_59 = arith.constant 0 : index
    %c34 = arith.constant 34 : index
    %c0_60 = arith.constant 0 : index
    %122 = vector.load %arg1[%c0_59, %c34, %c0_60] : memref<1x324x4xf32, #tpu.memory_space<vmem>>, vector<1x256x4xf32>
    %123 = vector.shape_cast %122 : vector<1x256x4xf32> to vector<256x4xf32>
    %cst_61 = arith.constant 0.000000e+00 : f32
    %124 = vector.broadcast %cst_61 : f32 to vector<256x4xf32>
    %125 = vector.shape_cast %107 : vector<256x1xi1> to vector<256x1xi1>
    %126 = vector.broadcast %125 : vector<256x1xi1> to vector<256x4xi1>
    %127 = arith.select %126, %123, %124 : vector<256x4xi1>, vector<256x4xf32>
    %c0_62 = arith.constant 0 : index
    %c48_63 = arith.constant 48 : index
    %128 = vector.load %arg4[%c0_62, %c48_63] : memref<256x100xf32, #tpu.memory_space<vmem>>, vector<256x4xf32>
    tpu.vector_store %arg4[%c0_62, %c48_63], %127 {strides = array<i32>} : memref<256x100xf32, #tpu.memory_space<vmem>>, vector<256x4xf32>,
    %c0_64 = arith.constant 0 : index
    %c50 = arith.constant 50 : index
    %c0_65 = arith.constant 0 : index
    %129 = vector.load %arg1[%c0_64, %c50, %c0_65] : memref<1x324x4xf32, #tpu.memory_space<vmem>>, vector<1x256x4xf32>
    %130 = vector.shape_cast %129 : vector<1x256x4xf32> to vector<256x4xf32>
    %cst_66 = arith.constant 0.000000e+00 : f32
    %131 = vector.broadcast %cst_66 : f32 to vector<256x4xf32>
    %132 = vector.shape_cast %107 : vector<256x1xi1> to vector<256x1xi1>
    %133 = vector.broadcast %132 : vector<256x1xi1> to vector<256x4xi1>
    %134 = arith.select %133, %130, %131 : vector<256x4xi1>, vector<256x4xf32>
    %c0_67 = arith.constant 0 : index
    %c68 = arith.constant 68 : index
    %135 = vector.load %arg4[%c0_67, %c68] : memref<256x100xf32, #tpu.memory_space<vmem>>, vector<256x4xf32>
    tpu.vector_store %arg4[%c0_67, %c68], %134 {strides = array<i32>} : memref<256x100xf32, #tpu.memory_space<vmem>>, vector<256x4xf32>,
    %c0_68 = arith.constant 0 : index
    %c66 = arith.constant 66 : index
    %c0_69 = arith.constant 0 : index
    %136 = vector.load %arg1[%c0_68, %c66, %c0_69] : memref<1x324x4xf32, #tpu.memory_space<vmem>>, vector<1x256x4xf32>
    %137 = vector.shape_cast %136 : vector<1x256x4xf32> to vector<256x4xf32>
    %cst_70 = arith.constant 0.000000e+00 : f32
    %138 = vector.broadcast %cst_70 : f32 to vector<256x4xf32>
    %139 = vector.shape_cast %107 : vector<256x1xi1> to vector<256x1xi1>
    %140 = vector.broadcast %139 : vector<256x1xi1> to vector<256x4xi1>
    %141 = arith.select %140, %137, %138 : vector<256x4xi1>, vector<256x4xf32>
    %c0_71 = arith.constant 0 : index
    %c88 = arith.constant 88 : index
    %142 = vector.load %arg4[%c0_71, %c88] : memref<256x100xf32, #tpu.memory_space<vmem>>, vector<256x4xf32>
    tpu.vector_store %arg4[%c0_71, %c88], %141 {strides = array<i32>} : memref<256x100xf32, #tpu.memory_space<vmem>>, vector<256x4xf32>,
    %c1_i32_72 = arith.constant 1 : i32
    %143 = vector.broadcast %c1_i32_72 : i32 to vector<256x1xi32>
    %144 = arith.addi %16, %143 : vector<256x1xi32>
    %c0_i32_73 = arith.constant 0 : i32
    %145 = vector.broadcast %c0_i32_73 : i32 to vector<256x1xi32>
    %146 = arith.cmpi sge, %144, %145 : vector<256x1xi32>
    %c16_i32_74 = arith.constant 16 : i32
    %147 = vector.broadcast %c16_i32_74 : i32 to vector<256x1xi32>
    %148 = arith.cmpi slt, %144, %147 : vector<256x1xi32>
    %149 = arith.andi %146, %148 : vector<256x1xi1>
    %c0_75 = arith.constant 0 : index
    %c3 = arith.constant 3 : index
    %c0_76 = arith.constant 0 : index
    %150 = vector.load %arg1[%c0_75, %c3, %c0_76] : memref<1x324x4xf32, #tpu.memory_space<vmem>>, vector<1x256x4xf32>
    %151 = vector.shape_cast %150 : vector<1x256x4xf32> to vector<256x4xf32>
    %cst_77 = arith.constant 0.000000e+00 : f32
    %152 = vector.broadcast %cst_77 : f32 to vector<256x4xf32>
    %153 = vector.shape_cast %149 : vector<256x1xi1> to vector<256x1xi1>
    %154 = vector.broadcast %153 : vector<256x1xi1> to vector<256x4xi1>
    %155 = arith.select %154, %151, %152 : vector<256x4xi1>, vector<256x4xf32>
    %c0_78 = arith.constant 0 : index
    %c12 = arith.constant 12 : index
    %156 = vector.load %arg4[%c0_78, %c12] : memref<256x100xf32, #tpu.memory_space<vmem>>, vector<256x4xf32>
    tpu.vector_store %arg4[%c0_78, %c12], %155 {strides = array<i32>} : memref<256x100xf32, #tpu.memory_space<vmem>>, vector<256x4xf32>,
    %c0_79 = arith.constant 0 : index
    %c19 = arith.constant 19 : index
    %c0_80 = arith.constant 0 : index
    %157 = vector.load %arg1[%c0_79, %c19, %c0_80] : memref<1x324x4xf32, #tpu.memory_space<vmem>>, vector<1x256x4xf32>
    %158 = vector.shape_cast %157 : vector<1x256x4xf32> to vector<256x4xf32>
    %cst_81 = arith.constant 0.000000e+00 : f32
    %159 = vector.broadcast %cst_81 : f32 to vector<256x4xf32>
    %160 = vector.shape_cast %149 : vector<256x1xi1> to vector<256x1xi1>
    %161 = vector.broadcast %160 : vector<256x1xi1> to vector<256x4xi1>
    %162 = arith.select %161, %158, %159 : vector<256x4xi1>, vector<256x4xf32>
    %c0_82 = arith.constant 0 : index
    %c32_83 = arith.constant 32 : index
    %163 = vector.load %arg4[%c0_82, %c32_83] : memref<256x100xf32, #tpu.memory_space<vmem>>, vector<256x4xf32>
    tpu.vector_store %arg4[%c0_82, %c32_83], %162 {strides = array<i32>} : memref<256x100xf32, #tpu.memory_space<vmem>>, vector<256x4xf32>,
    %c0_84 = arith.constant 0 : index
    %c35 = arith.constant 35 : index
    %c0_85 = arith.constant 0 : index
    %164 = vector.load %arg1[%c0_84, %c35, %c0_85] : memref<1x324x4xf32, #tpu.memory_space<vmem>>, vector<1x256x4xf32>
    %165 = vector.shape_cast %164 : vector<1x256x4xf32> to vector<256x4xf32>
    %cst_86 = arith.constant 0.000000e+00 : f32
    %166 = vector.broadcast %cst_86 : f32 to vector<256x4xf32>
    %167 = vector.shape_cast %149 : vector<256x1xi1> to vector<256x1xi1>
    %168 = vector.broadcast %167 : vector<256x1xi1> to vector<256x4xi1>
    %169 = arith.select %168, %165, %166 : vector<256x4xi1>, vector<256x4xf32>
    %c0_87 = arith.constant 0 : index
    %c52 = arith.constant 52 : index
    %170 = vector.load %arg4[%c0_87, %c52] : memref<256x100xf32, #tpu.memory_space<vmem>>, vector<256x4xf32>
    tpu.vector_store %arg4[%c0_87, %c52], %169 {strides = array<i32>} : memref<256x100xf32, #tpu.memory_space<vmem>>, vector<256x4xf32>,
    %c0_88 = arith.constant 0 : index
    %c51 = arith.constant 51 : index
    %c0_89 = arith.constant 0 : index
    %171 = vector.load %arg1[%c0_88, %c51, %c0_89] : memref<1x324x4xf32, #tpu.memory_space<vmem>>, vector<1x256x4xf32>
    %172 = vector.shape_cast %171 : vector<1x256x4xf32> to vector<256x4xf32>
    %cst_90 = arith.constant 0.000000e+00 : f32
    %173 = vector.broadcast %cst_90 : f32 to vector<256x4xf32>
    %174 = vector.shape_cast %149 : vector<256x1xi1> to vector<256x1xi1>
    %175 = vector.broadcast %174 : vector<256x1xi1> to vector<256x4xi1>
    %176 = arith.select %175, %172, %173 : vector<256x4xi1>, vector<256x4xf32>
    %c0_91 = arith.constant 0 : index
    %c72 = arith.constant 72 : index
    %177 = vector.load %arg4[%c0_91, %c72] : memref<256x100xf32, #tpu.memory_space<vmem>>, vector<256x4xf32>
    tpu.vector_store %arg4[%c0_91, %c72], %176 {strides = array<i32>} : memref<256x100xf32, #tpu.memory_space<vmem>>, vector<256x4xf32>,
    %c0_92 = arith.constant 0 : index
    %c67 = arith.constant 67 : index
    %c0_93 = arith.constant 0 : index
    %178 = vector.load %arg1[%c0_92, %c67, %c0_93] : memref<1x324x4xf32, #tpu.memory_space<vmem>>, vector<1x256x4xf32>
    %179 = vector.shape_cast %178 : vector<1x256x4xf32> to vector<256x4xf32>
    %cst_94 = arith.constant 0.000000e+00 : f32
    %180 = vector.broadcast %cst_94 : f32 to vector<256x4xf32>
    %181 = vector.shape_cast %149 : vector<256x1xi1> to vector<256x1xi1>
    %182 = vector.broadcast %181 : vector<256x1xi1> to vector<256x4xi1>
    %183 = arith.select %182, %179, %180 : vector<256x4xi1>, vector<256x4xf32>
    %c0_95 = arith.constant 0 : index
    %c92 = arith.constant 92 : index
    %184 = vector.load %arg4[%c0_95, %c92] : memref<256x100xf32, #tpu.memory_space<vmem>>, vector<256x4xf32>
    tpu.vector_store %arg4[%c0_95, %c92], %183 {strides = array<i32>} : memref<256x100xf32, #tpu.memory_space<vmem>>, vector<256x4xf32>,
    %c2_i32 = arith.constant 2 : i32
    %185 = vector.broadcast %c2_i32 : i32 to vector<256x1xi32>
    %186 = arith.addi %16, %185 : vector<256x1xi32>
    %c0_i32_96 = arith.constant 0 : i32
    %187 = vector.broadcast %c0_i32_96 : i32 to vector<256x1xi32>
    %188 = arith.cmpi sge, %186, %187 : vector<256x1xi32>
    %c16_i32_97 = arith.constant 16 : i32
    %189 = vector.broadcast %c16_i32_97 : i32 to vector<256x1xi32>
    %190 = arith.cmpi slt, %186, %189 : vector<256x1xi32>
    %191 = arith.andi %188, %190 : vector<256x1xi1>
    %c0_98 = arith.constant 0 : index
    %c4_99 = arith.constant 4 : index
    %c0_100 = arith.constant 0 : index
    %192 = vector.load %arg1[%c0_98, %c4_99, %c0_100] : memref<1x324x4xf32, #tpu.memory_space<vmem>>, vector<1x256x4xf32>
    %193 = vector.shape_cast %192 : vector<1x256x4xf32> to vector<256x4xf32>
    %cst_101 = arith.constant 0.000000e+00 : f32
    %194 = vector.broadcast %cst_101 : f32 to vector<256x4xf32>
    %195 = vector.shape_cast %191 : vector<256x1xi1> to vector<256x1xi1>
    %196 = vector.broadcast %195 : vector<256x1xi1> to vector<256x4xi1>
    %197 = arith.select %196, %193, %194 : vector<256x4xi1>, vector<256x4xf32>
    %c0_102 = arith.constant 0 : index
    %c16_103 = arith.constant 16 : index
    %198 = vector.load %arg4[%c0_102, %c16_103] : memref<256x100xf32, #tpu.memory_space<vmem>>, vector<256x4xf32>
    tpu.vector_store %arg4[%c0_102, %c16_103], %197 {strides = array<i32>} : memref<256x100xf32, #tpu.memory_space<vmem>>, vector<256x4xf32>,
    %c0_104 = arith.constant 0 : index
    %c20_105 = arith.constant 20 : index
    %c0_106 = arith.constant 0 : index
    %199 = vector.load %arg1[%c0_104, %c20_105, %c0_106] : memref<1x324x4xf32, #tpu.memory_space<vmem>>, vector<1x256x4xf32>
    %200 = vector.shape_cast %199 : vector<1x256x4xf32> to vector<256x4xf32>
    %cst_107 = arith.constant 0.000000e+00 : f32
    %201 = vector.broadcast %cst_107 : f32 to vector<256x4xf32>
    %202 = vector.shape_cast %191 : vector<256x1xi1> to vector<256x1xi1>
    %203 = vector.broadcast %202 : vector<256x1xi1> to vector<256x4xi1>
    %204 = arith.select %203, %200, %201 : vector<256x4xi1>, vector<256x4xf32>
    %c0_108 = arith.constant 0 : index
    %c36 = arith.constant 36 : index
    %205 = vector.load %arg4[%c0_108, %c36] : memref<256x100xf32, #tpu.memory_space<vmem>>, vector<256x4xf32>
    tpu.vector_store %arg4[%c0_108, %c36], %204 {strides = array<i32>} : memref<256x100xf32, #tpu.memory_space<vmem>>, vector<256x4xf32>,
    %c0_109 = arith.constant 0 : index
    %c36_110 = arith.constant 36 : index
    %c0_111 = arith.constant 0 : index
    %206 = vector.load %arg1[%c0_109, %c36_110, %c0_111] : memref<1x324x4xf32, #tpu.memory_space<vmem>>, vector<1x256x4xf32>
    %207 = vector.shape_cast %206 : vector<1x256x4xf32> to vector<256x4xf32>
    %cst_112 = arith.constant 0.000000e+00 : f32
    %208 = vector.broadcast %cst_112 : f32 to vector<256x4xf32>
    %209 = vector.shape_cast %191 : vector<256x1xi1> to vector<256x1xi1>
    %210 = vector.broadcast %209 : vector<256x1xi1> to vector<256x4xi1>
    %211 = arith.select %210, %207, %208 : vector<256x4xi1>, vector<256x4xf32>
    %c0_113 = arith.constant 0 : index
    %c56 = arith.constant 56 : index
    %212 = vector.load %arg4[%c0_113, %c56] : memref<256x100xf32, #tpu.memory_space<vmem>>, vector<256x4xf32>
    tpu.vector_store %arg4[%c0_113, %c56], %211 {strides = array<i32>} : memref<256x100xf32, #tpu.memory_space<vmem>>, vector<256x4xf32>,
    %c0_114 = arith.constant 0 : index
    %c52_115 = arith.constant 52 : index
    %c0_116 = arith.constant 0 : index
    %213 = vector.load %arg1[%c0_114, %c52_115, %c0_116] : memref<1x324x4xf32, #tpu.memory_space<vmem>>, vector<1x256x4xf32>
    %214 = vector.shape_cast %213 : vector<1x256x4xf32> to vector<256x4xf32>
    %cst_117 = arith.constant 0.000000e+00 : f32
    %215 = vector.broadcast %cst_117 : f32 to vector<256x4xf32>
    %216 = vector.shape_cast %191 : vector<256x1xi1> to vector<256x1xi1>
    %217 = vector.broadcast %216 : vector<256x1xi1> to vector<256x4xi1>
    %218 = arith.select %217, %214, %215 : vector<256x4xi1>, vector<256x4xf32>
    %c0_118 = arith.constant 0 : index
    %c76 = arith.constant 76 : index
    %219 = vector.load %arg4[%c0_118, %c76] : memref<256x100xf32, #tpu.memory_space<vmem>>, vector<256x4xf32>
    tpu.vector_store %arg4[%c0_118, %c76], %218 {strides = array<i32>} : memref<256x100xf32, #tpu.memory_space<vmem>>, vector<256x4xf32>,
    %c0_119 = arith.constant 0 : index
    %c68_120 = arith.constant 68 : index
    %c0_121 = arith.constant 0 : index
    %220 = vector.load %arg1[%c0_119, %c68_120, %c0_121] : memref<1x324x4xf32, #tpu.memory_space<vmem>>, vector<1x256x4xf32>
    %221 = vector.shape_cast %220 : vector<1x256x4xf32> to vector<256x4xf32>
    %cst_122 = arith.constant 0.000000e+00 : f32
    %222 = vector.broadcast %cst_122 : f32 to vector<256x4xf32>
    %223 = vector.shape_cast %191 : vector<256x1xi1> to vector<256x1xi1>
    %224 = vector.broadcast %223 : vector<256x1xi1> to vector<256x4xi1>
    %225 = arith.select %224, %221, %222 : vector<256x4xi1>, vector<256x4xf32>
    %c0_123 = arith.constant 0 : index
    %c96 = arith.constant 96 : index
    %226 = vector.load %arg4[%c0_123, %c96] : memref<256x100xf32, #tpu.memory_space<vmem>>, vector<256x4xf32>
    tpu.vector_store %arg4[%c0_123, %c96], %225 {strides = array<i32>} : memref<256x100xf32, #tpu.memory_space<vmem>>, vector<256x4xf32>,
    %c0_124 = arith.constant 0 : index
    %c0_125 = arith.constant 0 : index
    %227 = vector.load %arg4[%c0_124, %c0_125] : memref<256x100xf32, #tpu.memory_space<vmem>>, vector<256x100xf32>
    %c0_126 = arith.constant 0 : index
    %c0_127 = arith.constant 0 : index
    %228 = vector.load %arg2[%c0_126, %c0_127] : memref<100x100xf32, #tpu.memory_space<vmem>>, vector<100x100xf32>
    %cst_128 = arith.constant dense<0.000000e+00> : vector<256x100xf32>
    %229 = tpu.matmul %227, %228, %cst_128 {dimension_numbers = #tpu.dot_dimension_numbers<[1], [0], [0], [1], [0, 0, 1, 1], [], []>} : vector<256x100xf32>, vector<100x100xf32>, vector<256x100xf32> -> vector<256x100xf32>
    %c0_129 = arith.constant 0 : index
    %c0_130 = arith.constant 0 : index
    %230 = vector.load %arg3[%c0_129, %c0_130] : memref<256x100xf32, #tpu.memory_space<vmem>>, vector<256x100xf32>
    tpu.vector_store %arg3[%c0_129, %c0_130], %229 {strides = array<i32>} : memref<256x100xf32, #tpu.memory_space<vmem>>, vector<256x100xf32>,
    return
  }
  func.func @transform_0(%arg0: i32) -> (i32, i32, i32) {
    %c0_i32 = arith.constant 0 : i32
    %c0_i32_0 = arith.constant 0 : i32
    %c0_i32_1 = arith.constant 0 : i32
    return %arg0, %c0_i32, %c0_i32_0 : i32, i32, i32
  }
  func.func @transform_1(%arg0: i32) -> (i32, i32) {
    %c0_i32 = arith.constant 0 : i32
    %c0_i32_0 = arith.constant 0 : i32
    %c0_i32_1 = arith.constant 0 : i32
    return %c0_i32, %c0_i32_0 : i32, i32
  }
  func.func @transform_2(%arg0: i32) -> (i32, i32) {
    %c0_i32 = arith.constant 0 : i32
    %c0_i32_0 = arith.constant 0 : i32
    return %arg0, %c0_i32 : i32, i32
  }
}

</mosaic_0001>

<llo_original>
// kernel: tpu_custom_call.1
$region0: #{tpu_custom_call.1}
  #allocation0 [shape = 'u32[]', space=smem, size = 0x4, offset = 0x4, fixed_abs, tag = 'smem constant byte address 0x4 - core index']
  #allocation1 [shape = 'u32[144,128]{1,0:T(1,128)}', space=vmem, size = 0x12000, scoped, tag = 'internal scratch']
  #allocation2 [shape = 'f32[256,100]{1,0:T(8,128)}', space=vmem, size = 0x20000, scoped, tag = 'scratch operand']
  %s0 = inlined_call_operand.vmem [shape: f32[2,324,4], index: 0, kind: input, shape index: {}]
  %s1 = inlined_call_operand.vmem [shape: f32[100,100], index: 1, kind: input, shape index: {}]
  %s2 = inlined_call_operand.vmem [shape: f32[512,100], index: 2, kind: output, shape index: {}]
  %s3 = sld [smem:[#allocation0]]
  $region41: #{tpu_custom_call.1} parent=0
    _
  %s5 = ssub.s32 1, %s3
  %s6 = scalar_select 0, %s5, %s3
  loop: start=0, step=1, limit=4
  $region2: #{tpu_custom_call.1} parent=0 // loop_pre_header
    _
  $region3: #{tpu_custom_call.1} parent=0 // loop_header
    %s8 = sphi 0, %s12
    %p9 = scmp.ge.s32.totalorder %s8, 4
    %s18 = sphi 0, %s20
    %s21 = sphi 0, %s18
    %s22 = sphi 0, %s21
    %s38 = sphi 0, %s22
    %s42 = sphi 0, %s42
    %s44 = sphi 0, %s42
    %s45 = sphi 0, %s44
    %s59 = sphi 0, %s45
    %s65 = sphi 0, %s67
    %s68 = sphi 0, %s65
    %s69 = sphi 0, %s68
    %s85 = sphi 0, %s69
  $region4: #{tpu_custom_call.1} parent=0 // loop_header_branch
    %11 = sbr.rel (%p9) target = $region8
  $region5: #{tpu_custom_call.1} parent=0 // loop_body
    %s13 = ssub.s32 %s8, 1
    %s14 = ssub.s32 %s8, 2
    %s15 = sadd.s32 %s8, 1
    %s16 = ssub.s32 %s8, %s15
    %p17 = scmp.eq.s32.totalorder %s16, 0
    %s19 = sadd.s32 %s18, 1
    %s20 = scalar_select %p17, %s18, %s19
    %p23 = pneg %p17
    %p24 = scmp.eq.s32.totalorder %s8, 1
    %p25 = por %p23, %p24
    %p26 = scmp.ne.s32.totalorder %s18, %s21
    %p27 = scmp.eq.s32.totalorder %s8, 0
    %p28 = por %p26, %p27
    %p29 = scmp.ne.s32.totalorder %s18, %s21
    %p30 = scmp.eq.s32.totalorder %s13, 1
    %p31 = por %p29, %p30
    %p32 = scmp.ne.s32.totalorder %s21, %s22
    %p33 = scmp.eq.s32.totalorder %s13, 0
    %p34 = por %p32, %p33
    %p35 = scmp.ne.s32.totalorder %s21, %s22
    %p36 = scmp.eq.s32.totalorder %s14, 1
    %p37 = por %p35, %p36
    %p39 = scmp.ne.s32.totalorder %s22, %s38
    %p40 = scmp.eq.s32.totalorder %s14, 0
    %p41 = por %p39, %p40
    %s43 = sadd.s32 %s42, 1
    %p46 = scmp.eq.s32.totalorder %s8, 1
    %p47 = scmp.ne.s32.totalorder %s42, %s44
    %p48 = scmp.eq.s32.totalorder %s8, 0
    %p49 = por %p47, %p48
    %p50 = scmp.ne.s32.totalorder %s42, %s44
    %p51 = scmp.eq.s32.totalorder %s13, 1
    %p52 = por %p50, %p51
    %p53 = scmp.ne.s32.totalorder %s44, %s45
    %p54 = scmp.eq.s32.totalorder %s13, 0
    %p55 = por %p53, %p54
    %p56 = scmp.ne.s32.totalorder %s44, %s45
    %p57 = scmp.eq.s32.totalorder %s14, 1
    %p58 = por %p56, %p57
    %p60 = scmp.ne.s32.totalorder %s45, %s59
    %p61 = scmp.eq.s32.totalorder %s14, 0
    %p62 = por %p60, %p61
    %s63 = ssub.s32 %s8, %s15
    %p64 = scmp.eq.s32.totalorder %s63, 0
    %s66 = sadd.s32 %s65, 1
    %s67 = scalar_select %p64, %s65, %s66
    %p70 = pneg %p64
    %p71 = scmp.eq.s32.totalorder %s8, 1
    %p72 = por %p70, %p71
    %p73 = scmp.ne.s32.totalorder %s65, %s68
    %p74 = scmp.eq.s32.totalorder %s8, 0
    %p75 = por %p73, %p74
    %p76 = scmp.ne.s32.totalorder %s65, %s68
    %p77 = scmp.eq.s32.totalorder %s13, 1
    %p78 = por %p76, %p77
    %p79 = scmp.ne.s32.totalorder %s68, %s69
    %p80 = scmp.eq.s32.totalorder %s13, 0
    %p81 = por %p79, %p80
    %p82 = scmp.ne.s32.totalorder %s68, %s69
    %p83 = scmp.eq.s32.totalorder %s14, 1
    %p84 = por %p82, %p83
    %p86 = scmp.ne.s32.totalorder %s69, %s85
    %p87 = scmp.eq.s32.totalorder %s14, 0
    %p88 = por %p86, %p87
    %p89 = scmp.le.s32.totalorder 1, %s8
    %p90 = scmp.lt.s32.totalorder %s8, 3
    %p91 = pnand %p89, %p90
    %p92 = pneg %p91
    // Predicated region
    $region9: #{tpu_custom_call.1} parent=5 // pred_check
      _
    $region10: #{tpu_custom_call.1} parent=5 // pred_check_branch
      %94 = sbr.rel (%p91) target = $region12
    $region11: #{tpu_custom_call.1} parent=5 // pred_region
      %s95 = ssub.s32 %s8, 1
      // Predicated region
      $region13: #{tpu_custom_call.1} parent=11 // pred_check
        %p96 = pneg %p55
      $region14: #{tpu_custom_call.1} parent=11 // pred_check_branch
        %98 = sbr.rel (%p96) target = $region16
      $region15: #{tpu_custom_call.1} parent=11 // pred_region
        _
      $region16: #{tpu_custom_call.1} parent=11 // pred_fallthru
        _
    $region12: #{tpu_custom_call.1} parent=5 // pred_fallthru
      _
    %p99 = scmp.lt.s32.totalorder %s8, 2
    // Predicated region
    $region17: #{tpu_custom_call.1} parent=5 // pred_check
      %p100 = pneg %p99
    $region18: #{tpu_custom_call.1} parent=5 // pred_check_branch
      %102 = sbr.rel (%p100) target = $region20
    $region19: #{tpu_custom_call.1} parent=5 // pred_region
      // Predicated region
      $region21: #{tpu_custom_call.1} parent=19 // pred_check
        %p103 = pneg %p28
      $region22: #{tpu_custom_call.1} parent=19 // pred_check_branch
        %105 = sbr.rel (%p103) target = $region24
      $region23: #{tpu_custom_call.1} parent=19 // pred_region
        %p106 = scmp.lt.s32.totalorder %s8, 1
        %s107 = scalar_select %p106, %s8, 1
        %s108 = smul.addr %s107, 41
        %s109 = smul.addr %s108, 8
        %s110 = scalar_lea.vmem %s0, %s109
      $region24: #{tpu_custom_call.1} parent=19 // pred_fallthru
        _
    $region20: #{tpu_custom_call.1} parent=5 // pred_fallthru
      _
    %p111 = scmp.le.s32.totalorder 1, %s8
    %p112 = scmp.lt.s32.totalorder %s8, 3
    %p113 = pnand %p111, %p112
    %p114 = pneg %p113
    // Predicated region
    $region25: #{tpu_custom_call.1} parent=5 // pred_check
      _
    $region26: #{tpu_custom_call.1} parent=5 // pred_check_branch
      %116 = sbr.rel (%p113) target = $region28
    $region27: #{tpu_custom_call.1} parent=5 // pred_region
      %s117 = ssub.s32 %s8, 1
      %p118 = scmp.lt.s32.totalorder %s13, 1
      %s119 = scalar_select %p118, %s13, 1
      %s120 = smul.addr %s119, 41
      %s121 = smul.addr %s120, 8
      %s122 = scalar_lea.vmem %s0, %s121
      %p123 = pneg %p34
      %p124 = pneg %p31
      %p125 = pneg %p55
      %p126 = pneg %p52
      %p127 = pneg %p81
      %p128 = pneg %p78
      %s129 = smul.u32 32, %s13
      %p130 = scmp.lt.s32.totalorder %s129, 63
      %s131 = scalar_select %p130, %s129, 63
      %s132 = smul.addr %s131, 8
      %s133 = scalar_lea.vmem %s2, %s132
      %p134 = scmp.lt.s32.totalorder %s13, 1
      %s135 = scalar_select %p134, %s13, 1
      %s136 = smul.addr %s135, 41
      %s137 = smul.addr %s136, 8
      %s138 = scalar_lea.vmem %s0, %s137
      %s139 = smul.u32 32, %s13
      %p140 = scmp.lt.s32.totalorder %s139, 63
      %s141 = scalar_select %p140, %s139, 63
      %s142 = smul.addr %s141, 8
      %s143 = scalar_lea.vmem %s2, %s142
      %s144 = smul.u32 32, %s13
      %v145 = vlaneseq
      %v146 = vshrl.u32 %v145, 7
      %v147 = vadd.s32 %v146, 8
      %v148 = vadd.s32 %v146, 16
      %v149 = vadd.s32 %v146, 24
      %v150 = vadd.s32 %v146, 32
      %v151 = vadd.s32 %v146, 40
      %v152 = vadd.s32 %v146, 48
      %v153 = vadd.s32 %v146, 56
      %v154 = vadd.s32 %v146, 64
      %v155 = vadd.s32 %v146, 72
      %v156 = vadd.s32 %v146, 80
      %v157 = vadd.s32 %v146, 88
      %v158 = vadd.s32 %v146, 96
      %v159 = vadd.s32 %v146, 104
      %v160 = vadd.s32 %v146, 112
      %v161 = vadd.s32 %v146, 120
      %v162 = vadd.s32 %v146, 128
      %v163 = vadd.s32 %v146, 136
      %v164 = vadd.s32 %v146, 144
      %v165 = vadd.s32 %v146, 152
      %v166 = vadd.s32 %v146, 160
      %v167 = vadd.s32 %v146, 168
      %v168 = vadd.s32 %v146, 176
      %v169 = vadd.s32 %v146, 184
      %v170 = vadd.s32 %v146, 192
      %v171 = vadd.s32 %v146, 200
      %v172 = vadd.s32 %v146, 208
      %v173 = vadd.s32 %v146, 216
      %v174 = vadd.s32 %v146, 224
      %v175 = vadd.s32 %v146, 232
      %v176 = vadd.s32 %v146, 240
      %v177 = vadd.s32 %v146, 248
      %vm178 = vcmp.lt.s32.totalorder %v146, 0
      %v179 = vsub.s32 0, %v146
      %v180 = vsel %vm178, %v179, %v146
      %v181 = vshrl.u32 %v180, 4
      %v182 = vand.u32 %v180, 15
      %v183 = vsub.s32 0, %v182
      %v184 = vsel %vm178, %v183, %v182
      %vm185 = vcmp.lt.s32.totalorder %v147, 0
      %v186 = vsub.s32 0, %v147
      %v187 = vsel %vm185, %v186, %v147
      %v188 = vshrl.u32 %v187, 4
      %v189 = vand.u32 %v187, 15
      %v190 = vsub.s32 0, %v189
      %v191 = vsel %vm185, %v190, %v189
      %vm192 = vcmp.lt.s32.totalorder %v148, 0
      %v193 = vsub.s32 0, %v148
      %v194 = vsel %vm192, %v193, %v148
      %v195 = vshrl.u32 %v194, 4
      %v196 = vand.u32 %v194, 15
      %v197 = vsub.s32 0, %v196
      %v198 = vsel %vm192, %v197, %v196
      %vm199 = vcmp.lt.s32.totalorder %v149, 0
      %v200 = vsub.s32 0, %v149
      %v201 = vsel %vm199, %v200, %v149
      %v202 = vshrl.u32 %v201, 4
      %v203 = vand.u32 %v201, 15
      %v204 = vsub.s32 0, %v203
      %v205 = vsel %vm199, %v204, %v203
      %vm206 = vcmp.lt.s32.totalorder %v150, 0
      %v207 = vsub.s32 0, %v150
      %v208 = vsel %vm206, %v207, %v150
      %v209 = vshrl.u32 %v208, 4
      %v210 = vand.u32 %v208, 15
      %v211 = vsub.s32 0, %v210
      %v212 = vsel %vm206, %v211, %v210
      %vm213 = vcmp.lt.s32.totalorder %v151, 0
      %v214 = vsub.s32 0, %v151
      %v215 = vsel %vm213, %v214, %v151
      %v216 = vshrl.u32 %v215, 4
      %v217 = vand.u32 %v215, 15
      %v218 = vsub.s32 0, %v217
      %v219 = vsel %vm213, %v218, %v217
      %vm220 = vcmp.lt.s32.totalorder %v152, 0
      %v221 = vsub.s32 0, %v152
      %v222 = vsel %vm220, %v221, %v152
      %v223 = vshrl.u32 %v222, 4
      %v224 = vand.u32 %v222, 15
      %v225 = vsub.s32 0, %v224
      %v226 = vsel %vm220, %v225, %v224
      %vm227 = vcmp.lt.s32.totalorder %v153, 0
      %v228 = vsub.s32 0, %v153
      %v229 = vsel %vm227, %v228, %v153
      %v230 = vshrl.u32 %v229, 4
      %v231 = vand.u32 %v229, 15
      %v232 = vsub.s32 0, %v231
      %v233 = vsel %vm227, %v232, %v231
      %vm234 = vcmp.lt.s32.totalorder %v154, 0
      %v235 = vsub.s32 0, %v154
      %v236 = vsel %vm234, %v235, %v154
      %v237 = vshrl.u32 %v236, 4
      %v238 = vand.u32 %v236, 15
      %v239 = vsub.s32 0, %v238
      %v240 = vsel %vm234, %v239, %v238
      %vm241 = vcmp.lt.s32.totalorder %v155, 0
      %v242 = vsub.s32 0, %v155
      %v243 = vsel %vm241, %v242, %v155
      %v244 = vshrl.u32 %v243, 4
      %v245 = vand.u32 %v243, 15
      %v246 = vsub.s32 0, %v245
      %v247 = vsel %vm241, %v246, %v245
      %vm248 = vcmp.lt.s32.totalorder %v156, 0
      %v249 = vsub.s32 0, %v156
      %v250 = vsel %vm248, %v249, %v156
      %v251 = vshrl.u32 %v250, 4
      %v252 = vand.u32 %v250, 15
      %v253 = vsub.s32 0, %v252
      %v254 = vsel %vm248, %v253, %v252
      %vm255 = vcmp.lt.s32.totalorder %v157, 0
      %v256 = vsub.s32 0, %v157
      %v257 = vsel %vm255, %v256, %v157
      %v258 = vshrl.u32 %v257, 4
      %v259 = vand.u32 %v257, 15
      %v260 = vsub.s32 0, %v259
      %v261 = vsel %vm255, %v260, %v259
      %vm262 = vcmp.lt.s32.totalorder %v158, 0
      %v263 = vsub.s32 0, %v158
      %v264 = vsel %vm262, %v263, %v158
      %v265 = vshrl.u32 %v264, 4
      %v266 = vand.u32 %v264, 15
      %v267 = vsub.s32 0, %v266
      %v268 = vsel %vm262, %v267, %v266
      %vm269 = vcmp.lt.s32.totalorder %v159, 0
      %v270 = vsub.s32 0, %v159
      %v271 = vsel %vm269, %v270, %v159
      %v272 = vshrl.u32 %v271, 4
      %v273 = vand.u32 %v271, 15
      %v274 = vsub.s32 0, %v273
      %v275 = vsel %vm269, %v274, %v273
      %vm276 = vcmp.lt.s32.totalorder %v160, 0
      %v277 = vsub.s32 0, %v160
      %v278 = vsel %vm276, %v277, %v160
      %v279 = vshrl.u32 %v278, 4
      %v280 = vand.u32 %v278, 15
      %v281 = vsub.s32 0, %v280
      %v282 = vsel %vm276, %v281, %v280
      %vm283 = vcmp.lt.s32.totalorder %v161, 0
      %v284 = vsub.s32 0, %v161
      %v285 = vsel %vm283, %v284, %v161
      %v286 = vshrl.u32 %v285, 4
      %v287 = vand.u32 %v285, 15
      %v288 = vsub.s32 0, %v287
      %v289 = vsel %vm283, %v288, %v287
      %vm290 = vcmp.lt.s32.totalorder %v162, 0
      %v291 = vsub.s32 0, %v162
      %v292 = vsel %vm290, %v291, %v162
      %v293 = vshrl.u32 %v292, 4
      %v294 = vand.u32 %v292, 15
      %v295 = vsub.s32 0, %v294
      %v296 = vsel %vm290, %v295, %v294
      %vm297 = vcmp.lt.s32.totalorder %v163, 0
      %v298 = vsub.s32 0, %v163
      %v299 = vsel %vm297, %v298, %v163
      %v300 = vshrl.u32 %v299, 4
      %v301 = vand.u32 %v299, 15
      %v302 = vsub.s32 0, %v301
      %v303 = vsel %vm297, %v302, %v301
      %vm304 = vcmp.lt.s32.totalorder %v164, 0
      %v305 = vsub.s32 0, %v164
      %v306 = vsel %vm304, %v305, %v164
      %v307 = vshrl.u32 %v306, 4
      %v308 = vand.u32 %v306, 15
      %v309 = vsub.s32 0, %v308
      %v310 = vsel %vm304, %v309, %v308
      %vm311 = vcmp.lt.s32.totalorder %v165, 0
      %v312 = vsub.s32 0, %v165
      %v313 = vsel %vm311, %v312, %v165
      %v314 = vshrl.u32 %v313, 4
      %v315 = vand.u32 %v313, 15
      %v316 = vsub.s32 0, %v315
      %v317 = vsel %vm311, %v316, %v315
      %vm318 = vcmp.lt.s32.totalorder %v166, 0
      %v319 = vsub.s32 0, %v166
      %v320 = vsel %vm318, %v319, %v166
      %v321 = vshrl.u32 %v320, 4
      %v322 = vand.u32 %v320, 15
      %v323 = vsub.s32 0, %v322
      %v324 = vsel %vm318, %v323, %v322
      %vm325 = vcmp.lt.s32.totalorder %v167, 0
      %v326 = vsub.s32 0, %v167
      %v327 = vsel %vm325, %v326, %v167
      %v328 = vshrl.u32 %v327, 4
      %v329 = vand.u32 %v327, 15
      %v330 = vsub.s32 0, %v329
      %v331 = vsel %vm325, %v330, %v329
      %vm332 = vcmp.lt.s32.totalorder %v168, 0
      %v333 = vsub.s32 0, %v168
      %v334 = vsel %vm332, %v333, %v168
      %v335 = vshrl.u32 %v334, 4
      %v336 = vand.u32 %v334, 15
      %v337 = vsub.s32 0, %v336
      %v338 = vsel %vm332, %v337, %v336
      %vm339 = vcmp.lt.s32.totalorder %v169, 0
      %v340 = vsub.s32 0, %v169
      %v341 = vsel %vm339, %v340, %v169
      %v342 = vshrl.u32 %v341, 4
      %v343 = vand.u32 %v341, 15
      %v344 = vsub.s32 0, %v343
      %v345 = vsel %vm339, %v344, %v343
      %vm346 = vcmp.lt.s32.totalorder %v170, 0
      %v347 = vsub.s32 0, %v170
      %v348 = vsel %vm346, %v347, %v170
      %v349 = vshrl.u32 %v348, 4
      %v350 = vand.u32 %v348, 15
      %v351 = vsub.s32 0, %v350
      %v352 = vsel %vm346, %v351, %v350
      %vm353 = vcmp.lt.s32.totalorder %v171, 0
      %v354 = vsub.s32 0, %v171
      %v355 = vsel %vm353, %v354, %v171
      %v356 = vshrl.u32 %v355, 4
      %v357 = vand.u32 %v355, 15
      %v358 = vsub.s32 0, %v357
      %v359 = vsel %vm353, %v358, %v357
      %vm360 = vcmp.lt.s32.totalorder %v172, 0
      %v361 = vsub.s32 0, %v172
      %v362 = vsel %vm360, %v361, %v172
      %v363 = vshrl.u32 %v362, 4
      %v364 = vand.u32 %v362, 15
      %v365 = vsub.s32 0, %v364
      %v366 = vsel %vm360, %v365, %v364
      %vm367 = vcmp.lt.s32.totalorder %v173, 0
      %v368 = vsub.s32 0, %v173
      %v369 = vsel %vm367, %v368, %v173
      %v370 = vshrl.u32 %v369, 4
      %v371 = vand.u32 %v369, 15
      %v372 = vsub.s32 0, %v371
      %v373 = vsel %vm367, %v372, %v371
      %vm374 = vcmp.lt.s32.totalorder %v174, 0
      %v375 = vsub.s32 0, %v174
      %v376 = vsel %vm374, %v375, %v174
      %v377 = vshrl.u32 %v376, 4
      %v378 = vand.u32 %v376, 15
      %v379 = vsub.s32 0, %v378
      %v380 = vsel %vm374, %v379, %v378
      %vm381 = vcmp.lt.s32.totalorder %v175, 0
      %v382 = vsub.s32 0, %v175
      %v383 = vsel %vm381, %v382, %v175
      %v384 = vshrl.u32 %v383, 4
      %v385 = vand.u32 %v383, 15
      %v386 = vsub.s32 0, %v385
      %v387 = vsel %vm381, %v386, %v385
      %vm388 = vcmp.lt.s32.totalorder %v176, 0
      %v389 = vsub.s32 0, %v176
      %v390 = vsel %vm388, %v389, %v176
      %v391 = vshrl.u32 %v390, 4
      %v392 = vand.u32 %v390, 15
      %v393 = vsub.s32 0, %v392
      %v394 = vsel %vm388, %v393, %v392
      %vm395 = vcmp.lt.s32.totalorder %v177, 0
      %v396 = vsub.s32 0, %v177
      %v397 = vsel %vm395, %v396, %v177
      %v398 = vshrl.u32 %v397, 4
      %v399 = vand.u32 %v397, 15
      %v400 = vsub.s32 0, %v399
      %v401 = vsel %vm395, %v400, %v399
      %vm402 = vcmp.ne.s32.totalorder %v184, 0
      %vm403 = vcmp.ne.s32.totalorder %v191, 0
      %vm404 = vcmp.ne.s32.totalorder %v198, 0
      %vm405 = vcmp.ne.s32.totalorder %v205, 0
      %vm406 = vcmp.ne.s32.totalorder %v212, 0
      %vm407 = vcmp.ne.s32.totalorder %v219, 0
      %vm408 = vcmp.ne.s32.totalorder %v226, 0
      %vm409 = vcmp.ne.s32.totalorder %v233, 0
      %vm410 = vcmp.ne.s32.totalorder %v240, 0
      %vm411 = vcmp.ne.s32.totalorder %v247, 0
      %vm412 = vcmp.ne.s32.totalorder %v254, 0
      %vm413 = vcmp.ne.s32.totalorder %v261, 0
      %vm414 = vcmp.ne.s32.totalorder %v268, 0
      %vm415 = vcmp.ne.s32.totalorder %v275, 0
      %vm416 = vcmp.ne.s32.totalorder %v282, 0
      %vm417 = vcmp.ne.s32.totalorder %v289, 0
      %vm418 = vcmp.ne.s32.totalorder %v296, 0
      %vm419 = vcmp.ne.s32.totalorder %v303, 0
      %vm420 = vcmp.ne.s32.totalorder %v310, 0
      %vm421 = vcmp.ne.s32.totalorder %v317, 0
      %vm422 = vcmp.ne.s32.totalorder %v324, 0
      %vm423 = vcmp.ne.s32.totalorder %v331, 0
      %vm424 = vcmp.ne.s32.totalorder %v338, 0
      %vm425 = vcmp.ne.s32.totalorder %v345, 0
      %vm426 = vcmp.ne.s32.totalorder %v352, 0
      %vm427 = vcmp.ne.s32.totalorder %v359, 0
      %vm428 = vcmp.ne.s32.totalorder %v366, 0
      %vm429 = vcmp.ne.s32.totalorder %v373, 0
      %vm430 = vcmp.ne.s32.totalorder %v380, 0
      %vm431 = vcmp.ne.s32.totalorder %v387, 0
      %vm432 = vcmp.ne.s32.totalorder %v394, 0
      %vm433 = vcmp.ne.s32.totalorder %v401, 0
      %vm434 = vcmp.lt.s32.totalorder %v184, 0
      %vm435 = vcmp.lt.s32.totalorder %v191, 0
      %vm436 = vcmp.lt.s32.totalorder %v198, 0
      %vm437 = vcmp.lt.s32.totalorder %v205, 0
      %vm438 = vcmp.lt.s32.totalorder %v212, 0
      %vm439 = vcmp.lt.s32.totalorder %v219, 0
      %vm440 = vcmp.lt.s32.totalorder %v226, 0
      %vm441 = vcmp.lt.s32.totalorder %v233, 0
      %vm442 = vcmp.lt.s32.totalorder %v240, 0
      %vm443 = vcmp.lt.s32.totalorder %v247, 0
      %vm444 = vcmp.lt.s32.totalorder %v254, 0
      %vm445 = vcmp.lt.s32.totalorder %v261, 0
      %vm446 = vcmp.lt.s32.totalorder %v268, 0
      %vm447 = vcmp.lt.s32.totalorder %v275, 0
      %vm448 = vcmp.lt.s32.totalorder %v282, 0
      %vm449 = vcmp.lt.s32.totalorder %v289, 0
      %vm450 = vcmp.lt.s32.totalorder %v296, 0
      %vm451 = vcmp.lt.s32.totalorder %v303, 0
      %vm452 = vcmp.lt.s32.totalorder %v310, 0
      %vm453 = vcmp.lt.s32.totalorder %v317, 0
      %vm454 = vcmp.lt.s32.totalorder %v324, 0
      %vm455 = vcmp.lt.s32.totalorder %v331, 0
      %vm456 = vcmp.lt.s32.totalorder %v338, 0
      %vm457 = vcmp.lt.s32.totalorder %v345, 0
      %vm458 = vcmp.lt.s32.totalorder %v352, 0
      %vm459 = vcmp.lt.s32.totalorder %v359, 0
      %vm460 = vcmp.lt.s32.totalorder %v366, 0
      %vm461 = vcmp.lt.s32.totalorder %v373, 0
      %vm462 = vcmp.lt.s32.totalorder %v380, 0
      %vm463 = vcmp.lt.s32.totalorder %v387, 0
      %vm464 = vcmp.lt.s32.totalorder %v394, 0
      %vm465 = vcmp.lt.s32.totalorder %v401, 0
      %vm466 = vmand %vm434, %vm402
      %vm467 = vmand %vm435, %vm403
      %vm468 = vmand %vm436, %vm404
      %vm469 = vmand %vm437, %vm405
      %vm470 = vmand %vm438, %vm406
      %vm471 = vmand %vm439, %vm407
      %vm472 = vmand %vm440, %vm408
      %vm473 = vmand %vm441, %vm409
      %vm474 = vmand %vm442, %vm410
      %vm475 = vmand %vm443, %vm411
      %vm476 = vmand %vm444, %vm412
      %vm477 = vmand %vm445, %vm413
      %vm478 = vmand %vm446, %vm414
      %vm479 = vmand %vm447, %vm415
      %vm480 = vmand %vm448, %vm416
      %vm481 = vmand %vm449, %vm417
      %vm482 = vmand %vm450, %vm418
      %vm483 = vmand %vm451, %vm419
      %vm484 = vmand %vm452, %vm420
      %vm485 = vmand %vm453, %vm421
      %vm486 = vmand %vm454, %vm422
      %vm487 = vmand %vm455, %vm423
      %vm488 = vmand %vm456, %vm424
      %vm489 = vmand %vm457, %vm425
      %vm490 = vmand %vm458, %vm426
      %vm491 = vmand %vm459, %vm427
      %vm492 = vmand %vm460, %vm428
      %vm493 = vmand %vm461, %vm429
      %vm494 = vmand %vm462, %vm430
      %vm495 = vmand %vm463, %vm431
      %vm496 = vmand %vm464, %vm432
      %vm497 = vmand %vm465, %vm433
      %v498 = vadd.s32 %v184, 16
      %v499 = vadd.s32 %v191, 16
      %v500 = vadd.s32 %v198, 16
      %v501 = vadd.s32 %v205, 16
      %v502 = vadd.s32 %v212, 16
      %v503 = vadd.s32 %v219, 16
      %v504 = vadd.s32 %v226, 16
      %v505 = vadd.s32 %v233, 16
      %v506 = vadd.s32 %v240, 16
      %v507 = vadd.s32 %v247, 16
      %v508 = vadd.s32 %v254, 16
      %v509 = vadd.s32 %v261, 16
      %v510 = vadd.s32 %v268, 16
      %v511 = vadd.s32 %v275, 16
      %v512 = vadd.s32 %v282, 16
      %v513 = vadd.s32 %v289, 16
      %v514 = vadd.s32 %v296, 16
      %v515 = vadd.s32 %v303, 16
      %v516 = vadd.s32 %v310, 16
      %v517 = vadd.s32 %v317, 16
      %v518 = vadd.s32 %v324, 16
      %v519 = vadd.s32 %v331, 16
      %v520 = vadd.s32 %v338, 16
      %v521 = vadd.s32 %v345, 16
      %v522 = vadd.s32 %v352, 16
      %v523 = vadd.s32 %v359, 16
      %v524 = vadd.s32 %v366, 16
      %v525 = vadd.s32 %v373, 16
      %v526 = vadd.s32 %v380, 16
      %v527 = vadd.s32 %v387, 16
      %v528 = vadd.s32 %v394, 16
      %v529 = vadd.s32 %v401, 16
      %v530 = vsel %vm466, %v498, %v184
      %v531 = vsel %vm467, %v499, %v191
      %v532 = vsel %vm468, %v500, %v198
      %v533 = vsel %vm469, %v501, %v205
      %v534 = vsel %vm470, %v502, %v212
      %v535 = vsel %vm471, %v503, %v219
      %v536 = vsel %vm472, %v504, %v226
      %v537 = vsel %vm473, %v505, %v233
      %v538 = vsel %vm474, %v506, %v240
      %v539 = vsel %vm475, %v507, %v247
      %v540 = vsel %vm476, %v508, %v254
      %v541 = vsel %vm477, %v509, %v261
      %v542 = vsel %vm478, %v510, %v268
      %v543 = vsel %vm479, %v511, %v275
      %v544 = vsel %vm480, %v512, %v282
      %v545 = vsel %vm481, %v513, %v289
      %v546 = vsel %vm482, %v514, %v296
      %v547 = vsel %vm483, %v515, %v303
      %v548 = vsel %vm484, %v516, %v310
      %v549 = vsel %vm485, %v517, %v317
      %v550 = vsel %vm486, %v518, %v324
      %v551 = vsel %vm487, %v519, %v331
      %v552 = vsel %vm488, %v520, %v338
      %v553 = vsel %vm489, %v521, %v345
      %v554 = vsel %vm490, %v522, %v352
      %v555 = vsel %vm491, %v523, %v359
      %v556 = vsel %vm492, %v524, %v366
      %v557 = vsel %vm493, %v525, %v373
      %v558 = vsel %vm494, %v526, %v380
      %v559 = vsel %vm495, %v527, %v387
      %v560 = vsel %vm496, %v528, %v394
      %v561 = vsel %vm497, %v529, %v401
      %v562 = vadd.s32 %v530, 4294967294
      %v563 = vadd.s32 %v531, 4294967294
      %v564 = vadd.s32 %v532, 4294967294
      %v565 = vadd.s32 %v533, 4294967294
      %v566 = vadd.s32 %v534, 4294967294
      %v567 = vadd.s32 %v535, 4294967294
      %v568 = vadd.s32 %v536, 4294967294
      %v569 = vadd.s32 %v537, 4294967294
      %v570 = vadd.s32 %v538, 4294967294
      %v571 = vadd.s32 %v539, 4294967294
      %v572 = vadd.s32 %v540, 4294967294
      %v573 = vadd.s32 %v541, 4294967294
      %v574 = vadd.s32 %v542, 4294967294
      %v575 = vadd.s32 %v543, 4294967294
      %v576 = vadd.s32 %v544, 4294967294
      %v577 = vadd.s32 %v545, 4294967294
      %v578 = vadd.s32 %v546, 4294967294
      %v579 = vadd.s32 %v547, 4294967294
      %v580 = vadd.s32 %v548, 4294967294
      %v581 = vadd.s32 %v549, 4294967294
      %v582 = vadd.s32 %v550, 4294967294
      %v583 = vadd.s32 %v551, 4294967294
      %v584 = vadd.s32 %v552, 4294967294
      %v585 = vadd.s32 %v553, 4294967294
      %v586 = vadd.s32 %v554, 4294967294
      %v587 = vadd.s32 %v555, 4294967294
      %v588 = vadd.s32 %v556, 4294967294
      %v589 = vadd.s32 %v557, 4294967294
      %v590 = vadd.s32 %v558, 4294967294
      %v591 = vadd.s32 %v559, 4294967294
      %v592 = vadd.s32 %v560, 4294967294
      %v593 = vadd.s32 %v561, 4294967294
      %vm594 = vcmp.ge.s32.totalorder %v562, 0
      %vm595 = vcmp.ge.s32.totalorder %v563, 0
      %vm596 = vcmp.ge.s32.totalorder %v564, 0
      %vm597 = vcmp.ge.s32.totalorder %v565, 0
      %vm598 = vcmp.ge.s32.totalorder %v566, 0
      %vm599 = vcmp.ge.s32.totalorder %v567, 0
      %vm600 = vcmp.ge.s32.totalorder %v568, 0
      %vm601 = vcmp.ge.s32.totalorder %v569, 0
      %vm602 = vcmp.ge.s32.totalorder %v570, 0
      %vm603 = vcmp.ge.s32.totalorder %v571, 0
      %vm604 = vcmp.ge.s32.totalorder %v572, 0
      %vm605 = vcmp.ge.s32.totalorder %v573, 0
      %vm606 = vcmp.ge.s32.totalorder %v574, 0
      %vm607 = vcmp.ge.s32.totalorder %v575, 0
      %vm608 = vcmp.ge.s32.totalorder %v576, 0
      %vm609 = vcmp.ge.s32.totalorder %v577, 0
      %vm610 = vcmp.ge.s32.totalorder %v578, 0
      %vm611 = vcmp.ge.s32.totalorder %v579, 0
      %vm612 = vcmp.ge.s32.totalorder %v580, 0
      %vm613 = vcmp.ge.s32.totalorder %v581, 0
      %vm614 = vcmp.ge.s32.totalorder %v582, 0
      %vm615 = vcmp.ge.s32.totalorder %v583, 0
      %vm616 = vcmp.ge.s32.totalorder %v584, 0
      %vm617 = vcmp.ge.s32.totalorder %v585, 0
      %vm618 = vcmp.ge.s32.totalorder %v586, 0
      %vm619 = vcmp.ge.s32.totalorder %v587, 0
      %vm620 = vcmp.ge.s32.totalorder %v588, 0
      %vm621 = vcmp.ge.s32.totalorder %v589, 0
      %vm622 = vcmp.ge.s32.totalorder %v590, 0
      %vm623 = vcmp.ge.s32.totalorder %v591, 0
      %vm624 = vcmp.ge.s32.totalorder %v592, 0
      %vm625 = vcmp.ge.s32.totalorder %v593, 0
      %vm626 = vcmp.lt.s32.totalorder %v562, 16
      %vm627 = vcmp.lt.s32.totalorder %v563, 16
      %vm628 = vcmp.lt.s32.totalorder %v564, 16
      %vm629 = vcmp.lt.s32.totalorder %v565, 16
      %vm630 = vcmp.lt.s32.totalorder %v566, 16
      %vm631 = vcmp.lt.s32.totalorder %v567, 16
      %vm632 = vcmp.lt.s32.totalorder %v568, 16
      %vm633 = vcmp.lt.s32.totalorder %v569, 16
      %vm634 = vcmp.lt.s32.totalorder %v570, 16
      %vm635 = vcmp.lt.s32.totalorder %v571, 16
      %vm636 = vcmp.lt.s32.totalorder %v572, 16
      %vm637 = vcmp.lt.s32.totalorder %v573, 16
      %vm638 = vcmp.lt.s32.totalorder %v574, 16
      %vm639 = vcmp.lt.s32.totalorder %v575, 16
      %vm640 = vcmp.lt.s32.totalorder %v576, 16
      %vm641 = vcmp.lt.s32.totalorder %v577, 16
      %vm642 = vcmp.lt.s32.totalorder %v578, 16
      %vm643 = vcmp.lt.s32.totalorder %v579, 16
      %vm644 = vcmp.lt.s32.totalorder %v580, 16
      %vm645 = vcmp.lt.s32.totalorder %v581, 16
      %vm646 = vcmp.lt.s32.totalorder %v582, 16
      %vm647 = vcmp.lt.s32.totalorder %v583, 16
      %vm648 = vcmp.lt.s32.totalorder %v584, 16
      %vm649 = vcmp.lt.s32.totalorder %v585, 16
      %vm650 = vcmp.lt.s32.totalorder %v586, 16
      %vm651 = vcmp.lt.s32.totalorder %v587, 16
      %vm652 = vcmp.lt.s32.totalorder %v588, 16
      %vm653 = vcmp.lt.s32.totalorder %v589, 16
      %vm654 = vcmp.lt.s32.totalorder %v590, 16
      %vm655 = vcmp.lt.s32.totalorder %v591, 16
      %vm656 = vcmp.lt.s32.totalorder %v592, 16
      %vm657 = vcmp.lt.s32.totalorder %v593, 16
      %vm658 = vmand %vm594, %vm626
      %vm659 = vmand %vm595, %vm627
      %vm660 = vmand %vm596, %vm628
      %vm661 = vmand %vm597, %vm629
      %vm662 = vmand %vm598, %vm630
      %vm663 = vmand %vm599, %vm631
      %vm664 = vmand %vm600, %vm632
      %vm665 = vmand %vm601, %vm633
      %vm666 = vmand %vm602, %vm634
      %vm667 = vmand %vm603, %vm635
      %vm668 = vmand %vm604, %vm636
      %vm669 = vmand %vm605, %vm637
      %vm670 = vmand %vm606, %vm638
      %vm671 = vmand %vm607, %vm639
      %vm672 = vmand %vm608, %vm640
      %vm673 = vmand %vm609, %vm641
      %vm674 = vmand %vm610, %vm642
      %vm675 = vmand %vm611, %vm643
      %vm676 = vmand %vm612, %vm644
      %vm677 = vmand %vm613, %vm645
      %vm678 = vmand %vm614, %vm646
      %vm679 = vmand %vm615, %vm647
      %vm680 = vmand %vm616, %vm648
      %vm681 = vmand %vm617, %vm649
      %vm682 = vmand %vm618, %vm650
      %vm683 = vmand %vm619, %vm651
      %vm684 = vmand %vm620, %vm652
      %vm685 = vmand %vm621, %vm653
      %vm686 = vmand %vm622, %vm654
      %vm687 = vmand %vm623, %vm655
      %vm688 = vmand %vm624, %vm656
      %vm689 = vmand %vm625, %vm657
      %v690 = vld [vmem:[%s138] sm:$0xff]
      %v691 = vld [vmem:[%s138 + $0x8] sm:$0xff]
      %v692 = vld [vmem:[%s138 + $0x10] sm:$0xff]
      %v693 = vld [vmem:[%s138 + $0x18] sm:$0xff]
      %v694 = vld [vmem:[%s138 + $0x20] sm:$0xff]
      %v695 = vld [vmem:[%s138 + $0x28] sm:$0xff]
      %v696 = vld [vmem:[%s138 + $0x30] sm:$0xff]
      %v697 = vld [vmem:[%s138 + $0x38] sm:$0xff]
      %v698 = vld [vmem:[%s138 + $0x40] sm:$0xff]
      %v699 = vld [vmem:[%s138 + $0x48] sm:$0xff]
      %v700 = vld [vmem:[%s138 + $0x50] sm:$0xff]
      %v701 = vld [vmem:[%s138 + $0x58] sm:$0xff]
      %v702 = vld [vmem:[%s138 + $0x60] sm:$0xff]
      %v703 = vld [vmem:[%s138 + $0x68] sm:$0xff]
      %v704 = vld [vmem:[%s138 + $0x70] sm:$0xff]
      %v705 = vld [vmem:[%s138 + $0x78] sm:$0xff]
      %v706 = vld [vmem:[%s138 + $0x80] sm:$0xff]
      %v707 = vld [vmem:[%s138 + $0x88] sm:$0xff]
      %v708 = vld [vmem:[%s138 + $0x90] sm:$0xff]
      %v709 = vld [vmem:[%s138 + $0x98] sm:$0xff]
      %v710 = vld [vmem:[%s138 + $0xa0] sm:$0xff]
      %v711 = vld [vmem:[%s138 + $0xa8] sm:$0xff]
      %v712 = vld [vmem:[%s138 + $0xb0] sm:$0xff]
      %v713 = vld [vmem:[%s138 + $0xb8] sm:$0xff]
      %v714 = vld [vmem:[%s138 + $0xc0] sm:$0xff]
      %v715 = vld [vmem:[%s138 + $0xc8] sm:$0xff]
      %v716 = vld [vmem:[%s138 + $0xd0] sm:$0xff]
      %v717 = vld [vmem:[%s138 + $0xd8] sm:$0xff]
      %v718 = vld [vmem:[%s138 + $0xe0] sm:$0xff]
      %v719 = vld [vmem:[%s138 + $0xe8] sm:$0xff]
      %v720 = vld [vmem:[%s138 + $0xf0] sm:$0xff]
      %v721 = vld [vmem:[%s138 + $0xf8] sm:$0xff]
      %v722 = vsel %vm658, 1, 0
      %v723 = vsel %vm659, 1, 0
      %v724 = vsel %vm660, 1, 0
      %v725 = vsel %vm661, 1, 0
      %v726 = vsel %vm662, 1, 0
      %v727 = vsel %vm663, 1, 0
      %v728 = vsel %vm664, 1, 0
      %v729 = vsel %vm665, 1, 0
      %v730 = vsel %vm666, 1, 0
      %v731 = vsel %vm667, 1, 0
      %v732 = vsel %vm668, 1, 0
      %v733 = vsel %vm669, 1, 0
      %v734 = vsel %vm670, 1, 0
      %v735 = vsel %vm671, 1, 0
      %v736 = vsel %vm672, 1, 0
      %v737 = vsel %vm673, 1, 0
      %v738 = vsel %vm674, 1, 0
      %v739 = vsel %vm675, 1, 0
      %v740 = vsel %vm676, 1, 0
      %v741 = vsel %vm677, 1, 0
      %v742 = vsel %vm678, 1, 0
      %v743 = vsel %vm679, 1, 0
      %v744 = vsel %vm680, 1, 0
      %v745 = vsel %vm681, 1, 0
      %v746 = vsel %vm682, 1, 0
      %v747 = vsel %vm683, 1, 0
      %v748 = vsel %vm684, 1, 0
      %v749 = vsel %vm685, 1, 0
      %v750 = vsel %vm686, 1, 0
      %v751 = vsel %vm687, 1, 0
      %v752 = vsel %vm688, 1, 0
      %v753 = vsel %vm689, 1, 0
      %vm754 = vcmp.eq.s32.totalorder %v722, 1
      %vm755 = vcmp.eq.s32.totalorder %v723, 1
      %vm756 = vcmp.eq.s32.totalorder %v724, 1
      %vm757 = vcmp.eq.s32.totalorder %v725, 1
      %vm758 = vcmp.eq.s32.totalorder %v726, 1
      %vm759 = vcmp.eq.s32.totalorder %v727, 1
      %vm760 = vcmp.eq.s32.totalorder %v728, 1
      %vm761 = vcmp.eq.s32.totalorder %v729, 1
      %vm762 = vcmp.eq.s32.totalorder %v730, 1
      %vm763 = vcmp.eq.s32.totalorder %v731, 1
      %vm764 = vcmp.eq.s32.totalorder %v732, 1
      %vm765 = vcmp.eq.s32.totalorder %v733, 1
      %vm766 = vcmp.eq.s32.totalorder %v734, 1
      %vm767 = vcmp.eq.s32.totalorder %v735, 1
      %vm768 = vcmp.eq.s32.totalorder %v736, 1
      %vm769 = vcmp.eq.s32.totalorder %v737, 1
      %vm770 = vcmp.eq.s32.totalorder %v738, 1
      %vm771 = vcmp.eq.s32.totalorder %v739, 1
      %vm772 = vcmp.eq.s32.totalorder %v740, 1
      %vm773 = vcmp.eq.s32.totalorder %v741, 1
      %vm774 = vcmp.eq.s32.totalorder %v742, 1
      %vm775 = vcmp.eq.s32.totalorder %v743, 1
      %vm776 = vcmp.eq.s32.totalorder %v744, 1
      %vm777 = vcmp.eq.s32.totalorder %v745, 1
      %vm778 = vcmp.eq.s32.totalorder %v746, 1
      %vm779 = vcmp.eq.s32.totalorder %v747, 1
      %vm780 = vcmp.eq.s32.totalorder %v748, 1
      %vm781 = vcmp.eq.s32.totalorder %v749, 1
      %vm782 = vcmp.eq.s32.totalorder %v750, 1
      %vm783 = vcmp.eq.s32.totalorder %v751, 1
      %vm784 = vcmp.eq.s32.totalorder %v752, 1
      %vm785 = vcmp.eq.s32.totalorder %v753, 1
      %v786 = vsel %vm754, %v690, 0.0
      %v787 = vsel %vm755, %v691, 0.0
      %v788 = vsel %vm756, %v692, 0.0
      %v789 = vsel %vm757, %v693, 0.0
      %v790 = vsel %vm758, %v694, 0.0
      %v791 = vsel %vm759, %v695, 0.0
      %v792 = vsel %vm760, %v696, 0.0
      %v793 = vsel %vm761, %v697, 0.0
      %v794 = vsel %vm762, %v698, 0.0
      %v795 = vsel %vm763, %v699, 0.0
      %v796 = vsel %vm764, %v700, 0.0
      %v797 = vsel %vm765, %v701, 0.0
      %v798 = vsel %vm766, %v702, 0.0
      %v799 = vsel %vm767, %v703, 0.0
      %v800 = vsel %vm768, %v704, 0.0
      %v801 = vsel %vm769, %v705, 0.0
      %v802 = vsel %vm770, %v706, 0.0
      %v803 = vsel %vm771, %v707, 0.0
      %v804 = vsel %vm772, %v708, 0.0
      %v805 = vsel %vm773, %v709, 0.0
      %v806 = vsel %vm774, %v710, 0.0
      %v807 = vsel %vm775, %v711, 0.0
      %v808 = vsel %vm776, %v712, 0.0
      %v809 = vsel %vm777, %v713, 0.0
      %v810 = vsel %vm778, %v714, 0.0
      %v811 = vsel %vm779, %v715, 0.0
      %v812 = vsel %vm780, %v716, 0.0
      %v813 = vsel %vm781, %v717, 0.0
      %v814 = vsel %vm782, %v718, 0.0
      %v815 = vsel %vm783, %v719, 0.0
      %v816 = vsel %vm784, %v720, 0.0
      %v817 = vsel %vm785, %v721, 0.0
      %vm818 = vcmask 31744
      %819 = vst.msk [vmem:[#allocation2] sm:$0xff] %vm818, %v786
      %820 = vst.msk [vmem:[#allocation2 + $0x8] sm:$0xff] %vm818, %v787
      %821 = vst.msk [vmem:[#allocation2 + $0x10] sm:$0xff] %vm818, %v788
      %822 = vst.msk [vmem:[#allocation2 + $0x18] sm:$0xff] %vm818, %v789
      %823 = vst.msk [vmem:[#allocation2 + $0x20] sm:$0xff] %vm818, %v790
      %824 = vst.msk [vmem:[#allocation2 + $0x28] sm:$0xff] %vm818, %v791
      %825 = vst.msk [vmem:[#allocation2 + $0x30] sm:$0xff] %vm818, %v792
      %826 = vst.msk [vmem:[#allocation2 + $0x38] sm:$0xff] %vm818, %v793
      %827 = vst.msk [vmem:[#allocation2 + $0x40] sm:$0xff] %vm818, %v794
      %828 = vst.msk [vmem:[#allocation2 + $0x48] sm:$0xff] %vm818, %v795
      %829 = vst.msk [vmem:[#allocation2 + $0x50] sm:$0xff] %vm818, %v796
      %830 = vst.msk [vmem:[#allocation2 + $0x58] sm:$0xff] %vm818, %v797
      %831 = vst.msk [vmem:[#allocation2 + $0x60] sm:$0xff] %vm818, %v798
      %832 = vst.msk [vmem:[#allocation2 + $0x68] sm:$0xff] %vm818, %v799
      %833 = vst.msk [vmem:[#allocation2 + $0x70] sm:$0xff] %vm818, %v800
      %834 = vst.msk [vmem:[#allocation2 + $0x78] sm:$0xff] %vm818, %v801
      %835 = vst.msk [vmem:[#allocation2 + $0x80] sm:$0xff] %vm818, %v802
      %836 = vst.msk [vmem:[#allocation2 + $0x88] sm:$0xff] %vm818, %v803
      %837 = vst.msk [vmem:[#allocation2 + $0x90] sm:$0xff] %vm818, %v804
      %838 = vst.msk [vmem:[#allocation2 + $0x98] sm:$0xff] %vm818, %v805
      %839 = vst.msk [vmem:[#allocation2 + $0xa0] sm:$0xff] %vm818, %v806
      %840 = vst.msk [vmem:[#allocation2 + $0xa8] sm:$0xff] %vm818, %v807
      %841 = vst.msk [vmem:[#allocation2 + $0xb0] sm:$0xff] %vm818, %v808
      %842 = vst.msk [vmem:[#allocation2 + $0xb8] sm:$0xff] %vm818, %v809
      %843 = vst.msk [vmem:[#allocation2 + $0xc0] sm:$0xff] %vm818, %v810
      %844 = vst.msk [vmem:[#allocation2 + $0xc8] sm:$0xff] %vm818, %v811
      %845 = vst.msk [vmem:[#allocation2 + $0xd0] sm:$0xff] %vm818, %v812
      %846 = vst.msk [vmem:[#allocation2 + $0xd8] sm:$0xff] %vm818, %v813
      %847 = vst.msk [vmem:[#allocation2 + $0xe0] sm:$0xff] %vm818, %v814
      %848 = vst.msk [vmem:[#allocation2 + $0xe8] sm:$0xff] %vm818, %v815
      %849 = vst.msk [vmem:[#allocation2 + $0xf0] sm:$0xff] %vm818, %v816
      %850 = vst.msk [vmem:[#allocation2 + $0xf8] sm:$0xff] %vm818, %v817
      %v851 = vld [vmem:[%s138 + $0x10] sm:$0xff]
      %v852 = vld [vmem:[%s138 + $0x18] sm:$0xff]
      %v853 = vld [vmem:[%s138 + $0x20] sm:$0xff]
      %v854 = vld [vmem:[%s138 + $0x28] sm:$0xff]
      %v855 = vld [vmem:[%s138 + $0x30] sm:$0xff]
      %v856 = vld [vmem:[%s138 + $0x38] sm:$0xff]
      %v857 = vld [vmem:[%s138 + $0x40] sm:$0xff]
      %v858 = vld [vmem:[%s138 + $0x48] sm:$0xff]
      %v859 = vld [vmem:[%s138 + $0x50] sm:$0xff]
      %v860 = vld [vmem:[%s138 + $0x58] sm:$0xff]
      %v861 = vld [vmem:[%s138 + $0x60] sm:$0xff]
      %v862 = vld [vmem:[%s138 + $0x68] sm:$0xff]
      %v863 = vld [vmem:[%s138 + $0x70] sm:$0xff]
      %v864 = vld [vmem:[%s138 + $0x78] sm:$0xff]
      %v865 = vld [vmem:[%s138 + $0x80] sm:$0xff]
      %v866 = vld [vmem:[%s138 + $0x88] sm:$0xff]
      %v867 = vld [vmem:[%s138 + $0x90] sm:$0xff]
      %v868 = vld [vmem:[%s138 + $0x98] sm:$0xff]
      %v869 = vld [vmem:[%s138 + $0xa0] sm:$0xff]
      %v870 = vld [vmem:[%s138 + $0xa8] sm:$0xff]
      %v871 = vld [vmem:[%s138 + $0xb0] sm:$0xff]
      %v872 = vld [vmem:[%s138 + $0xb8] sm:$0xff]
      %v873 = vld [vmem:[%s138 + $0xc0] sm:$0xff]
      %v874 = vld [vmem:[%s138 + $0xc8] sm:$0xff]
      %v875 = vld [vmem:[%s138 + $0xd0] sm:$0xff]
      %v876 = vld [vmem:[%s138 + $0xd8] sm:$0xff]
      %v877 = vld [vmem:[%s138 + $0xe0] sm:$0xff]
      %v878 = vld [vmem:[%s138 + $0xe8] sm:$0xff]
      %v879 = vld [vmem:[%s138 + $0xf0] sm:$0xff]
      %v880 = vld [vmem:[%s138 + $0xf8] sm:$0xff]
      %v881 = vld [vmem:[%s138 + $0x100] sm:$0xff]
      %v882 = vld [vmem:[%s138 + $0x108] sm:$0xff]
      %v883 = vsel %vm754, %v851, 0.0
      %v884 = vsel %vm755, %v852, 0.0
      %v885 = vsel %vm756, %v853, 0.0
      %v886 = vsel %vm757, %v854, 0.0
      %v887 = vsel %vm758, %v855, 0.0
      %v888 = vsel %vm759, %v856, 0.0
      %v889 = vsel %vm760, %v857, 0.0
      %v890 = vsel %vm761, %v858, 0.0
      %v891 = vsel %vm762, %v859, 0.0
      %v892 = vsel %vm763, %v860, 0.0
      %v893 = vsel %vm764, %v861, 0.0
      %v894 = vsel %vm765, %v862, 0.0
      %v895 = vsel %vm766, %v863, 0.0
      %v896 = vsel %vm767, %v864, 0.0
      %v897 = vsel %vm768, %v865, 0.0
      %v898 = vsel %vm769, %v866, 0.0
      %v899 = vsel %vm770, %v867, 0.0
      %v900 = vsel %vm771, %v868, 0.0
      %v901 = vsel %vm772, %v869, 0.0
      %v902 = vsel %vm773, %v870, 0.0
      %v903 = vsel %vm774, %v871, 0.0
      %v904 = vsel %vm775, %v872, 0.0
      %v905 = vsel %vm776, %v873, 0.0
      %v906 = vsel %vm777, %v874, 0.0
      %v907 = vsel %vm778, %v875, 0.0
      %v908 = vsel %vm779, %v876, 0.0
      %v909 = vsel %vm780, %v877, 0.0
      %v910 = vsel %vm781, %v878, 0.0
      %v911 = vsel %vm782, %v879, 0.0
      %v912 = vsel %vm783, %v880, 0.0
      %v913 = vsel %vm784, %v881, 0.0
      %v914 = vsel %vm785, %v882, 0.0
      %947 = vrot.lane.b32.xlu0 %v883, 20
      %v948 = vpop.permute.xlu0 %947
      %949 = vrot.lane.b32.xlu0 %v884, 20
      %v950 = vpop.permute.xlu0 %949
      %951 = vrot.lane.b32.xlu0 %v885, 20
      %v952 = vpop.permute.xlu0 %951
      %953 = vrot.lane.b32.xlu0 %v886, 20
      %v954 = vpop.permute.xlu0 %953
      %955 = vrot.lane.b32.xlu0 %v887, 20
      %v956 = vpop.permute.xlu0 %955
      %957 = vrot.lane.b32.xlu0 %v888, 20
      %v958 = vpop.permute.xlu0 %957
      %959 = vrot.lane.b32.xlu0 %v889, 20
      %v960 = vpop.permute.xlu0 %959
      %961 = vrot.lane.b32.xlu0 %v890, 20
      %v962 = vpop.permute.xlu0 %961
      %963 = vrot.lane.b32.xlu0 %v891, 20
      %v964 = vpop.permute.xlu0 %963
      %965 = vrot.lane.b32.xlu0 %v892, 20
      %v966 = vpop.permute.xlu0 %965
      %967 = vrot.lane.b32.xlu0 %v893, 20
      %v968 = vpop.permute.xlu0 %967
      %969 = vrot.lane.b32.xlu0 %v894, 20
      %v970 = vpop.permute.xlu0 %969
      %971 = vrot.lane.b32.xlu0 %v895, 20
      %v972 = vpop.permute.xlu0 %971
      %973 = vrot.lane.b32.xlu0 %v896, 20
      %v974 = vpop.permute.xlu0 %973
      %975 = vrot.lane.b32.xlu0 %v897, 20
      %v976 = vpop.permute.xlu0 %975
      %977 = vrot.lane.b32.xlu0 %v898, 20
      %v978 = vpop.permute.xlu0 %977
      %979 = vrot.lane.b32.xlu0 %v899, 20
      %v980 = vpop.permute.xlu0 %979
      %981 = vrot.lane.b32.xlu0 %v900, 20
      %v982 = vpop.permute.xlu0 %981
      %983 = vrot.lane.b32.xlu0 %v901, 20
      %v984 = vpop.permute.xlu0 %983
      %985 = vrot.lane.b32.xlu0 %v902, 20
      %v986 = vpop.permute.xlu0 %985
      %987 = vrot.lane.b32.xlu0 %v903, 20
      %v988 = vpop.permute.xlu0 %987
      %989 = vrot.lane.b32.xlu0 %v904, 20
      %v990 = vpop.permute.xlu0 %989
      %991 = vrot.lane.b32.xlu0 %v905, 20
      %v992 = vpop.permute.xlu0 %991
      %993 = vrot.lane.b32.xlu0 %v906, 20
      %v994 = vpop.permute.xlu0 %993
      %995 = vrot.lane.b32.xlu0 %v907, 20
      %v996 = vpop.permute.xlu0 %995
      %997 = vrot.lane.b32.xlu0 %v908, 20
      %v998 = vpop.permute.xlu0 %997
      %999 = vrot.lane.b32.xlu0 %v909, 20
      %v1000 = vpop.permute.xlu0 %999
      %1001 = vrot.lane.b32.xlu0 %v910, 20
      %v1002 = vpop.permute.xlu0 %1001
      %1003 = vrot.lane.b32.xlu0 %v911, 20
      %v1004 = vpop.permute.xlu0 %1003
      %1005 = vrot.lane.b32.xlu0 %v912, 20
      %v1006 = vpop.permute.xlu0 %1005
      %1007 = vrot.lane.b32.xlu0 %v913, 20
      %v1008 = vpop.permute.xlu0 %1007
      %1009 = vrot.lane.b32.xlu0 %v914, 20
      %v1010 = vpop.permute.xlu0 %1009
      %vm1043 = vcmask 195744
      %1044 = vst.msk [vmem:[#allocation2] sm:$0xff] %vm1043, %v948
      %1045 = vst.msk [vmem:[#allocation2 + $0x8] sm:$0xff] %vm1043, %v950
      %1046 = vst.msk [vmem:[#allocation2 + $0x10] sm:$0xff] %vm1043, %v952
      %1047 = vst.msk [vmem:[#allocation2 + $0x18] sm:$0xff] %vm1043, %v954
      %1048 = vst.msk [vmem:[#allocation2 + $0x20] sm:$0xff] %vm1043, %v956
      %1049 = vst.msk [vmem:[#allocation2 + $0x28] sm:$0xff] %vm1043, %v958
      %1050 = vst.msk [vmem:[#allocation2 + $0x30] sm:$0xff] %vm1043, %v960
      %1051 = vst.msk [vmem:[#allocation2 + $0x38] sm:$0xff] %vm1043, %v962
      %1052 = vst.msk [vmem:[#allocation2 + $0x40] sm:$0xff] %vm1043, %v964
      %1053 = vst.msk [vmem:[#allocation2 + $0x48] sm:$0xff] %vm1043, %v966
      %1054 = vst.msk [vmem:[#allocation2 + $0x50] sm:$0xff] %vm1043, %v968
      %1055 = vst.msk [vmem:[#allocation2 + $0x58] sm:$0xff] %vm1043, %v970
      %1056 = vst.msk [vmem:[#allocation2 + $0x60] sm:$0xff] %vm1043, %v972
      %1057 = vst.msk [vmem:[#allocation2 + $0x68] sm:$0xff] %vm1043, %v974
      %1058 = vst.msk [vmem:[#allocation2 + $0x70] sm:$0xff] %vm1043, %v976
      %1059 = vst.msk [vmem:[#allocation2 + $0x78] sm:$0xff] %vm1043, %v978
      %1060 = vst.msk [vmem:[#allocation2 + $0x80] sm:$0xff] %vm1043, %v980
      %1061 = vst.msk [vmem:[#allocation2 + $0x88] sm:$0xff] %vm1043, %v982
      %1062 = vst.msk [vmem:[#allocation2 + $0x90] sm:$0xff] %vm1043, %v984
      %1063 = vst.msk [vmem:[#allocation2 + $0x98] sm:$0xff] %vm1043, %v986
      %1064 = vst.msk [vmem:[#allocation2 + $0xa0] sm:$0xff] %vm1043, %v988
      %1065 = vst.msk [vmem:[#allocation2 + $0xa8] sm:$0xff] %vm1043, %v990
      %1066 = vst.msk [vmem:[#allocation2 + $0xb0] sm:$0xff] %vm1043, %v992
      %1067 = vst.msk [vmem:[#allocation2 + $0xb8] sm:$0xff] %vm1043, %v994
      %1068 = vst.msk [vmem:[#allocation2 + $0xc0] sm:$0xff] %vm1043, %v996
      %1069 = vst.msk [vmem:[#allocation2 + $0xc8] sm:$0xff] %vm1043, %v998
      %1070 = vst.msk [vmem:[#allocation2 + $0xd0] sm:$0xff] %vm1043, %v1000
      %1071 = vst.msk [vmem:[#allocation2 + $0xd8] sm:$0xff] %vm1043, %v1002
      %1072 = vst.msk [vmem:[#allocation2 + $0xe0] sm:$0xff] %vm1043, %v1004
      %1073 = vst.msk [vmem:[#allocation2 + $0xe8] sm:$0xff] %vm1043, %v1006
      %1074 = vst.msk [vmem:[#allocation2 + $0xf0] sm:$0xff] %vm1043, %v1008
      %1075 = vst.msk [vmem:[#allocation2 + $0xf8] sm:$0xff] %vm1043, %v1010
      %v1076 = vld [vmem:[%s138 + $0x20] sm:$0xff]
      %v1077 = vld [vmem:[%s138 + $0x28] sm:$0xff]
      %v1078 = vld [vmem:[%s138 + $0x30] sm:$0xff]
      %v1079 = vld [vmem:[%s138 + $0x38] sm:$0xff]
      %v1080 = vld [vmem:[%s138 + $0x40] sm:$0xff]
      %v1081 = vld [vmem:[%s138 + $0x48] sm:$0xff]
      %v1082 = vld [vmem:[%s138 + $0x50] sm:$0xff]
      %v1083 = vld [vmem:[%s138 + $0x58] sm:$0xff]
      %v1084 = vld [vmem:[%s138 + $0x60] sm:$0xff]
      %v1085 = vld [vmem:[%s138 + $0x68] sm:$0xff]
      %v1086 = vld [vmem:[%s138 + $0x70] sm:$0xff]
      %v1087 = vld [vmem:[%s138 + $0x78] sm:$0xff]
      %v1088 = vld [vmem:[%s138 + $0x80] sm:$0xff]
      %v1089 = vld [vmem:[%s138 + $0x88] sm:$0xff]
      %v1090 = vld [vmem:[%s138 + $0x90] sm:$0xff]
      %v1091 = vld [vmem:[%s138 + $0x98] sm:$0xff]
      %v1092 = vld [vmem:[%s138 + $0xa0] sm:$0xff]
      %v1093 = vld [vmem:[%s138 + $0xa8] sm:$0xff]
      %v1094 = vld [vmem:[%s138 + $0xb0] sm:$0xff]
      %v1095 = vld [vmem:[%s138 + $0xb8] sm:$0xff]
      %v1096 = vld [vmem:[%s138 + $0xc0] sm:$0xff]
      %v1097 = vld [vmem:[%s138 + $0xc8] sm:$0xff]
      %v1098 = vld [vmem:[%s138 + $0xd0] sm:$0xff]
      %v1099 = vld [vmem:[%s138 + $0xd8] sm:$0xff]
      %v1100 = vld [vmem:[%s138 + $0xe0] sm:$0xff]
      %v1101 = vld [vmem:[%s138 + $0xe8] sm:$0xff]
      %v1102 = vld [vmem:[%s138 + $0xf0] sm:$0xff]
      %v1103 = vld [vmem:[%s138 + $0xf8] sm:$0xff]
      %v1104 = vld [vmem:[%s138 + $0x100] sm:$0xff]
      %v1105 = vld [vmem:[%s138 + $0x108] sm:$0xff]
      %v1106 = vld [vmem:[%s138 + $0x110] sm:$0xff]
      %v1107 = vld [vmem:[%s138 + $0x118] sm:$0xff]
      %v1108 = vsel %vm754, %v1076, 0.0
      %v1109 = vsel %vm755, %v1077, 0.0
      %v1110 = vsel %vm756, %v1078, 0.0
      %v1111 = vsel %vm757, %v1079, 0.0
      %v1112 = vsel %vm758, %v1080, 0.0
      %v1113 = vsel %vm759, %v1081, 0.0
      %v1114 = vsel %vm760, %v1082, 0.0
      %v1115 = vsel %vm761, %v1083, 0.0
      %v1116 = vsel %vm762, %v1084, 0.0
      %v1117 = vsel %vm763, %v1085, 0.0
      %v1118 = vsel %vm764, %v1086, 0.0
      %v1119 = vsel %vm765, %v1087, 0.0
      %v1120 = vsel %vm766, %v1088, 0.0
      %v1121 = vsel %vm767, %v1089, 0.0
      %v1122 = vsel %vm768, %v1090, 0.0
      %v1123 = vsel %vm769, %v1091, 0.0
      %v1124 = vsel %vm770, %v1092, 0.0
      %v1125 = vsel %vm771, %v1093, 0.0
      %v1126 = vsel %vm772, %v1094, 0.0
      %v1127 = vsel %vm773, %v1095, 0.0
      %v1128 = vsel %vm774, %v1096, 0.0
      %v1129 = vsel %vm775, %v1097, 0.0
      %v1130 = vsel %vm776, %v1098, 0.0
      %v1131 = vsel %vm777, %v1099, 0.0
      %v1132 = vsel %vm778, %v1100, 0.0
      %v1133 = vsel %vm779, %v1101, 0.0
      %v1134 = vsel %vm780, %v1102, 0.0
      %v1135 = vsel %vm781, %v1103, 0.0
      %v1136 = vsel %vm782, %v1104, 0.0
      %v1137 = vsel %vm783, %v1105, 0.0
      %v1138 = vsel %vm784, %v1106, 0.0
      %v1139 = vsel %vm785, %v1107, 0.0
      %1172 = vrot.lane.b32.xlu0 %v1108, 40
      %v1173 = vpop.permute.xlu0 %1172
      %1174 = vrot.lane.b32.xlu0 %v1109, 40
      %v1175 = vpop.permute.xlu0 %1174
      %1176 = vrot.lane.b32.xlu0 %v1110, 40
      %v1177 = vpop.permute.xlu0 %1176
      %1178 = vrot.lane.b32.xlu0 %v1111, 40
      %v1179 = vpop.permute.xlu0 %1178
      %1180 = vrot.lane.b32.xlu0 %v1112, 40
      %v1181 = vpop.permute.xlu0 %1180
      %1182 = vrot.lane.b32.xlu0 %v1113, 40
      %v1183 = vpop.permute.xlu0 %1182
      %1184 = vrot.lane.b32.xlu0 %v1114, 40
      %v1185 = vpop.permute.xlu0 %1184
      %1186 = vrot.lane.b32.xlu0 %v1115, 40
      %v1187 = vpop.permute.xlu0 %1186
      %1188 = vrot.lane.b32.xlu0 %v1116, 40
      %v1189 = vpop.permute.xlu0 %1188
      %1190 = vrot.lane.b32.xlu0 %v1117, 40
      %v1191 = vpop.permute.xlu0 %1190
      %1192 = vrot.lane.b32.xlu0 %v1118, 40
      %v1193 = vpop.permute.xlu0 %1192
      %1194 = vrot.lane.b32.xlu0 %v1119, 40
      %v1195 = vpop.permute.xlu0 %1194
      %1196 = vrot.lane.b32.xlu0 %v1120, 40
      %v1197 = vpop.permute.xlu0 %1196
      %1198 = vrot.lane.b32.xlu0 %v1121, 40
      %v1199 = vpop.permute.xlu0 %1198
      %1200 = vrot.lane.b32.xlu0 %v1122, 40
      %v1201 = vpop.permute.xlu0 %1200
      %1202 = vrot.lane.b32.xlu0 %v1123, 40
      %v1203 = vpop.permute.xlu0 %1202
      %1204 = vrot.lane.b32.xlu0 %v1124, 40
      %v1205 = vpop.permute.xlu0 %1204
      %1206 = vrot.lane.b32.xlu0 %v1125, 40
      %v1207 = vpop.permute.xlu0 %1206
      %1208 = vrot.lane.b32.xlu0 %v1126, 40
      %v1209 = vpop.permute.xlu0 %1208
      %1210 = vrot.lane.b32.xlu0 %v1127, 40
      %v1211 = vpop.permute.xlu0 %1210
      %1212 = vrot.lane.b32.xlu0 %v1128, 40
      %v1213 = vpop.permute.xlu0 %1212
      %1214 = vrot.lane.b32.xlu0 %v1129, 40
      %v1215 = vpop.permute.xlu0 %1214
      %1216 = vrot.lane.b32.xlu0 %v1130, 40
      %v1217 = vpop.permute.xlu0 %1216
      %1218 = vrot.lane.b32.xlu0 %v1131, 40
      %v1219 = vpop.permute.xlu0 %1218
      %1220 = vrot.lane.b32.xlu0 %v1132, 40
      %v1221 = vpop.permute.xlu0 %1220
      %1222 = vrot.lane.b32.xlu0 %v1133, 40
      %v1223 = vpop.permute.xlu0 %1222
      %1224 = vrot.lane.b32.xlu0 %v1134, 40
      %v1225 = vpop.permute.xlu0 %1224
      %1226 = vrot.lane.b32.xlu0 %v1135, 40
      %v1227 = vpop.permute.xlu0 %1226
      %1228 = vrot.lane.b32.xlu0 %v1136, 40
      %v1229 = vpop.permute.xlu0 %1228
      %1230 = vrot.lane.b32.xlu0 %v1137, 40
      %v1231 = vpop.permute.xlu0 %1230
      %1232 = vrot.lane.b32.xlu0 %v1138, 40
      %v1233 = vpop.permute.xlu0 %1232
      %1234 = vrot.lane.b32.xlu0 %v1139, 40
      %v1235 = vpop.permute.xlu0 %1234
      %vm1268 = vcmask 359744
      %1269 = vst.msk [vmem:[#allocation2] sm:$0xff] %vm1268, %v1173
      %1270 = vst.msk [vmem:[#allocation2 + $0x8] sm:$0xff] %vm1268, %v1175
      %1271 = vst.msk [vmem:[#allocation2 + $0x10] sm:$0xff] %vm1268, %v1177
      %1272 = vst.msk [vmem:[#allocation2 + $0x18] sm:$0xff] %vm1268, %v1179
      %1273 = vst.msk [vmem:[#allocation2 + $0x20] sm:$0xff] %vm1268, %v1181
      %1274 = vst.msk [vmem:[#allocation2 + $0x28] sm:$0xff] %vm1268, %v1183
      %1275 = vst.msk [vmem:[#allocation2 + $0x30] sm:$0xff] %vm1268, %v1185
      %1276 = vst.msk [vmem:[#allocation2 + $0x38] sm:$0xff] %vm1268, %v1187
      %1277 = vst.msk [vmem:[#allocation2 + $0x40] sm:$0xff] %vm1268, %v1189
      %1278 = vst.msk [vmem:[#allocation2 + $0x48] sm:$0xff] %vm1268, %v1191
      %1279 = vst.msk [vmem:[#allocation2 + $0x50] sm:$0xff] %vm1268, %v1193
      %1280 = vst.msk [vmem:[#allocation2 + $0x58] sm:$0xff] %vm1268, %v1195
      %1281 = vst.msk [vmem:[#allocation2 + $0x60] sm:$0xff] %vm1268, %v1197
      %1282 = vst.msk [vmem:[#allocation2 + $0x68] sm:$0xff] %vm1268, %v1199
      %1283 = vst.msk [vmem:[#allocation2 + $0x70] sm:$0xff] %vm1268, %v1201
      %1284 = vst.msk [vmem:[#allocation2 + $0x78] sm:$0xff] %vm1268, %v1203
      %1285 = vst.msk [vmem:[#allocation2 + $0x80] sm:$0xff] %vm1268, %v1205
      %1286 = vst.msk [vmem:[#allocation2 + $0x88] sm:$0xff] %vm1268, %v1207
      %1287 = vst.msk [vmem:[#allocation2 + $0x90] sm:$0xff] %vm1268, %v1209
      %1288 = vst.msk [vmem:[#allocation2 + $0x98] sm:$0xff] %vm1268, %v1211
      %1289 = vst.msk [vmem:[#allocation2 + $0xa0] sm:$0xff] %vm1268, %v1213
      %1290 = vst.msk [vmem:[#allocation2 + $0xa8] sm:$0xff] %vm1268, %v1215
      %1291 = vst.msk [vmem:[#allocation2 + $0xb0] sm:$0xff] %vm1268, %v1217
      %1292 = vst.msk [vmem:[#allocation2 + $0xb8] sm:$0xff] %vm1268, %v1219
      %1293 = vst.msk [vmem:[#allocation2 + $0xc0] sm:$0xff] %vm1268, %v1221
      %1294 = vst.msk [vmem:[#allocation2 + $0xc8] sm:$0xff] %vm1268, %v1223
      %1295 = vst.msk [vmem:[#allocation2 + $0xd0] sm:$0xff] %vm1268, %v1225
      %1296 = vst.msk [vmem:[#allocation2 + $0xd8] sm:$0xff] %vm1268, %v1227
      %1297 = vst.msk [vmem:[#allocation2 + $0xe0] sm:$0xff] %vm1268, %v1229
      %1298 = vst.msk [vmem:[#allocation2 + $0xe8] sm:$0xff] %vm1268, %v1231
      %1299 = vst.msk [vmem:[#allocation2 + $0xf0] sm:$0xff] %vm1268, %v1233
      %1300 = vst.msk [vmem:[#allocation2 + $0xf8] sm:$0xff] %vm1268, %v1235
      %v1301 = vld [vmem:[%s138 + $0x30] sm:$0xff]
      %v1302 = vld [vmem:[%s138 + $0x38] sm:$0xff]
      %v1303 = vld [vmem:[%s138 + $0x40] sm:$0xff]
      %v1304 = vld [vmem:[%s138 + $0x48] sm:$0xff]
      %v1305 = vld [vmem:[%s138 + $0x50] sm:$0xff]
      %v1306 = vld [vmem:[%s138 + $0x58] sm:$0xff]
      %v1307 = vld [vmem:[%s138 + $0x60] sm:$0xff]
      %v1308 = vld [vmem:[%s138 + $0x68] sm:$0xff]
      %v1309 = vld [vmem:[%s138 + $0x70] sm:$0xff]
      %v1310 = vld [vmem:[%s138 + $0x78] sm:$0xff]
      %v1311 = vld [vmem:[%s138 + $0x80] sm:$0xff]
      %v1312 = vld [vmem:[%s138 + $0x88] sm:$0xff]
      %v1313 = vld [vmem:[%s138 + $0x90] sm:$0xff]
      %v1314 = vld [vmem:[%s138 + $0x98] sm:$0xff]
      %v1315 = vld [vmem:[%s138 + $0xa0] sm:$0xff]
      %v1316 = vld [vmem:[%s138 + $0xa8] sm:$0xff]
      %v1317 = vld [vmem:[%s138 + $0xb0] sm:$0xff]
      %v1318 = vld [vmem:[%s138 + $0xb8] sm:$0xff]
      %v1319 = vld [vmem:[%s138 + $0xc0] sm:$0xff]
      %v1320 = vld [vmem:[%s138 + $0xc8] sm:$0xff]
      %v1321 = vld [vmem:[%s138 + $0xd0] sm:$0xff]
      %v1322 = vld [vmem:[%s138 + $0xd8] sm:$0xff]
      %v1323 = vld [vmem:[%s138 + $0xe0] sm:$0xff]
      %v1324 = vld [vmem:[%s138 + $0xe8] sm:$0xff]
      %v1325 = vld [vmem:[%s138 + $0xf0] sm:$0xff]
      %v1326 = vld [vmem:[%s138 + $0xf8] sm:$0xff]
      %v1327 = vld [vmem:[%s138 + $0x100] sm:$0xff]
      %v1328 = vld [vmem:[%s138 + $0x108] sm:$0xff]
      %v1329 = vld [vmem:[%s138 + $0x110] sm:$0xff]
      %v1330 = vld [vmem:[%s138 + $0x118] sm:$0xff]
      %v1331 = vld [vmem:[%s138 + $0x120] sm:$0xff]
      %v1332 = vld [vmem:[%s138 + $0x128] sm:$0xff]
      %v1333 = vsel %vm754, %v1301, 0.0
      %v1334 = vsel %vm755, %v1302, 0.0
      %v1335 = vsel %vm756, %v1303, 0.0
      %v1336 = vsel %vm757, %v1304, 0.0
      %v1337 = vsel %vm758, %v1305, 0.0
      %v1338 = vsel %vm759, %v1306, 0.0
      %v1339 = vsel %vm760, %v1307, 0.0
      %v1340 = vsel %vm761, %v1308, 0.0
      %v1341 = vsel %vm762, %v1309, 0.0
      %v1342 = vsel %vm763, %v1310, 0.0
      %v1343 = vsel %vm764, %v1311, 0.0
      %v1344 = vsel %vm765, %v1312, 0.0
      %v1345 = vsel %vm766, %v1313, 0.0
      %v1346 = vsel %vm767, %v1314, 0.0
      %v1347 = vsel %vm768, %v1315, 0.0
      %v1348 = vsel %vm769, %v1316, 0.0
      %v1349 = vsel %vm770, %v1317, 0.0
      %v1350 = vsel %vm771, %v1318, 0.0
      %v1351 = vsel %vm772, %v1319, 0.0
      %v1352 = vsel %vm773, %v1320, 0.0
      %v1353 = vsel %vm774, %v1321, 0.0
      %v1354 = vsel %vm775, %v1322, 0.0
      %v1355 = vsel %vm776, %v1323, 0.0
      %v1356 = vsel %vm777, %v1324, 0.0
      %v1357 = vsel %vm778, %v1325, 0.0
      %v1358 = vsel %vm779, %v1326, 0.0
      %v1359 = vsel %vm780, %v1327, 0.0
      %v1360 = vsel %vm781, %v1328, 0.0
      %v1361 = vsel %vm782, %v1329, 0.0
      %v1362 = vsel %vm783, %v1330, 0.0
      %v1363 = vsel %vm784, %v1331, 0.0
      %v1364 = vsel %vm785, %v1332, 0.0
      %1397 = vrot.lane.b32.xlu0 %v1333, 60
      %v1398 = vpop.permute.xlu0 %1397
      %1399 = vrot.lane.b32.xlu0 %v1334, 60
      %v1400 = vpop.permute.xlu0 %1399
      %1401 = vrot.lane.b32.xlu0 %v1335, 60
      %v1402 = vpop.permute.xlu0 %1401
      %1403 = vrot.lane.b32.xlu0 %v1336, 60
      %v1404 = vpop.permute.xlu0 %1403
      %1405 = vrot.lane.b32.xlu0 %v1337, 60
      %v1406 = vpop.permute.xlu0 %1405
      %1407 = vrot.lane.b32.xlu0 %v1338, 60
      %v1408 = vpop.permute.xlu0 %1407
      %1409 = vrot.lane.b32.xlu0 %v1339, 60
      %v1410 = vpop.permute.xlu0 %1409
      %1411 = vrot.lane.b32.xlu0 %v1340, 60
      %v1412 = vpop.permute.xlu0 %1411
      %1413 = vrot.lane.b32.xlu0 %v1341, 60
      %v1414 = vpop.permute.xlu0 %1413
      %1415 = vrot.lane.b32.xlu0 %v1342, 60
      %v1416 = vpop.permute.xlu0 %1415
      %1417 = vrot.lane.b32.xlu0 %v1343, 60
      %v1418 = vpop.permute.xlu0 %1417
      %1419 = vrot.lane.b32.xlu0 %v1344, 60
      %v1420 = vpop.permute.xlu0 %1419
      %1421 = vrot.lane.b32.xlu0 %v1345, 60
      %v1422 = vpop.permute.xlu0 %1421
      %1423 = vrot.lane.b32.xlu0 %v1346, 60
      %v1424 = vpop.permute.xlu0 %1423
      %1425 = vrot.lane.b32.xlu0 %v1347, 60
      %v1426 = vpop.permute.xlu0 %1425
      %1427 = vrot.lane.b32.xlu0 %v1348, 60
      %v1428 = vpop.permute.xlu0 %1427
      %1429 = vrot.lane.b32.xlu0 %v1349, 60
      %v1430 = vpop.permute.xlu0 %1429
      %1431 = vrot.lane.b32.xlu0 %v1350, 60
      %v1432 = vpop.permute.xlu0 %1431
      %1433 = vrot.lane.b32.xlu0 %v1351, 60
      %v1434 = vpop.permute.xlu0 %1433
      %1435 = vrot.lane.b32.xlu0 %v1352, 60
      %v1436 = vpop.permute.xlu0 %1435
      %1437 = vrot.lane.b32.xlu0 %v1353, 60
      %v1438 = vpop.permute.xlu0 %1437
      %1439 = vrot.lane.b32.xlu0 %v1354, 60
      %v1440 = vpop.permute.xlu0 %1439
      %1441 = vrot.lane.b32.xlu0 %v1355, 60
      %v1442 = vpop.permute.xlu0 %1441
      %1443 = vrot.lane.b32.xlu0 %v1356, 60
      %v1444 = vpop.permute.xlu0 %1443
      %1445 = vrot.lane.b32.xlu0 %v1357, 60
      %v1446 = vpop.permute.xlu0 %1445
      %1447 = vrot.lane.b32.xlu0 %v1358, 60
      %v1448 = vpop.permute.xlu0 %1447
      %1449 = vrot.lane.b32.xlu0 %v1359, 60
      %v1450 = vpop.permute.xlu0 %1449
      %1451 = vrot.lane.b32.xlu0 %v1360, 60
      %v1452 = vpop.permute.xlu0 %1451
      %1453 = vrot.lane.b32.xlu0 %v1361, 60
      %v1454 = vpop.permute.xlu0 %1453
      %1455 = vrot.lane.b32.xlu0 %v1362, 60
      %v1456 = vpop.permute.xlu0 %1455
      %1457 = vrot.lane.b32.xlu0 %v1363, 60
      %v1458 = vpop.permute.xlu0 %1457
      %1459 = vrot.lane.b32.xlu0 %v1364, 60
      %v1460 = vpop.permute.xlu0 %1459
      %vm1493 = vcmask 523744
      %1494 = vst.msk [vmem:[#allocation2] sm:$0xff] %vm1493, %v1398
      %1495 = vst.msk [vmem:[#allocation2 + $0x8] sm:$0xff] %vm1493, %v1400
      %1496 = vst.msk [vmem:[#allocation2 + $0x10] sm:$0xff] %vm1493, %v1402
      %1497 = vst.msk [vmem:[#allocation2 + $0x18] sm:$0xff] %vm1493, %v1404
      %1498 = vst.msk [vmem:[#allocation2 + $0x20] sm:$0xff] %vm1493, %v1406
      %1499 = vst.msk [vmem:[#allocation2 + $0x28] sm:$0xff] %vm1493, %v1408
      %1500 = vst.msk [vmem:[#allocation2 + $0x30] sm:$0xff] %vm1493, %v1410
      %1501 = vst.msk [vmem:[#allocation2 + $0x38] sm:$0xff] %vm1493, %v1412
      %1502 = vst.msk [vmem:[#allocation2 + $0x40] sm:$0xff] %vm1493, %v1414
      %1503 = vst.msk [vmem:[#allocation2 + $0x48] sm:$0xff] %vm1493, %v1416
      %1504 = vst.msk [vmem:[#allocation2 + $0x50] sm:$0xff] %vm1493, %v1418
      %1505 = vst.msk [vmem:[#allocation2 + $0x58] sm:$0xff] %vm1493, %v1420
      %1506 = vst.msk [vmem:[#allocation2 + $0x60] sm:$0xff] %vm1493, %v1422
      %1507 = vst.msk [vmem:[#allocation2 + $0x68] sm:$0xff] %vm1493, %v1424
      %1508 = vst.msk [vmem:[#allocation2 + $0x70] sm:$0xff] %vm1493, %v1426
      %1509 = vst.msk [vmem:[#allocation2 + $0x78] sm:$0xff] %vm1493, %v1428
      %1510 = vst.msk [vmem:[#allocation2 + $0x80] sm:$0xff] %vm1493, %v1430
      %1511 = vst.msk [vmem:[#allocation2 + $0x88] sm:$0xff] %vm1493, %v1432
      %1512 = vst.msk [vmem:[#allocation2 + $0x90] sm:$0xff] %vm1493, %v1434
      %1513 = vst.msk [vmem:[#allocation2 + $0x98] sm:$0xff] %vm1493, %v1436
      %1514 = vst.msk [vmem:[#allocation2 + $0xa0] sm:$0xff] %vm1493, %v1438
      %1515 = vst.msk [vmem:[#allocation2 + $0xa8] sm:$0xff] %vm1493, %v1440
      %1516 = vst.msk [vmem:[#allocation2 + $0xb0] sm:$0xff] %vm1493, %v1442
      %1517 = vst.msk [vmem:[#allocation2 + $0xb8] sm:$0xff] %vm1493, %v1444
      %1518 = vst.msk [vmem:[#allocation2 + $0xc0] sm:$0xff] %vm1493, %v1446
      %1519 = vst.msk [vmem:[#allocation2 + $0xc8] sm:$0xff] %vm1493, %v1448
      %1520 = vst.msk [vmem:[#allocation2 + $0xd0] sm:$0xff] %vm1493, %v1450
      %1521 = vst.msk [vmem:[#allocation2 + $0xd8] sm:$0xff] %vm1493, %v1452
      %1522 = vst.msk [vmem:[#allocation2 + $0xe0] sm:$0xff] %vm1493, %v1454
      %1523 = vst.msk [vmem:[#allocation2 + $0xe8] sm:$0xff] %vm1493, %v1456
      %1524 = vst.msk [vmem:[#allocation2 + $0xf0] sm:$0xff] %vm1493, %v1458
      %1525 = vst.msk [vmem:[#allocation2 + $0xf8] sm:$0xff] %vm1493, %v1460
      %v1526 = vld [vmem:[%s138 + $0x40] sm:$0xff]
      %v1527 = vld [vmem:[%s138 + $0x48] sm:$0xff]
      %v1528 = vld [vmem:[%s138 + $0x50] sm:$0xff]
      %v1529 = vld [vmem:[%s138 + $0x58] sm:$0xff]
      %v1530 = vld [vmem:[%s138 + $0x60] sm:$0xff]
      %v1531 = vld [vmem:[%s138 + $0x68] sm:$0xff]
      %v1532 = vld [vmem:[%s138 + $0x70] sm:$0xff]
      %v1533 = vld [vmem:[%s138 + $0x78] sm:$0xff]
      %v1534 = vld [vmem:[%s138 + $0x80] sm:$0xff]
      %v1535 = vld [vmem:[%s138 + $0x88] sm:$0xff]
      %v1536 = vld [vmem:[%s138 + $0x90] sm:$0xff]
      %v1537 = vld [vmem:[%s138 + $0x98] sm:$0xff]
      %v1538 = vld [vmem:[%s138 + $0xa0] sm:$0xff]
      %v1539 = vld [vmem:[%s138 + $0xa8] sm:$0xff]
      %v1540 = vld [vmem:[%s138 + $0xb0] sm:$0xff]
      %v1541 = vld [vmem:[%s138 + $0xb8] sm:$0xff]
      %v1542 = vld [vmem:[%s138 + $0xc0] sm:$0xff]
      %v1543 = vld [vmem:[%s138 + $0xc8] sm:$0xff]
      %v1544 = vld [vmem:[%s138 + $0xd0] sm:$0xff]
      %v1545 = vld [vmem:[%s138 + $0xd8] sm:$0xff]
      %v1546 = vld [vmem:[%s138 + $0xe0] sm:$0xff]
      %v1547 = vld [vmem:[%s138 + $0xe8] sm:$0xff]
      %v1548 = vld [vmem:[%s138 + $0xf0] sm:$0xff]
      %v1549 = vld [vmem:[%s138 + $0xf8] sm:$0xff]
      %v1550 = vld [vmem:[%s138 + $0x100] sm:$0xff]
      %v1551 = vld [vmem:[%s138 + $0x108] sm:$0xff]
      %v1552 = vld [vmem:[%s138 + $0x110] sm:$0xff]
      %v1553 = vld [vmem:[%s138 + $0x118] sm:$0xff]
      %v1554 = vld [vmem:[%s138 + $0x120] sm:$0xff]
      %v1555 = vld [vmem:[%s138 + $0x128] sm:$0xff]
      %v1556 = vld [vmem:[%s138 + $0x130] sm:$0xff]
      %v1557 = vld [vmem:[%s138 + $0x138] sm:$0xff]
      %v1558 = vsel %vm754, %v1526, 0.0
      %v1559 = vsel %vm755, %v1527, 0.0
      %v1560 = vsel %vm756, %v1528, 0.0
      %v1561 = vsel %vm757, %v1529, 0.0
      %v1562 = vsel %vm758, %v1530, 0.0
      %v1563 = vsel %vm759, %v1531, 0.0
      %v1564 = vsel %vm760, %v1532, 0.0
      %v1565 = vsel %vm761, %v1533, 0.0
      %v1566 = vsel %vm762, %v1534, 0.0
      %v1567 = vsel %vm763, %v1535, 0.0
      %v1568 = vsel %vm764, %v1536, 0.0
      %v1569 = vsel %vm765, %v1537, 0.0
      %v1570 = vsel %vm766, %v1538, 0.0
      %v1571 = vsel %vm767, %v1539, 0.0
      %v1572 = vsel %vm768, %v1540, 0.0
      %v1573 = vsel %vm769, %v1541, 0.0
      %v1574 = vsel %vm770, %v1542, 0.0
      %v1575 = vsel %vm771, %v1543, 0.0
      %v1576 = vsel %vm772, %v1544, 0.0
      %v1577 = vsel %vm773, %v1545, 0.0
      %v1578 = vsel %vm774, %v1546, 0.0
      %v1579 = vsel %vm775, %v1547, 0.0
      %v1580 = vsel %vm776, %v1548, 0.0
      %v1581 = vsel %vm777, %v1549, 0.0
      %v1582 = vsel %vm778, %v1550, 0.0
      %v1583 = vsel %vm779, %v1551, 0.0
      %v1584 = vsel %vm780, %v1552, 0.0
      %v1585 = vsel %vm781, %v1553, 0.0
      %v1586 = vsel %vm782, %v1554, 0.0
      %v1587 = vsel %vm783, %v1555, 0.0
      %v1588 = vsel %vm784, %v1556, 0.0
      %v1589 = vsel %vm785, %v1557, 0.0
      %1622 = vrot.lane.b32.xlu0 %v1558, 80
      %v1623 = vpop.permute.xlu0 %1622
      %1624 = vrot.lane.b32.xlu0 %v1559, 80
      %v1625 = vpop.permute.xlu0 %1624
      %1626 = vrot.lane.b32.xlu0 %v1560, 80
      %v1627 = vpop.permute.xlu0 %1626
      %1628 = vrot.lane.b32.xlu0 %v1561, 80
      %v1629 = vpop.permute.xlu0 %1628
      %1630 = vrot.lane.b32.xlu0 %v1562, 80
      %v1631 = vpop.permute.xlu0 %1630
      %1632 = vrot.lane.b32.xlu0 %v1563, 80
      %v1633 = vpop.permute.xlu0 %1632
      %1634 = vrot.lane.b32.xlu0 %v1564, 80
      %v1635 = vpop.permute.xlu0 %1634
      %1636 = vrot.lane.b32.xlu0 %v1565, 80
      %v1637 = vpop.permute.xlu0 %1636
      %1638 = vrot.lane.b32.xlu0 %v1566, 80
      %v1639 = vpop.permute.xlu0 %1638
      %1640 = vrot.lane.b32.xlu0 %v1567, 80
      %v1641 = vpop.permute.xlu0 %1640
      %1642 = vrot.lane.b32.xlu0 %v1568, 80
      %v1643 = vpop.permute.xlu0 %1642
      %1644 = vrot.lane.b32.xlu0 %v1569, 80
      %v1645 = vpop.permute.xlu0 %1644
      %1646 = vrot.lane.b32.xlu0 %v1570, 80
      %v1647 = vpop.permute.xlu0 %1646
      %1648 = vrot.lane.b32.xlu0 %v1571, 80
      %v1649 = vpop.permute.xlu0 %1648
      %1650 = vrot.lane.b32.xlu0 %v1572, 80
      %v1651 = vpop.permute.xlu0 %1650
      %1652 = vrot.lane.b32.xlu0 %v1573, 80
      %v1653 = vpop.permute.xlu0 %1652
      %1654 = vrot.lane.b32.xlu0 %v1574, 80
      %v1655 = vpop.permute.xlu0 %1654
      %1656 = vrot.lane.b32.xlu0 %v1575, 80
      %v1657 = vpop.permute.xlu0 %1656
      %1658 = vrot.lane.b32.xlu0 %v1576, 80
      %v1659 = vpop.permute.xlu0 %1658
      %1660 = vrot.lane.b32.xlu0 %v1577, 80
      %v1661 = vpop.permute.xlu0 %1660
      %1662 = vrot.lane.b32.xlu0 %v1578, 80
      %v1663 = vpop.permute.xlu0 %1662
      %1664 = vrot.lane.b32.xlu0 %v1579, 80
      %v1665 = vpop.permute.xlu0 %1664
      %1666 = vrot.lane.b32.xlu0 %v1580, 80
      %v1667 = vpop.permute.xlu0 %1666
      %1668 = vrot.lane.b32.xlu0 %v1581, 80
      %v1669 = vpop.permute.xlu0 %1668
      %1670 = vrot.lane.b32.xlu0 %v1582, 80
      %v1671 = vpop.permute.xlu0 %1670
      %1672 = vrot.lane.b32.xlu0 %v1583, 80
      %v1673 = vpop.permute.xlu0 %1672
      %1674 = vrot.lane.b32.xlu0 %v1584, 80
      %v1675 = vpop.permute.xlu0 %1674
      %1676 = vrot.lane.b32.xlu0 %v1585, 80
      %v1677 = vpop.permute.xlu0 %1676
      %1678 = vrot.lane.b32.xlu0 %v1586, 80
      %v1679 = vpop.permute.xlu0 %1678
      %1680 = vrot.lane.b32.xlu0 %v1587, 80
      %v1681 = vpop.permute.xlu0 %1680
      %1682 = vrot.lane.b32.xlu0 %v1588, 80
      %v1683 = vpop.permute.xlu0 %1682
      %1684 = vrot.lane.b32.xlu0 %v1589, 80
      %v1685 = vpop.permute.xlu0 %1684
      %vm1718 = vcmask 687744
      %1719 = vst.msk [vmem:[#allocation2] sm:$0xff] %vm1718, %v1623
      %1720 = vst.msk [vmem:[#allocation2 + $0x8] sm:$0xff] %vm1718, %v1625
      %1721 = vst.msk [vmem:[#allocation2 + $0x10] sm:$0xff] %vm1718, %v1627
      %1722 = vst.msk [vmem:[#allocation2 + $0x18] sm:$0xff] %vm1718, %v1629
      %1723 = vst.msk [vmem:[#allocation2 + $0x20] sm:$0xff] %vm1718, %v1631
      %1724 = vst.msk [vmem:[#allocation2 + $0x28] sm:$0xff] %vm1718, %v1633
      %1725 = vst.msk [vmem:[#allocation2 + $0x30] sm:$0xff] %vm1718, %v1635
      %1726 = vst.msk [vmem:[#allocation2 + $0x38] sm:$0xff] %vm1718, %v1637
      %1727 = vst.msk [vmem:[#allocation2 + $0x40] sm:$0xff] %vm1718, %v1639
      %1728 = vst.msk [vmem:[#allocation2 + $0x48] sm:$0xff] %vm1718, %v1641
      %1729 = vst.msk [vmem:[#allocation2 + $0x50] sm:$0xff] %vm1718, %v1643
      %1730 = vst.msk [vmem:[#allocation2 + $0x58] sm:$0xff] %vm1718, %v1645
      %1731 = vst.msk [vmem:[#allocation2 + $0x60] sm:$0xff] %vm1718, %v1647
      %1732 = vst.msk [vmem:[#allocation2 + $0x68] sm:$0xff] %vm1718, %v1649
      %1733 = vst.msk [vmem:[#allocation2 + $0x70] sm:$0xff] %vm1718, %v1651
      %1734 = vst.msk [vmem:[#allocation2 + $0x78] sm:$0xff] %vm1718, %v1653
      %1735 = vst.msk [vmem:[#allocation2 + $0x80] sm:$0xff] %vm1718, %v1655
      %1736 = vst.msk [vmem:[#allocation2 + $0x88] sm:$0xff] %vm1718, %v1657
      %1737 = vst.msk [vmem:[#allocation2 + $0x90] sm:$0xff] %vm1718, %v1659
      %1738 = vst.msk [vmem:[#allocation2 + $0x98] sm:$0xff] %vm1718, %v1661
      %1739 = vst.msk [vmem:[#allocation2 + $0xa0] sm:$0xff] %vm1718, %v1663
      %1740 = vst.msk [vmem:[#allocation2 + $0xa8] sm:$0xff] %vm1718, %v1665
      %1741 = vst.msk [vmem:[#allocation2 + $0xb0] sm:$0xff] %vm1718, %v1667
      %1742 = vst.msk [vmem:[#allocation2 + $0xb8] sm:$0xff] %vm1718, %v1669
      %1743 = vst.msk [vmem:[#allocation2 + $0xc0] sm:$0xff] %vm1718, %v1671
      %1744 = vst.msk [vmem:[#allocation2 + $0xc8] sm:$0xff] %vm1718, %v1673
      %1745 = vst.msk [vmem:[#allocation2 + $0xd0] sm:$0xff] %vm1718, %v1675
      %1746 = vst.msk [vmem:[#allocation2 + $0xd8] sm:$0xff] %vm1718, %v1677
      %1747 = vst.msk [vmem:[#allocation2 + $0xe0] sm:$0xff] %vm1718, %v1679
      %1748 = vst.msk [vmem:[#allocation2 + $0xe8] sm:$0xff] %vm1718, %v1681
      %1749 = vst.msk [vmem:[#allocation2 + $0xf0] sm:$0xff] %vm1718, %v1683
      %1750 = vst.msk [vmem:[#allocation2 + $0xf8] sm:$0xff] %vm1718, %v1685
      %v1751 = vadd.s32 %v530, 4294967295
      %v1752 = vadd.s32 %v531, 4294967295
      %v1753 = vadd.s32 %v532, 4294967295
      %v1754 = vadd.s32 %v533, 4294967295
      %v1755 = vadd.s32 %v534, 4294967295
      %v1756 = vadd.s32 %v535, 4294967295
      %v1757 = vadd.s32 %v536, 4294967295
      %v1758 = vadd.s32 %v537, 4294967295
      %v1759 = vadd.s32 %v538, 4294967295
      %v1760 = vadd.s32 %v539, 4294967295
      %v1761 = vadd.s32 %v540, 4294967295
      %v1762 = vadd.s32 %v541, 4294967295
      %v1763 = vadd.s32 %v542, 4294967295
      %v1764 = vadd.s32 %v543, 4294967295
      %v1765 = vadd.s32 %v544, 4294967295
      %v1766 = vadd.s32 %v545, 4294967295
      %v1767 = vadd.s32 %v546, 4294967295
      %v1768 = vadd.s32 %v547, 4294967295
      %v1769 = vadd.s32 %v548, 4294967295
      %v1770 = vadd.s32 %v549, 4294967295
      %v1771 = vadd.s32 %v550, 4294967295
      %v1772 = vadd.s32 %v551, 4294967295
      %v1773 = vadd.s32 %v552, 4294967295
      %v1774 = vadd.s32 %v553, 4294967295
      %v1775 = vadd.s32 %v554, 4294967295
      %v1776 = vadd.s32 %v555, 4294967295
      %v1777 = vadd.s32 %v556, 4294967295
      %v1778 = vadd.s32 %v557, 4294967295
      %v1779 = vadd.s32 %v558, 4294967295
      %v1780 = vadd.s32 %v559, 4294967295
      %v1781 = vadd.s32 %v560, 4294967295
      %v1782 = vadd.s32 %v561, 4294967295
      %vm1783 = vcmp.ge.s32.totalorder %v1751, 0
      %vm1784 = vcmp.ge.s32.totalorder %v1752, 0
      %vm1785 = vcmp.ge.s32.totalorder %v1753, 0
      %vm1786 = vcmp.ge.s32.totalorder %v1754, 0
      %vm1787 = vcmp.ge.s32.totalorder %v1755, 0
      %vm1788 = vcmp.ge.s32.totalorder %v1756, 0
      %vm1789 = vcmp.ge.s32.totalorder %v1757, 0
      %vm1790 = vcmp.ge.s32.totalorder %v1758, 0
      %vm1791 = vcmp.ge.s32.totalorder %v1759, 0
      %vm1792 = vcmp.ge.s32.totalorder %v1760, 0
      %vm1793 = vcmp.ge.s32.totalorder %v1761, 0
      %vm1794 = vcmp.ge.s32.totalorder %v1762, 0
      %vm1795 = vcmp.ge.s32.totalorder %v1763, 0
      %vm1796 = vcmp.ge.s32.totalorder %v1764, 0
      %vm1797 = vcmp.ge.s32.totalorder %v1765, 0
      %vm1798 = vcmp.ge.s32.totalorder %v1766, 0
      %vm1799 = vcmp.ge.s32.totalorder %v1767, 0
      %vm1800 = vcmp.ge.s32.totalorder %v1768, 0
      %vm1801 = vcmp.ge.s32.totalorder %v1769, 0
      %vm1802 = vcmp.ge.s32.totalorder %v1770, 0
      %vm1803 = vcmp.ge.s32.totalorder %v1771, 0
      %vm1804 = vcmp.ge.s32.totalorder %v1772, 0
      %vm1805 = vcmp.ge.s32.totalorder %v1773, 0
      %vm1806 = vcmp.ge.s32.totalorder %v1774, 0
      %vm1807 = vcmp.ge.s32.totalorder %v1775, 0
      %vm1808 = vcmp.ge.s32.totalorder %v1776, 0
      %vm1809 = vcmp.ge.s32.totalorder %v1777, 0
      %vm1810 = vcmp.ge.s32.totalorder %v1778, 0
      %vm1811 = vcmp.ge.s32.totalorder %v1779, 0
      %vm1812 = vcmp.ge.s32.totalorder %v1780, 0
      %vm1813 = vcmp.ge.s32.totalorder %v1781, 0
      %vm1814 = vcmp.ge.s32.totalorder %v1782, 0
      %vm1815 = vcmp.lt.s32.totalorder %v1751, 16
      %vm1816 = vcmp.lt.s32.totalorder %v1752, 16
      %vm1817 = vcmp.lt.s32.totalorder %v1753, 16
      %vm1818 = vcmp.lt.s32.totalorder %v1754, 16
      %vm1819 = vcmp.lt.s32.totalorder %v1755, 16
      %vm1820 = vcmp.lt.s32.totalorder %v1756, 16
      %vm1821 = vcmp.lt.s32.totalorder %v1757, 16
      %vm1822 = vcmp.lt.s32.totalorder %v1758, 16
      %vm1823 = vcmp.lt.s32.totalorder %v1759, 16
      %vm1824 = vcmp.lt.s32.totalorder %v1760, 16
      %vm1825 = vcmp.lt.s32.totalorder %v1761, 16
      %vm1826 = vcmp.lt.s32.totalorder %v1762, 16
      %vm1827 = vcmp.lt.s32.totalorder %v1763, 16
      %vm1828 = vcmp.lt.s32.totalorder %v1764, 16
      %vm1829 = vcmp.lt.s32.totalorder %v1765, 16
      %vm1830 = vcmp.lt.s32.totalorder %v1766, 16
      %vm1831 = vcmp.lt.s32.totalorder %v1767, 16
      %vm1832 = vcmp.lt.s32.totalorder %v1768, 16
      %vm1833 = vcmp.lt.s32.totalorder %v1769, 16
      %vm1834 = vcmp.lt.s32.totalorder %v1770, 16
      %vm1835 = vcmp.lt.s32.totalorder %v1771, 16
      %vm1836 = vcmp.lt.s32.totalorder %v1772, 16
      %vm1837 = vcmp.lt.s32.totalorder %v1773, 16
      %vm1838 = vcmp.lt.s32.totalorder %v1774, 16
      %vm1839 = vcmp.lt.s32.totalorder %v1775, 16
      %vm1840 = vcmp.lt.s32.totalorder %v1776, 16
      %vm1841 = vcmp.lt.s32.totalorder %v1777, 16
      %vm1842 = vcmp.lt.s32.totalorder %v1778, 16
      %vm1843 = vcmp.lt.s32.totalorder %v1779, 16
      %vm1844 = vcmp.lt.s32.totalorder %v1780, 16
      %vm1845 = vcmp.lt.s32.totalorder %v1781, 16
      %vm1846 = vcmp.lt.s32.totalorder %v1782, 16
      %vm1847 = vmand %vm1783, %vm1815
      %vm1848 = vmand %vm1784, %vm1816
      %vm1849 = vmand %vm1785, %vm1817
      %vm1850 = vmand %vm1786, %vm1818
      %vm1851 = vmand %vm1787, %vm1819
      %vm1852 = vmand %vm1788, %vm1820
      %vm1853 = vmand %vm1789, %vm1821
      %vm1854 = vmand %vm1790, %vm1822
      %vm1855 = vmand %vm1791, %vm1823
      %vm1856 = vmand %vm1792, %vm1824
      %vm1857 = vmand %vm1793, %vm1825
      %vm1858 = vmand %vm1794, %vm1826
      %vm1859 = vmand %vm1795, %vm1827
      %vm1860 = vmand %vm1796, %vm1828
      %vm1861 = vmand %vm1797, %vm1829
      %vm1862 = vmand %vm1798, %vm1830
      %vm1863 = vmand %vm1799, %vm1831
      %vm1864 = vmand %vm1800, %vm1832
      %vm1865 = vmand %vm1801, %vm1833
      %vm1866 = vmand %vm1802, %vm1834
      %vm1867 = vmand %vm1803, %vm1835
      %vm1868 = vmand %vm1804, %vm1836
      %vm1869 = vmand %vm1805, %vm1837
      %vm1870 = vmand %vm1806, %vm1838
      %vm1871 = vmand %vm1807, %vm1839
      %vm1872 = vmand %vm1808, %vm1840
      %vm1873 = vmand %vm1809, %vm1841
      %vm1874 = vmand %vm1810, %vm1842
      %vm1875 = vmand %vm1811, %vm1843
      %vm1876 = vmand %vm1812, %vm1844
      %vm1877 = vmand %vm1813, %vm1845
      %vm1878 = vmand %vm1814, %vm1846
      %v1879 = vld [vmem:[%s138 + $0x1] sm:$0xff]
      %v1880 = vld [vmem:[%s138 + $0x9] sm:$0xff]
      %v1881 = vld [vmem:[%s138 + $0x11] sm:$0xff]
      %v1882 = vld [vmem:[%s138 + $0x19] sm:$0xff]
      %v1883 = vld [vmem:[%s138 + $0x21] sm:$0xff]
      %v1884 = vld [vmem:[%s138 + $0x29] sm:$0xff]
      %v1885 = vld [vmem:[%s138 + $0x31] sm:$0xff]
      %v1886 = vld [vmem:[%s138 + $0x39] sm:$0xff]
      %v1887 = vld [vmem:[%s138 + $0x41] sm:$0xff]
      %v1888 = vld [vmem:[%s138 + $0x49] sm:$0xff]
      %v1889 = vld [vmem:[%s138 + $0x51] sm:$0xff]
      %v1890 = vld [vmem:[%s138 + $0x59] sm:$0xff]
      %v1891 = vld [vmem:[%s138 + $0x61] sm:$0xff]
      %v1892 = vld [vmem:[%s138 + $0x69] sm:$0xff]
      %v1893 = vld [vmem:[%s138 + $0x71] sm:$0xff]
      %v1894 = vld [vmem:[%s138 + $0x79] sm:$0xff]
      %v1895 = vld [vmem:[%s138 + $0x81] sm:$0xff]
      %v1896 = vld [vmem:[%s138 + $0x89] sm:$0xff]
      %v1897 = vld [vmem:[%s138 + $0x91] sm:$0xff]
      %v1898 = vld [vmem:[%s138 + $0x99] sm:$0xff]
      %v1899 = vld [vmem:[%s138 + $0xa1] sm:$0xff]
      %v1900 = vld [vmem:[%s138 + $0xa9] sm:$0xff]
      %v1901 = vld [vmem:[%s138 + $0xb1] sm:$0xff]
      %v1902 = vld [vmem:[%s138 + $0xb9] sm:$0xff]
      %v1903 = vld [vmem:[%s138 + $0xc1] sm:$0xff]
      %v1904 = vld [vmem:[%s138 + $0xc9] sm:$0xff]
      %v1905 = vld [vmem:[%s138 + $0xd1] sm:$0xff]
      %v1906 = vld [vmem:[%s138 + $0xd9] sm:$0xff]
      %v1907 = vld [vmem:[%s138 + $0xe1] sm:$0xff]
      %v1908 = vld [vmem:[%s138 + $0xe9] sm:$0xff]
      %v1909 = vld [vmem:[%s138 + $0xf1] sm:$0xff]
      %v1910 = vld [vmem:[%s138 + $0xf9] sm:$0xff]
      %v1911 = vsel %vm1847, 1, 0
      %v1912 = vsel %vm1848, 1, 0
      %v1913 = vsel %vm1849, 1, 0
      %v1914 = vsel %vm1850, 1, 0
      %v1915 = vsel %vm1851, 1, 0
      %v1916 = vsel %vm1852, 1, 0
      %v1917 = vsel %vm1853, 1, 0
      %v1918 = vsel %vm1854, 1, 0
      %v1919 = vsel %vm1855, 1, 0
      %v1920 = vsel %vm1856, 1, 0
      %v1921 = vsel %vm1857, 1, 0
      %v1922 = vsel %vm1858, 1, 0
      %v1923 = vsel %vm1859, 1, 0
      %v1924 = vsel %vm1860, 1, 0
      %v1925 = vsel %vm1861, 1, 0
      %v1926 = vsel %vm1862, 1, 0
      %v1927 = vsel %vm1863, 1, 0
      %v1928 = vsel %vm1864, 1, 0
      %v1929 = vsel %vm1865, 1, 0
      %v1930 = vsel %vm1866, 1, 0
      %v1931 = vsel %vm1867, 1, 0
      %v1932 = vsel %vm1868, 1, 0
      %v1933 = vsel %vm1869, 1, 0
      %v1934 = vsel %vm1870, 1, 0
      %v1935 = vsel %vm1871, 1, 0
      %v1936 = vsel %vm1872, 1, 0
      %v1937 = vsel %vm1873, 1, 0
      %v1938 = vsel %vm1874, 1, 0
      %v1939 = vsel %vm1875, 1, 0
      %v1940 = vsel %vm1876, 1, 0
      %v1941 = vsel %vm1877, 1, 0
      %v1942 = vsel %vm1878, 1, 0
      %vm1943 = vcmp.eq.s32.totalorder %v1911, 1
      %vm1944 = vcmp.eq.s32.totalorder %v1912, 1
      %vm1945 = vcmp.eq.s32.totalorder %v1913, 1
      %vm1946 = vcmp.eq.s32.totalorder %v1914, 1
      %vm1947 = vcmp.eq.s32.totalorder %v1915, 1
      %vm1948 = vcmp.eq.s32.totalorder %v1916, 1
      %vm1949 = vcmp.eq.s32.totalorder %v1917, 1
      %vm1950 = vcmp.eq.s32.totalorder %v1918, 1
      %vm1951 = vcmp.eq.s32.totalorder %v1919, 1
      %vm1952 = vcmp.eq.s32.totalorder %v1920, 1
      %vm1953 = vcmp.eq.s32.totalorder %v1921, 1
      %vm1954 = vcmp.eq.s32.totalorder %v1922, 1
      %vm1955 = vcmp.eq.s32.totalorder %v1923, 1
      %vm1956 = vcmp.eq.s32.totalorder %v1924, 1
      %vm1957 = vcmp.eq.s32.totalorder %v1925, 1
      %vm1958 = vcmp.eq.s32.totalorder %v1926, 1
      %vm1959 = vcmp.eq.s32.totalorder %v1927, 1
      %vm1960 = vcmp.eq.s32.totalorder %v1928, 1
      %vm1961 = vcmp.eq.s32.totalorder %v1929, 1
      %vm1962 = vcmp.eq.s32.totalorder %v1930, 1
      %vm1963 = vcmp.eq.s32.totalorder %v1931, 1
      %vm1964 = vcmp.eq.s32.totalorder %v1932, 1
      %vm1965 = vcmp.eq.s32.totalorder %v1933, 1
      %vm1966 = vcmp.eq.s32.totalorder %v1934, 1
      %vm1967 = vcmp.eq.s32.totalorder %v1935, 1
      %vm1968 = vcmp.eq.s32.totalorder %v1936, 1
      %vm1969 = vcmp.eq.s32.totalorder %v1937, 1
      %vm1970 = vcmp.eq.s32.totalorder %v1938, 1
      %vm1971 = vcmp.eq.s32.totalorder %v1939, 1
      %vm1972 = vcmp.eq.s32.totalorder %v1940, 1
      %vm1973 = vcmp.eq.s32.totalorder %v1941, 1
      %vm1974 = vcmp.eq.s32.totalorder %v1942, 1
      %v1975 = vsel %vm1943, %v1879, 0.0
      %v1976 = vsel %vm1944, %v1880, 0.0
      %v1977 = vsel %vm1945, %v1881, 0.0
      %v1978 = vsel %vm1946, %v1882, 0.0
      %v1979 = vsel %vm1947, %v1883, 0.0
      %v1980 = vsel %vm1948, %v1884, 0.0
      %v1981 = vsel %vm1949, %v1885, 0.0
      %v1982 = vsel %vm1950, %v1886, 0.0
      %v1983 = vsel %vm1951, %v1887, 0.0
      %v1984 = vsel %vm1952, %v1888, 0.0
      %v1985 = vsel %vm1953, %v1889, 0.0
      %v1986 = vsel %vm1954, %v1890, 0.0
      %v1987 = vsel %vm1955, %v1891, 0.0
      %v1988 = vsel %vm1956, %v1892, 0.0
      %v1989 = vsel %vm1957, %v1893, 0.0
      %v1990 = vsel %vm1958, %v1894, 0.0
      %v1991 = vsel %vm1959, %v1895, 0.0
      %v1992 = vsel %vm1960, %v1896, 0.0
      %v1993 = vsel %vm1961, %v1897, 0.0
      %v1994 = vsel %vm1962, %v1898, 0.0
      %v1995 = vsel %vm1963, %v1899, 0.0
      %v1996 = vsel %vm1964, %v1900, 0.0
      %v1997 = vsel %vm1965, %v1901, 0.0
      %v1998 = vsel %vm1966, %v1902, 0.0
      %v1999 = vsel %vm1967, %v1903, 0.0
      %v2000 = vsel %vm1968, %v1904, 0.0
      %v2001 = vsel %vm1969, %v1905, 0.0
      %v2002 = vsel %vm1970, %v1906, 0.0
      %v2003 = vsel %vm1971, %v1907, 0.0
      %v2004 = vsel %vm1972, %v1908, 0.0
      %v2005 = vsel %vm1973, %v1909, 0.0
      %v2006 = vsel %vm1974, %v1910, 0.0
      %2039 = vrot.lane.b32.xlu0 %v1975, 4
      %v2040 = vpop.permute.xlu0 %2039
      %2041 = vrot.lane.b32.xlu0 %v1976, 4
      %v2042 = vpop.permute.xlu0 %2041
      %2043 = vrot.lane.b32.xlu0 %v1977, 4
      %v2044 = vpop.permute.xlu0 %2043
      %2045 = vrot.lane.b32.xlu0 %v1978, 4
      %v2046 = vpop.permute.xlu0 %2045
      %2047 = vrot.lane.b32.xlu0 %v1979, 4
      %v2048 = vpop.permute.xlu0 %2047
      %2049 = vrot.lane.b32.xlu0 %v1980, 4
      %v2050 = vpop.permute.xlu0 %2049
      %2051 = vrot.lane.b32.xlu0 %v1981, 4
      %v2052 = vpop.permute.xlu0 %2051
      %2053 = vrot.lane.b32.xlu0 %v1982, 4
      %v2054 = vpop.permute.xlu0 %2053
      %2055 = vrot.lane.b32.xlu0 %v1983, 4
      %v2056 = vpop.permute.xlu0 %2055
      %2057 = vrot.lane.b32.xlu0 %v1984, 4
      %v2058 = vpop.permute.xlu0 %2057
      %2059 = vrot.lane.b32.xlu0 %v1985, 4
      %v2060 = vpop.permute.xlu0 %2059
      %2061 = vrot.lane.b32.xlu0 %v1986, 4
      %v2062 = vpop.permute.xlu0 %2061
      %2063 = vrot.lane.b32.xlu0 %v1987, 4
      %v2064 = vpop.permute.xlu0 %2063
      %2065 = vrot.lane.b32.xlu0 %v1988, 4
      %v2066 = vpop.permute.xlu0 %2065
      %2067 = vrot.lane.b32.xlu0 %v1989, 4
      %v2068 = vpop.permute.xlu0 %2067
      %2069 = vrot.lane.b32.xlu0 %v1990, 4
      %v2070 = vpop.permute.xlu0 %2069
      %2071 = vrot.lane.b32.xlu0 %v1991, 4
      %v2072 = vpop.permute.xlu0 %2071
      %2073 = vrot.lane.b32.xlu0 %v1992, 4
      %v2074 = vpop.permute.xlu0 %2073
      %2075 = vrot.lane.b32.xlu0 %v1993, 4
      %v2076 = vpop.permute.xlu0 %2075
      %2077 = vrot.lane.b32.xlu0 %v1994, 4
      %v2078 = vpop.permute.xlu0 %2077
      %2079 = vrot.lane.b32.xlu0 %v1995, 4
      %v2080 = vpop.permute.xlu0 %2079
      %2081 = vrot.lane.b32.xlu0 %v1996, 4
      %v2082 = vpop.permute.xlu0 %2081
      %2083 = vrot.lane.b32.xlu0 %v1997, 4
      %v2084 = vpop.permute.xlu0 %2083
      %2085 = vrot.lane.b32.xlu0 %v1998, 4
      %v2086 = vpop.permute.xlu0 %2085
      %2087 = vrot.lane.b32.xlu0 %v1999, 4
      %v2088 = vpop.permute.xlu0 %2087
      %2089 = vrot.lane.b32.xlu0 %v2000, 4
      %v2090 = vpop.permute.xlu0 %2089
      %2091 = vrot.lane.b32.xlu0 %v2001, 4
      %v2092 = vpop.permute.xlu0 %2091
      %2093 = vrot.lane.b32.xlu0 %v2002, 4
      %v2094 = vpop.permute.xlu0 %2093
      %2095 = vrot.lane.b32.xlu0 %v2003, 4
      %v2096 = vpop.permute.xlu0 %2095
      %2097 = vrot.lane.b32.xlu0 %v2004, 4
      %v2098 = vpop.permute.xlu0 %2097
      %2099 = vrot.lane.b32.xlu0 %v2005, 4
      %v2100 = vpop.permute.xlu0 %2099
      %2101 = vrot.lane.b32.xlu0 %v2006, 4
      %v2102 = vpop.permute.xlu0 %2101
      %vm2135 = vcmask 64544
      %2136 = vst.msk [vmem:[#allocation2] sm:$0xff] %vm2135, %v2040
      %2137 = vst.msk [vmem:[#allocation2 + $0x8] sm:$0xff] %vm2135, %v2042
      %2138 = vst.msk [vmem:[#allocation2 + $0x10] sm:$0xff] %vm2135, %v2044
      %2139 = vst.msk [vmem:[#allocation2 + $0x18] sm:$0xff] %vm2135, %v2046
      %2140 = vst.msk [vmem:[#allocation2 + $0x20] sm:$0xff] %vm2135, %v2048
      %2141 = vst.msk [vmem:[#allocation2 + $0x28] sm:$0xff] %vm2135, %v2050
      %2142 = vst.msk [vmem:[#allocation2 + $0x30] sm:$0xff] %vm2135, %v2052
      %2143 = vst.msk [vmem:[#allocation2 + $0x38] sm:$0xff] %vm2135, %v2054
      %2144 = vst.msk [vmem:[#allocation2 + $0x40] sm:$0xff] %vm2135, %v2056
      %2145 = vst.msk [vmem:[#allocation2 + $0x48] sm:$0xff] %vm2135, %v2058
      %2146 = vst.msk [vmem:[#allocation2 + $0x50] sm:$0xff] %vm2135, %v2060
      %2147 = vst.msk [vmem:[#allocation2 + $0x58] sm:$0xff] %vm2135, %v2062
      %2148 = vst.msk [vmem:[#allocation2 + $0x60] sm:$0xff] %vm2135, %v2064
      %2149 = vst.msk [vmem:[#allocation2 + $0x68] sm:$0xff] %vm2135, %v2066
      %2150 = vst.msk [vmem:[#allocation2 + $0x70] sm:$0xff] %vm2135, %v2068
      %2151 = vst.msk [vmem:[#allocation2 + $0x78] sm:$0xff] %vm2135, %v2070
      %2152 = vst.msk [vmem:[#allocation2 + $0x80] sm:$0xff] %vm2135, %v2072
      %2153 = vst.msk [vmem:[#allocation2 + $0x88] sm:$0xff] %vm2135, %v2074
      %2154 = vst.msk [vmem:[#allocation2 + $0x90] sm:$0xff] %vm2135, %v2076
      %2155 = vst.msk [vmem:[#allocation2 + $0x98] sm:$0xff] %vm2135, %v2078
      %2156 = vst.msk [vmem:[#allocation2 + $0xa0] sm:$0xff] %vm2135, %v2080
      %2157 = vst.msk [vmem:[#allocation2 + $0xa8] sm:$0xff] %vm2135, %v2082
      %2158 = vst.msk [vmem:[#allocation2 + $0xb0] sm:$0xff] %vm2135, %v2084
      %2159 = vst.msk [vmem:[#allocation2 + $0xb8] sm:$0xff] %vm2135, %v2086
      %2160 = vst.msk [vmem:[#allocation2 + $0xc0] sm:$0xff] %vm2135, %v2088
      %2161 = vst.msk [vmem:[#allocation2 + $0xc8] sm:$0xff] %vm2135, %v2090
      %2162 = vst.msk [vmem:[#allocation2 + $0xd0] sm:$0xff] %vm2135, %v2092
      %2163 = vst.msk [vmem:[#allocation2 + $0xd8] sm:$0xff] %vm2135, %v2094
      %2164 = vst.msk [vmem:[#allocation2 + $0xe0] sm:$0xff] %vm2135, %v2096
      %2165 = vst.msk [vmem:[#allocation2 + $0xe8] sm:$0xff] %vm2135, %v2098
      %2166 = vst.msk [vmem:[#allocation2 + $0xf0] sm:$0xff] %vm2135, %v2100
      %2167 = vst.msk [vmem:[#allocation2 + $0xf8] sm:$0xff] %vm2135, %v2102
      %v2168 = vld [vmem:[%s138 + $0x11] sm:$0xff]
      %v2169 = vld [vmem:[%s138 + $0x19] sm:$0xff]
      %v2170 = vld [vmem:[%s138 + $0x21] sm:$0xff]
      %v2171 = vld [vmem:[%s138 + $0x29] sm:$0xff]
      %v2172 = vld [vmem:[%s138 + $0x31] sm:$0xff]
      %v2173 = vld [vmem:[%s138 + $0x39] sm:$0xff]
      %v2174 = vld [vmem:[%s138 + $0x41] sm:$0xff]
      %v2175 = vld [vmem:[%s138 + $0x49] sm:$0xff]
      %v2176 = vld [vmem:[%s138 + $0x51] sm:$0xff]
      %v2177 = vld [vmem:[%s138 + $0x59] sm:$0xff]
      %v2178 = vld [vmem:[%s138 + $0x61] sm:$0xff]
      %v2179 = vld [vmem:[%s138 + $0x69] sm:$0xff]
      %v2180 = vld [vmem:[%s138 + $0x71] sm:$0xff]
      %v2181 = vld [vmem:[%s138 + $0x79] sm:$0xff]
      %v2182 = vld [vmem:[%s138 + $0x81] sm:$0xff]
      %v2183 = vld [vmem:[%s138 + $0x89] sm:$0xff]
      %v2184 = vld [vmem:[%s138 + $0x91] sm:$0xff]
      %v2185 = vld [vmem:[%s138 + $0x99] sm:$0xff]
      %v2186 = vld [vmem:[%s138 + $0xa1] sm:$0xff]
      %v2187 = vld [vmem:[%s138 + $0xa9] sm:$0xff]
      %v2188 = vld [vmem:[%s138 + $0xb1] sm:$0xff]
      %v2189 = vld [vmem:[%s138 + $0xb9] sm:$0xff]
      %v2190 = vld [vmem:[%s138 + $0xc1] sm:$0xff]
      %v2191 = vld [vmem:[%s138 + $0xc9] sm:$0xff]
      %v2192 = vld [vmem:[%s138 + $0xd1] sm:$0xff]
      %v2193 = vld [vmem:[%s138 + $0xd9] sm:$0xff]
      %v2194 = vld [vmem:[%s138 + $0xe1] sm:$0xff]
      %v2195 = vld [vmem:[%s138 + $0xe9] sm:$0xff]
      %v2196 = vld [vmem:[%s138 + $0xf1] sm:$0xff]
      %v2197 = vld [vmem:[%s138 + $0xf9] sm:$0xff]
      %v2198 = vld [vmem:[%s138 + $0x101] sm:$0xff]
      %v2199 = vld [vmem:[%s138 + $0x109] sm:$0xff]
      %v2200 = vsel %vm1943, %v2168, 0.0
      %v2201 = vsel %vm1944, %v2169, 0.0
      %v2202 = vsel %vm1945, %v2170, 0.0
      %v2203 = vsel %vm1946, %v2171, 0.0
      %v2204 = vsel %vm1947, %v2172, 0.0
      %v2205 = vsel %vm1948, %v2173, 0.0
      %v2206 = vsel %vm1949, %v2174, 0.0
      %v2207 = vsel %vm1950, %v2175, 0.0
      %v2208 = vsel %vm1951, %v2176, 0.0
      %v2209 = vsel %vm1952, %v2177, 0.0
      %v2210 = vsel %vm1953, %v2178, 0.0
      %v2211 = vsel %vm1954, %v2179, 0.0
      %v2212 = vsel %vm1955, %v2180, 0.0
      %v2213 = vsel %vm1956, %v2181, 0.0
      %v2214 = vsel %vm1957, %v2182, 0.0
      %v2215 = vsel %vm1958, %v2183, 0.0
      %v2216 = vsel %vm1959, %v2184, 0.0
      %v2217 = vsel %vm1960, %v2185, 0.0
      %v2218 = vsel %vm1961, %v2186, 0.0
      %v2219 = vsel %vm1962, %v2187, 0.0
      %v2220 = vsel %vm1963, %v2188, 0.0
      %v2221 = vsel %vm1964, %v2189, 0.0
      %v2222 = vsel %vm1965, %v2190, 0.0
      %v2223 = vsel %vm1966, %v2191, 0.0
      %v2224 = vsel %vm1967, %v2192, 0.0
      %v2225 = vsel %vm1968, %v2193, 0.0
      %v2226 = vsel %vm1969, %v2194, 0.0
      %v2227 = vsel %vm1970, %v2195, 0.0
      %v2228 = vsel %vm1971, %v2196, 0.0
      %v2229 = vsel %vm1972, %v2197, 0.0
      %v2230 = vsel %vm1973, %v2198, 0.0
      %v2231 = vsel %vm1974, %v2199, 0.0
      %2264 = vrot.lane.b32.xlu0 %v2200, 24
      %v2265 = vpop.permute.xlu0 %2264
      %2266 = vrot.lane.b32.xlu0 %v2201, 24
      %v2267 = vpop.permute.xlu0 %2266
      %2268 = vrot.lane.b32.xlu0 %v2202, 24
      %v2269 = vpop.permute.xlu0 %2268
      %2270 = vrot.lane.b32.xlu0 %v2203, 24
      %v2271 = vpop.permute.xlu0 %2270
      %2272 = vrot.lane.b32.xlu0 %v2204, 24
      %v2273 = vpop.permute.xlu0 %2272
      %2274 = vrot.lane.b32.xlu0 %v2205, 24
      %v2275 = vpop.permute.xlu0 %2274
      %2276 = vrot.lane.b32.xlu0 %v2206, 24
      %v2277 = vpop.permute.xlu0 %2276
      %2278 = vrot.lane.b32.xlu0 %v2207, 24
      %v2279 = vpop.permute.xlu0 %2278
      %2280 = vrot.lane.b32.xlu0 %v2208, 24
      %v2281 = vpop.permute.xlu0 %2280
      %2282 = vrot.lane.b32.xlu0 %v2209, 24
      %v2283 = vpop.permute.xlu0 %2282
      %2284 = vrot.lane.b32.xlu0 %v2210, 24
      %v2285 = vpop.permute.xlu0 %2284
      %2286 = vrot.lane.b32.xlu0 %v2211, 24
      %v2287 = vpop.permute.xlu0 %2286
      %2288 = vrot.lane.b32.xlu0 %v2212, 24
      %v2289 = vpop.permute.xlu0 %2288
      %2290 = vrot.lane.b32.xlu0 %v2213, 24
      %v2291 = vpop.permute.xlu0 %2290
      %2292 = vrot.lane.b32.xlu0 %v2214, 24
      %v2293 = vpop.permute.xlu0 %2292
      %2294 = vrot.lane.b32.xlu0 %v2215, 24
      %v2295 = vpop.permute.xlu0 %2294
      %2296 = vrot.lane.b32.xlu0 %v2216, 24
      %v2297 = vpop.permute.xlu0 %2296
      %2298 = vrot.lane.b32.xlu0 %v2217, 24
      %v2299 = vpop.permute.xlu0 %2298
      %2300 = vrot.lane.b32.xlu0 %v2218, 24
      %v2301 = vpop.permute.xlu0 %2300
      %2302 = vrot.lane.b32.xlu0 %v2219, 24
      %v2303 = vpop.permute.xlu0 %2302
      %2304 = vrot.lane.b32.xlu0 %v2220, 24
      %v2305 = vpop.permute.xlu0 %2304
      %2306 = vrot.lane.b32.xlu0 %v2221, 24
      %v2307 = vpop.permute.xlu0 %2306
      %2308 = vrot.lane.b32.xlu0 %v2222, 24
      %v2309 = vpop.permute.xlu0 %2308
      %2310 = vrot.lane.b32.xlu0 %v2223, 24
      %v2311 = vpop.permute.xlu0 %2310
      %2312 = vrot.lane.b32.xlu0 %v2224, 24
      %v2313 = vpop.permute.xlu0 %2312
      %2314 = vrot.lane.b32.xlu0 %v2225, 24
      %v2315 = vpop.permute.xlu0 %2314
      %2316 = vrot.lane.b32.xlu0 %v2226, 24
      %v2317 = vpop.permute.xlu0 %2316
      %2318 = vrot.lane.b32.xlu0 %v2227, 24
      %v2319 = vpop.permute.xlu0 %2318
      %2320 = vrot.lane.b32.xlu0 %v2228, 24
      %v2321 = vpop.permute.xlu0 %2320
      %2322 = vrot.lane.b32.xlu0 %v2229, 24
      %v2323 = vpop.permute.xlu0 %2322
      %2324 = vrot.lane.b32.xlu0 %v2230, 24
      %v2325 = vpop.permute.xlu0 %2324
      %2326 = vrot.lane.b32.xlu0 %v2231, 24
      %v2327 = vpop.permute.xlu0 %2326
      %vm2360 = vcmask 228544
      %2361 = vst.msk [vmem:[#allocation2] sm:$0xff] %vm2360, %v2265
      %2362 = vst.msk [vmem:[#allocation2 + $0x8] sm:$0xff] %vm2360, %v2267
      %2363 = vst.msk [vmem:[#allocation2 + $0x10] sm:$0xff] %vm2360, %v2269
      %2364 = vst.msk [vmem:[#allocation2 + $0x18] sm:$0xff] %vm2360, %v2271
      %2365 = vst.msk [vmem:[#allocation2 + $0x20] sm:$0xff] %vm2360, %v2273
      %2366 = vst.msk [vmem:[#allocation2 + $0x28] sm:$0xff] %vm2360, %v2275
      %2367 = vst.msk [vmem:[#allocation2 + $0x30] sm:$0xff] %vm2360, %v2277
      %2368 = vst.msk [vmem:[#allocation2 + $0x38] sm:$0xff] %vm2360, %v2279
      %2369 = vst.msk [vmem:[#allocation2 + $0x40] sm:$0xff] %vm2360, %v2281
      %2370 = vst.msk [vmem:[#allocation2 + $0x48] sm:$0xff] %vm2360, %v2283
      %2371 = vst.msk [vmem:[#allocation2 + $0x50] sm:$0xff] %vm2360, %v2285
      %2372 = vst.msk [vmem:[#allocation2 + $0x58] sm:$0xff] %vm2360, %v2287
      %2373 = vst.msk [vmem:[#allocation2 + $0x60] sm:$0xff] %vm2360, %v2289
      %2374 = vst.msk [vmem:[#allocation2 + $0x68] sm:$0xff] %vm2360, %v2291
      %2375 = vst.msk [vmem:[#allocation2 + $0x70] sm:$0xff] %vm2360, %v2293
      %2376 = vst.msk [vmem:[#allocation2 + $0x78] sm:$0xff] %vm2360, %v2295
      %2377 = vst.msk [vmem:[#allocation2 + $0x80] sm:$0xff] %vm2360, %v2297
      %2378 = vst.msk [vmem:[#allocation2 + $0x88] sm:$0xff] %vm2360, %v2299
      %2379 = vst.msk [vmem:[#allocation2 + $0x90] sm:$0xff] %vm2360, %v2301
      %2380 = vst.msk [vmem:[#allocation2 + $0x98] sm:$0xff] %vm2360, %v2303
      %2381 = vst.msk [vmem:[#allocation2 + $0xa0] sm:$0xff] %vm2360, %v2305
      %2382 = vst.msk [vmem:[#allocation2 + $0xa8] sm:$0xff] %vm2360, %v2307
      %2383 = vst.msk [vmem:[#allocation2 + $0xb0] sm:$0xff] %vm2360, %v2309
      %2384 = vst.msk [vmem:[#allocation2 + $0xb8] sm:$0xff] %vm2360, %v2311
      %2385 = vst.msk [vmem:[#allocation2 + $0xc0] sm:$0xff] %vm2360, %v2313
      %2386 = vst.msk [vmem:[#allocation2 + $0xc8] sm:$0xff] %vm2360, %v2315
      %2387 = vst.msk [vmem:[#allocation2 + $0xd0] sm:$0xff] %vm2360, %v2317
      %2388 = vst.msk [vmem:[#allocation2 + $0xd8] sm:$0xff] %vm2360, %v2319
      %2389 = vst.msk [vmem:[#allocation2 + $0xe0] sm:$0xff] %vm2360, %v2321
      %2390 = vst.msk [vmem:[#allocation2 + $0xe8] sm:$0xff] %vm2360, %v2323
      %2391 = vst.msk [vmem:[#allocation2 + $0xf0] sm:$0xff] %vm2360, %v2325
      %2392 = vst.msk [vmem:[#allocation2 + $0xf8] sm:$0xff] %vm2360, %v2327
      %v2393 = vld [vmem:[%s138 + $0x21] sm:$0xff]
      %v2394 = vld [vmem:[%s138 + $0x29] sm:$0xff]
      %v2395 = vld [vmem:[%s138 + $0x31] sm:$0xff]
      %v2396 = vld [vmem:[%s138 + $0x39] sm:$0xff]
      %v2397 = vld [vmem:[%s138 + $0x41] sm:$0xff]
      %v2398 = vld [vmem:[%s138 + $0x49] sm:$0xff]
      %v2399 = vld [vmem:[%s138 + $0x51] sm:$0xff]
      %v2400 = vld [vmem:[%s138 + $0x59] sm:$0xff]
      %v2401 = vld [vmem:[%s138 + $0x61] sm:$0xff]
      %v2402 = vld [vmem:[%s138 + $0x69] sm:$0xff]
      %v2403 = vld [vmem:[%s138 + $0x71] sm:$0xff]
      %v2404 = vld [vmem:[%s138 + $0x79] sm:$0xff]
      %v2405 = vld [vmem:[%s138 + $0x81] sm:$0xff]
      %v2406 = vld [vmem:[%s138 + $0x89] sm:$0xff]
      %v2407 = vld [vmem:[%s138 + $0x91] sm:$0xff]
      %v2408 = vld [vmem:[%s138 + $0x99] sm:$0xff]
      %v2409 = vld [vmem:[%s138 + $0xa1] sm:$0xff]
      %v2410 = vld [vmem:[%s138 + $0xa9] sm:$0xff]
      %v2411 = vld [vmem:[%s138 + $0xb1] sm:$0xff]
      %v2412 = vld [vmem:[%s138 + $0xb9] sm:$0xff]
      %v2413 = vld [vmem:[%s138 + $0xc1] sm:$0xff]
      %v2414 = vld [vmem:[%s138 + $0xc9] sm:$0xff]
      %v2415 = vld [vmem:[%s138 + $0xd1] sm:$0xff]
      %v2416 = vld [vmem:[%s138 + $0xd9] sm:$0xff]
      %v2417 = vld [vmem:[%s138 + $0xe1] sm:$0xff]
      %v2418 = vld [vmem:[%s138 + $0xe9] sm:$0xff]
      %v2419 = vld [vmem:[%s138 + $0xf1] sm:$0xff]
      %v2420 = vld [vmem:[%s138 + $0xf9] sm:$0xff]
      %v2421 = vld [vmem:[%s138 + $0x101] sm:$0xff]
      %v2422 = vld [vmem:[%s138 + $0x109] sm:$0xff]
      %v2423 = vld [vmem:[%s138 + $0x111] sm:$0xff]
      %v2424 = vld [vmem:[%s138 + $0x119] sm:$0xff]
      %v2425 = vsel %vm1943, %v2393, 0.0
      %v2426 = vsel %vm1944, %v2394, 0.0
      %v2427 = vsel %vm1945, %v2395, 0.0
      %v2428 = vsel %vm1946, %v2396, 0.0
      %v2429 = vsel %vm1947, %v2397, 0.0
      %v2430 = vsel %vm1948, %v2398, 0.0
      %v2431 = vsel %vm1949, %v2399, 0.0
      %v2432 = vsel %vm1950, %v2400, 0.0
      %v2433 = vsel %vm1951, %v2401, 0.0
      %v2434 = vsel %vm1952, %v2402, 0.0
      %v2435 = vsel %vm1953, %v2403, 0.0
      %v2436 = vsel %vm1954, %v2404, 0.0
      %v2437 = vsel %vm1955, %v2405, 0.0
      %v2438 = vsel %vm1956, %v2406, 0.0
      %v2439 = vsel %vm1957, %v2407, 0.0
      %v2440 = vsel %vm1958, %v2408, 0.0
      %v2441 = vsel %vm1959, %v2409, 0.0
      %v2442 = vsel %vm1960, %v2410, 0.0
      %v2443 = vsel %vm1961, %v2411, 0.0
      %v2444 = vsel %vm1962, %v2412, 0.0
      %v2445 = vsel %vm1963, %v2413, 0.0
      %v2446 = vsel %vm1964, %v2414, 0.0
      %v2447 = vsel %vm1965, %v2415, 0.0
      %v2448 = vsel %vm1966, %v2416, 0.0
      %v2449 = vsel %vm1967, %v2417, 0.0
      %v2450 = vsel %vm1968, %v2418, 0.0
      %v2451 = vsel %vm1969, %v2419, 0.0
      %v2452 = vsel %vm1970, %v2420, 0.0
      %v2453 = vsel %vm1971, %v2421, 0.0
      %v2454 = vsel %vm1972, %v2422, 0.0
      %v2455 = vsel %vm1973, %v2423, 0.0
      %v2456 = vsel %vm1974, %v2424, 0.0
      %2489 = vrot.lane.b32.xlu0 %v2425, 44
      %v2490 = vpop.permute.xlu0 %2489
      %2491 = vrot.lane.b32.xlu0 %v2426, 44
      %v2492 = vpop.permute.xlu0 %2491
      %2493 = vrot.lane.b32.xlu0 %v2427, 44
      %v2494 = vpop.permute.xlu0 %2493
      %2495 = vrot.lane.b32.xlu0 %v2428, 44
      %v2496 = vpop.permute.xlu0 %2495
      %2497 = vrot.lane.b32.xlu0 %v2429, 44
      %v2498 = vpop.permute.xlu0 %2497
      %2499 = vrot.lane.b32.xlu0 %v2430, 44
      %v2500 = vpop.permute.xlu0 %2499
      %2501 = vrot.lane.b32.xlu0 %v2431, 44
      %v2502 = vpop.permute.xlu0 %2501
      %2503 = vrot.lane.b32.xlu0 %v2432, 44
      %v2504 = vpop.permute.xlu0 %2503
      %2505 = vrot.lane.b32.xlu0 %v2433, 44
      %v2506 = vpop.permute.xlu0 %2505
      %2507 = vrot.lane.b32.xlu0 %v2434, 44
      %v2508 = vpop.permute.xlu0 %2507
      %2509 = vrot.lane.b32.xlu0 %v2435, 44
      %v2510 = vpop.permute.xlu0 %2509
      %2511 = vrot.lane.b32.xlu0 %v2436, 44
      %v2512 = vpop.permute.xlu0 %2511
      %2513 = vrot.lane.b32.xlu0 %v2437, 44
      %v2514 = vpop.permute.xlu0 %2513
      %2515 = vrot.lane.b32.xlu0 %v2438, 44
      %v2516 = vpop.permute.xlu0 %2515
      %2517 = vrot.lane.b32.xlu0 %v2439, 44
      %v2518 = vpop.permute.xlu0 %2517
      %2519 = vrot.lane.b32.xlu0 %v2440, 44
      %v2520 = vpop.permute.xlu0 %2519
      %2521 = vrot.lane.b32.xlu0 %v2441, 44
      %v2522 = vpop.permute.xlu0 %2521
      %2523 = vrot.lane.b32.xlu0 %v2442, 44
      %v2524 = vpop.permute.xlu0 %2523
      %2525 = vrot.lane.b32.xlu0 %v2443, 44
      %v2526 = vpop.permute.xlu0 %2525
      %2527 = vrot.lane.b32.xlu0 %v2444, 44
      %v2528 = vpop.permute.xlu0 %2527
      %2529 = vrot.lane.b32.xlu0 %v2445, 44
      %v2530 = vpop.permute.xlu0 %2529
      %2531 = vrot.lane.b32.xlu0 %v2446, 44
      %v2532 = vpop.permute.xlu0 %2531
      %2533 = vrot.lane.b32.xlu0 %v2447, 44
      %v2534 = vpop.permute.xlu0 %2533
      %2535 = vrot.lane.b32.xlu0 %v2448, 44
      %v2536 = vpop.permute.xlu0 %2535
      %2537 = vrot.lane.b32.xlu0 %v2449, 44
      %v2538 = vpop.permute.xlu0 %2537
      %2539 = vrot.lane.b32.xlu0 %v2450, 44
      %v2540 = vpop.permute.xlu0 %2539
      %2541 = vrot.lane.b32.xlu0 %v2451, 44
      %v2542 = vpop.permute.xlu0 %2541
      %2543 = vrot.lane.b32.xlu0 %v2452, 44
      %v2544 = vpop.permute.xlu0 %2543
      %2545 = vrot.lane.b32.xlu0 %v2453, 44
      %v2546 = vpop.permute.xlu0 %2545
      %2547 = vrot.lane.b32.xlu0 %v2454, 44
      %v2548 = vpop.permute.xlu0 %2547
      %2549 = vrot.lane.b32.xlu0 %v2455, 44
      %v2550 = vpop.permute.xlu0 %2549
      %2551 = vrot.lane.b32.xlu0 %v2456, 44
      %v2552 = vpop.permute.xlu0 %2551
      %vm2585 = vcmask 392544
      %2586 = vst.msk [vmem:[#allocation2] sm:$0xff] %vm2585, %v2490
      %2587 = vst.msk [vmem:[#allocation2 + $0x8] sm:$0xff] %vm2585, %v2492
      %2588 = vst.msk [vmem:[#allocation2 + $0x10] sm:$0xff] %vm2585, %v2494
      %2589 = vst.msk [vmem:[#allocation2 + $0x18] sm:$0xff] %vm2585, %v2496
      %2590 = vst.msk [vmem:[#allocation2 + $0x20] sm:$0xff] %vm2585, %v2498
      %2591 = vst.msk [vmem:[#allocation2 + $0x28] sm:$0xff] %vm2585, %v2500
      %2592 = vst.msk [vmem:[#allocation2 + $0x30] sm:$0xff] %vm2585, %v2502
      %2593 = vst.msk [vmem:[#allocation2 + $0x38] sm:$0xff] %vm2585, %v2504
      %2594 = vst.msk [vmem:[#allocation2 + $0x40] sm:$0xff] %vm2585, %v2506
      %2595 = vst.msk [vmem:[#allocation2 + $0x48] sm:$0xff] %vm2585, %v2508
      %2596 = vst.msk [vmem:[#allocation2 + $0x50] sm:$0xff] %vm2585, %v2510
      %2597 = vst.msk [vmem:[#allocation2 + $0x58] sm:$0xff] %vm2585, %v2512
      %2598 = vst.msk [vmem:[#allocation2 + $0x60] sm:$0xff] %vm2585, %v2514
      %2599 = vst.msk [vmem:[#allocation2 + $0x68] sm:$0xff] %vm2585, %v2516
      %2600 = vst.msk [vmem:[#allocation2 + $0x70] sm:$0xff] %vm2585, %v2518
      %2601 = vst.msk [vmem:[#allocation2 + $0x78] sm:$0xff] %vm2585, %v2520
      %2602 = vst.msk [vmem:[#allocation2 + $0x80] sm:$0xff] %vm2585, %v2522
      %2603 = vst.msk [vmem:[#allocation2 + $0x88] sm:$0xff] %vm2585, %v2524
      %2604 = vst.msk [vmem:[#allocation2 + $0x90] sm:$0xff] %vm2585, %v2526
      %2605 = vst.msk [vmem:[#allocation2 + $0x98] sm:$0xff] %vm2585, %v2528
      %2606 = vst.msk [vmem:[#allocation2 + $0xa0] sm:$0xff] %vm2585, %v2530
      %2607 = vst.msk [vmem:[#allocation2 + $0xa8] sm:$0xff] %vm2585, %v2532
      %2608 = vst.msk [vmem:[#allocation2 + $0xb0] sm:$0xff] %vm2585, %v2534
      %2609 = vst.msk [vmem:[#allocation2 + $0xb8] sm:$0xff] %vm2585, %v2536
      %2610 = vst.msk [vmem:[#allocation2 + $0xc0] sm:$0xff] %vm2585, %v2538
      %2611 = vst.msk [vmem:[#allocation2 + $0xc8] sm:$0xff] %vm2585, %v2540
      %2612 = vst.msk [vmem:[#allocation2 + $0xd0] sm:$0xff] %vm2585, %v2542
      %2613 = vst.msk [vmem:[#allocation2 + $0xd8] sm:$0xff] %vm2585, %v2544
      %2614 = vst.msk [vmem:[#allocation2 + $0xe0] sm:$0xff] %vm2585, %v2546
      %2615 = vst.msk [vmem:[#allocation2 + $0xe8] sm:$0xff] %vm2585, %v2548
      %2616 = vst.msk [vmem:[#allocation2 + $0xf0] sm:$0xff] %vm2585, %v2550
      %2617 = vst.msk [vmem:[#allocation2 + $0xf8] sm:$0xff] %vm2585, %v2552
      %v2618 = vld [vmem:[%s138 + $0x31] sm:$0xff]
      %v2619 = vld [vmem:[%s138 + $0x39] sm:$0xff]
      %v2620 = vld [vmem:[%s138 + $0x41] sm:$0xff]
      %v2621 = vld [vmem:[%s138 + $0x49] sm:$0xff]
      %v2622 = vld [vmem:[%s138 + $0x51] sm:$0xff]
      %v2623 = vld [vmem:[%s138 + $0x59] sm:$0xff]
      %v2624 = vld [vmem:[%s138 + $0x61] sm:$0xff]
      %v2625 = vld [vmem:[%s138 + $0x69] sm:$0xff]
      %v2626 = vld [vmem:[%s138 + $0x71] sm:$0xff]
      %v2627 = vld [vmem:[%s138 + $0x79] sm:$0xff]
      %v2628 = vld [vmem:[%s138 + $0x81] sm:$0xff]
      %v2629 = vld [vmem:[%s138 + $0x89] sm:$0xff]
      %v2630 = vld [vmem:[%s138 + $0x91] sm:$0xff]
      %v2631 = vld [vmem:[%s138 + $0x99] sm:$0xff]
      %v2632 = vld [vmem:[%s138 + $0xa1] sm:$0xff]
      %v2633 = vld [vmem:[%s138 + $0xa9] sm:$0xff]
      %v2634 = vld [vmem:[%s138 + $0xb1] sm:$0xff]
      %v2635 = vld [vmem:[%s138 + $0xb9] sm:$0xff]
      %v2636 = vld [vmem:[%s138 + $0xc1] sm:$0xff]
      %v2637 = vld [vmem:[%s138 + $0xc9] sm:$0xff]
      %v2638 = vld [vmem:[%s138 + $0xd1] sm:$0xff]
      %v2639 = vld [vmem:[%s138 + $0xd9] sm:$0xff]
      %v2640 = vld [vmem:[%s138 + $0xe1] sm:$0xff]
      %v2641 = vld [vmem:[%s138 + $0xe9] sm:$0xff]
      %v2642 = vld [vmem:[%s138 + $0xf1] sm:$0xff]
      %v2643 = vld [vmem:[%s138 + $0xf9] sm:$0xff]
      %v2644 = vld [vmem:[%s138 + $0x101] sm:$0xff]
      %v2645 = vld [vmem:[%s138 + $0x109] sm:$0xff]
      %v2646 = vld [vmem:[%s138 + $0x111] sm:$0xff]
      %v2647 = vld [vmem:[%s138 + $0x119] sm:$0xff]
      %v2648 = vld [vmem:[%s138 + $0x121] sm:$0xff]
      %v2649 = vld [vmem:[%s138 + $0x129] sm:$0xff]
      %v2650 = vsel %vm1943, %v2618, 0.0
      %v2651 = vsel %vm1944, %v2619, 0.0
      %v2652 = vsel %vm1945, %v2620, 0.0
      %v2653 = vsel %vm1946, %v2621, 0.0
      %v2654 = vsel %vm1947, %v2622, 0.0
      %v2655 = vsel %vm1948, %v2623, 0.0
      %v2656 = vsel %vm1949, %v2624, 0.0
      %v2657 = vsel %vm1950, %v2625, 0.0
      %v2658 = vsel %vm1951, %v2626, 0.0
      %v2659 = vsel %vm1952, %v2627, 0.0
      %v2660 = vsel %vm1953, %v2628, 0.0
      %v2661 = vsel %vm1954, %v2629, 0.0
      %v2662 = vsel %vm1955, %v2630, 0.0
      %v2663 = vsel %vm1956, %v2631, 0.0
      %v2664 = vsel %vm1957, %v2632, 0.0
      %v2665 = vsel %vm1958, %v2633, 0.0
      %v2666 = vsel %vm1959, %v2634, 0.0
      %v2667 = vsel %vm1960, %v2635, 0.0
      %v2668 = vsel %vm1961, %v2636, 0.0
      %v2669 = vsel %vm1962, %v2637, 0.0
      %v2670 = vsel %vm1963, %v2638, 0.0
      %v2671 = vsel %vm1964, %v2639, 0.0
      %v2672 = vsel %vm1965, %v2640, 0.0
      %v2673 = vsel %vm1966, %v2641, 0.0
      %v2674 = vsel %vm1967, %v2642, 0.0
      %v2675 = vsel %vm1968, %v2643, 0.0
      %v2676 = vsel %vm1969, %v2644, 0.0
      %v2677 = vsel %vm1970, %v2645, 0.0
      %v2678 = vsel %vm1971, %v2646, 0.0
      %v2679 = vsel %vm1972, %v2647, 0.0
      %v2680 = vsel %vm1973, %v2648, 0.0
      %v2681 = vsel %vm1974, %v2649, 0.0
      %2714 = vrot.lane.b32.xlu0 %v2650, 64
      %v2715 = vpop.permute.xlu0 %2714
      %2716 = vrot.lane.b32.xlu0 %v2651, 64
      %v2717 = vpop.permute.xlu0 %2716
      %2718 = vrot.lane.b32.xlu0 %v2652, 64
      %v2719 = vpop.permute.xlu0 %2718
      %2720 = vrot.lane.b32.xlu0 %v2653, 64
      %v2721 = vpop.permute.xlu0 %2720
      %2722 = vrot.lane.b32.xlu0 %v2654, 64
      %v2723 = vpop.permute.xlu0 %2722
      %2724 = vrot.lane.b32.xlu0 %v2655, 64
      %v2725 = vpop.permute.xlu0 %2724
      %2726 = vrot.lane.b32.xlu0 %v2656, 64
      %v2727 = vpop.permute.xlu0 %2726
      %2728 = vrot.lane.b32.xlu0 %v2657, 64
      %v2729 = vpop.permute.xlu0 %2728
      %2730 = vrot.lane.b32.xlu0 %v2658, 64
      %v2731 = vpop.permute.xlu0 %2730
      %2732 = vrot.lane.b32.xlu0 %v2659, 64
      %v2733 = vpop.permute.xlu0 %2732
      %2734 = vrot.lane.b32.xlu0 %v2660, 64
      %v2735 = vpop.permute.xlu0 %2734
      %2736 = vrot.lane.b32.xlu0 %v2661, 64
      %v2737 = vpop.permute.xlu0 %2736
      %2738 = vrot.lane.b32.xlu0 %v2662, 64
      %v2739 = vpop.permute.xlu0 %2738
      %2740 = vrot.lane.b32.xlu0 %v2663, 64
      %v2741 = vpop.permute.xlu0 %2740
      %2742 = vrot.lane.b32.xlu0 %v2664, 64
      %v2743 = vpop.permute.xlu0 %2742
      %2744 = vrot.lane.b32.xlu0 %v2665, 64
      %v2745 = vpop.permute.xlu0 %2744
      %2746 = vrot.lane.b32.xlu0 %v2666, 64
      %v2747 = vpop.permute.xlu0 %2746
      %2748 = vrot.lane.b32.xlu0 %v2667, 64
      %v2749 = vpop.permute.xlu0 %2748
      %2750 = vrot.lane.b32.xlu0 %v2668, 64
      %v2751 = vpop.permute.xlu0 %2750
      %2752 = vrot.lane.b32.xlu0 %v2669, 64
      %v2753 = vpop.permute.xlu0 %2752
      %2754 = vrot.lane.b32.xlu0 %v2670, 64
      %v2755 = vpop.permute.xlu0 %2754
      %2756 = vrot.lane.b32.xlu0 %v2671, 64
      %v2757 = vpop.permute.xlu0 %2756
      %2758 = vrot.lane.b32.xlu0 %v2672, 64
      %v2759 = vpop.permute.xlu0 %2758
      %2760 = vrot.lane.b32.xlu0 %v2673, 64
      %v2761 = vpop.permute.xlu0 %2760
      %2762 = vrot.lane.b32.xlu0 %v2674, 64
      %v2763 = vpop.permute.xlu0 %2762
      %2764 = vrot.lane.b32.xlu0 %v2675, 64
      %v2765 = vpop.permute.xlu0 %2764
      %2766 = vrot.lane.b32.xlu0 %v2676, 64
      %v2767 = vpop.permute.xlu0 %2766
      %2768 = vrot.lane.b32.xlu0 %v2677, 64
      %v2769 = vpop.permute.xlu0 %2768
      %2770 = vrot.lane.b32.xlu0 %v2678, 64
      %v2771 = vpop.permute.xlu0 %2770
      %2772 = vrot.lane.b32.xlu0 %v2679, 64
      %v2773 = vpop.permute.xlu0 %2772
      %2774 = vrot.lane.b32.xlu0 %v2680, 64
      %v2775 = vpop.permute.xlu0 %2774
      %2776 = vrot.lane.b32.xlu0 %v2681, 64
      %v2777 = vpop.permute.xlu0 %2776
      %vm2810 = vcmask 556544
      %2811 = vst.msk [vmem:[#allocation2] sm:$0xff] %vm2810, %v2715
      %2812 = vst.msk [vmem:[#allocation2 + $0x8] sm:$0xff] %vm2810, %v2717
      %2813 = vst.msk [vmem:[#allocation2 + $0x10] sm:$0xff] %vm2810, %v2719
      %2814 = vst.msk [vmem:[#allocation2 + $0x18] sm:$0xff] %vm2810, %v2721
      %2815 = vst.msk [vmem:[#allocation2 + $0x20] sm:$0xff] %vm2810, %v2723
      %2816 = vst.msk [vmem:[#allocation2 + $0x28] sm:$0xff] %vm2810, %v2725
      %2817 = vst.msk [vmem:[#allocation2 + $0x30] sm:$0xff] %vm2810, %v2727
      %2818 = vst.msk [vmem:[#allocation2 + $0x38] sm:$0xff] %vm2810, %v2729
      %2819 = vst.msk [vmem:[#allocation2 + $0x40] sm:$0xff] %vm2810, %v2731
      %2820 = vst.msk [vmem:[#allocation2 + $0x48] sm:$0xff] %vm2810, %v2733
      %2821 = vst.msk [vmem:[#allocation2 + $0x50] sm:$0xff] %vm2810, %v2735
      %2822 = vst.msk [vmem:[#allocation2 + $0x58] sm:$0xff] %vm2810, %v2737
      %2823 = vst.msk [vmem:[#allocation2 + $0x60] sm:$0xff] %vm2810, %v2739
      %2824 = vst.msk [vmem:[#allocation2 + $0x68] sm:$0xff] %vm2810, %v2741
      %2825 = vst.msk [vmem:[#allocation2 + $0x70] sm:$0xff] %vm2810, %v2743
      %2826 = vst.msk [vmem:[#allocation2 + $0x78] sm:$0xff] %vm2810, %v2745
      %2827 = vst.msk [vmem:[#allocation2 + $0x80] sm:$0xff] %vm2810, %v2747
      %2828 = vst.msk [vmem:[#allocation2 + $0x88] sm:$0xff] %vm2810, %v2749
      %2829 = vst.msk [vmem:[#allocation2 + $0x90] sm:$0xff] %vm2810, %v2751
      %2830 = vst.msk [vmem:[#allocation2 + $0x98] sm:$0xff] %vm2810, %v2753
      %2831 = vst.msk [vmem:[#allocation2 + $0xa0] sm:$0xff] %vm2810, %v2755
      %2832 = vst.msk [vmem:[#allocation2 + $0xa8] sm:$0xff] %vm2810, %v2757
      %2833 = vst.msk [vmem:[#allocation2 + $0xb0] sm:$0xff] %vm2810, %v2759
      %2834 = vst.msk [vmem:[#allocation2 + $0xb8] sm:$0xff] %vm2810, %v2761
      %2835 = vst.msk [vmem:[#allocation2 + $0xc0] sm:$0xff] %vm2810, %v2763
      %2836 = vst.msk [vmem:[#allocation2 + $0xc8] sm:$0xff] %vm2810, %v2765
      %2837 = vst.msk [vmem:[#allocation2 + $0xd0] sm:$0xff] %vm2810, %v2767
      %2838 = vst.msk [vmem:[#allocation2 + $0xd8] sm:$0xff] %vm2810, %v2769
      %2839 = vst.msk [vmem:[#allocation2 + $0xe0] sm:$0xff] %vm2810, %v2771
      %2840 = vst.msk [vmem:[#allocation2 + $0xe8] sm:$0xff] %vm2810, %v2773
      %2841 = vst.msk [vmem:[#allocation2 + $0xf0] sm:$0xff] %vm2810, %v2775
      %2842 = vst.msk [vmem:[#allocation2 + $0xf8] sm:$0xff] %vm2810, %v2777
      %v2843 = vld [vmem:[%s138 + $0x41] sm:$0xff]
      %v2844 = vld [vmem:[%s138 + $0x49] sm:$0xff]
      %v2845 = vld [vmem:[%s138 + $0x51] sm:$0xff]
      %v2846 = vld [vmem:[%s138 + $0x59] sm:$0xff]
      %v2847 = vld [vmem:[%s138 + $0x61] sm:$0xff]
      %v2848 = vld [vmem:[%s138 + $0x69] sm:$0xff]
      %v2849 = vld [vmem:[%s138 + $0x71] sm:$0xff]
      %v2850 = vld [vmem:[%s138 + $0x79] sm:$0xff]
      %v2851 = vld [vmem:[%s138 + $0x81] sm:$0xff]
      %v2852 = vld [vmem:[%s138 + $0x89] sm:$0xff]
      %v2853 = vld [vmem:[%s138 + $0x91] sm:$0xff]
      %v2854 = vld [vmem:[%s138 + $0x99] sm:$0xff]
      %v2855 = vld [vmem:[%s138 + $0xa1] sm:$0xff]
      %v2856 = vld [vmem:[%s138 + $0xa9] sm:$0xff]
      %v2857 = vld [vmem:[%s138 + $0xb1] sm:$0xff]
      %v2858 = vld [vmem:[%s138 + $0xb9] sm:$0xff]
      %v2859 = vld [vmem:[%s138 + $0xc1] sm:$0xff]
      %v2860 = vld [vmem:[%s138 + $0xc9] sm:$0xff]
      %v2861 = vld [vmem:[%s138 + $0xd1] sm:$0xff]
      %v2862 = vld [vmem:[%s138 + $0xd9] sm:$0xff]
      %v2863 = vld [vmem:[%s138 + $0xe1] sm:$0xff]
      %v2864 = vld [vmem:[%s138 + $0xe9] sm:$0xff]
      %v2865 = vld [vmem:[%s138 + $0xf1] sm:$0xff]
      %v2866 = vld [vmem:[%s138 + $0xf9] sm:$0xff]
      %v2867 = vld [vmem:[%s138 + $0x101] sm:$0xff]
      %v2868 = vld [vmem:[%s138 + $0x109] sm:$0xff]
      %v2869 = vld [vmem:[%s138 + $0x111] sm:$0xff]
      %v2870 = vld [vmem:[%s138 + $0x119] sm:$0xff]
      %v2871 = vld [vmem:[%s138 + $0x121] sm:$0xff]
      %v2872 = vld [vmem:[%s138 + $0x129] sm:$0xff]
      %v2873 = vld [vmem:[%s138 + $0x131] sm:$0xff]
      %v2874 = vld [vmem:[%s138 + $0x139] sm:$0xff]
      %v2875 = vsel %vm1943, %v2843, 0.0
      %v2876 = vsel %vm1944, %v2844, 0.0
      %v2877 = vsel %vm1945, %v2845, 0.0
      %v2878 = vsel %vm1946, %v2846, 0.0
      %v2879 = vsel %vm1947, %v2847, 0.0
      %v2880 = vsel %vm1948, %v2848, 0.0
      %v2881 = vsel %vm1949, %v2849, 0.0
      %v2882 = vsel %vm1950, %v2850, 0.0
      %v2883 = vsel %vm1951, %v2851, 0.0
      %v2884 = vsel %vm1952, %v2852, 0.0
      %v2885 = vsel %vm1953, %v2853, 0.0
      %v2886 = vsel %vm1954, %v2854, 0.0
      %v2887 = vsel %vm1955, %v2855, 0.0
      %v2888 = vsel %vm1956, %v2856, 0.0
      %v2889 = vsel %vm1957, %v2857, 0.0
      %v2890 = vsel %vm1958, %v2858, 0.0
      %v2891 = vsel %vm1959, %v2859, 0.0
      %v2892 = vsel %vm1960, %v2860, 0.0
      %v2893 = vsel %vm1961, %v2861, 0.0
      %v2894 = vsel %vm1962, %v2862, 0.0
      %v2895 = vsel %vm1963, %v2863, 0.0
      %v2896 = vsel %vm1964, %v2864, 0.0
      %v2897 = vsel %vm1965, %v2865, 0.0
      %v2898 = vsel %vm1966, %v2866, 0.0
      %v2899 = vsel %vm1967, %v2867, 0.0
      %v2900 = vsel %vm1968, %v2868, 0.0
      %v2901 = vsel %vm1969, %v2869, 0.0
      %v2902 = vsel %vm1970, %v2870, 0.0
      %v2903 = vsel %vm1971, %v2871, 0.0
      %v2904 = vsel %vm1972, %v2872, 0.0
      %v2905 = vsel %vm1973, %v2873, 0.0
      %v2906 = vsel %vm1974, %v2874, 0.0
      %2939 = vrot.lane.b32.xlu0 %v2875, 84
      %v2940 = vpop.permute.xlu0 %2939
      %2941 = vrot.lane.b32.xlu0 %v2876, 84
      %v2942 = vpop.permute.xlu0 %2941
      %2943 = vrot.lane.b32.xlu0 %v2877, 84
      %v2944 = vpop.permute.xlu0 %2943
      %2945 = vrot.lane.b32.xlu0 %v2878, 84
      %v2946 = vpop.permute.xlu0 %2945
      %2947 = vrot.lane.b32.xlu0 %v2879, 84
      %v2948 = vpop.permute.xlu0 %2947
      %2949 = vrot.lane.b32.xlu0 %v2880, 84
      %v2950 = vpop.permute.xlu0 %2949
      %2951 = vrot.lane.b32.xlu0 %v2881, 84
      %v2952 = vpop.permute.xlu0 %2951
      %2953 = vrot.lane.b32.xlu0 %v2882, 84
      %v2954 = vpop.permute.xlu0 %2953
      %2955 = vrot.lane.b32.xlu0 %v2883, 84
      %v2956 = vpop.permute.xlu0 %2955
      %2957 = vrot.lane.b32.xlu0 %v2884, 84
      %v2958 = vpop.permute.xlu0 %2957
      %2959 = vrot.lane.b32.xlu0 %v2885, 84
      %v2960 = vpop.permute.xlu0 %2959
      %2961 = vrot.lane.b32.xlu0 %v2886, 84
      %v2962 = vpop.permute.xlu0 %2961
      %2963 = vrot.lane.b32.xlu0 %v2887, 84
      %v2964 = vpop.permute.xlu0 %2963
      %2965 = vrot.lane.b32.xlu0 %v2888, 84
      %v2966 = vpop.permute.xlu0 %2965
      %2967 = vrot.lane.b32.xlu0 %v2889, 84
      %v2968 = vpop.permute.xlu0 %2967
      %2969 = vrot.lane.b32.xlu0 %v2890, 84
      %v2970 = vpop.permute.xlu0 %2969
      %2971 = vrot.lane.b32.xlu0 %v2891, 84
      %v2972 = vpop.permute.xlu0 %2971
      %2973 = vrot.lane.b32.xlu0 %v2892, 84
      %v2974 = vpop.permute.xlu0 %2973
      %2975 = vrot.lane.b32.xlu0 %v2893, 84
      %v2976 = vpop.permute.xlu0 %2975
      %2977 = vrot.lane.b32.xlu0 %v2894, 84
      %v2978 = vpop.permute.xlu0 %2977
      %2979 = vrot.lane.b32.xlu0 %v2895, 84
      %v2980 = vpop.permute.xlu0 %2979
      %2981 = vrot.lane.b32.xlu0 %v2896, 84
      %v2982 = vpop.permute.xlu0 %2981
      %2983 = vrot.lane.b32.xlu0 %v2897, 84
      %v2984 = vpop.permute.xlu0 %2983
      %2985 = vrot.lane.b32.xlu0 %v2898, 84
      %v2986 = vpop.permute.xlu0 %2985
      %2987 = vrot.lane.b32.xlu0 %v2899, 84
      %v2988 = vpop.permute.xlu0 %2987
      %2989 = vrot.lane.b32.xlu0 %v2900, 84
      %v2990 = vpop.permute.xlu0 %2989
      %2991 = vrot.lane.b32.xlu0 %v2901, 84
      %v2992 = vpop.permute.xlu0 %2991
      %2993 = vrot.lane.b32.xlu0 %v2902, 84
      %v2994 = vpop.permute.xlu0 %2993
      %2995 = vrot.lane.b32.xlu0 %v2903, 84
      %v2996 = vpop.permute.xlu0 %2995
      %2997 = vrot.lane.b32.xlu0 %v2904, 84
      %v2998 = vpop.permute.xlu0 %2997
      %2999 = vrot.lane.b32.xlu0 %v2905, 84
      %v3000 = vpop.permute.xlu0 %2999
      %3001 = vrot.lane.b32.xlu0 %v2906, 84
      %v3002 = vpop.permute.xlu0 %3001
      %vm3035 = vcmask 720544
      %3036 = vst.msk [vmem:[#allocation2] sm:$0xff] %vm3035, %v2940
      %3037 = vst.msk [vmem:[#allocation2 + $0x8] sm:$0xff] %vm3035, %v2942
      %3038 = vst.msk [vmem:[#allocation2 + $0x10] sm:$0xff] %vm3035, %v2944
      %3039 = vst.msk [vmem:[#allocation2 + $0x18] sm:$0xff] %vm3035, %v2946
      %3040 = vst.msk [vmem:[#allocation2 + $0x20] sm:$0xff] %vm3035, %v2948
      %3041 = vst.msk [vmem:[#allocation2 + $0x28] sm:$0xff] %vm3035, %v2950
      %3042 = vst.msk [vmem:[#allocation2 + $0x30] sm:$0xff] %vm3035, %v2952
      %3043 = vst.msk [vmem:[#allocation2 + $0x38] sm:$0xff] %vm3035, %v2954
      %3044 = vst.msk [vmem:[#allocation2 + $0x40] sm:$0xff] %vm3035, %v2956
      %3045 = vst.msk [vmem:[#allocation2 + $0x48] sm:$0xff] %vm3035, %v2958
      %3046 = vst.msk [vmem:[#allocation2 + $0x50] sm:$0xff] %vm3035, %v2960
      %3047 = vst.msk [vmem:[#allocation2 + $0x58] sm:$0xff] %vm3035, %v2962
      %3048 = vst.msk [vmem:[#allocation2 + $0x60] sm:$0xff] %vm3035, %v2964
      %3049 = vst.msk [vmem:[#allocation2 + $0x68] sm:$0xff] %vm3035, %v2966
      %3050 = vst.msk [vmem:[#allocation2 + $0x70] sm:$0xff] %vm3035, %v2968
      %3051 = vst.msk [vmem:[#allocation2 + $0x78] sm:$0xff] %vm3035, %v2970
      %3052 = vst.msk [vmem:[#allocation2 + $0x80] sm:$0xff] %vm3035, %v2972
      %3053 = vst.msk [vmem:[#allocation2 + $0x88] sm:$0xff] %vm3035, %v2974
      %3054 = vst.msk [vmem:[#allocation2 + $0x90] sm:$0xff] %vm3035, %v2976
      %3055 = vst.msk [vmem:[#allocation2 + $0x98] sm:$0xff] %vm3035, %v2978
      %3056 = vst.msk [vmem:[#allocation2 + $0xa0] sm:$0xff] %vm3035, %v2980
      %3057 = vst.msk [vmem:[#allocation2 + $0xa8] sm:$0xff] %vm3035, %v2982
      %3058 = vst.msk [vmem:[#allocation2 + $0xb0] sm:$0xff] %vm3035, %v2984
      %3059 = vst.msk [vmem:[#allocation2 + $0xb8] sm:$0xff] %vm3035, %v2986
      %3060 = vst.msk [vmem:[#allocation2 + $0xc0] sm:$0xff] %vm3035, %v2988
      %3061 = vst.msk [vmem:[#allocation2 + $0xc8] sm:$0xff] %vm3035, %v2990
      %3062 = vst.msk [vmem:[#allocation2 + $0xd0] sm:$0xff] %vm3035, %v2992
      %3063 = vst.msk [vmem:[#allocation2 + $0xd8] sm:$0xff] %vm3035, %v2994
      %3064 = vst.msk [vmem:[#allocation2 + $0xe0] sm:$0xff] %vm3035, %v2996
      %3065 = vst.msk [vmem:[#allocation2 + $0xe8] sm:$0xff] %vm3035, %v2998
      %3066 = vst.msk [vmem:[#allocation2 + $0xf0] sm:$0xff] %vm3035, %v3000
      %3067 = vst.msk [vmem:[#allocation2 + $0xf8] sm:$0xff] %vm3035, %v3002
      %vm3068 = vcmp.ge.s32.totalorder %v530, 0
      %vm3069 = vcmp.ge.s32.totalorder %v531, 0
      %vm3070 = vcmp.ge.s32.totalorder %v532, 0
      %vm3071 = vcmp.ge.s32.totalorder %v533, 0
      %vm3072 = vcmp.ge.s32.totalorder %v534, 0
      %vm3073 = vcmp.ge.s32.totalorder %v535, 0
      %vm3074 = vcmp.ge.s32.totalorder %v536, 0
      %vm3075 = vcmp.ge.s32.totalorder %v537, 0
      %vm3076 = vcmp.ge.s32.totalorder %v538, 0
      %vm3077 = vcmp.ge.s32.totalorder %v539, 0
      %vm3078 = vcmp.ge.s32.totalorder %v540, 0
      %vm3079 = vcmp.ge.s32.totalorder %v541, 0
      %vm3080 = vcmp.ge.s32.totalorder %v542, 0
      %vm3081 = vcmp.ge.s32.totalorder %v543, 0
      %vm3082 = vcmp.ge.s32.totalorder %v544, 0
      %vm3083 = vcmp.ge.s32.totalorder %v545, 0
      %vm3084 = vcmp.ge.s32.totalorder %v546, 0
      %vm3085 = vcmp.ge.s32.totalorder %v547, 0
      %vm3086 = vcmp.ge.s32.totalorder %v548, 0
      %vm3087 = vcmp.ge.s32.totalorder %v549, 0
      %vm3088 = vcmp.ge.s32.totalorder %v550, 0
      %vm3089 = vcmp.ge.s32.totalorder %v551, 0
      %vm3090 = vcmp.ge.s32.totalorder %v552, 0
      %vm3091 = vcmp.ge.s32.totalorder %v553, 0
      %vm3092 = vcmp.ge.s32.totalorder %v554, 0
      %vm3093 = vcmp.ge.s32.totalorder %v555, 0
      %vm3094 = vcmp.ge.s32.totalorder %v556, 0
      %vm3095 = vcmp.ge.s32.totalorder %v557, 0
      %vm3096 = vcmp.ge.s32.totalorder %v558, 0
      %vm3097 = vcmp.ge.s32.totalorder %v559, 0
      %vm3098 = vcmp.ge.s32.totalorder %v560, 0
      %vm3099 = vcmp.ge.s32.totalorder %v561, 0
      %vm3100 = vcmp.lt.s32.totalorder %v530, 16
      %vm3101 = vcmp.lt.s32.totalorder %v531, 16
      %vm3102 = vcmp.lt.s32.totalorder %v532, 16
      %vm3103 = vcmp.lt.s32.totalorder %v533, 16
      %vm3104 = vcmp.lt.s32.totalorder %v534, 16
      %vm3105 = vcmp.lt.s32.totalorder %v535, 16
      %vm3106 = vcmp.lt.s32.totalorder %v536, 16
      %vm3107 = vcmp.lt.s32.totalorder %v537, 16
      %vm3108 = vcmp.lt.s32.totalorder %v538, 16
      %vm3109 = vcmp.lt.s32.totalorder %v539, 16
      %vm3110 = vcmp.lt.s32.totalorder %v540, 16
      %vm3111 = vcmp.lt.s32.totalorder %v541, 16
      %vm3112 = vcmp.lt.s32.totalorder %v542, 16
      %vm3113 = vcmp.lt.s32.totalorder %v543, 16
      %vm3114 = vcmp.lt.s32.totalorder %v544, 16
      %vm3115 = vcmp.lt.s32.totalorder %v545, 16
      %vm3116 = vcmp.lt.s32.totalorder %v546, 16
      %vm3117 = vcmp.lt.s32.totalorder %v547, 16
      %vm3118 = vcmp.lt.s32.totalorder %v548, 16
      %vm3119 = vcmp.lt.s32.totalorder %v549, 16
      %vm3120 = vcmp.lt.s32.totalorder %v550, 16
      %vm3121 = vcmp.lt.s32.totalorder %v551, 16
      %vm3122 = vcmp.lt.s32.totalorder %v552, 16
      %vm3123 = vcmp.lt.s32.totalorder %v553, 16
      %vm3124 = vcmp.lt.s32.totalorder %v554, 16
      %vm3125 = vcmp.lt.s32.totalorder %v555, 16
      %vm3126 = vcmp.lt.s32.totalorder %v556, 16
      %vm3127 = vcmp.lt.s32.totalorder %v557, 16
      %vm3128 = vcmp.lt.s32.totalorder %v558, 16
      %vm3129 = vcmp.lt.s32.totalorder %v559, 16
      %vm3130 = vcmp.lt.s32.totalorder %v560, 16
      %vm3131 = vcmp.lt.s32.totalorder %v561, 16
      %vm3132 = vmand %vm3068, %vm3100
      %vm3133 = vmand %vm3069, %vm3101
      %vm3134 = vmand %vm3070, %vm3102
      %vm3135 = vmand %vm3071, %vm3103
      %vm3136 = vmand %vm3072, %vm3104
      %vm3137 = vmand %vm3073, %vm3105
      %vm3138 = vmand %vm3074, %vm3106
      %vm3139 = vmand %vm3075, %vm3107
      %vm3140 = vmand %vm3076, %vm3108
      %vm3141 = vmand %vm3077, %vm3109
      %vm3142 = vmand %vm3078, %vm3110
      %vm3143 = vmand %vm3079, %vm3111
      %vm3144 = vmand %vm3080, %vm3112
      %vm3145 = vmand %vm3081, %vm3113
      %vm3146 = vmand %vm3082, %vm3114
      %vm3147 = vmand %vm3083, %vm3115
      %vm3148 = vmand %vm3084, %vm3116
      %vm3149 = vmand %vm3085, %vm3117
      %vm3150 = vmand %vm3086, %vm3118
      %vm3151 = vmand %vm3087, %vm3119
      %vm3152 = vmand %vm3088, %vm3120
      %vm3153 = vmand %vm3089, %vm3121
      %vm3154 = vmand %vm3090, %vm3122
      %vm3155 = vmand %vm3091, %vm3123
      %vm3156 = vmand %vm3092, %vm3124
      %vm3157 = vmand %vm3093, %vm3125
      %vm3158 = vmand %vm3094, %vm3126
      %vm3159 = vmand %vm3095, %vm3127
      %vm3160 = vmand %vm3096, %vm3128
      %vm3161 = vmand %vm3097, %vm3129
      %vm3162 = vmand %vm3098, %vm3130
      %vm3163 = vmand %vm3099, %vm3131
      %v3164 = vld [vmem:[%s138 + $0x2] sm:$0xff]
      %v3165 = vld [vmem:[%s138 + $0xa] sm:$0xff]
      %v3166 = vld [vmem:[%s138 + $0x12] sm:$0xff]
      %v3167 = vld [vmem:[%s138 + $0x1a] sm:$0xff]
      %v3168 = vld [vmem:[%s138 + $0x22] sm:$0xff]
      %v3169 = vld [vmem:[%s138 + $0x2a] sm:$0xff]
      %v3170 = vld [vmem:[%s138 + $0x32] sm:$0xff]
      %v3171 = vld [vmem:[%s138 + $0x3a] sm:$0xff]
      %v3172 = vld [vmem:[%s138 + $0x42] sm:$0xff]
      %v3173 = vld [vmem:[%s138 + $0x4a] sm:$0xff]
      %v3174 = vld [vmem:[%s138 + $0x52] sm:$0xff]
      %v3175 = vld [vmem:[%s138 + $0x5a] sm:$0xff]
      %v3176 = vld [vmem:[%s138 + $0x62] sm:$0xff]
      %v3177 = vld [vmem:[%s138 + $0x6a] sm:$0xff]
      %v3178 = vld [vmem:[%s138 + $0x72] sm:$0xff]
      %v3179 = vld [vmem:[%s138 + $0x7a] sm:$0xff]
      %v3180 = vld [vmem:[%s138 + $0x82] sm:$0xff]
      %v3181 = vld [vmem:[%s138 + $0x8a] sm:$0xff]
      %v3182 = vld [vmem:[%s138 + $0x92] sm:$0xff]
      %v3183 = vld [vmem:[%s138 + $0x9a] sm:$0xff]
      %v3184 = vld [vmem:[%s138 + $0xa2] sm:$0xff]
      %v3185 = vld [vmem:[%s138 + $0xaa] sm:$0xff]
      %v3186 = vld [vmem:[%s138 + $0xb2] sm:$0xff]
      %v3187 = vld [vmem:[%s138 + $0xba] sm:$0xff]
      %v3188 = vld [vmem:[%s138 + $0xc2] sm:$0xff]
      %v3189 = vld [vmem:[%s138 + $0xca] sm:$0xff]
      %v3190 = vld [vmem:[%s138 + $0xd2] sm:$0xff]
      %v3191 = vld [vmem:[%s138 + $0xda] sm:$0xff]
      %v3192 = vld [vmem:[%s138 + $0xe2] sm:$0xff]
      %v3193 = vld [vmem:[%s138 + $0xea] sm:$0xff]
      %v3194 = vld [vmem:[%s138 + $0xf2] sm:$0xff]
      %v3195 = vld [vmem:[%s138 + $0xfa] sm:$0xff]
      %v3196 = vsel %vm3132, 1, 0
      %v3197 = vsel %vm3133, 1, 0
      %v3198 = vsel %vm3134, 1, 0
      %v3199 = vsel %vm3135, 1, 0
      %v3200 = vsel %vm3136, 1, 0
      %v3201 = vsel %vm3137, 1, 0
      %v3202 = vsel %vm3138, 1, 0
      %v3203 = vsel %vm3139, 1, 0
      %v3204 = vsel %vm3140, 1, 0
      %v3205 = vsel %vm3141, 1, 0
      %v3206 = vsel %vm3142, 1, 0
      %v3207 = vsel %vm3143, 1, 0
      %v3208 = vsel %vm3144, 1, 0
      %v3209 = vsel %vm3145, 1, 0
      %v3210 = vsel %vm3146, 1, 0
      %v3211 = vsel %vm3147, 1, 0
      %v3212 = vsel %vm3148, 1, 0
      %v3213 = vsel %vm3149, 1, 0
      %v3214 = vsel %vm3150, 1, 0
      %v3215 = vsel %vm3151, 1, 0
      %v3216 = vsel %vm3152, 1, 0
      %v3217 = vsel %vm3153, 1, 0
      %v3218 = vsel %vm3154, 1, 0
      %v3219 = vsel %vm3155, 1, 0
      %v3220 = vsel %vm3156, 1, 0
      %v3221 = vsel %vm3157, 1, 0
      %v3222 = vsel %vm3158, 1, 0
      %v3223 = vsel %vm3159, 1, 0
      %v3224 = vsel %vm3160, 1, 0
      %v3225 = vsel %vm3161, 1, 0
      %v3226 = vsel %vm3162, 1, 0
      %v3227 = vsel %vm3163, 1, 0
      %vm3228 = vcmp.eq.s32.totalorder %v3196, 1
      %vm3229 = vcmp.eq.s32.totalorder %v3197, 1
      %vm3230 = vcmp.eq.s32.totalorder %v3198, 1
      %vm3231 = vcmp.eq.s32.totalorder %v3199, 1
      %vm3232 = vcmp.eq.s32.totalorder %v3200, 1
      %vm3233 = vcmp.eq.s32.totalorder %v3201, 1
      %vm3234 = vcmp.eq.s32.totalorder %v3202, 1
      %vm3235 = vcmp.eq.s32.totalorder %v3203, 1
      %vm3236 = vcmp.eq.s32.totalorder %v3204, 1
      %vm3237 = vcmp.eq.s32.totalorder %v3205, 1
      %vm3238 = vcmp.eq.s32.totalorder %v3206, 1
      %vm3239 = vcmp.eq.s32.totalorder %v3207, 1
      %vm3240 = vcmp.eq.s32.totalorder %v3208, 1
      %vm3241 = vcmp.eq.s32.totalorder %v3209, 1
      %vm3242 = vcmp.eq.s32.totalorder %v3210, 1
      %vm3243 = vcmp.eq.s32.totalorder %v3211, 1
      %vm3244 = vcmp.eq.s32.totalorder %v3212, 1
      %vm3245 = vcmp.eq.s32.totalorder %v3213, 1
      %vm3246 = vcmp.eq.s32.totalorder %v3214, 1
      %vm3247 = vcmp.eq.s32.totalorder %v3215, 1
      %vm3248 = vcmp.eq.s32.totalorder %v3216, 1
      %vm3249 = vcmp.eq.s32.totalorder %v3217, 1
      %vm3250 = vcmp.eq.s32.totalorder %v3218, 1
      %vm3251 = vcmp.eq.s32.totalorder %v3219, 1
      %vm3252 = vcmp.eq.s32.totalorder %v3220, 1
      %vm3253 = vcmp.eq.s32.totalorder %v3221, 1
      %vm3254 = vcmp.eq.s32.totalorder %v3222, 1
      %vm3255 = vcmp.eq.s32.totalorder %v3223, 1
      %vm3256 = vcmp.eq.s32.totalorder %v3224, 1
      %vm3257 = vcmp.eq.s32.totalorder %v3225, 1
      %vm3258 = vcmp.eq.s32.totalorder %v3226, 1
      %vm3259 = vcmp.eq.s32.totalorder %v3227, 1
      %v3260 = vsel %vm3228, %v3164, 0.0
      %v3261 = vsel %vm3229, %v3165, 0.0
      %v3262 = vsel %vm3230, %v3166, 0.0
      %v3263 = vsel %vm3231, %v3167, 0.0
      %v3264 = vsel %vm3232, %v3168, 0.0
      %v3265 = vsel %vm3233, %v3169, 0.0
      %v3266 = vsel %vm3234, %v3170, 0.0
      %v3267 = vsel %vm3235, %v3171, 0.0
      %v3268 = vsel %vm3236, %v3172, 0.0
      %v3269 = vsel %vm3237, %v3173, 0.0
      %v3270 = vsel %vm3238, %v3174, 0.0
      %v3271 = vsel %vm3239, %v3175, 0.0
      %v3272 = vsel %vm3240, %v3176, 0.0
      %v3273 = vsel %vm3241, %v3177, 0.0
      %v3274 = vsel %vm3242, %v3178, 0.0
      %v3275 = vsel %vm3243, %v3179, 0.0
      %v3276 = vsel %vm3244, %v3180, 0.0
      %v3277 = vsel %vm3245, %v3181, 0.0
      %v3278 = vsel %vm3246, %v3182, 0.0
      %v3279 = vsel %vm3247, %v3183, 0.0
      %v3280 = vsel %vm3248, %v3184, 0.0
      %v3281 = vsel %vm3249, %v3185, 0.0
      %v3282 = vsel %vm3250, %v3186, 0.0
      %v3283 = vsel %vm3251, %v3187, 0.0
      %v3284 = vsel %vm3252, %v3188, 0.0
      %v3285 = vsel %vm3253, %v3189, 0.0
      %v3286 = vsel %vm3254, %v3190, 0.0
      %v3287 = vsel %vm3255, %v3191, 0.0
      %v3288 = vsel %vm3256, %v3192, 0.0
      %v3289 = vsel %vm3257, %v3193, 0.0
      %v3290 = vsel %vm3258, %v3194, 0.0
      %v3291 = vsel %vm3259, %v3195, 0.0
      %3324 = vrot.lane.b32.xlu0 %v3260, 8
      %v3325 = vpop.permute.xlu0 %3324
      %3326 = vrot.lane.b32.xlu0 %v3261, 8
      %v3327 = vpop.permute.xlu0 %3326
      %3328 = vrot.lane.b32.xlu0 %v3262, 8
      %v3329 = vpop.permute.xlu0 %3328
      %3330 = vrot.lane.b32.xlu0 %v3263, 8
      %v3331 = vpop.permute.xlu0 %3330
      %3332 = vrot.lane.b32.xlu0 %v3264, 8
      %v3333 = vpop.permute.xlu0 %3332
      %3334 = vrot.lane.b32.xlu0 %v3265, 8
      %v3335 = vpop.permute.xlu0 %3334
      %3336 = vrot.lane.b32.xlu0 %v3266, 8
      %v3337 = vpop.permute.xlu0 %3336
      %3338 = vrot.lane.b32.xlu0 %v3267, 8
      %v3339 = vpop.permute.xlu0 %3338
      %3340 = vrot.lane.b32.xlu0 %v3268, 8
      %v3341 = vpop.permute.xlu0 %3340
      %3342 = vrot.lane.b32.xlu0 %v3269, 8
      %v3343 = vpop.permute.xlu0 %3342
      %3344 = vrot.lane.b32.xlu0 %v3270, 8
      %v3345 = vpop.permute.xlu0 %3344
      %3346 = vrot.lane.b32.xlu0 %v3271, 8
      %v3347 = vpop.permute.xlu0 %3346
      %3348 = vrot.lane.b32.xlu0 %v3272, 8
      %v3349 = vpop.permute.xlu0 %3348
      %3350 = vrot.lane.b32.xlu0 %v3273, 8
      %v3351 = vpop.permute.xlu0 %3350
      %3352 = vrot.lane.b32.xlu0 %v3274, 8
      %v3353 = vpop.permute.xlu0 %3352
      %3354 = vrot.lane.b32.xlu0 %v3275, 8
      %v3355 = vpop.permute.xlu0 %3354
      %3356 = vrot.lane.b32.xlu0 %v3276, 8
      %v3357 = vpop.permute.xlu0 %3356
      %3358 = vrot.lane.b32.xlu0 %v3277, 8
      %v3359 = vpop.permute.xlu0 %3358
      %3360 = vrot.lane.b32.xlu0 %v3278, 8
      %v3361 = vpop.permute.xlu0 %3360
      %3362 = vrot.lane.b32.xlu0 %v3279, 8
      %v3363 = vpop.permute.xlu0 %3362
      %3364 = vrot.lane.b32.xlu0 %v3280, 8
      %v3365 = vpop.permute.xlu0 %3364
      %3366 = vrot.lane.b32.xlu0 %v3281, 8
      %v3367 = vpop.permute.xlu0 %3366
      %3368 = vrot.lane.b32.xlu0 %v3282, 8
      %v3369 = vpop.permute.xlu0 %3368
      %3370 = vrot.lane.b32.xlu0 %v3283, 8
      %v3371 = vpop.permute.xlu0 %3370
      %3372 = vrot.lane.b32.xlu0 %v3284, 8
      %v3373 = vpop.permute.xlu0 %3372
      %3374 = vrot.lane.b32.xlu0 %v3285, 8
      %v3375 = vpop.permute.xlu0 %3374
      %3376 = vrot.lane.b32.xlu0 %v3286, 8
      %v3377 = vpop.permute.xlu0 %3376
      %3378 = vrot.lane.b32.xlu0 %v3287, 8
      %v3379 = vpop.permute.xlu0 %3378
      %3380 = vrot.lane.b32.xlu0 %v3288, 8
      %v3381 = vpop.permute.xlu0 %3380
      %3382 = vrot.lane.b32.xlu0 %v3289, 8
      %v3383 = vpop.permute.xlu0 %3382
      %3384 = vrot.lane.b32.xlu0 %v3290, 8
      %v3385 = vpop.permute.xlu0 %3384
      %3386 = vrot.lane.b32.xlu0 %v3291, 8
      %v3387 = vpop.permute.xlu0 %3386
      %vm3420 = vcmask 97344
      %3421 = vst.msk [vmem:[#allocation2] sm:$0xff] %vm3420, %v3325
      %3422 = vst.msk [vmem:[#allocation2 + $0x8] sm:$0xff] %vm3420, %v3327
      %3423 = vst.msk [vmem:[#allocation2 + $0x10] sm:$0xff] %vm3420, %v3329
      %3424 = vst.msk [vmem:[#allocation2 + $0x18] sm:$0xff] %vm3420, %v3331
      %3425 = vst.msk [vmem:[#allocation2 + $0x20] sm:$0xff] %vm3420, %v3333
      %3426 = vst.msk [vmem:[#allocation2 + $0x28] sm:$0xff] %vm3420, %v3335
      %3427 = vst.msk [vmem:[#allocation2 + $0x30] sm:$0xff] %vm3420, %v3337
      %3428 = vst.msk [vmem:[#allocation2 + $0x38] sm:$0xff] %vm3420, %v3339
      %3429 = vst.msk [vmem:[#allocation2 + $0x40] sm:$0xff] %vm3420, %v3341
      %3430 = vst.msk [vmem:[#allocation2 + $0x48] sm:$0xff] %vm3420, %v3343
      %3431 = vst.msk [vmem:[#allocation2 + $0x50] sm:$0xff] %vm3420, %v3345
      %3432 = vst.msk [vmem:[#allocation2 + $0x58] sm:$0xff] %vm3420, %v3347
      %3433 = vst.msk [vmem:[#allocation2 + $0x60] sm:$0xff] %vm3420, %v3349
      %3434 = vst.msk [vmem:[#allocation2 + $0x68] sm:$0xff] %vm3420, %v3351
      %3435 = vst.msk [vmem:[#allocation2 + $0x70] sm:$0xff] %vm3420, %v3353
      %3436 = vst.msk [vmem:[#allocation2 + $0x78] sm:$0xff] %vm3420, %v3355
      %3437 = vst.msk [vmem:[#allocation2 + $0x80] sm:$0xff] %vm3420, %v3357
      %3438 = vst.msk [vmem:[#allocation2 + $0x88] sm:$0xff] %vm3420, %v3359
      %3439 = vst.msk [vmem:[#allocation2 + $0x90] sm:$0xff] %vm3420, %v3361
      %3440 = vst.msk [vmem:[#allocation2 + $0x98] sm:$0xff] %vm3420, %v3363
      %3441 = vst.msk [vmem:[#allocation2 + $0xa0] sm:$0xff] %vm3420, %v3365
      %3442 = vst.msk [vmem:[#allocation2 + $0xa8] sm:$0xff] %vm3420, %v3367
      %3443 = vst.msk [vmem:[#allocation2 + $0xb0] sm:$0xff] %vm3420, %v3369
      %3444 = vst.msk [vmem:[#allocation2 + $0xb8] sm:$0xff] %vm3420, %v3371
      %3445 = vst.msk [vmem:[#allocation2 + $0xc0] sm:$0xff] %vm3420, %v3373
      %3446 = vst.msk [vmem:[#allocation2 + $0xc8] sm:$0xff] %vm3420, %v3375
      %3447 = vst.msk [vmem:[#allocation2 + $0xd0] sm:$0xff] %vm3420, %v3377
      %3448 = vst.msk [vmem:[#allocation2 + $0xd8] sm:$0xff] %vm3420, %v3379
      %3449 = vst.msk [vmem:[#allocation2 + $0xe0] sm:$0xff] %vm3420, %v3381
      %3450 = vst.msk [vmem:[#allocation2 + $0xe8] sm:$0xff] %vm3420, %v3383
      %3451 = vst.msk [vmem:[#allocation2 + $0xf0] sm:$0xff] %vm3420, %v3385
      %3452 = vst.msk [vmem:[#allocation2 + $0xf8] sm:$0xff] %vm3420, %v3387
      %v3453 = vld [vmem:[%s138 + $0x12] sm:$0xff]
      %v3454 = vld [vmem:[%s138 + $0x1a] sm:$0xff]
      %v3455 = vld [vmem:[%s138 + $0x22] sm:$0xff]
      %v3456 = vld [vmem:[%s138 + $0x2a] sm:$0xff]
      %v3457 = vld [vmem:[%s138 + $0x32] sm:$0xff]
      %v3458 = vld [vmem:[%s138 + $0x3a] sm:$0xff]
      %v3459 = vld [vmem:[%s138 + $0x42] sm:$0xff]
      %v3460 = vld [vmem:[%s138 + $0x4a] sm:$0xff]
      %v3461 = vld [vmem:[%s138 + $0x52] sm:$0xff]
      %v3462 = vld [vmem:[%s138 + $0x5a] sm:$0xff]
      %v3463 = vld [vmem:[%s138 + $0x62] sm:$0xff]
      %v3464 = vld [vmem:[%s138 + $0x6a] sm:$0xff]
      %v3465 = vld [vmem:[%s138 + $0x72] sm:$0xff]
      %v3466 = vld [vmem:[%s138 + $0x7a] sm:$0xff]
      %v3467 = vld [vmem:[%s138 + $0x82] sm:$0xff]
      %v3468 = vld [vmem:[%s138 + $0x8a] sm:$0xff]
      %v3469 = vld [vmem:[%s138 + $0x92] sm:$0xff]
      %v3470 = vld [vmem:[%s138 + $0x9a] sm:$0xff]
      %v3471 = vld [vmem:[%s138 + $0xa2] sm:$0xff]
      %v3472 = vld [vmem:[%s138 + $0xaa] sm:$0xff]
      %v3473 = vld [vmem:[%s138 + $0xb2] sm:$0xff]
      %v3474 = vld [vmem:[%s138 + $0xba] sm:$0xff]
      %v3475 = vld [vmem:[%s138 + $0xc2] sm:$0xff]
      %v3476 = vld [vmem:[%s138 + $0xca] sm:$0xff]
      %v3477 = vld [vmem:[%s138 + $0xd2] sm:$0xff]
      %v3478 = vld [vmem:[%s138 + $0xda] sm:$0xff]
      %v3479 = vld [vmem:[%s138 + $0xe2] sm:$0xff]
      %v3480 = vld [vmem:[%s138 + $0xea] sm:$0xff]
      %v3481 = vld [vmem:[%s138 + $0xf2] sm:$0xff]
      %v3482 = vld [vmem:[%s138 + $0xfa] sm:$0xff]
      %v3483 = vld [vmem:[%s138 + $0x102] sm:$0xff]
      %v3484 = vld [vmem:[%s138 + $0x10a] sm:$0xff]
      %v3485 = vsel %vm3228, %v3453, 0.0
      %v3486 = vsel %vm3229, %v3454, 0.0
      %v3487 = vsel %vm3230, %v3455, 0.0
      %v3488 = vsel %vm3231, %v3456, 0.0
      %v3489 = vsel %vm3232, %v3457, 0.0
      %v3490 = vsel %vm3233, %v3458, 0.0
      %v3491 = vsel %vm3234, %v3459, 0.0
      %v3492 = vsel %vm3235, %v3460, 0.0
      %v3493 = vsel %vm3236, %v3461, 0.0
      %v3494 = vsel %vm3237, %v3462, 0.0
      %v3495 = vsel %vm3238, %v3463, 0.0
      %v3496 = vsel %vm3239, %v3464, 0.0
      %v3497 = vsel %vm3240, %v3465, 0.0
      %v3498 = vsel %vm3241, %v3466, 0.0
      %v3499 = vsel %vm3242, %v3467, 0.0
      %v3500 = vsel %vm3243, %v3468, 0.0
      %v3501 = vsel %vm3244, %v3469, 0.0
      %v3502 = vsel %vm3245, %v3470, 0.0
      %v3503 = vsel %vm3246, %v3471, 0.0
      %v3504 = vsel %vm3247, %v3472, 0.0
      %v3505 = vsel %vm3248, %v3473, 0.0
      %v3506 = vsel %vm3249, %v3474, 0.0
      %v3507 = vsel %vm3250, %v3475, 0.0
      %v3508 = vsel %vm3251, %v3476, 0.0
      %v3509 = vsel %vm3252, %v3477, 0.0
      %v3510 = vsel %vm3253, %v3478, 0.0
      %v3511 = vsel %vm3254, %v3479, 0.0
      %v3512 = vsel %vm3255, %v3480, 0.0
      %v3513 = vsel %vm3256, %v3481, 0.0
      %v3514 = vsel %vm3257, %v3482, 0.0
      %v3515 = vsel %vm3258, %v3483, 0.0
      %v3516 = vsel %vm3259, %v3484, 0.0
      %3549 = vrot.lane.b32.xlu0 %v3485, 28
      %v3550 = vpop.permute.xlu0 %3549
      %3551 = vrot.lane.b32.xlu0 %v3486, 28
      %v3552 = vpop.permute.xlu0 %3551
      %3553 = vrot.lane.b32.xlu0 %v3487, 28
      %v3554 = vpop.permute.xlu0 %3553
      %3555 = vrot.lane.b32.xlu0 %v3488, 28
      %v3556 = vpop.permute.xlu0 %3555
      %3557 = vrot.lane.b32.xlu0 %v3489, 28
      %v3558 = vpop.permute.xlu0 %3557
      %3559 = vrot.lane.b32.xlu0 %v3490, 28
      %v3560 = vpop.permute.xlu0 %3559
      %3561 = vrot.lane.b32.xlu0 %v3491, 28
      %v3562 = vpop.permute.xlu0 %3561
      %3563 = vrot.lane.b32.xlu0 %v3492, 28
      %v3564 = vpop.permute.xlu0 %3563
      %3565 = vrot.lane.b32.xlu0 %v3493, 28
      %v3566 = vpop.permute.xlu0 %3565
      %3567 = vrot.lane.b32.xlu0 %v3494, 28
      %v3568 = vpop.permute.xlu0 %3567
      %3569 = vrot.lane.b32.xlu0 %v3495, 28
      %v3570 = vpop.permute.xlu0 %3569
      %3571 = vrot.lane.b32.xlu0 %v3496, 28
      %v3572 = vpop.permute.xlu0 %3571
      %3573 = vrot.lane.b32.xlu0 %v3497, 28
      %v3574 = vpop.permute.xlu0 %3573
      %3575 = vrot.lane.b32.xlu0 %v3498, 28
      %v3576 = vpop.permute.xlu0 %3575
      %3577 = vrot.lane.b32.xlu0 %v3499, 28
      %v3578 = vpop.permute.xlu0 %3577
      %3579 = vrot.lane.b32.xlu0 %v3500, 28
      %v3580 = vpop.permute.xlu0 %3579
      %3581 = vrot.lane.b32.xlu0 %v3501, 28
      %v3582 = vpop.permute.xlu0 %3581
      %3583 = vrot.lane.b32.xlu0 %v3502, 28
      %v3584 = vpop.permute.xlu0 %3583
      %3585 = vrot.lane.b32.xlu0 %v3503, 28
      %v3586 = vpop.permute.xlu0 %3585
      %3587 = vrot.lane.b32.xlu0 %v3504, 28
      %v3588 = vpop.permute.xlu0 %3587
      %3589 = vrot.lane.b32.xlu0 %v3505, 28
      %v3590 = vpop.permute.xlu0 %3589
      %3591 = vrot.lane.b32.xlu0 %v3506, 28
      %v3592 = vpop.permute.xlu0 %3591
      %3593 = vrot.lane.b32.xlu0 %v3507, 28
      %v3594 = vpop.permute.xlu0 %3593
      %3595 = vrot.lane.b32.xlu0 %v3508, 28
      %v3596 = vpop.permute.xlu0 %3595
      %3597 = vrot.lane.b32.xlu0 %v3509, 28
      %v3598 = vpop.permute.xlu0 %3597
      %3599 = vrot.lane.b32.xlu0 %v3510, 28
      %v3600 = vpop.permute.xlu0 %3599
      %3601 = vrot.lane.b32.xlu0 %v3511, 28
      %v3602 = vpop.permute.xlu0 %3601
      %3603 = vrot.lane.b32.xlu0 %v3512, 28
      %v3604 = vpop.permute.xlu0 %3603
      %3605 = vrot.lane.b32.xlu0 %v3513, 28
      %v3606 = vpop.permute.xlu0 %3605
      %3607 = vrot.lane.b32.xlu0 %v3514, 28
      %v3608 = vpop.permute.xlu0 %3607
      %3609 = vrot.lane.b32.xlu0 %v3515, 28
      %v3610 = vpop.permute.xlu0 %3609
      %3611 = vrot.lane.b32.xlu0 %v3516, 28
      %v3612 = vpop.permute.xlu0 %3611
      %vm3645 = vcmask 261344
      %3646 = vst.msk [vmem:[#allocation2] sm:$0xff] %vm3645, %v3550
      %3647 = vst.msk [vmem:[#allocation2 + $0x8] sm:$0xff] %vm3645, %v3552
      %3648 = vst.msk [vmem:[#allocation2 + $0x10] sm:$0xff] %vm3645, %v3554
      %3649 = vst.msk [vmem:[#allocation2 + $0x18] sm:$0xff] %vm3645, %v3556
      %3650 = vst.msk [vmem:[#allocation2 + $0x20] sm:$0xff] %vm3645, %v3558
      %3651 = vst.msk [vmem:[#allocation2 + $0x28] sm:$0xff] %vm3645, %v3560
      %3652 = vst.msk [vmem:[#allocation2 + $0x30] sm:$0xff] %vm3645, %v3562
      %3653 = vst.msk [vmem:[#allocation2 + $0x38] sm:$0xff] %vm3645, %v3564
      %3654 = vst.msk [vmem:[#allocation2 + $0x40] sm:$0xff] %vm3645, %v3566
      %3655 = vst.msk [vmem:[#allocation2 + $0x48] sm:$0xff] %vm3645, %v3568
      %3656 = vst.msk [vmem:[#allocation2 + $0x50] sm:$0xff] %vm3645, %v3570
      %3657 = vst.msk [vmem:[#allocation2 + $0x58] sm:$0xff] %vm3645, %v3572
      %3658 = vst.msk [vmem:[#allocation2 + $0x60] sm:$0xff] %vm3645, %v3574
      %3659 = vst.msk [vmem:[#allocation2 + $0x68] sm:$0xff] %vm3645, %v3576
      %3660 = vst.msk [vmem:[#allocation2 + $0x70] sm:$0xff] %vm3645, %v3578
      %3661 = vst.msk [vmem:[#allocation2 + $0x78] sm:$0xff] %vm3645, %v3580
      %3662 = vst.msk [vmem:[#allocation2 + $0x80] sm:$0xff] %vm3645, %v3582
      %3663 = vst.msk [vmem:[#allocation2 + $0x88] sm:$0xff] %vm3645, %v3584
      %3664 = vst.msk [vmem:[#allocation2 + $0x90] sm:$0xff] %vm3645, %v3586
      %3665 = vst.msk [vmem:[#allocation2 + $0x98] sm:$0xff] %vm3645, %v3588
      %3666 = vst.msk [vmem:[#allocation2 + $0xa0] sm:$0xff] %vm3645, %v3590
      %3667 = vst.msk [vmem:[#allocation2 + $0xa8] sm:$0xff] %vm3645, %v3592
      %3668 = vst.msk [vmem:[#allocation2 + $0xb0] sm:$0xff] %vm3645, %v3594
      %3669 = vst.msk [vmem:[#allocation2 + $0xb8] sm:$0xff] %vm3645, %v3596
      %3670 = vst.msk [vmem:[#allocation2 + $0xc0] sm:$0xff] %vm3645, %v3598
      %3671 = vst.msk [vmem:[#allocation2 + $0xc8] sm:$0xff] %vm3645, %v3600
      %3672 = vst.msk [vmem:[#allocation2 + $0xd0] sm:$0xff] %vm3645, %v3602
      %3673 = vst.msk [vmem:[#allocation2 + $0xd8] sm:$0xff] %vm3645, %v3604
      %3674 = vst.msk [vmem:[#allocation2 + $0xe0] sm:$0xff] %vm3645, %v3606
      %3675 = vst.msk [vmem:[#allocation2 + $0xe8] sm:$0xff] %vm3645, %v3608
      %3676 = vst.msk [vmem:[#allocation2 + $0xf0] sm:$0xff] %vm3645, %v3610
      %3677 = vst.msk [vmem:[#allocation2 + $0xf8] sm:$0xff] %vm3645, %v3612
      %v3678 = vld [vmem:[%s138 + $0x22] sm:$0xff]
      %v3679 = vld [vmem:[%s138 + $0x2a] sm:$0xff]
      %v3680 = vld [vmem:[%s138 + $0x32] sm:$0xff]
      %v3681 = vld [vmem:[%s138 + $0x3a] sm:$0xff]
      %v3682 = vld [vmem:[%s138 + $0x42] sm:$0xff]
      %v3683 = vld [vmem:[%s138 + $0x4a] sm:$0xff]
      %v3684 = vld [vmem:[%s138 + $0x52] sm:$0xff]
      %v3685 = vld [vmem:[%s138 + $0x5a] sm:$0xff]
      %v3686 = vld [vmem:[%s138 + $0x62] sm:$0xff]
      %v3687 = vld [vmem:[%s138 + $0x6a] sm:$0xff]
      %v3688 = vld [vmem:[%s138 + $0x72] sm:$0xff]
      %v3689 = vld [vmem:[%s138 + $0x7a] sm:$0xff]
      %v3690 = vld [vmem:[%s138 + $0x82] sm:$0xff]
      %v3691 = vld [vmem:[%s138 + $0x8a] sm:$0xff]
      %v3692 = vld [vmem:[%s138 + $0x92] sm:$0xff]
      %v3693 = vld [vmem:[%s138 + $0x9a] sm:$0xff]
      %v3694 = vld [vmem:[%s138 + $0xa2] sm:$0xff]
      %v3695 = vld [vmem:[%s138 + $0xaa] sm:$0xff]
      %v3696 = vld [vmem:[%s138 + $0xb2] sm:$0xff]
      %v3697 = vld [vmem:[%s138 + $0xba] sm:$0xff]
      %v3698 = vld [vmem:[%s138 + $0xc2] sm:$0xff]
      %v3699 = vld [vmem:[%s138 + $0xca] sm:$0xff]
      %v3700 = vld [vmem:[%s138 + $0xd2] sm:$0xff]
      %v3701 = vld [vmem:[%s138 + $0xda] sm:$0xff]
      %v3702 = vld [vmem:[%s138 + $0xe2] sm:$0xff]
      %v3703 = vld [vmem:[%s138 + $0xea] sm:$0xff]
      %v3704 = vld [vmem:[%s138 + $0xf2] sm:$0xff]
      %v3705 = vld [vmem:[%s138 + $0xfa] sm:$0xff]
      %v3706 = vld [vmem:[%s138 + $0x102] sm:$0xff]
      %v3707 = vld [vmem:[%s138 + $0x10a] sm:$0xff]
      %v3708 = vld [vmem:[%s138 + $0x112] sm:$0xff]
      %v3709 = vld [vmem:[%s138 + $0x11a] sm:$0xff]
      %v3710 = vsel %vm3228, %v3678, 0.0
      %v3711 = vsel %vm3229, %v3679, 0.0
      %v3712 = vsel %vm3230, %v3680, 0.0
      %v3713 = vsel %vm3231, %v3681, 0.0
      %v3714 = vsel %vm3232, %v3682, 0.0
      %v3715 = vsel %vm3233, %v3683, 0.0
      %v3716 = vsel %vm3234, %v3684, 0.0
      %v3717 = vsel %vm3235, %v3685, 0.0
      %v3718 = vsel %vm3236, %v3686, 0.0
      %v3719 = vsel %vm3237, %v3687, 0.0
      %v3720 = vsel %vm3238, %v3688, 0.0
      %v3721 = vsel %vm3239, %v3689, 0.0
      %v3722 = vsel %vm3240, %v3690, 0.0
      %v3723 = vsel %vm3241, %v3691, 0.0
      %v3724 = vsel %vm3242, %v3692, 0.0
      %v3725 = vsel %vm3243, %v3693, 0.0
      %v3726 = vsel %vm3244, %v3694, 0.0
      %v3727 = vsel %vm3245, %v3695, 0.0
      %v3728 = vsel %vm3246, %v3696, 0.0
      %v3729 = vsel %vm3247, %v3697, 0.0
      %v3730 = vsel %vm3248, %v3698, 0.0
      %v3731 = vsel %vm3249, %v3699, 0.0
      %v3732 = vsel %vm3250, %v3700, 0.0
      %v3733 = vsel %vm3251, %v3701, 0.0
      %v3734 = vsel %vm3252, %v3702, 0.0
      %v3735 = vsel %vm3253, %v3703, 0.0
      %v3736 = vsel %vm3254, %v3704, 0.0
      %v3737 = vsel %vm3255, %v3705, 0.0
      %v3738 = vsel %vm3256, %v3706, 0.0
      %v3739 = vsel %vm3257, %v3707, 0.0
      %v3740 = vsel %vm3258, %v3708, 0.0
      %v3741 = vsel %vm3259, %v3709, 0.0
      %3774 = vrot.lane.b32.xlu0 %v3710, 48
      %v3775 = vpop.permute.xlu0 %3774
      %3776 = vrot.lane.b32.xlu0 %v3711, 48
      %v3777 = vpop.permute.xlu0 %3776
      %3778 = vrot.lane.b32.xlu0 %v3712, 48
      %v3779 = vpop.permute.xlu0 %3778
      %3780 = vrot.lane.b32.xlu0 %v3713, 48
      %v3781 = vpop.permute.xlu0 %3780
      %3782 = vrot.lane.b32.xlu0 %v3714, 48
      %v3783 = vpop.permute.xlu0 %3782
      %3784 = vrot.lane.b32.xlu0 %v3715, 48
      %v3785 = vpop.permute.xlu0 %3784
      %3786 = vrot.lane.b32.xlu0 %v3716, 48
      %v3787 = vpop.permute.xlu0 %3786
      %3788 = vrot.lane.b32.xlu0 %v3717, 48
      %v3789 = vpop.permute.xlu0 %3788
      %3790 = vrot.lane.b32.xlu0 %v3718, 48
      %v3791 = vpop.permute.xlu0 %3790
      %3792 = vrot.lane.b32.xlu0 %v3719, 48
      %v3793 = vpop.permute.xlu0 %3792
      %3794 = vrot.lane.b32.xlu0 %v3720, 48
      %v3795 = vpop.permute.xlu0 %3794
      %3796 = vrot.lane.b32.xlu0 %v3721, 48
      %v3797 = vpop.permute.xlu0 %3796
      %3798 = vrot.lane.b32.xlu0 %v3722, 48
      %v3799 = vpop.permute.xlu0 %3798
      %3800 = vrot.lane.b32.xlu0 %v3723, 48
      %v3801 = vpop.permute.xlu0 %3800
      %3802 = vrot.lane.b32.xlu0 %v3724, 48
      %v3803 = vpop.permute.xlu0 %3802
      %3804 = vrot.lane.b32.xlu0 %v3725, 48
      %v3805 = vpop.permute.xlu0 %3804
      %3806 = vrot.lane.b32.xlu0 %v3726, 48
      %v3807 = vpop.permute.xlu0 %3806
      %3808 = vrot.lane.b32.xlu0 %v3727, 48
      %v3809 = vpop.permute.xlu0 %3808
      %3810 = vrot.lane.b32.xlu0 %v3728, 48
      %v3811 = vpop.permute.xlu0 %3810
      %3812 = vrot.lane.b32.xlu0 %v3729, 48
      %v3813 = vpop.permute.xlu0 %3812
      %3814 = vrot.lane.b32.xlu0 %v3730, 48
      %v3815 = vpop.permute.xlu0 %3814
      %3816 = vrot.lane.b32.xlu0 %v3731, 48
      %v3817 = vpop.permute.xlu0 %3816
      %3818 = vrot.lane.b32.xlu0 %v3732, 48
      %v3819 = vpop.permute.xlu0 %3818
      %3820 = vrot.lane.b32.xlu0 %v3733, 48
      %v3821 = vpop.permute.xlu0 %3820
      %3822 = vrot.lane.b32.xlu0 %v3734, 48
      %v3823 = vpop.permute.xlu0 %3822
      %3824 = vrot.lane.b32.xlu0 %v3735, 48
      %v3825 = vpop.permute.xlu0 %3824
      %3826 = vrot.lane.b32.xlu0 %v3736, 48
      %v3827 = vpop.permute.xlu0 %3826
      %3828 = vrot.lane.b32.xlu0 %v3737, 48
      %v3829 = vpop.permute.xlu0 %3828
      %3830 = vrot.lane.b32.xlu0 %v3738, 48
      %v3831 = vpop.permute.xlu0 %3830
      %3832 = vrot.lane.b32.xlu0 %v3739, 48
      %v3833 = vpop.permute.xlu0 %3832
      %3834 = vrot.lane.b32.xlu0 %v3740, 48
      %v3835 = vpop.permute.xlu0 %3834
      %3836 = vrot.lane.b32.xlu0 %v3741, 48
      %v3837 = vpop.permute.xlu0 %3836
      %vm3870 = vcmask 425344
      %3871 = vst.msk [vmem:[#allocation2] sm:$0xff] %vm3870, %v3775
      %3872 = vst.msk [vmem:[#allocation2 + $0x8] sm:$0xff] %vm3870, %v3777
      %3873 = vst.msk [vmem:[#allocation2 + $0x10] sm:$0xff] %vm3870, %v3779
      %3874 = vst.msk [vmem:[#allocation2 + $0x18] sm:$0xff] %vm3870, %v3781
      %3875 = vst.msk [vmem:[#allocation2 + $0x20] sm:$0xff] %vm3870, %v3783
      %3876 = vst.msk [vmem:[#allocation2 + $0x28] sm:$0xff] %vm3870, %v3785
      %3877 = vst.msk [vmem:[#allocation2 + $0x30] sm:$0xff] %vm3870, %v3787
      %3878 = vst.msk [vmem:[#allocation2 + $0x38] sm:$0xff] %vm3870, %v3789
      %3879 = vst.msk [vmem:[#allocation2 + $0x40] sm:$0xff] %vm3870, %v3791
      %3880 = vst.msk [vmem:[#allocation2 + $0x48] sm:$0xff] %vm3870, %v3793
      %3881 = vst.msk [vmem:[#allocation2 + $0x50] sm:$0xff] %vm3870, %v3795
      %3882 = vst.msk [vmem:[#allocation2 + $0x58] sm:$0xff] %vm3870, %v3797
      %3883 = vst.msk [vmem:[#allocation2 + $0x60] sm:$0xff] %vm3870, %v3799
      %3884 = vst.msk [vmem:[#allocation2 + $0x68] sm:$0xff] %vm3870, %v3801
      %3885 = vst.msk [vmem:[#allocation2 + $0x70] sm:$0xff] %vm3870, %v3803
      %3886 = vst.msk [vmem:[#allocation2 + $0x78] sm:$0xff] %vm3870, %v3805
      %3887 = vst.msk [vmem:[#allocation2 + $0x80] sm:$0xff] %vm3870, %v3807
      %3888 = vst.msk [vmem:[#allocation2 + $0x88] sm:$0xff] %vm3870, %v3809
      %3889 = vst.msk [vmem:[#allocation2 + $0x90] sm:$0xff] %vm3870, %v3811
      %3890 = vst.msk [vmem:[#allocation2 + $0x98] sm:$0xff] %vm3870, %v3813
      %3891 = vst.msk [vmem:[#allocation2 + $0xa0] sm:$0xff] %vm3870, %v3815
      %3892 = vst.msk [vmem:[#allocation2 + $0xa8] sm:$0xff] %vm3870, %v3817
      %3893 = vst.msk [vmem:[#allocation2 + $0xb0] sm:$0xff] %vm3870, %v3819
      %3894 = vst.msk [vmem:[#allocation2 + $0xb8] sm:$0xff] %vm3870, %v3821
      %3895 = vst.msk [vmem:[#allocation2 + $0xc0] sm:$0xff] %vm3870, %v3823
      %3896 = vst.msk [vmem:[#allocation2 + $0xc8] sm:$0xff] %vm3870, %v3825
      %3897 = vst.msk [vmem:[#allocation2 + $0xd0] sm:$0xff] %vm3870, %v3827
      %3898 = vst.msk [vmem:[#allocation2 + $0xd8] sm:$0xff] %vm3870, %v3829
      %3899 = vst.msk [vmem:[#allocation2 + $0xe0] sm:$0xff] %vm3870, %v3831
      %3900 = vst.msk [vmem:[#allocation2 + $0xe8] sm:$0xff] %vm3870, %v3833
      %3901 = vst.msk [vmem:[#allocation2 + $0xf0] sm:$0xff] %vm3870, %v3835
      %3902 = vst.msk [vmem:[#allocation2 + $0xf8] sm:$0xff] %vm3870, %v3837
      %v3903 = vld [vmem:[%s138 + $0x32] sm:$0xff]
      %v3904 = vld [vmem:[%s138 + $0x3a] sm:$0xff]
      %v3905 = vld [vmem:[%s138 + $0x42] sm:$0xff]
      %v3906 = vld [vmem:[%s138 + $0x4a] sm:$0xff]
      %v3907 = vld [vmem:[%s138 + $0x52] sm:$0xff]
      %v3908 = vld [vmem:[%s138 + $0x5a] sm:$0xff]
      %v3909 = vld [vmem:[%s138 + $0x62] sm:$0xff]
      %v3910 = vld [vmem:[%s138 + $0x6a] sm:$0xff]
      %v3911 = vld [vmem:[%s138 + $0x72] sm:$0xff]
      %v3912 = vld [vmem:[%s138 + $0x7a] sm:$0xff]
      %v3913 = vld [vmem:[%s138 + $0x82] sm:$0xff]
      %v3914 = vld [vmem:[%s138 + $0x8a] sm:$0xff]
      %v3915 = vld [vmem:[%s138 + $0x92] sm:$0xff]
      %v3916 = vld [vmem:[%s138 + $0x9a] sm:$0xff]
      %v3917 = vld [vmem:[%s138 + $0xa2] sm:$0xff]
      %v3918 = vld [vmem:[%s138 + $0xaa] sm:$0xff]
      %v3919 = vld [vmem:[%s138 + $0xb2] sm:$0xff]
      %v3920 = vld [vmem:[%s138 + $0xba] sm:$0xff]
      %v3921 = vld [vmem:[%s138 + $0xc2] sm:$0xff]
      %v3922 = vld [vmem:[%s138 + $0xca] sm:$0xff]
      %v3923 = vld [vmem:[%s138 + $0xd2] sm:$0xff]
      %v3924 = vld [vmem:[%s138 + $0xda] sm:$0xff]
      %v3925 = vld [vmem:[%s138 + $0xe2] sm:$0xff]
      %v3926 = vld [vmem:[%s138 + $0xea] sm:$0xff]
      %v3927 = vld [vmem:[%s138 + $0xf2] sm:$0xff]
      %v3928 = vld [vmem:[%s138 + $0xfa] sm:$0xff]
      %v3929 = vld [vmem:[%s138 + $0x102] sm:$0xff]
      %v3930 = vld [vmem:[%s138 + $0x10a] sm:$0xff]
      %v3931 = vld [vmem:[%s138 + $0x112] sm:$0xff]
      %v3932 = vld [vmem:[%s138 + $0x11a] sm:$0xff]
      %v3933 = vld [vmem:[%s138 + $0x122] sm:$0xff]
      %v3934 = vld [vmem:[%s138 + $0x12a] sm:$0xff]
      %v3935 = vsel %vm3228, %v3903, 0.0
      %v3936 = vsel %vm3229, %v3904, 0.0
      %v3937 = vsel %vm3230, %v3905, 0.0
      %v3938 = vsel %vm3231, %v3906, 0.0
      %v3939 = vsel %vm3232, %v3907, 0.0
      %v3940 = vsel %vm3233, %v3908, 0.0
      %v3941 = vsel %vm3234, %v3909, 0.0
      %v3942 = vsel %vm3235, %v3910, 0.0
      %v3943 = vsel %vm3236, %v3911, 0.0
      %v3944 = vsel %vm3237, %v3912, 0.0
      %v3945 = vsel %vm3238, %v3913, 0.0
      %v3946 = vsel %vm3239, %v3914, 0.0
      %v3947 = vsel %vm3240, %v3915, 0.0
      %v3948 = vsel %vm3241, %v3916, 0.0
      %v3949 = vsel %vm3242, %v3917, 0.0
      %v3950 = vsel %vm3243, %v3918, 0.0
      %v3951 = vsel %vm3244, %v3919, 0.0
      %v3952 = vsel %vm3245, %v3920, 0.0
      %v3953 = vsel %vm3246, %v3921, 0.0
      %v3954 = vsel %vm3247, %v3922, 0.0
      %v3955 = vsel %vm3248, %v3923, 0.0
      %v3956 = vsel %vm3249, %v3924, 0.0
      %v3957 = vsel %vm3250, %v3925, 0.0
      %v3958 = vsel %vm3251, %v3926, 0.0
      %v3959 = vsel %vm3252, %v3927, 0.0
      %v3960 = vsel %vm3253, %v3928, 0.0
      %v3961 = vsel %vm3254, %v3929, 0.0
      %v3962 = vsel %vm3255, %v3930, 0.0
      %v3963 = vsel %vm3256, %v3931, 0.0
      %v3964 = vsel %vm3257, %v3932, 0.0
      %v3965 = vsel %vm3258, %v3933, 0.0
      %v3966 = vsel %vm3259, %v3934, 0.0
      %3999 = vrot.lane.b32.xlu0 %v3935, 68
      %v4000 = vpop.permute.xlu0 %3999
      %4001 = vrot.lane.b32.xlu0 %v3936, 68
      %v4002 = vpop.permute.xlu0 %4001
      %4003 = vrot.lane.b32.xlu0 %v3937, 68
      %v4004 = vpop.permute.xlu0 %4003
      %4005 = vrot.lane.b32.xlu0 %v3938, 68
      %v4006 = vpop.permute.xlu0 %4005
      %4007 = vrot.lane.b32.xlu0 %v3939, 68
      %v4008 = vpop.permute.xlu0 %4007
      %4009 = vrot.lane.b32.xlu0 %v3940, 68
      %v4010 = vpop.permute.xlu0 %4009
      %4011 = vrot.lane.b32.xlu0 %v3941, 68
      %v4012 = vpop.permute.xlu0 %4011
      %4013 = vrot.lane.b32.xlu0 %v3942, 68
      %v4014 = vpop.permute.xlu0 %4013
      %4015 = vrot.lane.b32.xlu0 %v3943, 68
      %v4016 = vpop.permute.xlu0 %4015
      %4017 = vrot.lane.b32.xlu0 %v3944, 68
      %v4018 = vpop.permute.xlu0 %4017
      %4019 = vrot.lane.b32.xlu0 %v3945, 68
      %v4020 = vpop.permute.xlu0 %4019
      %4021 = vrot.lane.b32.xlu0 %v3946, 68
      %v4022 = vpop.permute.xlu0 %4021
      %4023 = vrot.lane.b32.xlu0 %v3947, 68
      %v4024 = vpop.permute.xlu0 %4023
      %4025 = vrot.lane.b32.xlu0 %v3948, 68
      %v4026 = vpop.permute.xlu0 %4025
      %4027 = vrot.lane.b32.xlu0 %v3949, 68
      %v4028 = vpop.permute.xlu0 %4027
      %4029 = vrot.lane.b32.xlu0 %v3950, 68
      %v4030 = vpop.permute.xlu0 %4029
      %4031 = vrot.lane.b32.xlu0 %v3951, 68
      %v4032 = vpop.permute.xlu0 %4031
      %4033 = vrot.lane.b32.xlu0 %v3952, 68
      %v4034 = vpop.permute.xlu0 %4033
      %4035 = vrot.lane.b32.xlu0 %v3953, 68
      %v4036 = vpop.permute.xlu0 %4035
      %4037 = vrot.lane.b32.xlu0 %v3954, 68
      %v4038 = vpop.permute.xlu0 %4037
      %4039 = vrot.lane.b32.xlu0 %v3955, 68
      %v4040 = vpop.permute.xlu0 %4039
      %4041 = vrot.lane.b32.xlu0 %v3956, 68
      %v4042 = vpop.permute.xlu0 %4041
      %4043 = vrot.lane.b32.xlu0 %v3957, 68
      %v4044 = vpop.permute.xlu0 %4043
      %4045 = vrot.lane.b32.xlu0 %v3958, 68
      %v4046 = vpop.permute.xlu0 %4045
      %4047 = vrot.lane.b32.xlu0 %v3959, 68
      %v4048 = vpop.permute.xlu0 %4047
      %4049 = vrot.lane.b32.xlu0 %v3960, 68
      %v4050 = vpop.permute.xlu0 %4049
      %4051 = vrot.lane.b32.xlu0 %v3961, 68
      %v4052 = vpop.permute.xlu0 %4051
      %4053 = vrot.lane.b32.xlu0 %v3962, 68
      %v4054 = vpop.permute.xlu0 %4053
      %4055 = vrot.lane.b32.xlu0 %v3963, 68
      %v4056 = vpop.permute.xlu0 %4055
      %4057 = vrot.lane.b32.xlu0 %v3964, 68
      %v4058 = vpop.permute.xlu0 %4057
      %4059 = vrot.lane.b32.xlu0 %v3965, 68
      %v4060 = vpop.permute.xlu0 %4059
      %4061 = vrot.lane.b32.xlu0 %v3966, 68
      %v4062 = vpop.permute.xlu0 %4061
      %vm4095 = vcmask 589344
      %4096 = vst.msk [vmem:[#allocation2] sm:$0xff] %vm4095, %v4000
      %4097 = vst.msk [vmem:[#allocation2 + $0x8] sm:$0xff] %vm4095, %v4002
      %4098 = vst.msk [vmem:[#allocation2 + $0x10] sm:$0xff] %vm4095, %v4004
      %4099 = vst.msk [vmem:[#allocation2 + $0x18] sm:$0xff] %vm4095, %v4006
      %4100 = vst.msk [vmem:[#allocation2 + $0x20] sm:$0xff] %vm4095, %v4008
      %4101 = vst.msk [vmem:[#allocation2 + $0x28] sm:$0xff] %vm4095, %v4010
      %4102 = vst.msk [vmem:[#allocation2 + $0x30] sm:$0xff] %vm4095, %v4012
      %4103 = vst.msk [vmem:[#allocation2 + $0x38] sm:$0xff] %vm4095, %v4014
      %4104 = vst.msk [vmem:[#allocation2 + $0x40] sm:$0xff] %vm4095, %v4016
      %4105 = vst.msk [vmem:[#allocation2 + $0x48] sm:$0xff] %vm4095, %v4018
      %4106 = vst.msk [vmem:[#allocation2 + $0x50] sm:$0xff] %vm4095, %v4020
      %4107 = vst.msk [vmem:[#allocation2 + $0x58] sm:$0xff] %vm4095, %v4022
      %4108 = vst.msk [vmem:[#allocation2 + $0x60] sm:$0xff] %vm4095, %v4024
      %4109 = vst.msk [vmem:[#allocation2 + $0x68] sm:$0xff] %vm4095, %v4026
      %4110 = vst.msk [vmem:[#allocation2 + $0x70] sm:$0xff] %vm4095, %v4028
      %4111 = vst.msk [vmem:[#allocation2 + $0x78] sm:$0xff] %vm4095, %v4030
      %4112 = vst.msk [vmem:[#allocation2 + $0x80] sm:$0xff] %vm4095, %v4032
      %4113 = vst.msk [vmem:[#allocation2 + $0x88] sm:$0xff] %vm4095, %v4034
      %4114 = vst.msk [vmem:[#allocation2 + $0x90] sm:$0xff] %vm4095, %v4036
      %4115 = vst.msk [vmem:[#allocation2 + $0x98] sm:$0xff] %vm4095, %v4038
      %4116 = vst.msk [vmem:[#allocation2 + $0xa0] sm:$0xff] %vm4095, %v4040
      %4117 = vst.msk [vmem:[#allocation2 + $0xa8] sm:$0xff] %vm4095, %v4042
      %4118 = vst.msk [vmem:[#allocation2 + $0xb0] sm:$0xff] %vm4095, %v4044
      %4119 = vst.msk [vmem:[#allocation2 + $0xb8] sm:$0xff] %vm4095, %v4046
      %4120 = vst.msk [vmem:[#allocation2 + $0xc0] sm:$0xff] %vm4095, %v4048
      %4121 = vst.msk [vmem:[#allocation2 + $0xc8] sm:$0xff] %vm4095, %v4050
      %4122 = vst.msk [vmem:[#allocation2 + $0xd0] sm:$0xff] %vm4095, %v4052
      %4123 = vst.msk [vmem:[#allocation2 + $0xd8] sm:$0xff] %vm4095, %v4054
      %4124 = vst.msk [vmem:[#allocation2 + $0xe0] sm:$0xff] %vm4095, %v4056
      %4125 = vst.msk [vmem:[#allocation2 + $0xe8] sm:$0xff] %vm4095, %v4058
      %4126 = vst.msk [vmem:[#allocation2 + $0xf0] sm:$0xff] %vm4095, %v4060
      %4127 = vst.msk [vmem:[#allocation2 + $0xf8] sm:$0xff] %vm4095, %v4062
      %v4128 = vld [vmem:[%s138 + $0x42] sm:$0xff]
      %v4129 = vld [vmem:[%s138 + $0x4a] sm:$0xff]
      %v4130 = vld [vmem:[%s138 + $0x52] sm:$0xff]
      %v4131 = vld [vmem:[%s138 + $0x5a] sm:$0xff]
      %v4132 = vld [vmem:[%s138 + $0x62] sm:$0xff]
      %v4133 = vld [vmem:[%s138 + $0x6a] sm:$0xff]
      %v4134 = vld [vmem:[%s138 + $0x72] sm:$0xff]
      %v4135 = vld [vmem:[%s138 + $0x7a] sm:$0xff]
      %v4136 = vld [vmem:[%s138 + $0x82] sm:$0xff]
      %v4137 = vld [vmem:[%s138 + $0x8a] sm:$0xff]
      %v4138 = vld [vmem:[%s138 + $0x92] sm:$0xff]
      %v4139 = vld [vmem:[%s138 + $0x9a] sm:$0xff]
      %v4140 = vld [vmem:[%s138 + $0xa2] sm:$0xff]
      %v4141 = vld [vmem:[%s138 + $0xaa] sm:$0xff]
      %v4142 = vld [vmem:[%s138 + $0xb2] sm:$0xff]
      %v4143 = vld [vmem:[%s138 + $0xba] sm:$0xff]
      %v4144 = vld [vmem:[%s138 + $0xc2] sm:$0xff]
      %v4145 = vld [vmem:[%s138 + $0xca] sm:$0xff]
      %v4146 = vld [vmem:[%s138 + $0xd2] sm:$0xff]
      %v4147 = vld [vmem:[%s138 + $0xda] sm:$0xff]
      %v4148 = vld [vmem:[%s138 + $0xe2] sm:$0xff]
      %v4149 = vld [vmem:[%s138 + $0xea] sm:$0xff]
      %v4150 = vld [vmem:[%s138 + $0xf2] sm:$0xff]
      %v4151 = vld [vmem:[%s138 + $0xfa] sm:$0xff]
      %v4152 = vld [vmem:[%s138 + $0x102] sm:$0xff]
      %v4153 = vld [vmem:[%s138 + $0x10a] sm:$0xff]
      %v4154 = vld [vmem:[%s138 + $0x112] sm:$0xff]
      %v4155 = vld [vmem:[%s138 + $0x11a] sm:$0xff]
      %v4156 = vld [vmem:[%s138 + $0x122] sm:$0xff]
      %v4157 = vld [vmem:[%s138 + $0x12a] sm:$0xff]
      %v4158 = vld [vmem:[%s138 + $0x132] sm:$0xff]
      %v4159 = vld [vmem:[%s138 + $0x13a] sm:$0xff]
      %v4160 = vsel %vm3228, %v4128, 0.0
      %v4161 = vsel %vm3229, %v4129, 0.0
      %v4162 = vsel %vm3230, %v4130, 0.0
      %v4163 = vsel %vm3231, %v4131, 0.0
      %v4164 = vsel %vm3232, %v4132, 0.0
      %v4165 = vsel %vm3233, %v4133, 0.0
      %v4166 = vsel %vm3234, %v4134, 0.0
      %v4167 = vsel %vm3235, %v4135, 0.0
      %v4168 = vsel %vm3236, %v4136, 0.0
      %v4169 = vsel %vm3237, %v4137, 0.0
      %v4170 = vsel %vm3238, %v4138, 0.0
      %v4171 = vsel %vm3239, %v4139, 0.0
      %v4172 = vsel %vm3240, %v4140, 0.0
      %v4173 = vsel %vm3241, %v4141, 0.0
      %v4174 = vsel %vm3242, %v4142, 0.0
      %v4175 = vsel %vm3243, %v4143, 0.0
      %v4176 = vsel %vm3244, %v4144, 0.0
      %v4177 = vsel %vm3245, %v4145, 0.0
      %v4178 = vsel %vm3246, %v4146, 0.0
      %v4179 = vsel %vm3247, %v4147, 0.0
      %v4180 = vsel %vm3248, %v4148, 0.0
      %v4181 = vsel %vm3249, %v4149, 0.0
      %v4182 = vsel %vm3250, %v4150, 0.0
      %v4183 = vsel %vm3251, %v4151, 0.0
      %v4184 = vsel %vm3252, %v4152, 0.0
      %v4185 = vsel %vm3253, %v4153, 0.0
      %v4186 = vsel %vm3254, %v4154, 0.0
      %v4187 = vsel %vm3255, %v4155, 0.0
      %v4188 = vsel %vm3256, %v4156, 0.0
      %v4189 = vsel %vm3257, %v4157, 0.0
      %v4190 = vsel %vm3258, %v4158, 0.0
      %v4191 = vsel %vm3259, %v4159, 0.0
      %4224 = vrot.lane.b32.xlu0 %v4160, 88
      %v4225 = vpop.permute.xlu0 %4224
      %4226 = vrot.lane.b32.xlu0 %v4161, 88
      %v4227 = vpop.permute.xlu0 %4226
      %4228 = vrot.lane.b32.xlu0 %v4162, 88
      %v4229 = vpop.permute.xlu0 %4228
      %4230 = vrot.lane.b32.xlu0 %v4163, 88
      %v4231 = vpop.permute.xlu0 %4230
      %4232 = vrot.lane.b32.xlu0 %v4164, 88
      %v4233 = vpop.permute.xlu0 %4232
      %4234 = vrot.lane.b32.xlu0 %v4165, 88
      %v4235 = vpop.permute.xlu0 %4234
      %4236 = vrot.lane.b32.xlu0 %v4166, 88
      %v4237 = vpop.permute.xlu0 %4236
      %4238 = vrot.lane.b32.xlu0 %v4167, 88
      %v4239 = vpop.permute.xlu0 %4238
      %4240 = vrot.lane.b32.xlu0 %v4168, 88
      %v4241 = vpop.permute.xlu0 %4240
      %4242 = vrot.lane.b32.xlu0 %v4169, 88
      %v4243 = vpop.permute.xlu0 %4242
      %4244 = vrot.lane.b32.xlu0 %v4170, 88
      %v4245 = vpop.permute.xlu0 %4244
      %4246 = vrot.lane.b32.xlu0 %v4171, 88
      %v4247 = vpop.permute.xlu0 %4246
      %4248 = vrot.lane.b32.xlu0 %v4172, 88
      %v4249 = vpop.permute.xlu0 %4248
      %4250 = vrot.lane.b32.xlu0 %v4173, 88
      %v4251 = vpop.permute.xlu0 %4250
      %4252 = vrot.lane.b32.xlu0 %v4174, 88
      %v4253 = vpop.permute.xlu0 %4252
      %4254 = vrot.lane.b32.xlu0 %v4175, 88
      %v4255 = vpop.permute.xlu0 %4254
      %4256 = vrot.lane.b32.xlu0 %v4176, 88
      %v4257 = vpop.permute.xlu0 %4256
      %4258 = vrot.lane.b32.xlu0 %v4177, 88
      %v4259 = vpop.permute.xlu0 %4258
      %4260 = vrot.lane.b32.xlu0 %v4178, 88
      %v4261 = vpop.permute.xlu0 %4260
      %4262 = vrot.lane.b32.xlu0 %v4179, 88
      %v4263 = vpop.permute.xlu0 %4262
      %4264 = vrot.lane.b32.xlu0 %v4180, 88
      %v4265 = vpop.permute.xlu0 %4264
      %4266 = vrot.lane.b32.xlu0 %v4181, 88
      %v4267 = vpop.permute.xlu0 %4266
      %4268 = vrot.lane.b32.xlu0 %v4182, 88
      %v4269 = vpop.permute.xlu0 %4268
      %4270 = vrot.lane.b32.xlu0 %v4183, 88
      %v4271 = vpop.permute.xlu0 %4270
      %4272 = vrot.lane.b32.xlu0 %v4184, 88
      %v4273 = vpop.permute.xlu0 %4272
      %4274 = vrot.lane.b32.xlu0 %v4185, 88
      %v4275 = vpop.permute.xlu0 %4274
      %4276 = vrot.lane.b32.xlu0 %v4186, 88
      %v4277 = vpop.permute.xlu0 %4276
      %4278 = vrot.lane.b32.xlu0 %v4187, 88
      %v4279 = vpop.permute.xlu0 %4278
      %4280 = vrot.lane.b32.xlu0 %v4188, 88
      %v4281 = vpop.permute.xlu0 %4280
      %4282 = vrot.lane.b32.xlu0 %v4189, 88
      %v4283 = vpop.permute.xlu0 %4282
      %4284 = vrot.lane.b32.xlu0 %v4190, 88
      %v4285 = vpop.permute.xlu0 %4284
      %4286 = vrot.lane.b32.xlu0 %v4191, 88
      %v4287 = vpop.permute.xlu0 %4286
      %vm4320 = vcmask 753344
      %4321 = vst.msk [vmem:[#allocation2] sm:$0xff] %vm4320, %v4225
      %4322 = vst.msk [vmem:[#allocation2 + $0x8] sm:$0xff] %vm4320, %v4227
      %4323 = vst.msk [vmem:[#allocation2 + $0x10] sm:$0xff] %vm4320, %v4229
      %4324 = vst.msk [vmem:[#allocation2 + $0x18] sm:$0xff] %vm4320, %v4231
      %4325 = vst.msk [vmem:[#allocation2 + $0x20] sm:$0xff] %vm4320, %v4233
      %4326 = vst.msk [vmem:[#allocation2 + $0x28] sm:$0xff] %vm4320, %v4235
      %4327 = vst.msk [vmem:[#allocation2 + $0x30] sm:$0xff] %vm4320, %v4237
      %4328 = vst.msk [vmem:[#allocation2 + $0x38] sm:$0xff] %vm4320, %v4239
      %4329 = vst.msk [vmem:[#allocation2 + $0x40] sm:$0xff] %vm4320, %v4241
      %4330 = vst.msk [vmem:[#allocation2 + $0x48] sm:$0xff] %vm4320, %v4243
      %4331 = vst.msk [vmem:[#allocation2 + $0x50] sm:$0xff] %vm4320, %v4245
      %4332 = vst.msk [vmem:[#allocation2 + $0x58] sm:$0xff] %vm4320, %v4247
      %4333 = vst.msk [vmem:[#allocation2 + $0x60] sm:$0xff] %vm4320, %v4249
      %4334 = vst.msk [vmem:[#allocation2 + $0x68] sm:$0xff] %vm4320, %v4251
      %4335 = vst.msk [vmem:[#allocation2 + $0x70] sm:$0xff] %vm4320, %v4253
      %4336 = vst.msk [vmem:[#allocation2 + $0x78] sm:$0xff] %vm4320, %v4255
      %4337 = vst.msk [vmem:[#allocation2 + $0x80] sm:$0xff] %vm4320, %v4257
      %4338 = vst.msk [vmem:[#allocation2 + $0x88] sm:$0xff] %vm4320, %v4259
      %4339 = vst.msk [vmem:[#allocation2 + $0x90] sm:$0xff] %vm4320, %v4261
      %4340 = vst.msk [vmem:[#allocation2 + $0x98] sm:$0xff] %vm4320, %v4263
      %4341 = vst.msk [vmem:[#allocation2 + $0xa0] sm:$0xff] %vm4320, %v4265
      %4342 = vst.msk [vmem:[#allocation2 + $0xa8] sm:$0xff] %vm4320, %v4267
      %4343 = vst.msk [vmem:[#allocation2 + $0xb0] sm:$0xff] %vm4320, %v4269
      %4344 = vst.msk [vmem:[#allocation2 + $0xb8] sm:$0xff] %vm4320, %v4271
      %4345 = vst.msk [vmem:[#allocation2 + $0xc0] sm:$0xff] %vm4320, %v4273
      %4346 = vst.msk [vmem:[#allocation2 + $0xc8] sm:$0xff] %vm4320, %v4275
      %4347 = vst.msk [vmem:[#allocation2 + $0xd0] sm:$0xff] %vm4320, %v4277
      %4348 = vst.msk [vmem:[#allocation2 + $0xd8] sm:$0xff] %vm4320, %v4279
      %4349 = vst.msk [vmem:[#allocation2 + $0xe0] sm:$0xff] %vm4320, %v4281
      %4350 = vst.msk [vmem:[#allocation2 + $0xe8] sm:$0xff] %vm4320, %v4283
      %4351 = vst.msk [vmem:[#allocation2 + $0xf0] sm:$0xff] %vm4320, %v4285
      %4352 = vst.msk [vmem:[#allocation2 + $0xf8] sm:$0xff] %vm4320, %v4287
      %v4353 = vadd.s32 %v530, 1
      %v4354 = vadd.s32 %v531, 1
      %v4355 = vadd.s32 %v532, 1
      %v4356 = vadd.s32 %v533, 1
      %v4357 = vadd.s32 %v534, 1
      %v4358 = vadd.s32 %v535, 1
      %v4359 = vadd.s32 %v536, 1
      %v4360 = vadd.s32 %v537, 1
      %v4361 = vadd.s32 %v538, 1
      %v4362 = vadd.s32 %v539, 1
      %v4363 = vadd.s32 %v540, 1
      %v4364 = vadd.s32 %v541, 1
      %v4365 = vadd.s32 %v542, 1
      %v4366 = vadd.s32 %v543, 1
      %v4367 = vadd.s32 %v544, 1
      %v4368 = vadd.s32 %v545, 1
      %v4369 = vadd.s32 %v546, 1
      %v4370 = vadd.s32 %v547, 1
      %v4371 = vadd.s32 %v548, 1
      %v4372 = vadd.s32 %v549, 1
      %v4373 = vadd.s32 %v550, 1
      %v4374 = vadd.s32 %v551, 1
      %v4375 = vadd.s32 %v552, 1
      %v4376 = vadd.s32 %v553, 1
      %v4377 = vadd.s32 %v554, 1
      %v4378 = vadd.s32 %v555, 1
      %v4379 = vadd.s32 %v556, 1
      %v4380 = vadd.s32 %v557, 1
      %v4381 = vadd.s32 %v558, 1
      %v4382 = vadd.s32 %v559, 1
      %v4383 = vadd.s32 %v560, 1
      %v4384 = vadd.s32 %v561, 1
      %vm4385 = vcmp.ge.s32.totalorder %v4353, 0
      %vm4386 = vcmp.ge.s32.totalorder %v4354, 0
      %vm4387 = vcmp.ge.s32.totalorder %v4355, 0
      %vm4388 = vcmp.ge.s32.totalorder %v4356, 0
      %vm4389 = vcmp.ge.s32.totalorder %v4357, 0
      %vm4390 = vcmp.ge.s32.totalorder %v4358, 0
      %vm4391 = vcmp.ge.s32.totalorder %v4359, 0
      %vm4392 = vcmp.ge.s32.totalorder %v4360, 0
      %vm4393 = vcmp.ge.s32.totalorder %v4361, 0
      %vm4394 = vcmp.ge.s32.totalorder %v4362, 0
      %vm4395 = vcmp.ge.s32.totalorder %v4363, 0
      %vm4396 = vcmp.ge.s32.totalorder %v4364, 0
      %vm4397 = vcmp.ge.s32.totalorder %v4365, 0
      %vm4398 = vcmp.ge.s32.totalorder %v4366, 0
      %vm4399 = vcmp.ge.s32.totalorder %v4367, 0
      %vm4400 = vcmp.ge.s32.totalorder %v4368, 0
      %vm4401 = vcmp.ge.s32.totalorder %v4369, 0
      %vm4402 = vcmp.ge.s32.totalorder %v4370, 0
      %vm4403 = vcmp.ge.s32.totalorder %v4371, 0
      %vm4404 = vcmp.ge.s32.totalorder %v4372, 0
      %vm4405 = vcmp.ge.s32.totalorder %v4373, 0
      %vm4406 = vcmp.ge.s32.totalorder %v4374, 0
      %vm4407 = vcmp.ge.s32.totalorder %v4375, 0
      %vm4408 = vcmp.ge.s32.totalorder %v4376, 0
      %vm4409 = vcmp.ge.s32.totalorder %v4377, 0
      %vm4410 = vcmp.ge.s32.totalorder %v4378, 0
      %vm4411 = vcmp.ge.s32.totalorder %v4379, 0
      %vm4412 = vcmp.ge.s32.totalorder %v4380, 0
      %vm4413 = vcmp.ge.s32.totalorder %v4381, 0
      %vm4414 = vcmp.ge.s32.totalorder %v4382, 0
      %vm4415 = vcmp.ge.s32.totalorder %v4383, 0
      %vm4416 = vcmp.ge.s32.totalorder %v4384, 0
      %vm4417 = vcmp.lt.s32.totalorder %v4353, 16
      %vm4418 = vcmp.lt.s32.totalorder %v4354, 16
      %vm4419 = vcmp.lt.s32.totalorder %v4355, 16
      %vm4420 = vcmp.lt.s32.totalorder %v4356, 16
      %vm4421 = vcmp.lt.s32.totalorder %v4357, 16
      %vm4422 = vcmp.lt.s32.totalorder %v4358, 16
      %vm4423 = vcmp.lt.s32.totalorder %v4359, 16
      %vm4424 = vcmp.lt.s32.totalorder %v4360, 16
      %vm4425 = vcmp.lt.s32.totalorder %v4361, 16
      %vm4426 = vcmp.lt.s32.totalorder %v4362, 16
      %vm4427 = vcmp.lt.s32.totalorder %v4363, 16
      %vm4428 = vcmp.lt.s32.totalorder %v4364, 16
      %vm4429 = vcmp.lt.s32.totalorder %v4365, 16
      %vm4430 = vcmp.lt.s32.totalorder %v4366, 16
      %vm4431 = vcmp.lt.s32.totalorder %v4367, 16
      %vm4432 = vcmp.lt.s32.totalorder %v4368, 16
      %vm4433 = vcmp.lt.s32.totalorder %v4369, 16
      %vm4434 = vcmp.lt.s32.totalorder %v4370, 16
      %vm4435 = vcmp.lt.s32.totalorder %v4371, 16
      %vm4436 = vcmp.lt.s32.totalorder %v4372, 16
      %vm4437 = vcmp.lt.s32.totalorder %v4373, 16
      %vm4438 = vcmp.lt.s32.totalorder %v4374, 16
      %vm4439 = vcmp.lt.s32.totalorder %v4375, 16
      %vm4440 = vcmp.lt.s32.totalorder %v4376, 16
      %vm4441 = vcmp.lt.s32.totalorder %v4377, 16
      %vm4442 = vcmp.lt.s32.totalorder %v4378, 16
      %vm4443 = vcmp.lt.s32.totalorder %v4379, 16
      %vm4444 = vcmp.lt.s32.totalorder %v4380, 16
      %vm4445 = vcmp.lt.s32.totalorder %v4381, 16
      %vm4446 = vcmp.lt.s32.totalorder %v4382, 16
      %vm4447 = vcmp.lt.s32.totalorder %v4383, 16
      %vm4448 = vcmp.lt.s32.totalorder %v4384, 16
      %vm4449 = vmand %vm4385, %vm4417
      %vm4450 = vmand %vm4386, %vm4418
      %vm4451 = vmand %vm4387, %vm4419
      %vm4452 = vmand %vm4388, %vm4420
      %vm4453 = vmand %vm4389, %vm4421
      %vm4454 = vmand %vm4390, %vm4422
      %vm4455 = vmand %vm4391, %vm4423
      %vm4456 = vmand %vm4392, %vm4424
      %vm4457 = vmand %vm4393, %vm4425
      %vm4458 = vmand %vm4394, %vm4426
      %vm4459 = vmand %vm4395, %vm4427
      %vm4460 = vmand %vm4396, %vm4428
      %vm4461 = vmand %vm4397, %vm4429
      %vm4462 = vmand %vm4398, %vm4430
      %vm4463 = vmand %vm4399, %vm4431
      %vm4464 = vmand %vm4400, %vm4432
      %vm4465 = vmand %vm4401, %vm4433
      %vm4466 = vmand %vm4402, %vm4434
      %vm4467 = vmand %vm4403, %vm4435
      %vm4468 = vmand %vm4404, %vm4436
      %vm4469 = vmand %vm4405, %vm4437
      %vm4470 = vmand %vm4406, %vm4438
      %vm4471 = vmand %vm4407, %vm4439
      %vm4472 = vmand %vm4408, %vm4440
      %vm4473 = vmand %vm4409, %vm4441
      %vm4474 = vmand %vm4410, %vm4442
      %vm4475 = vmand %vm4411, %vm4443
      %vm4476 = vmand %vm4412, %vm4444
      %vm4477 = vmand %vm4413, %vm4445
      %vm4478 = vmand %vm4414, %vm4446
      %vm4479 = vmand %vm4415, %vm4447
      %vm4480 = vmand %vm4416, %vm4448
      %v4481 = vld [vmem:[%s138 + $0x3] sm:$0xff]
      %v4482 = vld [vmem:[%s138 + $0xb] sm:$0xff]
      %v4483 = vld [vmem:[%s138 + $0x13] sm:$0xff]
      %v4484 = vld [vmem:[%s138 + $0x1b] sm:$0xff]
      %v4485 = vld [vmem:[%s138 + $0x23] sm:$0xff]
      %v4486 = vld [vmem:[%s138 + $0x2b] sm:$0xff]
      %v4487 = vld [vmem:[%s138 + $0x33] sm:$0xff]
      %v4488 = vld [vmem:[%s138 + $0x3b] sm:$0xff]
      %v4489 = vld [vmem:[%s138 + $0x43] sm:$0xff]
      %v4490 = vld [vmem:[%s138 + $0x4b] sm:$0xff]
      %v4491 = vld [vmem:[%s138 + $0x53] sm:$0xff]
      %v4492 = vld [vmem:[%s138 + $0x5b] sm:$0xff]
      %v4493 = vld [vmem:[%s138 + $0x63] sm:$0xff]
      %v4494 = vld [vmem:[%s138 + $0x6b] sm:$0xff]
      %v4495 = vld [vmem:[%s138 + $0x73] sm:$0xff]
      %v4496 = vld [vmem:[%s138 + $0x7b] sm:$0xff]
      %v4497 = vld [vmem:[%s138 + $0x83] sm:$0xff]
      %v4498 = vld [vmem:[%s138 + $0x8b] sm:$0xff]
      %v4499 = vld [vmem:[%s138 + $0x93] sm:$0xff]
      %v4500 = vld [vmem:[%s138 + $0x9b] sm:$0xff]
      %v4501 = vld [vmem:[%s138 + $0xa3] sm:$0xff]
      %v4502 = vld [vmem:[%s138 + $0xab] sm:$0xff]
      %v4503 = vld [vmem:[%s138 + $0xb3] sm:$0xff]
      %v4504 = vld [vmem:[%s138 + $0xbb] sm:$0xff]
      %v4505 = vld [vmem:[%s138 + $0xc3] sm:$0xff]
      %v4506 = vld [vmem:[%s138 + $0xcb] sm:$0xff]
      %v4507 = vld [vmem:[%s138 + $0xd3] sm:$0xff]
      %v4508 = vld [vmem:[%s138 + $0xdb] sm:$0xff]
      %v4509 = vld [vmem:[%s138 + $0xe3] sm:$0xff]
      %v4510 = vld [vmem:[%s138 + $0xeb] sm:$0xff]
      %v4511 = vld [vmem:[%s138 + $0xf3] sm:$0xff]
      %v4512 = vld [vmem:[%s138 + $0xfb] sm:$0xff]
      %v4513 = vsel %vm4449, 1, 0
      %v4514 = vsel %vm4450, 1, 0
      %v4515 = vsel %vm4451, 1, 0
      %v4516 = vsel %vm4452, 1, 0
      %v4517 = vsel %vm4453, 1, 0
      %v4518 = vsel %vm4454, 1, 0
      %v4519 = vsel %vm4455, 1, 0
      %v4520 = vsel %vm4456, 1, 0
      %v4521 = vsel %vm4457, 1, 0
      %v4522 = vsel %vm4458, 1, 0
      %v4523 = vsel %vm4459, 1, 0
      %v4524 = vsel %vm4460, 1, 0
      %v4525 = vsel %vm4461, 1, 0
      %v4526 = vsel %vm4462, 1, 0
      %v4527 = vsel %vm4463, 1, 0
      %v4528 = vsel %vm4464, 1, 0
      %v4529 = vsel %vm4465, 1, 0
      %v4530 = vsel %vm4466, 1, 0
      %v4531 = vsel %vm4467, 1, 0
      %v4532 = vsel %vm4468, 1, 0
      %v4533 = vsel %vm4469, 1, 0
      %v4534 = vsel %vm4470, 1, 0
      %v4535 = vsel %vm4471, 1, 0
      %v4536 = vsel %vm4472, 1, 0
      %v4537 = vsel %vm4473, 1, 0
      %v4538 = vsel %vm4474, 1, 0
      %v4539 = vsel %vm4475, 1, 0
      %v4540 = vsel %vm4476, 1, 0
      %v4541 = vsel %vm4477, 1, 0
      %v4542 = vsel %vm4478, 1, 0
      %v4543 = vsel %vm4479, 1, 0
      %v4544 = vsel %vm4480, 1, 0
      %vm4545 = vcmp.eq.s32.totalorder %v4513, 1
      %vm4546 = vcmp.eq.s32.totalorder %v4514, 1
      %vm4547 = vcmp.eq.s32.totalorder %v4515, 1
      %vm4548 = vcmp.eq.s32.totalorder %v4516, 1
      %vm4549 = vcmp.eq.s32.totalorder %v4517, 1
      %vm4550 = vcmp.eq.s32.totalorder %v4518, 1
      %vm4551 = vcmp.eq.s32.totalorder %v4519, 1
      %vm4552 = vcmp.eq.s32.totalorder %v4520, 1
      %vm4553 = vcmp.eq.s32.totalorder %v4521, 1
      %vm4554 = vcmp.eq.s32.totalorder %v4522, 1
      %vm4555 = vcmp.eq.s32.totalorder %v4523, 1
      %vm4556 = vcmp.eq.s32.totalorder %v4524, 1
      %vm4557 = vcmp.eq.s32.totalorder %v4525, 1
      %vm4558 = vcmp.eq.s32.totalorder %v4526, 1
      %vm4559 = vcmp.eq.s32.totalorder %v4527, 1
      %vm4560 = vcmp.eq.s32.totalorder %v4528, 1
      %vm4561 = vcmp.eq.s32.totalorder %v4529, 1
      %vm4562 = vcmp.eq.s32.totalorder %v4530, 1
      %vm4563 = vcmp.eq.s32.totalorder %v4531, 1
      %vm4564 = vcmp.eq.s32.totalorder %v4532, 1
      %vm4565 = vcmp.eq.s32.totalorder %v4533, 1
      %vm4566 = vcmp.eq.s32.totalorder %v4534, 1
      %vm4567 = vcmp.eq.s32.totalorder %v4535, 1
      %vm4568 = vcmp.eq.s32.totalorder %v4536, 1
      %vm4569 = vcmp.eq.s32.totalorder %v4537, 1
      %vm4570 = vcmp.eq.s32.totalorder %v4538, 1
      %vm4571 = vcmp.eq.s32.totalorder %v4539, 1
      %vm4572 = vcmp.eq.s32.totalorder %v4540, 1
      %vm4573 = vcmp.eq.s32.totalorder %v4541, 1
      %vm4574 = vcmp.eq.s32.totalorder %v4542, 1
      %vm4575 = vcmp.eq.s32.totalorder %v4543, 1
      %vm4576 = vcmp.eq.s32.totalorder %v4544, 1
      %v4577 = vsel %vm4545, %v4481, 0.0
      %v4578 = vsel %vm4546, %v4482, 0.0
      %v4579 = vsel %vm4547, %v4483, 0.0
      %v4580 = vsel %vm4548, %v4484, 0.0
      %v4581 = vsel %vm4549, %v4485, 0.0
      %v4582 = vsel %vm4550, %v4486, 0.0
      %v4583 = vsel %vm4551, %v4487, 0.0
      %v4584 = vsel %vm4552, %v4488, 0.0
      %v4585 = vsel %vm4553, %v4489, 0.0
      %v4586 = vsel %vm4554, %v4490, 0.0
      %v4587 = vsel %vm4555, %v4491, 0.0
      %v4588 = vsel %vm4556, %v4492, 0.0
      %v4589 = vsel %vm4557, %v4493, 0.0
      %v4590 = vsel %vm4558, %v4494, 0.0
      %v4591 = vsel %vm4559, %v4495, 0.0
      %v4592 = vsel %vm4560, %v4496, 0.0
      %v4593 = vsel %vm4561, %v4497, 0.0
      %v4594 = vsel %vm4562, %v4498, 0.0
      %v4595 = vsel %vm4563, %v4499, 0.0
      %v4596 = vsel %vm4564, %v4500, 0.0
      %v4597 = vsel %vm4565, %v4501, 0.0
      %v4598 = vsel %vm4566, %v4502, 0.0
      %v4599 = vsel %vm4567, %v4503, 0.0
      %v4600 = vsel %vm4568, %v4504, 0.0
      %v4601 = vsel %vm4569, %v4505, 0.0
      %v4602 = vsel %vm4570, %v4506, 0.0
      %v4603 = vsel %vm4571, %v4507, 0.0
      %v4604 = vsel %vm4572, %v4508, 0.0
      %v4605 = vsel %vm4573, %v4509, 0.0
      %v4606 = vsel %vm4574, %v4510, 0.0
      %v4607 = vsel %vm4575, %v4511, 0.0
      %v4608 = vsel %vm4576, %v4512, 0.0
      %4641 = vrot.lane.b32.xlu0 %v4577, 12
      %v4642 = vpop.permute.xlu0 %4641
      %4643 = vrot.lane.b32.xlu0 %v4578, 12
      %v4644 = vpop.permute.xlu0 %4643
      %4645 = vrot.lane.b32.xlu0 %v4579, 12
      %v4646 = vpop.permute.xlu0 %4645
      %4647 = vrot.lane.b32.xlu0 %v4580, 12
      %v4648 = vpop.permute.xlu0 %4647
      %4649 = vrot.lane.b32.xlu0 %v4581, 12
      %v4650 = vpop.permute.xlu0 %4649
      %4651 = vrot.lane.b32.xlu0 %v4582, 12
      %v4652 = vpop.permute.xlu0 %4651
      %4653 = vrot.lane.b32.xlu0 %v4583, 12
      %v4654 = vpop.permute.xlu0 %4653
      %4655 = vrot.lane.b32.xlu0 %v4584, 12
      %v4656 = vpop.permute.xlu0 %4655
      %4657 = vrot.lane.b32.xlu0 %v4585, 12
      %v4658 = vpop.permute.xlu0 %4657
      %4659 = vrot.lane.b32.xlu0 %v4586, 12
      %v4660 = vpop.permute.xlu0 %4659
      %4661 = vrot.lane.b32.xlu0 %v4587, 12
      %v4662 = vpop.permute.xlu0 %4661
      %4663 = vrot.lane.b32.xlu0 %v4588, 12
      %v4664 = vpop.permute.xlu0 %4663
      %4665 = vrot.lane.b32.xlu0 %v4589, 12
      %v4666 = vpop.permute.xlu0 %4665
      %4667 = vrot.lane.b32.xlu0 %v4590, 12
      %v4668 = vpop.permute.xlu0 %4667
      %4669 = vrot.lane.b32.xlu0 %v4591, 12
      %v4670 = vpop.permute.xlu0 %4669
      %4671 = vrot.lane.b32.xlu0 %v4592, 12
      %v4672 = vpop.permute.xlu0 %4671
      %4673 = vrot.lane.b32.xlu0 %v4593, 12
      %v4674 = vpop.permute.xlu0 %4673
      %4675 = vrot.lane.b32.xlu0 %v4594, 12
      %v4676 = vpop.permute.xlu0 %4675
      %4677 = vrot.lane.b32.xlu0 %v4595, 12
      %v4678 = vpop.permute.xlu0 %4677
      %4679 = vrot.lane.b32.xlu0 %v4596, 12
      %v4680 = vpop.permute.xlu0 %4679
      %4681 = vrot.lane.b32.xlu0 %v4597, 12
      %v4682 = vpop.permute.xlu0 %4681
      %4683 = vrot.lane.b32.xlu0 %v4598, 12
      %v4684 = vpop.permute.xlu0 %4683
      %4685 = vrot.lane.b32.xlu0 %v4599, 12
      %v4686 = vpop.permute.xlu0 %4685
      %4687 = vrot.lane.b32.xlu0 %v4600, 12
      %v4688 = vpop.permute.xlu0 %4687
      %4689 = vrot.lane.b32.xlu0 %v4601, 12
      %v4690 = vpop.permute.xlu0 %4689
      %4691 = vrot.lane.b32.xlu0 %v4602, 12
      %v4692 = vpop.permute.xlu0 %4691
      %4693 = vrot.lane.b32.xlu0 %v4603, 12
      %v4694 = vpop.permute.xlu0 %4693
      %4695 = vrot.lane.b32.xlu0 %v4604, 12
      %v4696 = vpop.permute.xlu0 %4695
      %4697 = vrot.lane.b32.xlu0 %v4605, 12
      %v4698 = vpop.permute.xlu0 %4697
      %4699 = vrot.lane.b32.xlu0 %v4606, 12
      %v4700 = vpop.permute.xlu0 %4699
      %4701 = vrot.lane.b32.xlu0 %v4607, 12
      %v4702 = vpop.permute.xlu0 %4701
      %4703 = vrot.lane.b32.xlu0 %v4608, 12
      %v4704 = vpop.permute.xlu0 %4703
      %vm4737 = vcmask 130144
      %4738 = vst.msk [vmem:[#allocation2] sm:$0xff] %vm4737, %v4642
      %4739 = vst.msk [vmem:[#allocation2 + $0x8] sm:$0xff] %vm4737, %v4644
      %4740 = vst.msk [vmem:[#allocation2 + $0x10] sm:$0xff] %vm4737, %v4646
      %4741 = vst.msk [vmem:[#allocation2 + $0x18] sm:$0xff] %vm4737, %v4648
      %4742 = vst.msk [vmem:[#allocation2 + $0x20] sm:$0xff] %vm4737, %v4650
      %4743 = vst.msk [vmem:[#allocation2 + $0x28] sm:$0xff] %vm4737, %v4652
      %4744 = vst.msk [vmem:[#allocation2 + $0x30] sm:$0xff] %vm4737, %v4654
      %4745 = vst.msk [vmem:[#allocation2 + $0x38] sm:$0xff] %vm4737, %v4656
      %4746 = vst.msk [vmem:[#allocation2 + $0x40] sm:$0xff] %vm4737, %v4658
      %4747 = vst.msk [vmem:[#allocation2 + $0x48] sm:$0xff] %vm4737, %v4660
      %4748 = vst.msk [vmem:[#allocation2 + $0x50] sm:$0xff] %vm4737, %v4662
      %4749 = vst.msk [vmem:[#allocation2 + $0x58] sm:$0xff] %vm4737, %v4664
      %4750 = vst.msk [vmem:[#allocation2 + $0x60] sm:$0xff] %vm4737, %v4666
      %4751 = vst.msk [vmem:[#allocation2 + $0x68] sm:$0xff] %vm4737, %v4668
      %4752 = vst.msk [vmem:[#allocation2 + $0x70] sm:$0xff] %vm4737, %v4670
      %4753 = vst.msk [vmem:[#allocation2 + $0x78] sm:$0xff] %vm4737, %v4672
      %4754 = vst.msk [vmem:[#allocation2 + $0x80] sm:$0xff] %vm4737, %v4674
      %4755 = vst.msk [vmem:[#allocation2 + $0x88] sm:$0xff] %vm4737, %v4676
      %4756 = vst.msk [vmem:[#allocation2 + $0x90] sm:$0xff] %vm4737, %v4678
      %4757 = vst.msk [vmem:[#allocation2 + $0x98] sm:$0xff] %vm4737, %v4680
      %4758 = vst.msk [vmem:[#allocation2 + $0xa0] sm:$0xff] %vm4737, %v4682
      %4759 = vst.msk [vmem:[#allocation2 + $0xa8] sm:$0xff] %vm4737, %v4684
      %4760 = vst.msk [vmem:[#allocation2 + $0xb0] sm:$0xff] %vm4737, %v4686
      %4761 = vst.msk [vmem:[#allocation2 + $0xb8] sm:$0xff] %vm4737, %v4688
      %4762 = vst.msk [vmem:[#allocation2 + $0xc0] sm:$0xff] %vm4737, %v4690
      %4763 = vst.msk [vmem:[#allocation2 + $0xc8] sm:$0xff] %vm4737, %v4692
      %4764 = vst.msk [vmem:[#allocation2 + $0xd0] sm:$0xff] %vm4737, %v4694
      %4765 = vst.msk [vmem:[#allocation2 + $0xd8] sm:$0xff] %vm4737, %v4696
      %4766 = vst.msk [vmem:[#allocation2 + $0xe0] sm:$0xff] %vm4737, %v4698
      %4767 = vst.msk [vmem:[#allocation2 + $0xe8] sm:$0xff] %vm4737, %v4700
      %4768 = vst.msk [vmem:[#allocation2 + $0xf0] sm:$0xff] %vm4737, %v4702
      %4769 = vst.msk [vmem:[#allocation2 + $0xf8] sm:$0xff] %vm4737, %v4704
      %v4770 = vld [vmem:[%s138 + $0x13] sm:$0xff]
      %v4771 = vld [vmem:[%s138 + $0x1b] sm:$0xff]
      %v4772 = vld [vmem:[%s138 + $0x23] sm:$0xff]
      %v4773 = vld [vmem:[%s138 + $0x2b] sm:$0xff]
      %v4774 = vld [vmem:[%s138 + $0x33] sm:$0xff]
      %v4775 = vld [vmem:[%s138 + $0x3b] sm:$0xff]
      %v4776 = vld [vmem:[%s138 + $0x43] sm:$0xff]
      %v4777 = vld [vmem:[%s138 + $0x4b] sm:$0xff]
      %v4778 = vld [vmem:[%s138 + $0x53] sm:$0xff]
      %v4779 = vld [vmem:[%s138 + $0x5b] sm:$0xff]
      %v4780 = vld [vmem:[%s138 + $0x63] sm:$0xff]
      %v4781 = vld [vmem:[%s138 + $0x6b] sm:$0xff]
      %v4782 = vld [vmem:[%s138 + $0x73] sm:$0xff]
      %v4783 = vld [vmem:[%s138 + $0x7b] sm:$0xff]
      %v4784 = vld [vmem:[%s138 + $0x83] sm:$0xff]
      %v4785 = vld [vmem:[%s138 + $0x8b] sm:$0xff]
      %v4786 = vld [vmem:[%s138 + $0x93] sm:$0xff]
      %v4787 = vld [vmem:[%s138 + $0x9b] sm:$0xff]
      %v4788 = vld [vmem:[%s138 + $0xa3] sm:$0xff]
      %v4789 = vld [vmem:[%s138 + $0xab] sm:$0xff]
      %v4790 = vld [vmem:[%s138 + $0xb3] sm:$0xff]
      %v4791 = vld [vmem:[%s138 + $0xbb] sm:$0xff]
      %v4792 = vld [vmem:[%s138 + $0xc3] sm:$0xff]
      %v4793 = vld [vmem:[%s138 + $0xcb] sm:$0xff]
      %v4794 = vld [vmem:[%s138 + $0xd3] sm:$0xff]
      %v4795 = vld [vmem:[%s138 + $0xdb] sm:$0xff]
      %v4796 = vld [vmem:[%s138 + $0xe3] sm:$0xff]
      %v4797 = vld [vmem:[%s138 + $0xeb] sm:$0xff]
      %v4798 = vld [vmem:[%s138 + $0xf3] sm:$0xff]
      %v4799 = vld [vmem:[%s138 + $0xfb] sm:$0xff]
      %v4800 = vld [vmem:[%s138 + $0x103] sm:$0xff]
      %v4801 = vld [vmem:[%s138 + $0x10b] sm:$0xff]
      %v4802 = vsel %vm4545, %v4770, 0.0
      %v4803 = vsel %vm4546, %v4771, 0.0
      %v4804 = vsel %vm4547, %v4772, 0.0
      %v4805 = vsel %vm4548, %v4773, 0.0
      %v4806 = vsel %vm4549, %v4774, 0.0
      %v4807 = vsel %vm4550, %v4775, 0.0
      %v4808 = vsel %vm4551, %v4776, 0.0
      %v4809 = vsel %vm4552, %v4777, 0.0
      %v4810 = vsel %vm4553, %v4778, 0.0
      %v4811 = vsel %vm4554, %v4779, 0.0
      %v4812 = vsel %vm4555, %v4780, 0.0
      %v4813 = vsel %vm4556, %v4781, 0.0
      %v4814 = vsel %vm4557, %v4782, 0.0
      %v4815 = vsel %vm4558, %v4783, 0.0
      %v4816 = vsel %vm4559, %v4784, 0.0
      %v4817 = vsel %vm4560, %v4785, 0.0
      %v4818 = vsel %vm4561, %v4786, 0.0
      %v4819 = vsel %vm4562, %v4787, 0.0
      %v4820 = vsel %vm4563, %v4788, 0.0
      %v4821 = vsel %vm4564, %v4789, 0.0
      %v4822 = vsel %vm4565, %v4790, 0.0
      %v4823 = vsel %vm4566, %v4791, 0.0
      %v4824 = vsel %vm4567, %v4792, 0.0
      %v4825 = vsel %vm4568, %v4793, 0.0
      %v4826 = vsel %vm4569, %v4794, 0.0
      %v4827 = vsel %vm4570, %v4795, 0.0
      %v4828 = vsel %vm4571, %v4796, 0.0
      %v4829 = vsel %vm4572, %v4797, 0.0
      %v4830 = vsel %vm4573, %v4798, 0.0
      %v4831 = vsel %vm4574, %v4799, 0.0
      %v4832 = vsel %vm4575, %v4800, 0.0
      %v4833 = vsel %vm4576, %v4801, 0.0
      %4866 = vrot.lane.b32.xlu0 %v4802, 32
      %v4867 = vpop.permute.xlu0 %4866
      %4868 = vrot.lane.b32.xlu0 %v4803, 32
      %v4869 = vpop.permute.xlu0 %4868
      %4870 = vrot.lane.b32.xlu0 %v4804, 32
      %v4871 = vpop.permute.xlu0 %4870
      %4872 = vrot.lane.b32.xlu0 %v4805, 32
      %v4873 = vpop.permute.xlu0 %4872
      %4874 = vrot.lane.b32.xlu0 %v4806, 32
      %v4875 = vpop.permute.xlu0 %4874
      %4876 = vrot.lane.b32.xlu0 %v4807, 32
      %v4877 = vpop.permute.xlu0 %4876
      %4878 = vrot.lane.b32.xlu0 %v4808, 32
      %v4879 = vpop.permute.xlu0 %4878
      %4880 = vrot.lane.b32.xlu0 %v4809, 32
      %v4881 = vpop.permute.xlu0 %4880
      %4882 = vrot.lane.b32.xlu0 %v4810, 32
      %v4883 = vpop.permute.xlu0 %4882
      %4884 = vrot.lane.b32.xlu0 %v4811, 32
      %v4885 = vpop.permute.xlu0 %4884
      %4886 = vrot.lane.b32.xlu0 %v4812, 32
      %v4887 = vpop.permute.xlu0 %4886
      %4888 = vrot.lane.b32.xlu0 %v4813, 32
      %v4889 = vpop.permute.xlu0 %4888
      %4890 = vrot.lane.b32.xlu0 %v4814, 32
      %v4891 = vpop.permute.xlu0 %4890
      %4892 = vrot.lane.b32.xlu0 %v4815, 32
      %v4893 = vpop.permute.xlu0 %4892
      %4894 = vrot.lane.b32.xlu0 %v4816, 32
      %v4895 = vpop.permute.xlu0 %4894
      %4896 = vrot.lane.b32.xlu0 %v4817, 32
      %v4897 = vpop.permute.xlu0 %4896
      %4898 = vrot.lane.b32.xlu0 %v4818, 32
      %v4899 = vpop.permute.xlu0 %4898
      %4900 = vrot.lane.b32.xlu0 %v4819, 32
      %v4901 = vpop.permute.xlu0 %4900
      %4902 = vrot.lane.b32.xlu0 %v4820, 32
      %v4903 = vpop.permute.xlu0 %4902
      %4904 = vrot.lane.b32.xlu0 %v4821, 32
      %v4905 = vpop.permute.xlu0 %4904
      %4906 = vrot.lane.b32.xlu0 %v4822, 32
      %v4907 = vpop.permute.xlu0 %4906
      %4908 = vrot.lane.b32.xlu0 %v4823, 32
      %v4909 = vpop.permute.xlu0 %4908
      %4910 = vrot.lane.b32.xlu0 %v4824, 32
      %v4911 = vpop.permute.xlu0 %4910
      %4912 = vrot.lane.b32.xlu0 %v4825, 32
      %v4913 = vpop.permute.xlu0 %4912
      %4914 = vrot.lane.b32.xlu0 %v4826, 32
      %v4915 = vpop.permute.xlu0 %4914
      %4916 = vrot.lane.b32.xlu0 %v4827, 32
      %v4917 = vpop.permute.xlu0 %4916
      %4918 = vrot.lane.b32.xlu0 %v4828, 32
      %v4919 = vpop.permute.xlu0 %4918
      %4920 = vrot.lane.b32.xlu0 %v4829, 32
      %v4921 = vpop.permute.xlu0 %4920
      %4922 = vrot.lane.b32.xlu0 %v4830, 32
      %v4923 = vpop.permute.xlu0 %4922
      %4924 = vrot.lane.b32.xlu0 %v4831, 32
      %v4925 = vpop.permute.xlu0 %4924
      %4926 = vrot.lane.b32.xlu0 %v4832, 32
      %v4927 = vpop.permute.xlu0 %4926
      %4928 = vrot.lane.b32.xlu0 %v4833, 32
      %v4929 = vpop.permute.xlu0 %4928
      %vm4962 = vcmask 294144
      %4963 = vst.msk [vmem:[#allocation2] sm:$0xff] %vm4962, %v4867
      %4964 = vst.msk [vmem:[#allocation2 + $0x8] sm:$0xff] %vm4962, %v4869
      %4965 = vst.msk [vmem:[#allocation2 + $0x10] sm:$0xff] %vm4962, %v4871
      %4966 = vst.msk [vmem:[#allocation2 + $0x18] sm:$0xff] %vm4962, %v4873
      %4967 = vst.msk [vmem:[#allocation2 + $0x20] sm:$0xff] %vm4962, %v4875
      %4968 = vst.msk [vmem:[#allocation2 + $0x28] sm:$0xff] %vm4962, %v4877
      %4969 = vst.msk [vmem:[#allocation2 + $0x30] sm:$0xff] %vm4962, %v4879
      %4970 = vst.msk [vmem:[#allocation2 + $0x38] sm:$0xff] %vm4962, %v4881
      %4971 = vst.msk [vmem:[#allocation2 + $0x40] sm:$0xff] %vm4962, %v4883
      %4972 = vst.msk [vmem:[#allocation2 + $0x48] sm:$0xff] %vm4962, %v4885
      %4973 = vst.msk [vmem:[#allocation2 + $0x50] sm:$0xff] %vm4962, %v4887
      %4974 = vst.msk [vmem:[#allocation2 + $0x58] sm:$0xff] %vm4962, %v4889
      %4975 = vst.msk [vmem:[#allocation2 + $0x60] sm:$0xff] %vm4962, %v4891
      %4976 = vst.msk [vmem:[#allocation2 + $0x68] sm:$0xff] %vm4962, %v4893
      %4977 = vst.msk [vmem:[#allocation2 + $0x70] sm:$0xff] %vm4962, %v4895
      %4978 = vst.msk [vmem:[#allocation2 + $0x78] sm:$0xff] %vm4962, %v4897
      %4979 = vst.msk [vmem:[#allocation2 + $0x80] sm:$0xff] %vm4962, %v4899
      %4980 = vst.msk [vmem:[#allocation2 + $0x88] sm:$0xff] %vm4962, %v4901
      %4981 = vst.msk [vmem:[#allocation2 + $0x90] sm:$0xff] %vm4962, %v4903
      %4982 = vst.msk [vmem:[#allocation2 + $0x98] sm:$0xff] %vm4962, %v4905
      %4983 = vst.msk [vmem:[#allocation2 + $0xa0] sm:$0xff] %vm4962, %v4907
      %4984 = vst.msk [vmem:[#allocation2 + $0xa8] sm:$0xff] %vm4962, %v4909
      %4985 = vst.msk [vmem:[#allocation2 + $0xb0] sm:$0xff] %vm4962, %v4911
      %4986 = vst.msk [vmem:[#allocation2 + $0xb8] sm:$0xff] %vm4962, %v4913
      %4987 = vst.msk [vmem:[#allocation2 + $0xc0] sm:$0xff] %vm4962, %v4915
      %4988 = vst.msk [vmem:[#allocation2 + $0xc8] sm:$0xff] %vm4962, %v4917
      %4989 = vst.msk [vmem:[#allocation2 + $0xd0] sm:$0xff] %vm4962, %v4919
      %4990 = vst.msk [vmem:[#allocation2 + $0xd8] sm:$0xff] %vm4962, %v4921
      %4991 = vst.msk [vmem:[#allocation2 + $0xe0] sm:$0xff] %vm4962, %v4923
      %4992 = vst.msk [vmem:[#allocation2 + $0xe8] sm:$0xff] %vm4962, %v4925
      %4993 = vst.msk [vmem:[#allocation2 + $0xf0] sm:$0xff] %vm4962, %v4927
      %4994 = vst.msk [vmem:[#allocation2 + $0xf8] sm:$0xff] %vm4962, %v4929
      %v4995 = vld [vmem:[%s138 + $0x23] sm:$0xff]
      %v4996 = vld [vmem:[%s138 + $0x2b] sm:$0xff]
      %v4997 = vld [vmem:[%s138 + $0x33] sm:$0xff]
      %v4998 = vld [vmem:[%s138 + $0x3b] sm:$0xff]
      %v4999 = vld [vmem:[%s138 + $0x43] sm:$0xff]
      %v5000 = vld [vmem:[%s138 + $0x4b] sm:$0xff]
      %v5001 = vld [vmem:[%s138 + $0x53] sm:$0xff]
      %v5002 = vld [vmem:[%s138 + $0x5b] sm:$0xff]
      %v5003 = vld [vmem:[%s138 + $0x63] sm:$0xff]
      %v5004 = vld [vmem:[%s138 + $0x6b] sm:$0xff]
      %v5005 = vld [vmem:[%s138 + $0x73] sm:$0xff]
      %v5006 = vld [vmem:[%s138 + $0x7b] sm:$0xff]
      %v5007 = vld [vmem:[%s138 + $0x83] sm:$0xff]
      %v5008 = vld [vmem:[%s138 + $0x8b] sm:$0xff]
      %v5009 = vld [vmem:[%s138 + $0x93] sm:$0xff]
      %v5010 = vld [vmem:[%s138 + $0x9b] sm:$0xff]
      %v5011 = vld [vmem:[%s138 + $0xa3] sm:$0xff]
      %v5012 = vld [vmem:[%s138 + $0xab] sm:$0xff]
      %v5013 = vld [vmem:[%s138 + $0xb3] sm:$0xff]
      %v5014 = vld [vmem:[%s138 + $0xbb] sm:$0xff]
      %v5015 = vld [vmem:[%s138 + $0xc3] sm:$0xff]
      %v5016 = vld [vmem:[%s138 + $0xcb] sm:$0xff]
      %v5017 = vld [vmem:[%s138 + $0xd3] sm:$0xff]
      %v5018 = vld [vmem:[%s138 + $0xdb] sm:$0xff]
      %v5019 = vld [vmem:[%s138 + $0xe3] sm:$0xff]
      %v5020 = vld [vmem:[%s138 + $0xeb] sm:$0xff]
      %v5021 = vld [vmem:[%s138 + $0xf3] sm:$0xff]
      %v5022 = vld [vmem:[%s138 + $0xfb] sm:$0xff]
      %v5023 = vld [vmem:[%s138 + $0x103] sm:$0xff]
      %v5024 = vld [vmem:[%s138 + $0x10b] sm:$0xff]
      %v5025 = vld [vmem:[%s138 + $0x113] sm:$0xff]
      %v5026 = vld [vmem:[%s138 + $0x11b] sm:$0xff]
      %v5027 = vsel %vm4545, %v4995, 0.0
      %v5028 = vsel %vm4546, %v4996, 0.0
      %v5029 = vsel %vm4547, %v4997, 0.0
      %v5030 = vsel %vm4548, %v4998, 0.0
      %v5031 = vsel %vm4549, %v4999, 0.0
      %v5032 = vsel %vm4550, %v5000, 0.0
      %v5033 = vsel %vm4551, %v5001, 0.0
      %v5034 = vsel %vm4552, %v5002, 0.0
      %v5035 = vsel %vm4553, %v5003, 0.0
      %v5036 = vsel %vm4554, %v5004, 0.0
      %v5037 = vsel %vm4555, %v5005, 0.0
      %v5038 = vsel %vm4556, %v5006, 0.0
      %v5039 = vsel %vm4557, %v5007, 0.0
      %v5040 = vsel %vm4558, %v5008, 0.0
      %v5041 = vsel %vm4559, %v5009, 0.0
      %v5042 = vsel %vm4560, %v5010, 0.0
      %v5043 = vsel %vm4561, %v5011, 0.0
      %v5044 = vsel %vm4562, %v5012, 0.0
      %v5045 = vsel %vm4563, %v5013, 0.0
      %v5046 = vsel %vm4564, %v5014, 0.0
      %v5047 = vsel %vm4565, %v5015, 0.0
      %v5048 = vsel %vm4566, %v5016, 0.0
      %v5049 = vsel %vm4567, %v5017, 0.0
      %v5050 = vsel %vm4568, %v5018, 0.0
      %v5051 = vsel %vm4569, %v5019, 0.0
      %v5052 = vsel %vm4570, %v5020, 0.0
      %v5053 = vsel %vm4571, %v5021, 0.0
      %v5054 = vsel %vm4572, %v5022, 0.0
      %v5055 = vsel %vm4573, %v5023, 0.0
      %v5056 = vsel %vm4574, %v5024, 0.0
      %v5057 = vsel %vm4575, %v5025, 0.0
      %v5058 = vsel %vm4576, %v5026, 0.0
      %5091 = vrot.lane.b32.xlu0 %v5027, 52
      %v5092 = vpop.permute.xlu0 %5091
      %5093 = vrot.lane.b32.xlu0 %v5028, 52
      %v5094 = vpop.permute.xlu0 %5093
      %5095 = vrot.lane.b32.xlu0 %v5029, 52
      %v5096 = vpop.permute.xlu0 %5095
      %5097 = vrot.lane.b32.xlu0 %v5030, 52
      %v5098 = vpop.permute.xlu0 %5097
      %5099 = vrot.lane.b32.xlu0 %v5031, 52
      %v5100 = vpop.permute.xlu0 %5099
      %5101 = vrot.lane.b32.xlu0 %v5032, 52
      %v5102 = vpop.permute.xlu0 %5101
      %5103 = vrot.lane.b32.xlu0 %v5033, 52
      %v5104 = vpop.permute.xlu0 %5103
      %5105 = vrot.lane.b32.xlu0 %v5034, 52
      %v5106 = vpop.permute.xlu0 %5105
      %5107 = vrot.lane.b32.xlu0 %v5035, 52
      %v5108 = vpop.permute.xlu0 %5107
      %5109 = vrot.lane.b32.xlu0 %v5036, 52
      %v5110 = vpop.permute.xlu0 %5109
      %5111 = vrot.lane.b32.xlu0 %v5037, 52
      %v5112 = vpop.permute.xlu0 %5111
      %5113 = vrot.lane.b32.xlu0 %v5038, 52
      %v5114 = vpop.permute.xlu0 %5113
      %5115 = vrot.lane.b32.xlu0 %v5039, 52
      %v5116 = vpop.permute.xlu0 %5115
      %5117 = vrot.lane.b32.xlu0 %v5040, 52
      %v5118 = vpop.permute.xlu0 %5117
      %5119 = vrot.lane.b32.xlu0 %v5041, 52
      %v5120 = vpop.permute.xlu0 %5119
      %5121 = vrot.lane.b32.xlu0 %v5042, 52
      %v5122 = vpop.permute.xlu0 %5121
      %5123 = vrot.lane.b32.xlu0 %v5043, 52
      %v5124 = vpop.permute.xlu0 %5123
      %5125 = vrot.lane.b32.xlu0 %v5044, 52
      %v5126 = vpop.permute.xlu0 %5125
      %5127 = vrot.lane.b32.xlu0 %v5045, 52
      %v5128 = vpop.permute.xlu0 %5127
      %5129 = vrot.lane.b32.xlu0 %v5046, 52
      %v5130 = vpop.permute.xlu0 %5129
      %5131 = vrot.lane.b32.xlu0 %v5047, 52
      %v5132 = vpop.permute.xlu0 %5131
      %5133 = vrot.lane.b32.xlu0 %v5048, 52
      %v5134 = vpop.permute.xlu0 %5133
      %5135 = vrot.lane.b32.xlu0 %v5049, 52
      %v5136 = vpop.permute.xlu0 %5135
      %5137 = vrot.lane.b32.xlu0 %v5050, 52
      %v5138 = vpop.permute.xlu0 %5137
      %5139 = vrot.lane.b32.xlu0 %v5051, 52
      %v5140 = vpop.permute.xlu0 %5139
      %5141 = vrot.lane.b32.xlu0 %v5052, 52
      %v5142 = vpop.permute.xlu0 %5141
      %5143 = vrot.lane.b32.xlu0 %v5053, 52
      %v5144 = vpop.permute.xlu0 %5143
      %5145 = vrot.lane.b32.xlu0 %v5054, 52
      %v5146 = vpop.permute.xlu0 %5145
      %5147 = vrot.lane.b32.xlu0 %v5055, 52
      %v5148 = vpop.permute.xlu0 %5147
      %5149 = vrot.lane.b32.xlu0 %v5056, 52
      %v5150 = vpop.permute.xlu0 %5149
      %5151 = vrot.lane.b32.xlu0 %v5057, 52
      %v5152 = vpop.permute.xlu0 %5151
      %5153 = vrot.lane.b32.xlu0 %v5058, 52
      %v5154 = vpop.permute.xlu0 %5153
      %vm5187 = vcmask 458144
      %5188 = vst.msk [vmem:[#allocation2] sm:$0xff] %vm5187, %v5092
      %5189 = vst.msk [vmem:[#allocation2 + $0x8] sm:$0xff] %vm5187, %v5094
      %5190 = vst.msk [vmem:[#allocation2 + $0x10] sm:$0xff] %vm5187, %v5096
      %5191 = vst.msk [vmem:[#allocation2 + $0x18] sm:$0xff] %vm5187, %v5098
      %5192 = vst.msk [vmem:[#allocation2 + $0x20] sm:$0xff] %vm5187, %v5100
      %5193 = vst.msk [vmem:[#allocation2 + $0x28] sm:$0xff] %vm5187, %v5102
      %5194 = vst.msk [vmem:[#allocation2 + $0x30] sm:$0xff] %vm5187, %v5104
      %5195 = vst.msk [vmem:[#allocation2 + $0x38] sm:$0xff] %vm5187, %v5106
      %5196 = vst.msk [vmem:[#allocation2 + $0x40] sm:$0xff] %vm5187, %v5108
      %5197 = vst.msk [vmem:[#allocation2 + $0x48] sm:$0xff] %vm5187, %v5110
      %5198 = vst.msk [vmem:[#allocation2 + $0x50] sm:$0xff] %vm5187, %v5112
      %5199 = vst.msk [vmem:[#allocation2 + $0x58] sm:$0xff] %vm5187, %v5114
      %5200 = vst.msk [vmem:[#allocation2 + $0x60] sm:$0xff] %vm5187, %v5116
      %5201 = vst.msk [vmem:[#allocation2 + $0x68] sm:$0xff] %vm5187, %v5118
      %5202 = vst.msk [vmem:[#allocation2 + $0x70] sm:$0xff] %vm5187, %v5120
      %5203 = vst.msk [vmem:[#allocation2 + $0x78] sm:$0xff] %vm5187, %v5122
      %5204 = vst.msk [vmem:[#allocation2 + $0x80] sm:$0xff] %vm5187, %v5124
      %5205 = vst.msk [vmem:[#allocation2 + $0x88] sm:$0xff] %vm5187, %v5126
      %5206 = vst.msk [vmem:[#allocation2 + $0x90] sm:$0xff] %vm5187, %v5128
      %5207 = vst.msk [vmem:[#allocation2 + $0x98] sm:$0xff] %vm5187, %v5130
      %5208 = vst.msk [vmem:[#allocation2 + $0xa0] sm:$0xff] %vm5187, %v5132
      %5209 = vst.msk [vmem:[#allocation2 + $0xa8] sm:$0xff] %vm5187, %v5134
      %5210 = vst.msk [vmem:[#allocation2 + $0xb0] sm:$0xff] %vm5187, %v5136
      %5211 = vst.msk [vmem:[#allocation2 + $0xb8] sm:$0xff] %vm5187, %v5138
      %5212 = vst.msk [vmem:[#allocation2 + $0xc0] sm:$0xff] %vm5187, %v5140
      %5213 = vst.msk [vmem:[#allocation2 + $0xc8] sm:$0xff] %vm5187, %v5142
      %5214 = vst.msk [vmem:[#allocation2 + $0xd0] sm:$0xff] %vm5187, %v5144
      %5215 = vst.msk [vmem:[#allocation2 + $0xd8] sm:$0xff] %vm5187, %v5146
      %5216 = vst.msk [vmem:[#allocation2 + $0xe0] sm:$0xff] %vm5187, %v5148
      %5217 = vst.msk [vmem:[#allocation2 + $0xe8] sm:$0xff] %vm5187, %v5150
      %5218 = vst.msk [vmem:[#allocation2 + $0xf0] sm:$0xff] %vm5187, %v5152
      %5219 = vst.msk [vmem:[#allocation2 + $0xf8] sm:$0xff] %vm5187, %v5154
      %v5220 = vld [vmem:[%s138 + $0x33] sm:$0xff]
      %v5221 = vld [vmem:[%s138 + $0x3b] sm:$0xff]
      %v5222 = vld [vmem:[%s138 + $0x43] sm:$0xff]
      %v5223 = vld [vmem:[%s138 + $0x4b] sm:$0xff]
      %v5224 = vld [vmem:[%s138 + $0x53] sm:$0xff]
      %v5225 = vld [vmem:[%s138 + $0x5b] sm:$0xff]
      %v5226 = vld [vmem:[%s138 + $0x63] sm:$0xff]
      %v5227 = vld [vmem:[%s138 + $0x6b] sm:$0xff]
      %v5228 = vld [vmem:[%s138 + $0x73] sm:$0xff]
      %v5229 = vld [vmem:[%s138 + $0x7b] sm:$0xff]
      %v5230 = vld [vmem:[%s138 + $0x83] sm:$0xff]
      %v5231 = vld [vmem:[%s138 + $0x8b] sm:$0xff]
      %v5232 = vld [vmem:[%s138 + $0x93] sm:$0xff]
      %v5233 = vld [vmem:[%s138 + $0x9b] sm:$0xff]
      %v5234 = vld [vmem:[%s138 + $0xa3] sm:$0xff]
      %v5235 = vld [vmem:[%s138 + $0xab] sm:$0xff]
      %v5236 = vld [vmem:[%s138 + $0xb3] sm:$0xff]
      %v5237 = vld [vmem:[%s138 + $0xbb] sm:$0xff]
      %v5238 = vld [vmem:[%s138 + $0xc3] sm:$0xff]
      %v5239 = vld [vmem:[%s138 + $0xcb] sm:$0xff]
      %v5240 = vld [vmem:[%s138 + $0xd3] sm:$0xff]
      %v5241 = vld [vmem:[%s138 + $0xdb] sm:$0xff]
      %v5242 = vld [vmem:[%s138 + $0xe3] sm:$0xff]
      %v5243 = vld [vmem:[%s138 + $0xeb] sm:$0xff]
      %v5244 = vld [vmem:[%s138 + $0xf3] sm:$0xff]
      %v5245 = vld [vmem:[%s138 + $0xfb] sm:$0xff]
      %v5246 = vld [vmem:[%s138 + $0x103] sm:$0xff]
      %v5247 = vld [vmem:[%s138 + $0x10b] sm:$0xff]
      %v5248 = vld [vmem:[%s138 + $0x113] sm:$0xff]
      %v5249 = vld [vmem:[%s138 + $0x11b] sm:$0xff]
      %v5250 = vld [vmem:[%s138 + $0x123] sm:$0xff]
      %v5251 = vld [vmem:[%s138 + $0x12b] sm:$0xff]
      %v5252 = vsel %vm4545, %v5220, 0.0
      %v5253 = vsel %vm4546, %v5221, 0.0
      %v5254 = vsel %vm4547, %v5222, 0.0
      %v5255 = vsel %vm4548, %v5223, 0.0
      %v5256 = vsel %vm4549, %v5224, 0.0
      %v5257 = vsel %vm4550, %v5225, 0.0
      %v5258 = vsel %vm4551, %v5226, 0.0
      %v5259 = vsel %vm4552, %v5227, 0.0
      %v5260 = vsel %vm4553, %v5228, 0.0
      %v5261 = vsel %vm4554, %v5229, 0.0
      %v5262 = vsel %vm4555, %v5230, 0.0
      %v5263 = vsel %vm4556, %v5231, 0.0
      %v5264 = vsel %vm4557, %v5232, 0.0
      %v5265 = vsel %vm4558, %v5233, 0.0
      %v5266 = vsel %vm4559, %v5234, 0.0
      %v5267 = vsel %vm4560, %v5235, 0.0
      %v5268 = vsel %vm4561, %v5236, 0.0
      %v5269 = vsel %vm4562, %v5237, 0.0
      %v5270 = vsel %vm4563, %v5238, 0.0
      %v5271 = vsel %vm4564, %v5239, 0.0
      %v5272 = vsel %vm4565, %v5240, 0.0
      %v5273 = vsel %vm4566, %v5241, 0.0
      %v5274 = vsel %vm4567, %v5242, 0.0
      %v5275 = vsel %vm4568, %v5243, 0.0
      %v5276 = vsel %vm4569, %v5244, 0.0
      %v5277 = vsel %vm4570, %v5245, 0.0
      %v5278 = vsel %vm4571, %v5246, 0.0
      %v5279 = vsel %vm4572, %v5247, 0.0
      %v5280 = vsel %vm4573, %v5248, 0.0
      %v5281 = vsel %vm4574, %v5249, 0.0
      %v5282 = vsel %vm4575, %v5250, 0.0
      %v5283 = vsel %vm4576, %v5251, 0.0
      %5316 = vrot.lane.b32.xlu0 %v5252, 72
      %v5317 = vpop.permute.xlu0 %5316
      %5318 = vrot.lane.b32.xlu0 %v5253, 72
      %v5319 = vpop.permute.xlu0 %5318
      %5320 = vrot.lane.b32.xlu0 %v5254, 72
      %v5321 = vpop.permute.xlu0 %5320
      %5322 = vrot.lane.b32.xlu0 %v5255, 72
      %v5323 = vpop.permute.xlu0 %5322
      %5324 = vrot.lane.b32.xlu0 %v5256, 72
      %v5325 = vpop.permute.xlu0 %5324
      %5326 = vrot.lane.b32.xlu0 %v5257, 72
      %v5327 = vpop.permute.xlu0 %5326
      %5328 = vrot.lane.b32.xlu0 %v5258, 72
      %v5329 = vpop.permute.xlu0 %5328
      %5330 = vrot.lane.b32.xlu0 %v5259, 72
      %v5331 = vpop.permute.xlu0 %5330
      %5332 = vrot.lane.b32.xlu0 %v5260, 72
      %v5333 = vpop.permute.xlu0 %5332
      %5334 = vrot.lane.b32.xlu0 %v5261, 72
      %v5335 = vpop.permute.xlu0 %5334
      %5336 = vrot.lane.b32.xlu0 %v5262, 72
      %v5337 = vpop.permute.xlu0 %5336
      %5338 = vrot.lane.b32.xlu0 %v5263, 72
      %v5339 = vpop.permute.xlu0 %5338
      %5340 = vrot.lane.b32.xlu0 %v5264, 72
      %v5341 = vpop.permute.xlu0 %5340
      %5342 = vrot.lane.b32.xlu0 %v5265, 72
      %v5343 = vpop.permute.xlu0 %5342
      %5344 = vrot.lane.b32.xlu0 %v5266, 72
      %v5345 = vpop.permute.xlu0 %5344
      %5346 = vrot.lane.b32.xlu0 %v5267, 72
      %v5347 = vpop.permute.xlu0 %5346
      %5348 = vrot.lane.b32.xlu0 %v5268, 72
      %v5349 = vpop.permute.xlu0 %5348
      %5350 = vrot.lane.b32.xlu0 %v5269, 72
      %v5351 = vpop.permute.xlu0 %5350
      %5352 = vrot.lane.b32.xlu0 %v5270, 72
      %v5353 = vpop.permute.xlu0 %5352
      %5354 = vrot.lane.b32.xlu0 %v5271, 72
      %v5355 = vpop.permute.xlu0 %5354
      %5356 = vrot.lane.b32.xlu0 %v5272, 72
      %v5357 = vpop.permute.xlu0 %5356
      %5358 = vrot.lane.b32.xlu0 %v5273, 72
      %v5359 = vpop.permute.xlu0 %5358
      %5360 = vrot.lane.b32.xlu0 %v5274, 72
      %v5361 = vpop.permute.xlu0 %5360
      %5362 = vrot.lane.b32.xlu0 %v5275, 72
      %v5363 = vpop.permute.xlu0 %5362
      %5364 = vrot.lane.b32.xlu0 %v5276, 72
      %v5365 = vpop.permute.xlu0 %5364
      %5366 = vrot.lane.b32.xlu0 %v5277, 72
      %v5367 = vpop.permute.xlu0 %5366
      %5368 = vrot.lane.b32.xlu0 %v5278, 72
      %v5369 = vpop.permute.xlu0 %5368
      %5370 = vrot.lane.b32.xlu0 %v5279, 72
      %v5371 = vpop.permute.xlu0 %5370
      %5372 = vrot.lane.b32.xlu0 %v5280, 72
      %v5373 = vpop.permute.xlu0 %5372
      %5374 = vrot.lane.b32.xlu0 %v5281, 72
      %v5375 = vpop.permute.xlu0 %5374
      %5376 = vrot.lane.b32.xlu0 %v5282, 72
      %v5377 = vpop.permute.xlu0 %5376
      %5378 = vrot.lane.b32.xlu0 %v5283, 72
      %v5379 = vpop.permute.xlu0 %5378
      %vm5412 = vcmask 622144
      %5413 = vst.msk [vmem:[#allocation2] sm:$0xff] %vm5412, %v5317
      %5414 = vst.msk [vmem:[#allocation2 + $0x8] sm:$0xff] %vm5412, %v5319
      %5415 = vst.msk [vmem:[#allocation2 + $0x10] sm:$0xff] %vm5412, %v5321
      %5416 = vst.msk [vmem:[#allocation2 + $0x18] sm:$0xff] %vm5412, %v5323
      %5417 = vst.msk [vmem:[#allocation2 + $0x20] sm:$0xff] %vm5412, %v5325
      %5418 = vst.msk [vmem:[#allocation2 + $0x28] sm:$0xff] %vm5412, %v5327
      %5419 = vst.msk [vmem:[#allocation2 + $0x30] sm:$0xff] %vm5412, %v5329
      %5420 = vst.msk [vmem:[#allocation2 + $0x38] sm:$0xff] %vm5412, %v5331
      %5421 = vst.msk [vmem:[#allocation2 + $0x40] sm:$0xff] %vm5412, %v5333
      %5422 = vst.msk [vmem:[#allocation2 + $0x48] sm:$0xff] %vm5412, %v5335
      %5423 = vst.msk [vmem:[#allocation2 + $0x50] sm:$0xff] %vm5412, %v5337
      %5424 = vst.msk [vmem:[#allocation2 + $0x58] sm:$0xff] %vm5412, %v5339
      %5425 = vst.msk [vmem:[#allocation2 + $0x60] sm:$0xff] %vm5412, %v5341
      %5426 = vst.msk [vmem:[#allocation2 + $0x68] sm:$0xff] %vm5412, %v5343
      %5427 = vst.msk [vmem:[#allocation2 + $0x70] sm:$0xff] %vm5412, %v5345
      %5428 = vst.msk [vmem:[#allocation2 + $0x78] sm:$0xff] %vm5412, %v5347
      %5429 = vst.msk [vmem:[#allocation2 + $0x80] sm:$0xff] %vm5412, %v5349
      %5430 = vst.msk [vmem:[#allocation2 + $0x88] sm:$0xff] %vm5412, %v5351
      %5431 = vst.msk [vmem:[#allocation2 + $0x90] sm:$0xff] %vm5412, %v5353
      %5432 = vst.msk [vmem:[#allocation2 + $0x98] sm:$0xff] %vm5412, %v5355
      %5433 = vst.msk [vmem:[#allocation2 + $0xa0] sm:$0xff] %vm5412, %v5357
      %5434 = vst.msk [vmem:[#allocation2 + $0xa8] sm:$0xff] %vm5412, %v5359
      %5435 = vst.msk [vmem:[#allocation2 + $0xb0] sm:$0xff] %vm5412, %v5361
      %5436 = vst.msk [vmem:[#allocation2 + $0xb8] sm:$0xff] %vm5412, %v5363
      %5437 = vst.msk [vmem:[#allocation2 + $0xc0] sm:$0xff] %vm5412, %v5365
      %5438 = vst.msk [vmem:[#allocation2 + $0xc8] sm:$0xff] %vm5412, %v5367
      %5439 = vst.msk [vmem:[#allocation2 + $0xd0] sm:$0xff] %vm5412, %v5369
      %5440 = vst.msk [vmem:[#allocation2 + $0xd8] sm:$0xff] %vm5412, %v5371
      %5441 = vst.msk [vmem:[#allocation2 + $0xe0] sm:$0xff] %vm5412, %v5373
      %5442 = vst.msk [vmem:[#allocation2 + $0xe8] sm:$0xff] %vm5412, %v5375
      %5443 = vst.msk [vmem:[#allocation2 + $0xf0] sm:$0xff] %vm5412, %v5377
      %5444 = vst.msk [vmem:[#allocation2 + $0xf8] sm:$0xff] %vm5412, %v5379
      %v5445 = vld [vmem:[%s138 + $0x43] sm:$0xff]
      %v5446 = vld [vmem:[%s138 + $0x4b] sm:$0xff]
      %v5447 = vld [vmem:[%s138 + $0x53] sm:$0xff]
      %v5448 = vld [vmem:[%s138 + $0x5b] sm:$0xff]
      %v5449 = vld [vmem:[%s138 + $0x63] sm:$0xff]
      %v5450 = vld [vmem:[%s138 + $0x6b] sm:$0xff]
      %v5451 = vld [vmem:[%s138 + $0x73] sm:$0xff]
      %v5452 = vld [vmem:[%s138 + $0x7b] sm:$0xff]
      %v5453 = vld [vmem:[%s138 + $0x83] sm:$0xff]
      %v5454 = vld [vmem:[%s138 + $0x8b] sm:$0xff]
      %v5455 = vld [vmem:[%s138 + $0x93] sm:$0xff]
      %v5456 = vld [vmem:[%s138 + $0x9b] sm:$0xff]
      %v5457 = vld [vmem:[%s138 + $0xa3] sm:$0xff]
      %v5458 = vld [vmem:[%s138 + $0xab] sm:$0xff]
      %v5459 = vld [vmem:[%s138 + $0xb3] sm:$0xff]
      %v5460 = vld [vmem:[%s138 + $0xbb] sm:$0xff]
      %v5461 = vld [vmem:[%s138 + $0xc3] sm:$0xff]
      %v5462 = vld [vmem:[%s138 + $0xcb] sm:$0xff]
      %v5463 = vld [vmem:[%s138 + $0xd3] sm:$0xff]
      %v5464 = vld [vmem:[%s138 + $0xdb] sm:$0xff]
      %v5465 = vld [vmem:[%s138 + $0xe3] sm:$0xff]
      %v5466 = vld [vmem:[%s138 + $0xeb] sm:$0xff]
      %v5467 = vld [vmem:[%s138 + $0xf3] sm:$0xff]
      %v5468 = vld [vmem:[%s138 + $0xfb] sm:$0xff]
      %v5469 = vld [vmem:[%s138 + $0x103] sm:$0xff]
      %v5470 = vld [vmem:[%s138 + $0x10b] sm:$0xff]
      %v5471 = vld [vmem:[%s138 + $0x113] sm:$0xff]
      %v5472 = vld [vmem:[%s138 + $0x11b] sm:$0xff]
      %v5473 = vld [vmem:[%s138 + $0x123] sm:$0xff]
      %v5474 = vld [vmem:[%s138 + $0x12b] sm:$0xff]
      %v5475 = vld [vmem:[%s138 + $0x133] sm:$0xff]
      %v5476 = vld [vmem:[%s138 + $0x13b] sm:$0xff]
      %v5477 = vsel %vm4545, %v5445, 0.0
      %v5478 = vsel %vm4546, %v5446, 0.0
      %v5479 = vsel %vm4547, %v5447, 0.0
      %v5480 = vsel %vm4548, %v5448, 0.0
      %v5481 = vsel %vm4549, %v5449, 0.0
      %v5482 = vsel %vm4550, %v5450, 0.0
      %v5483 = vsel %vm4551, %v5451, 0.0
      %v5484 = vsel %vm4552, %v5452, 0.0
      %v5485 = vsel %vm4553, %v5453, 0.0
      %v5486 = vsel %vm4554, %v5454, 0.0
      %v5487 = vsel %vm4555, %v5455, 0.0
      %v5488 = vsel %vm4556, %v5456, 0.0
      %v5489 = vsel %vm4557, %v5457, 0.0
      %v5490 = vsel %vm4558, %v5458, 0.0
      %v5491 = vsel %vm4559, %v5459, 0.0
      %v5492 = vsel %vm4560, %v5460, 0.0
      %v5493 = vsel %vm4561, %v5461, 0.0
      %v5494 = vsel %vm4562, %v5462, 0.0
      %v5495 = vsel %vm4563, %v5463, 0.0
      %v5496 = vsel %vm4564, %v5464, 0.0
      %v5497 = vsel %vm4565, %v5465, 0.0
      %v5498 = vsel %vm4566, %v5466, 0.0
      %v5499 = vsel %vm4567, %v5467, 0.0
      %v5500 = vsel %vm4568, %v5468, 0.0
      %v5501 = vsel %vm4569, %v5469, 0.0
      %v5502 = vsel %vm4570, %v5470, 0.0
      %v5503 = vsel %vm4571, %v5471, 0.0
      %v5504 = vsel %vm4572, %v5472, 0.0
      %v5505 = vsel %vm4573, %v5473, 0.0
      %v5506 = vsel %vm4574, %v5474, 0.0
      %v5507 = vsel %vm4575, %v5475, 0.0
      %v5508 = vsel %vm4576, %v5476, 0.0
      %5541 = vrot.lane.b32.xlu0 %v5477, 92
      %v5542 = vpop.permute.xlu0 %5541
      %5543 = vrot.lane.b32.xlu0 %v5478, 92
      %v5544 = vpop.permute.xlu0 %5543
      %5545 = vrot.lane.b32.xlu0 %v5479, 92
      %v5546 = vpop.permute.xlu0 %5545
      %5547 = vrot.lane.b32.xlu0 %v5480, 92
      %v5548 = vpop.permute.xlu0 %5547
      %5549 = vrot.lane.b32.xlu0 %v5481, 92
      %v5550 = vpop.permute.xlu0 %5549
      %5551 = vrot.lane.b32.xlu0 %v5482, 92
      %v5552 = vpop.permute.xlu0 %5551
      %5553 = vrot.lane.b32.xlu0 %v5483, 92
      %v5554 = vpop.permute.xlu0 %5553
      %5555 = vrot.lane.b32.xlu0 %v5484, 92
      %v5556 = vpop.permute.xlu0 %5555
      %5557 = vrot.lane.b32.xlu0 %v5485, 92
      %v5558 = vpop.permute.xlu0 %5557
      %5559 = vrot.lane.b32.xlu0 %v5486, 92
      %v5560 = vpop.permute.xlu0 %5559
      %5561 = vrot.lane.b32.xlu0 %v5487, 92
      %v5562 = vpop.permute.xlu0 %5561
      %5563 = vrot.lane.b32.xlu0 %v5488, 92
      %v5564 = vpop.permute.xlu0 %5563
      %5565 = vrot.lane.b32.xlu0 %v5489, 92
      %v5566 = vpop.permute.xlu0 %5565
      %5567 = vrot.lane.b32.xlu0 %v5490, 92
      %v5568 = vpop.permute.xlu0 %5567
      %5569 = vrot.lane.b32.xlu0 %v5491, 92
      %v5570 = vpop.permute.xlu0 %5569
      %5571 = vrot.lane.b32.xlu0 %v5492, 92
      %v5572 = vpop.permute.xlu0 %5571
      %5573 = vrot.lane.b32.xlu0 %v5493, 92
      %v5574 = vpop.permute.xlu0 %5573
      %5575 = vrot.lane.b32.xlu0 %v5494, 92
      %v5576 = vpop.permute.xlu0 %5575
      %5577 = vrot.lane.b32.xlu0 %v5495, 92
      %v5578 = vpop.permute.xlu0 %5577
      %5579 = vrot.lane.b32.xlu0 %v5496, 92
      %v5580 = vpop.permute.xlu0 %5579
      %5581 = vrot.lane.b32.xlu0 %v5497, 92
      %v5582 = vpop.permute.xlu0 %5581
      %5583 = vrot.lane.b32.xlu0 %v5498, 92
      %v5584 = vpop.permute.xlu0 %5583
      %5585 = vrot.lane.b32.xlu0 %v5499, 92
      %v5586 = vpop.permute.xlu0 %5585
      %5587 = vrot.lane.b32.xlu0 %v5500, 92
      %v5588 = vpop.permute.xlu0 %5587
      %5589 = vrot.lane.b32.xlu0 %v5501, 92
      %v5590 = vpop.permute.xlu0 %5589
      %5591 = vrot.lane.b32.xlu0 %v5502, 92
      %v5592 = vpop.permute.xlu0 %5591
      %5593 = vrot.lane.b32.xlu0 %v5503, 92
      %v5594 = vpop.permute.xlu0 %5593
      %5595 = vrot.lane.b32.xlu0 %v5504, 92
      %v5596 = vpop.permute.xlu0 %5595
      %5597 = vrot.lane.b32.xlu0 %v5505, 92
      %v5598 = vpop.permute.xlu0 %5597
      %5599 = vrot.lane.b32.xlu0 %v5506, 92
      %v5600 = vpop.permute.xlu0 %5599
      %5601 = vrot.lane.b32.xlu0 %v5507, 92
      %v5602 = vpop.permute.xlu0 %5601
      %5603 = vrot.lane.b32.xlu0 %v5508, 92
      %v5604 = vpop.permute.xlu0 %5603
      %vm5637 = vcmask 786144
      %5638 = vst.msk [vmem:[#allocation2] sm:$0xff] %vm5637, %v5542
      %5639 = vst.msk [vmem:[#allocation2 + $0x8] sm:$0xff] %vm5637, %v5544
      %5640 = vst.msk [vmem:[#allocation2 + $0x10] sm:$0xff] %vm5637, %v5546
      %5641 = vst.msk [vmem:[#allocation2 + $0x18] sm:$0xff] %vm5637, %v5548
      %5642 = vst.msk [vmem:[#allocation2 + $0x20] sm:$0xff] %vm5637, %v5550
      %5643 = vst.msk [vmem:[#allocation2 + $0x28] sm:$0xff] %vm5637, %v5552
      %5644 = vst.msk [vmem:[#allocation2 + $0x30] sm:$0xff] %vm5637, %v5554
      %5645 = vst.msk [vmem:[#allocation2 + $0x38] sm:$0xff] %vm5637, %v5556
      %5646 = vst.msk [vmem:[#allocation2 + $0x40] sm:$0xff] %vm5637, %v5558
      %5647 = vst.msk [vmem:[#allocation2 + $0x48] sm:$0xff] %vm5637, %v5560
      %5648 = vst.msk [vmem:[#allocation2 + $0x50] sm:$0xff] %vm5637, %v5562
      %5649 = vst.msk [vmem:[#allocation2 + $0x58] sm:$0xff] %vm5637, %v5564
      %5650 = vst.msk [vmem:[#allocation2 + $0x60] sm:$0xff] %vm5637, %v5566
      %5651 = vst.msk [vmem:[#allocation2 + $0x68] sm:$0xff] %vm5637, %v5568
      %5652 = vst.msk [vmem:[#allocation2 + $0x70] sm:$0xff] %vm5637, %v5570
      %5653 = vst.msk [vmem:[#allocation2 + $0x78] sm:$0xff] %vm5637, %v5572
      %5654 = vst.msk [vmem:[#allocation2 + $0x80] sm:$0xff] %vm5637, %v5574
      %5655 = vst.msk [vmem:[#allocation2 + $0x88] sm:$0xff] %vm5637, %v5576
      %5656 = vst.msk [vmem:[#allocation2 + $0x90] sm:$0xff] %vm5637, %v5578
      %5657 = vst.msk [vmem:[#allocation2 + $0x98] sm:$0xff] %vm5637, %v5580
      %5658 = vst.msk [vmem:[#allocation2 + $0xa0] sm:$0xff] %vm5637, %v5582
      %5659 = vst.msk [vmem:[#allocation2 + $0xa8] sm:$0xff] %vm5637, %v5584
      %5660 = vst.msk [vmem:[#allocation2 + $0xb0] sm:$0xff] %vm5637, %v5586
      %5661 = vst.msk [vmem:[#allocation2 + $0xb8] sm:$0xff] %vm5637, %v5588
      %5662 = vst.msk [vmem:[#allocation2 + $0xc0] sm:$0xff] %vm5637, %v5590
      %5663 = vst.msk [vmem:[#allocation2 + $0xc8] sm:$0xff] %vm5637, %v5592
      %5664 = vst.msk [vmem:[#allocation2 + $0xd0] sm:$0xff] %vm5637, %v5594
      %5665 = vst.msk [vmem:[#allocation2 + $0xd8] sm:$0xff] %vm5637, %v5596
      %5666 = vst.msk [vmem:[#allocation2 + $0xe0] sm:$0xff] %vm5637, %v5598
      %5667 = vst.msk [vmem:[#allocation2 + $0xe8] sm:$0xff] %vm5637, %v5600
      %5668 = vst.msk [vmem:[#allocation2 + $0xf0] sm:$0xff] %vm5637, %v5602
      %5669 = vst.msk [vmem:[#allocation2 + $0xf8] sm:$0xff] %vm5637, %v5604
      %v5670 = vadd.s32 %v530, 2
      %v5671 = vadd.s32 %v531, 2
      %v5672 = vadd.s32 %v532, 2
      %v5673 = vadd.s32 %v533, 2
      %v5674 = vadd.s32 %v534, 2
      %v5675 = vadd.s32 %v535, 2
      %v5676 = vadd.s32 %v536, 2
      %v5677 = vadd.s32 %v537, 2
      %v5678 = vadd.s32 %v538, 2
      %v5679 = vadd.s32 %v539, 2
      %v5680 = vadd.s32 %v540, 2
      %v5681 = vadd.s32 %v541, 2
      %v5682 = vadd.s32 %v542, 2
      %v5683 = vadd.s32 %v543, 2
      %v5684 = vadd.s32 %v544, 2
      %v5685 = vadd.s32 %v545, 2
      %v5686 = vadd.s32 %v546, 2
      %v5687 = vadd.s32 %v547, 2
      %v5688 = vadd.s32 %v548, 2
      %v5689 = vadd.s32 %v549, 2
      %v5690 = vadd.s32 %v550, 2
      %v5691 = vadd.s32 %v551, 2
      %v5692 = vadd.s32 %v552, 2
      %v5693 = vadd.s32 %v553, 2
      %v5694 = vadd.s32 %v554, 2
      %v5695 = vadd.s32 %v555, 2
      %v5696 = vadd.s32 %v556, 2
      %v5697 = vadd.s32 %v557, 2
      %v5698 = vadd.s32 %v558, 2
      %v5699 = vadd.s32 %v559, 2
      %v5700 = vadd.s32 %v560, 2
      %v5701 = vadd.s32 %v561, 2
      %vm5702 = vcmp.ge.s32.totalorder %v5670, 0
      %vm5703 = vcmp.ge.s32.totalorder %v5671, 0
      %vm5704 = vcmp.ge.s32.totalorder %v5672, 0
      %vm5705 = vcmp.ge.s32.totalorder %v5673, 0
      %vm5706 = vcmp.ge.s32.totalorder %v5674, 0
      %vm5707 = vcmp.ge.s32.totalorder %v5675, 0
      %vm5708 = vcmp.ge.s32.totalorder %v5676, 0
      %vm5709 = vcmp.ge.s32.totalorder %v5677, 0
      %vm5710 = vcmp.ge.s32.totalorder %v5678, 0
      %vm5711 = vcmp.ge.s32.totalorder %v5679, 0
      %vm5712 = vcmp.ge.s32.totalorder %v5680, 0
      %vm5713 = vcmp.ge.s32.totalorder %v5681, 0
      %vm5714 = vcmp.ge.s32.totalorder %v5682, 0
      %vm5715 = vcmp.ge.s32.totalorder %v5683, 0
      %vm5716 = vcmp.ge.s32.totalorder %v5684, 0
      %vm5717 = vcmp.ge.s32.totalorder %v5685, 0
      %vm5718 = vcmp.ge.s32.totalorder %v5686, 0
      %vm5719 = vcmp.ge.s32.totalorder %v5687, 0
      %vm5720 = vcmp.ge.s32.totalorder %v5688, 0
      %vm5721 = vcmp.ge.s32.totalorder %v5689, 0
      %vm5722 = vcmp.ge.s32.totalorder %v5690, 0
      %vm5723 = vcmp.ge.s32.totalorder %v5691, 0
      %vm5724 = vcmp.ge.s32.totalorder %v5692, 0
      %vm5725 = vcmp.ge.s32.totalorder %v5693, 0
      %vm5726 = vcmp.ge.s32.totalorder %v5694, 0
      %vm5727 = vcmp.ge.s32.totalorder %v5695, 0
      %vm5728 = vcmp.ge.s32.totalorder %v5696, 0
      %vm5729 = vcmp.ge.s32.totalorder %v5697, 0
      %vm5730 = vcmp.ge.s32.totalorder %v5698, 0
      %vm5731 = vcmp.ge.s32.totalorder %v5699, 0
      %vm5732 = vcmp.ge.s32.totalorder %v5700, 0
      %vm5733 = vcmp.ge.s32.totalorder %v5701, 0
      %vm5734 = vcmp.lt.s32.totalorder %v5670, 16
      %vm5735 = vcmp.lt.s32.totalorder %v5671, 16
      %vm5736 = vcmp.lt.s32.totalorder %v5672, 16
      %vm5737 = vcmp.lt.s32.totalorder %v5673, 16
      %vm5738 = vcmp.lt.s32.totalorder %v5674, 16
      %vm5739 = vcmp.lt.s32.totalorder %v5675, 16
      %vm5740 = vcmp.lt.s32.totalorder %v5676, 16
      %vm5741 = vcmp.lt.s32.totalorder %v5677, 16
      %vm5742 = vcmp.lt.s32.totalorder %v5678, 16
      %vm5743 = vcmp.lt.s32.totalorder %v5679, 16
      %vm5744 = vcmp.lt.s32.totalorder %v5680, 16
      %vm5745 = vcmp.lt.s32.totalorder %v5681, 16
      %vm5746 = vcmp.lt.s32.totalorder %v5682, 16
      %vm5747 = vcmp.lt.s32.totalorder %v5683, 16
      %vm5748 = vcmp.lt.s32.totalorder %v5684, 16
      %vm5749 = vcmp.lt.s32.totalorder %v5685, 16
      %vm5750 = vcmp.lt.s32.totalorder %v5686, 16
      %vm5751 = vcmp.lt.s32.totalorder %v5687, 16
      %vm5752 = vcmp.lt.s32.totalorder %v5688, 16
      %vm5753 = vcmp.lt.s32.totalorder %v5689, 16
      %vm5754 = vcmp.lt.s32.totalorder %v5690, 16
      %vm5755 = vcmp.lt.s32.totalorder %v5691, 16
      %vm5756 = vcmp.lt.s32.totalorder %v5692, 16
      %vm5757 = vcmp.lt.s32.totalorder %v5693, 16
      %vm5758 = vcmp.lt.s32.totalorder %v5694, 16
      %vm5759 = vcmp.lt.s32.totalorder %v5695, 16
      %vm5760 = vcmp.lt.s32.totalorder %v5696, 16
      %vm5761 = vcmp.lt.s32.totalorder %v5697, 16
      %vm5762 = vcmp.lt.s32.totalorder %v5698, 16
      %vm5763 = vcmp.lt.s32.totalorder %v5699, 16
      %vm5764 = vcmp.lt.s32.totalorder %v5700, 16
      %vm5765 = vcmp.lt.s32.totalorder %v5701, 16
      %vm5766 = vmand %vm5702, %vm5734
      %vm5767 = vmand %vm5703, %vm5735
      %vm5768 = vmand %vm5704, %vm5736
      %vm5769 = vmand %vm5705, %vm5737
      %vm5770 = vmand %vm5706, %vm5738
      %vm5771 = vmand %vm5707, %vm5739
      %vm5772 = vmand %vm5708, %vm5740
      %vm5773 = vmand %vm5709, %vm5741
      %vm5774 = vmand %vm5710, %vm5742
      %vm5775 = vmand %vm5711, %vm5743
      %vm5776 = vmand %vm5712, %vm5744
      %vm5777 = vmand %vm5713, %vm5745
      %vm5778 = vmand %vm5714, %vm5746
      %vm5779 = vmand %vm5715, %vm5747
      %vm5780 = vmand %vm5716, %vm5748
      %vm5781 = vmand %vm5717, %vm5749
      %vm5782 = vmand %vm5718, %vm5750
      %vm5783 = vmand %vm5719, %vm5751
      %vm5784 = vmand %vm5720, %vm5752
      %vm5785 = vmand %vm5721, %vm5753
      %vm5786 = vmand %vm5722, %vm5754
      %vm5787 = vmand %vm5723, %vm5755
      %vm5788 = vmand %vm5724, %vm5756
      %vm5789 = vmand %vm5725, %vm5757
      %vm5790 = vmand %vm5726, %vm5758
      %vm5791 = vmand %vm5727, %vm5759
      %vm5792 = vmand %vm5728, %vm5760
      %vm5793 = vmand %vm5729, %vm5761
      %vm5794 = vmand %vm5730, %vm5762
      %vm5795 = vmand %vm5731, %vm5763
      %vm5796 = vmand %vm5732, %vm5764
      %vm5797 = vmand %vm5733, %vm5765
      %v5798 = vld [vmem:[%s138 + $0x4] sm:$0xff]
      %v5799 = vld [vmem:[%s138 + $0xc] sm:$0xff]
      %v5800 = vld [vmem:[%s138 + $0x14] sm:$0xff]
      %v5801 = vld [vmem:[%s138 + $0x1c] sm:$0xff]
      %v5802 = vld [vmem:[%s138 + $0x24] sm:$0xff]
      %v5803 = vld [vmem:[%s138 + $0x2c] sm:$0xff]
      %v5804 = vld [vmem:[%s138 + $0x34] sm:$0xff]
      %v5805 = vld [vmem:[%s138 + $0x3c] sm:$0xff]
      %v5806 = vld [vmem:[%s138 + $0x44] sm:$0xff]
      %v5807 = vld [vmem:[%s138 + $0x4c] sm:$0xff]
      %v5808 = vld [vmem:[%s138 + $0x54] sm:$0xff]
      %v5809 = vld [vmem:[%s138 + $0x5c] sm:$0xff]
      %v5810 = vld [vmem:[%s138 + $0x64] sm:$0xff]
      %v5811 = vld [vmem:[%s138 + $0x6c] sm:$0xff]
      %v5812 = vld [vmem:[%s138 + $0x74] sm:$0xff]
      %v5813 = vld [vmem:[%s138 + $0x7c] sm:$0xff]
      %v5814 = vld [vmem:[%s138 + $0x84] sm:$0xff]
      %v5815 = vld [vmem:[%s138 + $0x8c] sm:$0xff]
      %v5816 = vld [vmem:[%s138 + $0x94] sm:$0xff]
      %v5817 = vld [vmem:[%s138 + $0x9c] sm:$0xff]
      %v5818 = vld [vmem:[%s138 + $0xa4] sm:$0xff]
      %v5819 = vld [vmem:[%s138 + $0xac] sm:$0xff]
      %v5820 = vld [vmem:[%s138 + $0xb4] sm:$0xff]
      %v5821 = vld [vmem:[%s138 + $0xbc] sm:$0xff]
      %v5822 = vld [vmem:[%s138 + $0xc4] sm:$0xff]
      %v5823 = vld [vmem:[%s138 + $0xcc] sm:$0xff]
      %v5824 = vld [vmem:[%s138 + $0xd4] sm:$0xff]
      %v5825 = vld [vmem:[%s138 + $0xdc] sm:$0xff]
      %v5826 = vld [vmem:[%s138 + $0xe4] sm:$0xff]
      %v5827 = vld [vmem:[%s138 + $0xec] sm:$0xff]
      %v5828 = vld [vmem:[%s138 + $0xf4] sm:$0xff]
      %v5829 = vld [vmem:[%s138 + $0xfc] sm:$0xff]
      %v5830 = vsel %vm5766, 1, 0
      %v5831 = vsel %vm5767, 1, 0
      %v5832 = vsel %vm5768, 1, 0
      %v5833 = vsel %vm5769, 1, 0
      %v5834 = vsel %vm5770, 1, 0
      %v5835 = vsel %vm5771, 1, 0
      %v5836 = vsel %vm5772, 1, 0
      %v5837 = vsel %vm5773, 1, 0
      %v5838 = vsel %vm5774, 1, 0
      %v5839 = vsel %vm5775, 1, 0
      %v5840 = vsel %vm5776, 1, 0
      %v5841 = vsel %vm5777, 1, 0
      %v5842 = vsel %vm5778, 1, 0
      %v5843 = vsel %vm5779, 1, 0
      %v5844 = vsel %vm5780, 1, 0
      %v5845 = vsel %vm5781, 1, 0
      %v5846 = vsel %vm5782, 1, 0
      %v5847 = vsel %vm5783, 1, 0
      %v5848 = vsel %vm5784, 1, 0
      %v5849 = vsel %vm5785, 1, 0
      %v5850 = vsel %vm5786, 1, 0
      %v5851 = vsel %vm5787, 1, 0
      %v5852 = vsel %vm5788, 1, 0
      %v5853 = vsel %vm5789, 1, 0
      %v5854 = vsel %vm5790, 1, 0
      %v5855 = vsel %vm5791, 1, 0
      %v5856 = vsel %vm5792, 1, 0
      %v5857 = vsel %vm5793, 1, 0
      %v5858 = vsel %vm5794, 1, 0
      %v5859 = vsel %vm5795, 1, 0
      %v5860 = vsel %vm5796, 1, 0
      %v5861 = vsel %vm5797, 1, 0
      %vm5862 = vcmp.eq.s32.totalorder %v5830, 1
      %vm5863 = vcmp.eq.s32.totalorder %v5831, 1
      %vm5864 = vcmp.eq.s32.totalorder %v5832, 1
      %vm5865 = vcmp.eq.s32.totalorder %v5833, 1
      %vm5866 = vcmp.eq.s32.totalorder %v5834, 1
      %vm5867 = vcmp.eq.s32.totalorder %v5835, 1
      %vm5868 = vcmp.eq.s32.totalorder %v5836, 1
      %vm5869 = vcmp.eq.s32.totalorder %v5837, 1
      %vm5870 = vcmp.eq.s32.totalorder %v5838, 1
      %vm5871 = vcmp.eq.s32.totalorder %v5839, 1
      %vm5872 = vcmp.eq.s32.totalorder %v5840, 1
      %vm5873 = vcmp.eq.s32.totalorder %v5841, 1
      %vm5874 = vcmp.eq.s32.totalorder %v5842, 1
      %vm5875 = vcmp.eq.s32.totalorder %v5843, 1
      %vm5876 = vcmp.eq.s32.totalorder %v5844, 1
      %vm5877 = vcmp.eq.s32.totalorder %v5845, 1
      %vm5878 = vcmp.eq.s32.totalorder %v5846, 1
      %vm5879 = vcmp.eq.s32.totalorder %v5847, 1
      %vm5880 = vcmp.eq.s32.totalorder %v5848, 1
      %vm5881 = vcmp.eq.s32.totalorder %v5849, 1
      %vm5882 = vcmp.eq.s32.totalorder %v5850, 1
      %vm5883 = vcmp.eq.s32.totalorder %v5851, 1
      %vm5884 = vcmp.eq.s32.totalorder %v5852, 1
      %vm5885 = vcmp.eq.s32.totalorder %v5853, 1
      %vm5886 = vcmp.eq.s32.totalorder %v5854, 1
      %vm5887 = vcmp.eq.s32.totalorder %v5855, 1
      %vm5888 = vcmp.eq.s32.totalorder %v5856, 1
      %vm5889 = vcmp.eq.s32.totalorder %v5857, 1
      %vm5890 = vcmp.eq.s32.totalorder %v5858, 1
      %vm5891 = vcmp.eq.s32.totalorder %v5859, 1
      %vm5892 = vcmp.eq.s32.totalorder %v5860, 1
      %vm5893 = vcmp.eq.s32.totalorder %v5861, 1
      %v5894 = vsel %vm5862, %v5798, 0.0
      %v5895 = vsel %vm5863, %v5799, 0.0
      %v5896 = vsel %vm5864, %v5800, 0.0
      %v5897 = vsel %vm5865, %v5801, 0.0
      %v5898 = vsel %vm5866, %v5802, 0.0
      %v5899 = vsel %vm5867, %v5803, 0.0
      %v5900 = vsel %vm5868, %v5804, 0.0
      %v5901 = vsel %vm5869, %v5805, 0.0
      %v5902 = vsel %vm5870, %v5806, 0.0
      %v5903 = vsel %vm5871, %v5807, 0.0
      %v5904 = vsel %vm5872, %v5808, 0.0
      %v5905 = vsel %vm5873, %v5809, 0.0
      %v5906 = vsel %vm5874, %v5810, 0.0
      %v5907 = vsel %vm5875, %v5811, 0.0
      %v5908 = vsel %vm5876, %v5812, 0.0
      %v5909 = vsel %vm5877, %v5813, 0.0
      %v5910 = vsel %vm5878, %v5814, 0.0
      %v5911 = vsel %vm5879, %v5815, 0.0
      %v5912 = vsel %vm5880, %v5816, 0.0
      %v5913 = vsel %vm5881, %v5817, 0.0
      %v5914 = vsel %vm5882, %v5818, 0.0
      %v5915 = vsel %vm5883, %v5819, 0.0
      %v5916 = vsel %vm5884, %v5820, 0.0
      %v5917 = vsel %vm5885, %v5821, 0.0
      %v5918 = vsel %vm5886, %v5822, 0.0
      %v5919 = vsel %vm5887, %v5823, 0.0
      %v5920 = vsel %vm5888, %v5824, 0.0
      %v5921 = vsel %vm5889, %v5825, 0.0
      %v5922 = vsel %vm5890, %v5826, 0.0
      %v5923 = vsel %vm5891, %v5827, 0.0
      %v5924 = vsel %vm5892, %v5828, 0.0
      %v5925 = vsel %vm5893, %v5829, 0.0
      %5958 = vrot.lane.b32.xlu0 %v5894, 16
      %v5959 = vpop.permute.xlu0 %5958
      %5960 = vrot.lane.b32.xlu0 %v5895, 16
      %v5961 = vpop.permute.xlu0 %5960
      %5962 = vrot.lane.b32.xlu0 %v5896, 16
      %v5963 = vpop.permute.xlu0 %5962
      %5964 = vrot.lane.b32.xlu0 %v5897, 16
      %v5965 = vpop.permute.xlu0 %5964
      %5966 = vrot.lane.b32.xlu0 %v5898, 16
      %v5967 = vpop.permute.xlu0 %5966
      %5968 = vrot.lane.b32.xlu0 %v5899, 16
      %v5969 = vpop.permute.xlu0 %5968
      %5970 = vrot.lane.b32.xlu0 %v5900, 16
      %v5971 = vpop.permute.xlu0 %5970
      %5972 = vrot.lane.b32.xlu0 %v5901, 16
      %v5973 = vpop.permute.xlu0 %5972
      %5974 = vrot.lane.b32.xlu0 %v5902, 16
      %v5975 = vpop.permute.xlu0 %5974
      %5976 = vrot.lane.b32.xlu0 %v5903, 16
      %v5977 = vpop.permute.xlu0 %5976
      %5978 = vrot.lane.b32.xlu0 %v5904, 16
      %v5979 = vpop.permute.xlu0 %5978
      %5980 = vrot.lane.b32.xlu0 %v5905, 16
      %v5981 = vpop.permute.xlu0 %5980
      %5982 = vrot.lane.b32.xlu0 %v5906, 16
      %v5983 = vpop.permute.xlu0 %5982
      %5984 = vrot.lane.b32.xlu0 %v5907, 16
      %v5985 = vpop.permute.xlu0 %5984
      %5986 = vrot.lane.b32.xlu0 %v5908, 16
      %v5987 = vpop.permute.xlu0 %5986
      %5988 = vrot.lane.b32.xlu0 %v5909, 16
      %v5989 = vpop.permute.xlu0 %5988
      %5990 = vrot.lane.b32.xlu0 %v5910, 16
      %v5991 = vpop.permute.xlu0 %5990
      %5992 = vrot.lane.b32.xlu0 %v5911, 16
      %v5993 = vpop.permute.xlu0 %5992
      %5994 = vrot.lane.b32.xlu0 %v5912, 16
      %v5995 = vpop.permute.xlu0 %5994
      %5996 = vrot.lane.b32.xlu0 %v5913, 16
      %v5997 = vpop.permute.xlu0 %5996
      %5998 = vrot.lane.b32.xlu0 %v5914, 16
      %v5999 = vpop.permute.xlu0 %5998
      %6000 = vrot.lane.b32.xlu0 %v5915, 16
      %v6001 = vpop.permute.xlu0 %6000
      %6002 = vrot.lane.b32.xlu0 %v5916, 16
      %v6003 = vpop.permute.xlu0 %6002
      %6004 = vrot.lane.b32.xlu0 %v5917, 16
      %v6005 = vpop.permute.xlu0 %6004
      %6006 = vrot.lane.b32.xlu0 %v5918, 16
      %v6007 = vpop.permute.xlu0 %6006
      %6008 = vrot.lane.b32.xlu0 %v5919, 16
      %v6009 = vpop.permute.xlu0 %6008
      %6010 = vrot.lane.b32.xlu0 %v5920, 16
      %v6011 = vpop.permute.xlu0 %6010
      %6012 = vrot.lane.b32.xlu0 %v5921, 16
      %v6013 = vpop.permute.xlu0 %6012
      %6014 = vrot.lane.b32.xlu0 %v5922, 16
      %v6015 = vpop.permute.xlu0 %6014
      %6016 = vrot.lane.b32.xlu0 %v5923, 16
      %v6017 = vpop.permute.xlu0 %6016
      %6018 = vrot.lane.b32.xlu0 %v5924, 16
      %v6019 = vpop.permute.xlu0 %6018
      %6020 = vrot.lane.b32.xlu0 %v5925, 16
      %v6021 = vpop.permute.xlu0 %6020
      %vm6054 = vcmask 162944
      %6055 = vst.msk [vmem:[#allocation2] sm:$0xff] %vm6054, %v5959
      %6056 = vst.msk [vmem:[#allocation2 + $0x8] sm:$0xff] %vm6054, %v5961
      %6057 = vst.msk [vmem:[#allocation2 + $0x10] sm:$0xff] %vm6054, %v5963
      %6058 = vst.msk [vmem:[#allocation2 + $0x18] sm:$0xff] %vm6054, %v5965
      %6059 = vst.msk [vmem:[#allocation2 + $0x20] sm:$0xff] %vm6054, %v5967
      %6060 = vst.msk [vmem:[#allocation2 + $0x28] sm:$0xff] %vm6054, %v5969
      %6061 = vst.msk [vmem:[#allocation2 + $0x30] sm:$0xff] %vm6054, %v5971
      %6062 = vst.msk [vmem:[#allocation2 + $0x38] sm:$0xff] %vm6054, %v5973
      %6063 = vst.msk [vmem:[#allocation2 + $0x40] sm:$0xff] %vm6054, %v5975
      %6064 = vst.msk [vmem:[#allocation2 + $0x48] sm:$0xff] %vm6054, %v5977
      %6065 = vst.msk [vmem:[#allocation2 + $0x50] sm:$0xff] %vm6054, %v5979
      %6066 = vst.msk [vmem:[#allocation2 + $0x58] sm:$0xff] %vm6054, %v5981
      %6067 = vst.msk [vmem:[#allocation2 + $0x60] sm:$0xff] %vm6054, %v5983
      %6068 = vst.msk [vmem:[#allocation2 + $0x68] sm:$0xff] %vm6054, %v5985
      %6069 = vst.msk [vmem:[#allocation2 + $0x70] sm:$0xff] %vm6054, %v5987
      %6070 = vst.msk [vmem:[#allocation2 + $0x78] sm:$0xff] %vm6054, %v5989
      %6071 = vst.msk [vmem:[#allocation2 + $0x80] sm:$0xff] %vm6054, %v5991
      %6072 = vst.msk [vmem:[#allocation2 + $0x88] sm:$0xff] %vm6054, %v5993
      %6073 = vst.msk [vmem:[#allocation2 + $0x90] sm:$0xff] %vm6054, %v5995
      %6074 = vst.msk [vmem:[#allocation2 + $0x98] sm:$0xff] %vm6054, %v5997
      %6075 = vst.msk [vmem:[#allocation2 + $0xa0] sm:$0xff] %vm6054, %v5999
      %6076 = vst.msk [vmem:[#allocation2 + $0xa8] sm:$0xff] %vm6054, %v6001
      %6077 = vst.msk [vmem:[#allocation2 + $0xb0] sm:$0xff] %vm6054, %v6003
      %6078 = vst.msk [vmem:[#allocation2 + $0xb8] sm:$0xff] %vm6054, %v6005
      %6079 = vst.msk [vmem:[#allocation2 + $0xc0] sm:$0xff] %vm6054, %v6007
      %6080 = vst.msk [vmem:[#allocation2 + $0xc8] sm:$0xff] %vm6054, %v6009
      %6081 = vst.msk [vmem:[#allocation2 + $0xd0] sm:$0xff] %vm6054, %v6011
      %6082 = vst.msk [vmem:[#allocation2 + $0xd8] sm:$0xff] %vm6054, %v6013
      %6083 = vst.msk [vmem:[#allocation2 + $0xe0] sm:$0xff] %vm6054, %v6015
      %6084 = vst.msk [vmem:[#allocation2 + $0xe8] sm:$0xff] %vm6054, %v6017
      %6085 = vst.msk [vmem:[#allocation2 + $0xf0] sm:$0xff] %vm6054, %v6019
      %6086 = vst.msk [vmem:[#allocation2 + $0xf8] sm:$0xff] %vm6054, %v6021
      %v6087 = vld [vmem:[%s138 + $0x14] sm:$0xff]
      %v6088 = vld [vmem:[%s138 + $0x1c] sm:$0xff]
      %v6089 = vld [vmem:[%s138 + $0x24] sm:$0xff]
      %v6090 = vld [vmem:[%s138 + $0x2c] sm:$0xff]
      %v6091 = vld [vmem:[%s138 + $0x34] sm:$0xff]
      %v6092 = vld [vmem:[%s138 + $0x3c] sm:$0xff]
      %v6093 = vld [vmem:[%s138 + $0x44] sm:$0xff]
      %v6094 = vld [vmem:[%s138 + $0x4c] sm:$0xff]
      %v6095 = vld [vmem:[%s138 + $0x54] sm:$0xff]
      %v6096 = vld [vmem:[%s138 + $0x5c] sm:$0xff]
      %v6097 = vld [vmem:[%s138 + $0x64] sm:$0xff]
      %v6098 = vld [vmem:[%s138 + $0x6c] sm:$0xff]
      %v6099 = vld [vmem:[%s138 + $0x74] sm:$0xff]
      %v6100 = vld [vmem:[%s138 + $0x7c] sm:$0xff]
      %v6101 = vld [vmem:[%s138 + $0x84] sm:$0xff]
      %v6102 = vld [vmem:[%s138 + $0x8c] sm:$0xff]
      %v6103 = vld [vmem:[%s138 + $0x94] sm:$0xff]
      %v6104 = vld [vmem:[%s138 + $0x9c] sm:$0xff]
      %v6105 = vld [vmem:[%s138 + $0xa4] sm:$0xff]
      %v6106 = vld [vmem:[%s138 + $0xac] sm:$0xff]
      %v6107 = vld [vmem:[%s138 + $0xb4] sm:$0xff]
      %v6108 = vld [vmem:[%s138 + $0xbc] sm:$0xff]
      %v6109 = vld [vmem:[%s138 + $0xc4] sm:$0xff]
      %v6110 = vld [vmem:[%s138 + $0xcc] sm:$0xff]
      %v6111 = vld [vmem:[%s138 + $0xd4] sm:$0xff]
      %v6112 = vld [vmem:[%s138 + $0xdc] sm:$0xff]
      %v6113 = vld [vmem:[%s138 + $0xe4] sm:$0xff]
      %v6114 = vld [vmem:[%s138 + $0xec] sm:$0xff]
      %v6115 = vld [vmem:[%s138 + $0xf4] sm:$0xff]
      %v6116 = vld [vmem:[%s138 + $0xfc] sm:$0xff]
      %v6117 = vld [vmem:[%s138 + $0x104] sm:$0xff]
      %v6118 = vld [vmem:[%s138 + $0x10c] sm:$0xff]
      %v6119 = vsel %vm5862, %v6087, 0.0
      %v6120 = vsel %vm5863, %v6088, 0.0
      %v6121 = vsel %vm5864, %v6089, 0.0
      %v6122 = vsel %vm5865, %v6090, 0.0
      %v6123 = vsel %vm5866, %v6091, 0.0
      %v6124 = vsel %vm5867, %v6092, 0.0
      %v6125 = vsel %vm5868, %v6093, 0.0
      %v6126 = vsel %vm5869, %v6094, 0.0
      %v6127 = vsel %vm5870, %v6095, 0.0
      %v6128 = vsel %vm5871, %v6096, 0.0
      %v6129 = vsel %vm5872, %v6097, 0.0
      %v6130 = vsel %vm5873, %v6098, 0.0
      %v6131 = vsel %vm5874, %v6099, 0.0
      %v6132 = vsel %vm5875, %v6100, 0.0
      %v6133 = vsel %vm5876, %v6101, 0.0
      %v6134 = vsel %vm5877, %v6102, 0.0
      %v6135 = vsel %vm5878, %v6103, 0.0
      %v6136 = vsel %vm5879, %v6104, 0.0
      %v6137 = vsel %vm5880, %v6105, 0.0
      %v6138 = vsel %vm5881, %v6106, 0.0
      %v6139 = vsel %vm5882, %v6107, 0.0
      %v6140 = vsel %vm5883, %v6108, 0.0
      %v6141 = vsel %vm5884, %v6109, 0.0
      %v6142 = vsel %vm5885, %v6110, 0.0
      %v6143 = vsel %vm5886, %v6111, 0.0
      %v6144 = vsel %vm5887, %v6112, 0.0
      %v6145 = vsel %vm5888, %v6113, 0.0
      %v6146 = vsel %vm5889, %v6114, 0.0
      %v6147 = vsel %vm5890, %v6115, 0.0
      %v6148 = vsel %vm5891, %v6116, 0.0
      %v6149 = vsel %vm5892, %v6117, 0.0
      %v6150 = vsel %vm5893, %v6118, 0.0
      %6183 = vrot.lane.b32.xlu0 %v6119, 36
      %v6184 = vpop.permute.xlu0 %6183
      %6185 = vrot.lane.b32.xlu0 %v6120, 36
      %v6186 = vpop.permute.xlu0 %6185
      %6187 = vrot.lane.b32.xlu0 %v6121, 36
      %v6188 = vpop.permute.xlu0 %6187
      %6189 = vrot.lane.b32.xlu0 %v6122, 36
      %v6190 = vpop.permute.xlu0 %6189
      %6191 = vrot.lane.b32.xlu0 %v6123, 36
      %v6192 = vpop.permute.xlu0 %6191
      %6193 = vrot.lane.b32.xlu0 %v6124, 36
      %v6194 = vpop.permute.xlu0 %6193
      %6195 = vrot.lane.b32.xlu0 %v6125, 36
      %v6196 = vpop.permute.xlu0 %6195
      %6197 = vrot.lane.b32.xlu0 %v6126, 36
      %v6198 = vpop.permute.xlu0 %6197
      %6199 = vrot.lane.b32.xlu0 %v6127, 36
      %v6200 = vpop.permute.xlu0 %6199
      %6201 = vrot.lane.b32.xlu0 %v6128, 36
      %v6202 = vpop.permute.xlu0 %6201
      %6203 = vrot.lane.b32.xlu0 %v6129, 36
      %v6204 = vpop.permute.xlu0 %6203
      %6205 = vrot.lane.b32.xlu0 %v6130, 36
      %v6206 = vpop.permute.xlu0 %6205
      %6207 = vrot.lane.b32.xlu0 %v6131, 36
      %v6208 = vpop.permute.xlu0 %6207
      %6209 = vrot.lane.b32.xlu0 %v6132, 36
      %v6210 = vpop.permute.xlu0 %6209
      %6211 = vrot.lane.b32.xlu0 %v6133, 36
      %v6212 = vpop.permute.xlu0 %6211
      %6213 = vrot.lane.b32.xlu0 %v6134, 36
      %v6214 = vpop.permute.xlu0 %6213
      %6215 = vrot.lane.b32.xlu0 %v6135, 36
      %v6216 = vpop.permute.xlu0 %6215
      %6217 = vrot.lane.b32.xlu0 %v6136, 36
      %v6218 = vpop.permute.xlu0 %6217
      %6219 = vrot.lane.b32.xlu0 %v6137, 36
      %v6220 = vpop.permute.xlu0 %6219
      %6221 = vrot.lane.b32.xlu0 %v6138, 36
      %v6222 = vpop.permute.xlu0 %6221
      %6223 = vrot.lane.b32.xlu0 %v6139, 36
      %v6224 = vpop.permute.xlu0 %6223
      %6225 = vrot.lane.b32.xlu0 %v6140, 36
      %v6226 = vpop.permute.xlu0 %6225
      %6227 = vrot.lane.b32.xlu0 %v6141, 36
      %v6228 = vpop.permute.xlu0 %6227
      %6229 = vrot.lane.b32.xlu0 %v6142, 36
      %v6230 = vpop.permute.xlu0 %6229
      %6231 = vrot.lane.b32.xlu0 %v6143, 36
      %v6232 = vpop.permute.xlu0 %6231
      %6233 = vrot.lane.b32.xlu0 %v6144, 36
      %v6234 = vpop.permute.xlu0 %6233
      %6235 = vrot.lane.b32.xlu0 %v6145, 36
      %v6236 = vpop.permute.xlu0 %6235
      %6237 = vrot.lane.b32.xlu0 %v6146, 36
      %v6238 = vpop.permute.xlu0 %6237
      %6239 = vrot.lane.b32.xlu0 %v6147, 36
      %v6240 = vpop.permute.xlu0 %6239
      %6241 = vrot.lane.b32.xlu0 %v6148, 36
      %v6242 = vpop.permute.xlu0 %6241
      %6243 = vrot.lane.b32.xlu0 %v6149, 36
      %v6244 = vpop.permute.xlu0 %6243
      %6245 = vrot.lane.b32.xlu0 %v6150, 36
      %v6246 = vpop.permute.xlu0 %6245
      %vm6279 = vcmask 326944
      %6280 = vst.msk [vmem:[#allocation2] sm:$0xff] %vm6279, %v6184
      %6281 = vst.msk [vmem:[#allocation2 + $0x8] sm:$0xff] %vm6279, %v6186
      %6282 = vst.msk [vmem:[#allocation2 + $0x10] sm:$0xff] %vm6279, %v6188
      %6283 = vst.msk [vmem:[#allocation2 + $0x18] sm:$0xff] %vm6279, %v6190
      %6284 = vst.msk [vmem:[#allocation2 + $0x20] sm:$0xff] %vm6279, %v6192
      %6285 = vst.msk [vmem:[#allocation2 + $0x28] sm:$0xff] %vm6279, %v6194
      %6286 = vst.msk [vmem:[#allocation2 + $0x30] sm:$0xff] %vm6279, %v6196
      %6287 = vst.msk [vmem:[#allocation2 + $0x38] sm:$0xff] %vm6279, %v6198
      %6288 = vst.msk [vmem:[#allocation2 + $0x40] sm:$0xff] %vm6279, %v6200
      %6289 = vst.msk [vmem:[#allocation2 + $0x48] sm:$0xff] %vm6279, %v6202
      %6290 = vst.msk [vmem:[#allocation2 + $0x50] sm:$0xff] %vm6279, %v6204
      %6291 = vst.msk [vmem:[#allocation2 + $0x58] sm:$0xff] %vm6279, %v6206
      %6292 = vst.msk [vmem:[#allocation2 + $0x60] sm:$0xff] %vm6279, %v6208
      %6293 = vst.msk [vmem:[#allocation2 + $0x68] sm:$0xff] %vm6279, %v6210
      %6294 = vst.msk [vmem:[#allocation2 + $0x70] sm:$0xff] %vm6279, %v6212
      %6295 = vst.msk [vmem:[#allocation2 + $0x78] sm:$0xff] %vm6279, %v6214
      %6296 = vst.msk [vmem:[#allocation2 + $0x80] sm:$0xff] %vm6279, %v6216
      %6297 = vst.msk [vmem:[#allocation2 + $0x88] sm:$0xff] %vm6279, %v6218
      %6298 = vst.msk [vmem:[#allocation2 + $0x90] sm:$0xff] %vm6279, %v6220
      %6299 = vst.msk [vmem:[#allocation2 + $0x98] sm:$0xff] %vm6279, %v6222
      %6300 = vst.msk [vmem:[#allocation2 + $0xa0] sm:$0xff] %vm6279, %v6224
      %6301 = vst.msk [vmem:[#allocation2 + $0xa8] sm:$0xff] %vm6279, %v6226
      %6302 = vst.msk [vmem:[#allocation2 + $0xb0] sm:$0xff] %vm6279, %v6228
      %6303 = vst.msk [vmem:[#allocation2 + $0xb8] sm:$0xff] %vm6279, %v6230
      %6304 = vst.msk [vmem:[#allocation2 + $0xc0] sm:$0xff] %vm6279, %v6232
      %6305 = vst.msk [vmem:[#allocation2 + $0xc8] sm:$0xff] %vm6279, %v6234
      %6306 = vst.msk [vmem:[#allocation2 + $0xd0] sm:$0xff] %vm6279, %v6236
      %6307 = vst.msk [vmem:[#allocation2 + $0xd8] sm:$0xff] %vm6279, %v6238
      %6308 = vst.msk [vmem:[#allocation2 + $0xe0] sm:$0xff] %vm6279, %v6240
      %6309 = vst.msk [vmem:[#allocation2 + $0xe8] sm:$0xff] %vm6279, %v6242
      %6310 = vst.msk [vmem:[#allocation2 + $0xf0] sm:$0xff] %vm6279, %v6244
      %6311 = vst.msk [vmem:[#allocation2 + $0xf8] sm:$0xff] %vm6279, %v6246
      %v6312 = vld [vmem:[%s138 + $0x24] sm:$0xff]
      %v6313 = vld [vmem:[%s138 + $0x2c] sm:$0xff]
      %v6314 = vld [vmem:[%s138 + $0x34] sm:$0xff]
      %v6315 = vld [vmem:[%s138 + $0x3c] sm:$0xff]
      %v6316 = vld [vmem:[%s138 + $0x44] sm:$0xff]
      %v6317 = vld [vmem:[%s138 + $0x4c] sm:$0xff]
      %v6318 = vld [vmem:[%s138 + $0x54] sm:$0xff]
      %v6319 = vld [vmem:[%s138 + $0x5c] sm:$0xff]
      %v6320 = vld [vmem:[%s138 + $0x64] sm:$0xff]
      %v6321 = vld [vmem:[%s138 + $0x6c] sm:$0xff]
      %v6322 = vld [vmem:[%s138 + $0x74] sm:$0xff]
      %v6323 = vld [vmem:[%s138 + $0x7c] sm:$0xff]
      %v6324 = vld [vmem:[%s138 + $0x84] sm:$0xff]
      %v6325 = vld [vmem:[%s138 + $0x8c] sm:$0xff]
      %v6326 = vld [vmem:[%s138 + $0x94] sm:$0xff]
      %v6327 = vld [vmem:[%s138 + $0x9c] sm:$0xff]
      %v6328 = vld [vmem:[%s138 + $0xa4] sm:$0xff]
      %v6329 = vld [vmem:[%s138 + $0xac] sm:$0xff]
      %v6330 = vld [vmem:[%s138 + $0xb4] sm:$0xff]
      %v6331 = vld [vmem:[%s138 + $0xbc] sm:$0xff]
      %v6332 = vld [vmem:[%s138 + $0xc4] sm:$0xff]
      %v6333 = vld [vmem:[%s138 + $0xcc] sm:$0xff]
      %v6334 = vld [vmem:[%s138 + $0xd4] sm:$0xff]
      %v6335 = vld [vmem:[%s138 + $0xdc] sm:$0xff]
      %v6336 = vld [vmem:[%s138 + $0xe4] sm:$0xff]
      %v6337 = vld [vmem:[%s138 + $0xec] sm:$0xff]
      %v6338 = vld [vmem:[%s138 + $0xf4] sm:$0xff]
      %v6339 = vld [vmem:[%s138 + $0xfc] sm:$0xff]
      %v6340 = vld [vmem:[%s138 + $0x104] sm:$0xff]
      %v6341 = vld [vmem:[%s138 + $0x10c] sm:$0xff]
      %v6342 = vld [vmem:[%s138 + $0x114] sm:$0xff]
      %v6343 = vld [vmem:[%s138 + $0x11c] sm:$0xff]
      %v6344 = vsel %vm5862, %v6312, 0.0
      %v6345 = vsel %vm5863, %v6313, 0.0
      %v6346 = vsel %vm5864, %v6314, 0.0
      %v6347 = vsel %vm5865, %v6315, 0.0
      %v6348 = vsel %vm5866, %v6316, 0.0
      %v6349 = vsel %vm5867, %v6317, 0.0
      %v6350 = vsel %vm5868, %v6318, 0.0
      %v6351 = vsel %vm5869, %v6319, 0.0
      %v6352 = vsel %vm5870, %v6320, 0.0
      %v6353 = vsel %vm5871, %v6321, 0.0
      %v6354 = vsel %vm5872, %v6322, 0.0
      %v6355 = vsel %vm5873, %v6323, 0.0
      %v6356 = vsel %vm5874, %v6324, 0.0
      %v6357 = vsel %vm5875, %v6325, 0.0
      %v6358 = vsel %vm5876, %v6326, 0.0
      %v6359 = vsel %vm5877, %v6327, 0.0
      %v6360 = vsel %vm5878, %v6328, 0.0
      %v6361 = vsel %vm5879, %v6329, 0.0
      %v6362 = vsel %vm5880, %v6330, 0.0
      %v6363 = vsel %vm5881, %v6331, 0.0
      %v6364 = vsel %vm5882, %v6332, 0.0
      %v6365 = vsel %vm5883, %v6333, 0.0
      %v6366 = vsel %vm5884, %v6334, 0.0
      %v6367 = vsel %vm5885, %v6335, 0.0
      %v6368 = vsel %vm5886, %v6336, 0.0
      %v6369 = vsel %vm5887, %v6337, 0.0
      %v6370 = vsel %vm5888, %v6338, 0.0
      %v6371 = vsel %vm5889, %v6339, 0.0
      %v6372 = vsel %vm5890, %v6340, 0.0
      %v6373 = vsel %vm5891, %v6341, 0.0
      %v6374 = vsel %vm5892, %v6342, 0.0
      %v6375 = vsel %vm5893, %v6343, 0.0
      %6408 = vrot.lane.b32.xlu0 %v6344, 56
      %v6409 = vpop.permute.xlu0 %6408
      %6410 = vrot.lane.b32.xlu0 %v6345, 56
      %v6411 = vpop.permute.xlu0 %6410
      %6412 = vrot.lane.b32.xlu0 %v6346, 56
      %v6413 = vpop.permute.xlu0 %6412
      %6414 = vrot.lane.b32.xlu0 %v6347, 56
      %v6415 = vpop.permute.xlu0 %6414
      %6416 = vrot.lane.b32.xlu0 %v6348, 56
      %v6417 = vpop.permute.xlu0 %6416
      %6418 = vrot.lane.b32.xlu0 %v6349, 56
      %v6419 = vpop.permute.xlu0 %6418
      %6420 = vrot.lane.b32.xlu0 %v6350, 56
      %v6421 = vpop.permute.xlu0 %6420
      %6422 = vrot.lane.b32.xlu0 %v6351, 56
      %v6423 = vpop.permute.xlu0 %6422
      %6424 = vrot.lane.b32.xlu0 %v6352, 56
      %v6425 = vpop.permute.xlu0 %6424
      %6426 = vrot.lane.b32.xlu0 %v6353, 56
      %v6427 = vpop.permute.xlu0 %6426
      %6428 = vrot.lane.b32.xlu0 %v6354, 56
      %v6429 = vpop.permute.xlu0 %6428
      %6430 = vrot.lane.b32.xlu0 %v6355, 56
      %v6431 = vpop.permute.xlu0 %6430
      %6432 = vrot.lane.b32.xlu0 %v6356, 56
      %v6433 = vpop.permute.xlu0 %6432
      %6434 = vrot.lane.b32.xlu0 %v6357, 56
      %v6435 = vpop.permute.xlu0 %6434
      %6436 = vrot.lane.b32.xlu0 %v6358, 56
      %v6437 = vpop.permute.xlu0 %6436
      %6438 = vrot.lane.b32.xlu0 %v6359, 56
      %v6439 = vpop.permute.xlu0 %6438
      %6440 = vrot.lane.b32.xlu0 %v6360, 56
      %v6441 = vpop.permute.xlu0 %6440
      %6442 = vrot.lane.b32.xlu0 %v6361, 56
      %v6443 = vpop.permute.xlu0 %6442
      %6444 = vrot.lane.b32.xlu0 %v6362, 56
      %v6445 = vpop.permute.xlu0 %6444
      %6446 = vrot.lane.b32.xlu0 %v6363, 56
      %v6447 = vpop.permute.xlu0 %6446
      %6448 = vrot.lane.b32.xlu0 %v6364, 56
      %v6449 = vpop.permute.xlu0 %6448
      %6450 = vrot.lane.b32.xlu0 %v6365, 56
      %v6451 = vpop.permute.xlu0 %6450
      %6452 = vrot.lane.b32.xlu0 %v6366, 56
      %v6453 = vpop.permute.xlu0 %6452
      %6454 = vrot.lane.b32.xlu0 %v6367, 56
      %v6455 = vpop.permute.xlu0 %6454
      %6456 = vrot.lane.b32.xlu0 %v6368, 56
      %v6457 = vpop.permute.xlu0 %6456
      %6458 = vrot.lane.b32.xlu0 %v6369, 56
      %v6459 = vpop.permute.xlu0 %6458
      %6460 = vrot.lane.b32.xlu0 %v6370, 56
      %v6461 = vpop.permute.xlu0 %6460
      %6462 = vrot.lane.b32.xlu0 %v6371, 56
      %v6463 = vpop.permute.xlu0 %6462
      %6464 = vrot.lane.b32.xlu0 %v6372, 56
      %v6465 = vpop.permute.xlu0 %6464
      %6466 = vrot.lane.b32.xlu0 %v6373, 56
      %v6467 = vpop.permute.xlu0 %6466
      %6468 = vrot.lane.b32.xlu0 %v6374, 56
      %v6469 = vpop.permute.xlu0 %6468
      %6470 = vrot.lane.b32.xlu0 %v6375, 56
      %v6471 = vpop.permute.xlu0 %6470
      %vm6504 = vcmask 490944
      %6505 = vst.msk [vmem:[#allocation2] sm:$0xff] %vm6504, %v6409
      %6506 = vst.msk [vmem:[#allocation2 + $0x8] sm:$0xff] %vm6504, %v6411
      %6507 = vst.msk [vmem:[#allocation2 + $0x10] sm:$0xff] %vm6504, %v6413
      %6508 = vst.msk [vmem:[#allocation2 + $0x18] sm:$0xff] %vm6504, %v6415
      %6509 = vst.msk [vmem:[#allocation2 + $0x20] sm:$0xff] %vm6504, %v6417
      %6510 = vst.msk [vmem:[#allocation2 + $0x28] sm:$0xff] %vm6504, %v6419
      %6511 = vst.msk [vmem:[#allocation2 + $0x30] sm:$0xff] %vm6504, %v6421
      %6512 = vst.msk [vmem:[#allocation2 + $0x38] sm:$0xff] %vm6504, %v6423
      %6513 = vst.msk [vmem:[#allocation2 + $0x40] sm:$0xff] %vm6504, %v6425
      %6514 = vst.msk [vmem:[#allocation2 + $0x48] sm:$0xff] %vm6504, %v6427
      %6515 = vst.msk [vmem:[#allocation2 + $0x50] sm:$0xff] %vm6504, %v6429
      %6516 = vst.msk [vmem:[#allocation2 + $0x58] sm:$0xff] %vm6504, %v6431
      %6517 = vst.msk [vmem:[#allocation2 + $0x60] sm:$0xff] %vm6504, %v6433
      %6518 = vst.msk [vmem:[#allocation2 + $0x68] sm:$0xff] %vm6504, %v6435
      %6519 = vst.msk [vmem:[#allocation2 + $0x70] sm:$0xff] %vm6504, %v6437
      %6520 = vst.msk [vmem:[#allocation2 + $0x78] sm:$0xff] %vm6504, %v6439
      %6521 = vst.msk [vmem:[#allocation2 + $0x80] sm:$0xff] %vm6504, %v6441
      %6522 = vst.msk [vmem:[#allocation2 + $0x88] sm:$0xff] %vm6504, %v6443
      %6523 = vst.msk [vmem:[#allocation2 + $0x90] sm:$0xff] %vm6504, %v6445
      %6524 = vst.msk [vmem:[#allocation2 + $0x98] sm:$0xff] %vm6504, %v6447
      %6525 = vst.msk [vmem:[#allocation2 + $0xa0] sm:$0xff] %vm6504, %v6449
      %6526 = vst.msk [vmem:[#allocation2 + $0xa8] sm:$0xff] %vm6504, %v6451
      %6527 = vst.msk [vmem:[#allocation2 + $0xb0] sm:$0xff] %vm6504, %v6453
      %6528 = vst.msk [vmem:[#allocation2 + $0xb8] sm:$0xff] %vm6504, %v6455
      %6529 = vst.msk [vmem:[#allocation2 + $0xc0] sm:$0xff] %vm6504, %v6457
      %6530 = vst.msk [vmem:[#allocation2 + $0xc8] sm:$0xff] %vm6504, %v6459
      %6531 = vst.msk [vmem:[#allocation2 + $0xd0] sm:$0xff] %vm6504, %v6461
      %6532 = vst.msk [vmem:[#allocation2 + $0xd8] sm:$0xff] %vm6504, %v6463
      %6533 = vst.msk [vmem:[#allocation2 + $0xe0] sm:$0xff] %vm6504, %v6465
      %6534 = vst.msk [vmem:[#allocation2 + $0xe8] sm:$0xff] %vm6504, %v6467
      %6535 = vst.msk [vmem:[#allocation2 + $0xf0] sm:$0xff] %vm6504, %v6469
      %6536 = vst.msk [vmem:[#allocation2 + $0xf8] sm:$0xff] %vm6504, %v6471
      %v6537 = vld [vmem:[%s138 + $0x34] sm:$0xff]
      %v6538 = vld [vmem:[%s138 + $0x3c] sm:$0xff]
      %v6539 = vld [vmem:[%s138 + $0x44] sm:$0xff]
      %v6540 = vld [vmem:[%s138 + $0x4c] sm:$0xff]
      %v6541 = vld [vmem:[%s138 + $0x54] sm:$0xff]
      %v6542 = vld [vmem:[%s138 + $0x5c] sm:$0xff]
      %v6543 = vld [vmem:[%s138 + $0x64] sm:$0xff]
      %v6544 = vld [vmem:[%s138 + $0x6c] sm:$0xff]
      %v6545 = vld [vmem:[%s138 + $0x74] sm:$0xff]
      %v6546 = vld [vmem:[%s138 + $0x7c] sm:$0xff]
      %v6547 = vld [vmem:[%s138 + $0x84] sm:$0xff]
      %v6548 = vld [vmem:[%s138 + $0x8c] sm:$0xff]
      %v6549 = vld [vmem:[%s138 + $0x94] sm:$0xff]
      %v6550 = vld [vmem:[%s138 + $0x9c] sm:$0xff]
      %v6551 = vld [vmem:[%s138 + $0xa4] sm:$0xff]
      %v6552 = vld [vmem:[%s138 + $0xac] sm:$0xff]
      %v6553 = vld [vmem:[%s138 + $0xb4] sm:$0xff]
      %v6554 = vld [vmem:[%s138 + $0xbc] sm:$0xff]
      %v6555 = vld [vmem:[%s138 + $0xc4] sm:$0xff]
      %v6556 = vld [vmem:[%s138 + $0xcc] sm:$0xff]
      %v6557 = vld [vmem:[%s138 + $0xd4] sm:$0xff]
      %v6558 = vld [vmem:[%s138 + $0xdc] sm:$0xff]
      %v6559 = vld [vmem:[%s138 + $0xe4] sm:$0xff]
      %v6560 = vld [vmem:[%s138 + $0xec] sm:$0xff]
      %v6561 = vld [vmem:[%s138 + $0xf4] sm:$0xff]
      %v6562 = vld [vmem:[%s138 + $0xfc] sm:$0xff]
      %v6563 = vld [vmem:[%s138 + $0x104] sm:$0xff]
      %v6564 = vld [vmem:[%s138 + $0x10c] sm:$0xff]
      %v6565 = vld [vmem:[%s138 + $0x114] sm:$0xff]
      %v6566 = vld [vmem:[%s138 + $0x11c] sm:$0xff]
      %v6567 = vld [vmem:[%s138 + $0x124] sm:$0xff]
      %v6568 = vld [vmem:[%s138 + $0x12c] sm:$0xff]
      %v6569 = vsel %vm5862, %v6537, 0.0
      %v6570 = vsel %vm5863, %v6538, 0.0
      %v6571 = vsel %vm5864, %v6539, 0.0
      %v6572 = vsel %vm5865, %v6540, 0.0
      %v6573 = vsel %vm5866, %v6541, 0.0
      %v6574 = vsel %vm5867, %v6542, 0.0
      %v6575 = vsel %vm5868, %v6543, 0.0
      %v6576 = vsel %vm5869, %v6544, 0.0
      %v6577 = vsel %vm5870, %v6545, 0.0
      %v6578 = vsel %vm5871, %v6546, 0.0
      %v6579 = vsel %vm5872, %v6547, 0.0
      %v6580 = vsel %vm5873, %v6548, 0.0
      %v6581 = vsel %vm5874, %v6549, 0.0
      %v6582 = vsel %vm5875, %v6550, 0.0
      %v6583 = vsel %vm5876, %v6551, 0.0
      %v6584 = vsel %vm5877, %v6552, 0.0
      %v6585 = vsel %vm5878, %v6553, 0.0
      %v6586 = vsel %vm5879, %v6554, 0.0
      %v6587 = vsel %vm5880, %v6555, 0.0
      %v6588 = vsel %vm5881, %v6556, 0.0
      %v6589 = vsel %vm5882, %v6557, 0.0
      %v6590 = vsel %vm5883, %v6558, 0.0
      %v6591 = vsel %vm5884, %v6559, 0.0
      %v6592 = vsel %vm5885, %v6560, 0.0
      %v6593 = vsel %vm5886, %v6561, 0.0
      %v6594 = vsel %vm5887, %v6562, 0.0
      %v6595 = vsel %vm5888, %v6563, 0.0
      %v6596 = vsel %vm5889, %v6564, 0.0
      %v6597 = vsel %vm5890, %v6565, 0.0
      %v6598 = vsel %vm5891, %v6566, 0.0
      %v6599 = vsel %vm5892, %v6567, 0.0
      %v6600 = vsel %vm5893, %v6568, 0.0
      %6633 = vrot.lane.b32.xlu0 %v6569, 76
      %v6634 = vpop.permute.xlu0 %6633
      %6635 = vrot.lane.b32.xlu0 %v6570, 76
      %v6636 = vpop.permute.xlu0 %6635
      %6637 = vrot.lane.b32.xlu0 %v6571, 76
      %v6638 = vpop.permute.xlu0 %6637
      %6639 = vrot.lane.b32.xlu0 %v6572, 76
      %v6640 = vpop.permute.xlu0 %6639
      %6641 = vrot.lane.b32.xlu0 %v6573, 76
      %v6642 = vpop.permute.xlu0 %6641
      %6643 = vrot.lane.b32.xlu0 %v6574, 76
      %v6644 = vpop.permute.xlu0 %6643
      %6645 = vrot.lane.b32.xlu0 %v6575, 76
      %v6646 = vpop.permute.xlu0 %6645
      %6647 = vrot.lane.b32.xlu0 %v6576, 76
      %v6648 = vpop.permute.xlu0 %6647
      %6649 = vrot.lane.b32.xlu0 %v6577, 76
      %v6650 = vpop.permute.xlu0 %6649
      %6651 = vrot.lane.b32.xlu0 %v6578, 76
      %v6652 = vpop.permute.xlu0 %6651
      %6653 = vrot.lane.b32.xlu0 %v6579, 76
      %v6654 = vpop.permute.xlu0 %6653
      %6655 = vrot.lane.b32.xlu0 %v6580, 76
      %v6656 = vpop.permute.xlu0 %6655
      %6657 = vrot.lane.b32.xlu0 %v6581, 76
      %v6658 = vpop.permute.xlu0 %6657
      %6659 = vrot.lane.b32.xlu0 %v6582, 76
      %v6660 = vpop.permute.xlu0 %6659
      %6661 = vrot.lane.b32.xlu0 %v6583, 76
      %v6662 = vpop.permute.xlu0 %6661
      %6663 = vrot.lane.b32.xlu0 %v6584, 76
      %v6664 = vpop.permute.xlu0 %6663
      %6665 = vrot.lane.b32.xlu0 %v6585, 76
      %v6666 = vpop.permute.xlu0 %6665
      %6667 = vrot.lane.b32.xlu0 %v6586, 76
      %v6668 = vpop.permute.xlu0 %6667
      %6669 = vrot.lane.b32.xlu0 %v6587, 76
      %v6670 = vpop.permute.xlu0 %6669
      %6671 = vrot.lane.b32.xlu0 %v6588, 76
      %v6672 = vpop.permute.xlu0 %6671
      %6673 = vrot.lane.b32.xlu0 %v6589, 76
      %v6674 = vpop.permute.xlu0 %6673
      %6675 = vrot.lane.b32.xlu0 %v6590, 76
      %v6676 = vpop.permute.xlu0 %6675
      %6677 = vrot.lane.b32.xlu0 %v6591, 76
      %v6678 = vpop.permute.xlu0 %6677
      %6679 = vrot.lane.b32.xlu0 %v6592, 76
      %v6680 = vpop.permute.xlu0 %6679
      %6681 = vrot.lane.b32.xlu0 %v6593, 76
      %v6682 = vpop.permute.xlu0 %6681
      %6683 = vrot.lane.b32.xlu0 %v6594, 76
      %v6684 = vpop.permute.xlu0 %6683
      %6685 = vrot.lane.b32.xlu0 %v6595, 76
      %v6686 = vpop.permute.xlu0 %6685
      %6687 = vrot.lane.b32.xlu0 %v6596, 76
      %v6688 = vpop.permute.xlu0 %6687
      %6689 = vrot.lane.b32.xlu0 %v6597, 76
      %v6690 = vpop.permute.xlu0 %6689
      %6691 = vrot.lane.b32.xlu0 %v6598, 76
      %v6692 = vpop.permute.xlu0 %6691
      %6693 = vrot.lane.b32.xlu0 %v6599, 76
      %v6694 = vpop.permute.xlu0 %6693
      %6695 = vrot.lane.b32.xlu0 %v6600, 76
      %v6696 = vpop.permute.xlu0 %6695
      %vm6729 = vcmask 654944
      %6730 = vst.msk [vmem:[#allocation2] sm:$0xff] %vm6729, %v6634
      %6731 = vst.msk [vmem:[#allocation2 + $0x8] sm:$0xff] %vm6729, %v6636
      %6732 = vst.msk [vmem:[#allocation2 + $0x10] sm:$0xff] %vm6729, %v6638
      %6733 = vst.msk [vmem:[#allocation2 + $0x18] sm:$0xff] %vm6729, %v6640
      %6734 = vst.msk [vmem:[#allocation2 + $0x20] sm:$0xff] %vm6729, %v6642
      %6735 = vst.msk [vmem:[#allocation2 + $0x28] sm:$0xff] %vm6729, %v6644
      %6736 = vst.msk [vmem:[#allocation2 + $0x30] sm:$0xff] %vm6729, %v6646
      %6737 = vst.msk [vmem:[#allocation2 + $0x38] sm:$0xff] %vm6729, %v6648
      %6738 = vst.msk [vmem:[#allocation2 + $0x40] sm:$0xff] %vm6729, %v6650
      %6739 = vst.msk [vmem:[#allocation2 + $0x48] sm:$0xff] %vm6729, %v6652
      %6740 = vst.msk [vmem:[#allocation2 + $0x50] sm:$0xff] %vm6729, %v6654
      %6741 = vst.msk [vmem:[#allocation2 + $0x58] sm:$0xff] %vm6729, %v6656
      %6742 = vst.msk [vmem:[#allocation2 + $0x60] sm:$0xff] %vm6729, %v6658
      %6743 = vst.msk [vmem:[#allocation2 + $0x68] sm:$0xff] %vm6729, %v6660
      %6744 = vst.msk [vmem:[#allocation2 + $0x70] sm:$0xff] %vm6729, %v6662
      %6745 = vst.msk [vmem:[#allocation2 + $0x78] sm:$0xff] %vm6729, %v6664
      %6746 = vst.msk [vmem:[#allocation2 + $0x80] sm:$0xff] %vm6729, %v6666
      %6747 = vst.msk [vmem:[#allocation2 + $0x88] sm:$0xff] %vm6729, %v6668
      %6748 = vst.msk [vmem:[#allocation2 + $0x90] sm:$0xff] %vm6729, %v6670
      %6749 = vst.msk [vmem:[#allocation2 + $0x98] sm:$0xff] %vm6729, %v6672
      %6750 = vst.msk [vmem:[#allocation2 + $0xa0] sm:$0xff] %vm6729, %v6674
      %6751 = vst.msk [vmem:[#allocation2 + $0xa8] sm:$0xff] %vm6729, %v6676
      %6752 = vst.msk [vmem:[#allocation2 + $0xb0] sm:$0xff] %vm6729, %v6678
      %6753 = vst.msk [vmem:[#allocation2 + $0xb8] sm:$0xff] %vm6729, %v6680
      %6754 = vst.msk [vmem:[#allocation2 + $0xc0] sm:$0xff] %vm6729, %v6682
      %6755 = vst.msk [vmem:[#allocation2 + $0xc8] sm:$0xff] %vm6729, %v6684
      %6756 = vst.msk [vmem:[#allocation2 + $0xd0] sm:$0xff] %vm6729, %v6686
      %6757 = vst.msk [vmem:[#allocation2 + $0xd8] sm:$0xff] %vm6729, %v6688
      %6758 = vst.msk [vmem:[#allocation2 + $0xe0] sm:$0xff] %vm6729, %v6690
      %6759 = vst.msk [vmem:[#allocation2 + $0xe8] sm:$0xff] %vm6729, %v6692
      %6760 = vst.msk [vmem:[#allocation2 + $0xf0] sm:$0xff] %vm6729, %v6694
      %6761 = vst.msk [vmem:[#allocation2 + $0xf8] sm:$0xff] %vm6729, %v6696
      %v6762 = vld [vmem:[%s138 + $0x44] sm:$0xff]
      %v6763 = vld [vmem:[%s138 + $0x4c] sm:$0xff]
      %v6764 = vld [vmem:[%s138 + $0x54] sm:$0xff]
      %v6765 = vld [vmem:[%s138 + $0x5c] sm:$0xff]
      %v6766 = vld [vmem:[%s138 + $0x64] sm:$0xff]
      %v6767 = vld [vmem:[%s138 + $0x6c] sm:$0xff]
      %v6768 = vld [vmem:[%s138 + $0x74] sm:$0xff]
      %v6769 = vld [vmem:[%s138 + $0x7c] sm:$0xff]
      %v6770 = vld [vmem:[%s138 + $0x84] sm:$0xff]
      %v6771 = vld [vmem:[%s138 + $0x8c] sm:$0xff]
      %v6772 = vld [vmem:[%s138 + $0x94] sm:$0xff]
      %v6773 = vld [vmem:[%s138 + $0x9c] sm:$0xff]
      %v6774 = vld [vmem:[%s138 + $0xa4] sm:$0xff]
      %v6775 = vld [vmem:[%s138 + $0xac] sm:$0xff]
      %v6776 = vld [vmem:[%s138 + $0xb4] sm:$0xff]
      %v6777 = vld [vmem:[%s138 + $0xbc] sm:$0xff]
      %v6778 = vld [vmem:[%s138 + $0xc4] sm:$0xff]
      %v6779 = vld [vmem:[%s138 + $0xcc] sm:$0xff]
      %v6780 = vld [vmem:[%s138 + $0xd4] sm:$0xff]
      %v6781 = vld [vmem:[%s138 + $0xdc] sm:$0xff]
      %v6782 = vld [vmem:[%s138 + $0xe4] sm:$0xff]
      %v6783 = vld [vmem:[%s138 + $0xec] sm:$0xff]
      %v6784 = vld [vmem:[%s138 + $0xf4] sm:$0xff]
      %v6785 = vld [vmem:[%s138 + $0xfc] sm:$0xff]
      %v6786 = vld [vmem:[%s138 + $0x104] sm:$0xff]
      %v6787 = vld [vmem:[%s138 + $0x10c] sm:$0xff]
      %v6788 = vld [vmem:[%s138 + $0x114] sm:$0xff]
      %v6789 = vld [vmem:[%s138 + $0x11c] sm:$0xff]
      %v6790 = vld [vmem:[%s138 + $0x124] sm:$0xff]
      %v6791 = vld [vmem:[%s138 + $0x12c] sm:$0xff]
      %v6792 = vld [vmem:[%s138 + $0x134] sm:$0xff]
      %v6793 = vld [vmem:[%s138 + $0x13c] sm:$0xff]
      %v6794 = vsel %vm5862, %v6762, 0.0
      %v6795 = vsel %vm5863, %v6763, 0.0
      %v6796 = vsel %vm5864, %v6764, 0.0
      %v6797 = vsel %vm5865, %v6765, 0.0
      %v6798 = vsel %vm5866, %v6766, 0.0
      %v6799 = vsel %vm5867, %v6767, 0.0
      %v6800 = vsel %vm5868, %v6768, 0.0
      %v6801 = vsel %vm5869, %v6769, 0.0
      %v6802 = vsel %vm5870, %v6770, 0.0
      %v6803 = vsel %vm5871, %v6771, 0.0
      %v6804 = vsel %vm5872, %v6772, 0.0
      %v6805 = vsel %vm5873, %v6773, 0.0
      %v6806 = vsel %vm5874, %v6774, 0.0
      %v6807 = vsel %vm5875, %v6775, 0.0
      %v6808 = vsel %vm5876, %v6776, 0.0
      %v6809 = vsel %vm5877, %v6777, 0.0
      %v6810 = vsel %vm5878, %v6778, 0.0
      %v6811 = vsel %vm5879, %v6779, 0.0
      %v6812 = vsel %vm5880, %v6780, 0.0
      %v6813 = vsel %vm5881, %v6781, 0.0
      %v6814 = vsel %vm5882, %v6782, 0.0
      %v6815 = vsel %vm5883, %v6783, 0.0
      %v6816 = vsel %vm5884, %v6784, 0.0
      %v6817 = vsel %vm5885, %v6785, 0.0
      %v6818 = vsel %vm5886, %v6786, 0.0
      %v6819 = vsel %vm5887, %v6787, 0.0
      %v6820 = vsel %vm5888, %v6788, 0.0
      %v6821 = vsel %vm5889, %v6789, 0.0
      %v6822 = vsel %vm5890, %v6790, 0.0
      %v6823 = vsel %vm5891, %v6791, 0.0
      %v6824 = vsel %vm5892, %v6792, 0.0
      %v6825 = vsel %vm5893, %v6793, 0.0
      %6858 = vrot.lane.b32.xlu0 %v6794, 96
      %v6859 = vpop.permute.xlu0 %6858
      %6860 = vrot.lane.b32.xlu0 %v6795, 96
      %v6861 = vpop.permute.xlu0 %6860
      %6862 = vrot.lane.b32.xlu0 %v6796, 96
      %v6863 = vpop.permute.xlu0 %6862
      %6864 = vrot.lane.b32.xlu0 %v6797, 96
      %v6865 = vpop.permute.xlu0 %6864
      %6866 = vrot.lane.b32.xlu0 %v6798, 96
      %v6867 = vpop.permute.xlu0 %6866
      %6868 = vrot.lane.b32.xlu0 %v6799, 96
      %v6869 = vpop.permute.xlu0 %6868
      %6870 = vrot.lane.b32.xlu0 %v6800, 96
      %v6871 = vpop.permute.xlu0 %6870
      %6872 = vrot.lane.b32.xlu0 %v6801, 96
      %v6873 = vpop.permute.xlu0 %6872
      %6874 = vrot.lane.b32.xlu0 %v6802, 96
      %v6875 = vpop.permute.xlu0 %6874
      %6876 = vrot.lane.b32.xlu0 %v6803, 96
      %v6877 = vpop.permute.xlu0 %6876
      %6878 = vrot.lane.b32.xlu0 %v6804, 96
      %v6879 = vpop.permute.xlu0 %6878
      %6880 = vrot.lane.b32.xlu0 %v6805, 96
      %v6881 = vpop.permute.xlu0 %6880
      %6882 = vrot.lane.b32.xlu0 %v6806, 96
      %v6883 = vpop.permute.xlu0 %6882
      %6884 = vrot.lane.b32.xlu0 %v6807, 96
      %v6885 = vpop.permute.xlu0 %6884
      %6886 = vrot.lane.b32.xlu0 %v6808, 96
      %v6887 = vpop.permute.xlu0 %6886
      %6888 = vrot.lane.b32.xlu0 %v6809, 96
      %v6889 = vpop.permute.xlu0 %6888
      %6890 = vrot.lane.b32.xlu0 %v6810, 96
      %v6891 = vpop.permute.xlu0 %6890
      %6892 = vrot.lane.b32.xlu0 %v6811, 96
      %v6893 = vpop.permute.xlu0 %6892
      %6894 = vrot.lane.b32.xlu0 %v6812, 96
      %v6895 = vpop.permute.xlu0 %6894
      %6896 = vrot.lane.b32.xlu0 %v6813, 96
      %v6897 = vpop.permute.xlu0 %6896
      %6898 = vrot.lane.b32.xlu0 %v6814, 96
      %v6899 = vpop.permute.xlu0 %6898
      %6900 = vrot.lane.b32.xlu0 %v6815, 96
      %v6901 = vpop.permute.xlu0 %6900
      %6902 = vrot.lane.b32.xlu0 %v6816, 96
      %v6903 = vpop.permute.xlu0 %6902
      %6904 = vrot.lane.b32.xlu0 %v6817, 96
      %v6905 = vpop.permute.xlu0 %6904
      %6906 = vrot.lane.b32.xlu0 %v6818, 96
      %v6907 = vpop.permute.xlu0 %6906
      %6908 = vrot.lane.b32.xlu0 %v6819, 96
      %v6909 = vpop.permute.xlu0 %6908
      %6910 = vrot.lane.b32.xlu0 %v6820, 96
      %v6911 = vpop.permute.xlu0 %6910
      %6912 = vrot.lane.b32.xlu0 %v6821, 96
      %v6913 = vpop.permute.xlu0 %6912
      %6914 = vrot.lane.b32.xlu0 %v6822, 96
      %v6915 = vpop.permute.xlu0 %6914
      %6916 = vrot.lane.b32.xlu0 %v6823, 96
      %v6917 = vpop.permute.xlu0 %6916
      %6918 = vrot.lane.b32.xlu0 %v6824, 96
      %v6919 = vpop.permute.xlu0 %6918
      %6920 = vrot.lane.b32.xlu0 %v6825, 96
      %v6921 = vpop.permute.xlu0 %6920
      %vm6954 = vcmask 818944
      %6955 = vst.msk [vmem:[#allocation2] sm:$0xff] %vm6954, %v6859
      %6956 = vst.msk [vmem:[#allocation2 + $0x8] sm:$0xff] %vm6954, %v6861
      %6957 = vst.msk [vmem:[#allocation2 + $0x10] sm:$0xff] %vm6954, %v6863
      %6958 = vst.msk [vmem:[#allocation2 + $0x18] sm:$0xff] %vm6954, %v6865
      %6959 = vst.msk [vmem:[#allocation2 + $0x20] sm:$0xff] %vm6954, %v6867
      %6960 = vst.msk [vmem:[#allocation2 + $0x28] sm:$0xff] %vm6954, %v6869
      %6961 = vst.msk [vmem:[#allocation2 + $0x30] sm:$0xff] %vm6954, %v6871
      %6962 = vst.msk [vmem:[#allocation2 + $0x38] sm:$0xff] %vm6954, %v6873
      %6963 = vst.msk [vmem:[#allocation2 + $0x40] sm:$0xff] %vm6954, %v6875
      %6964 = vst.msk [vmem:[#allocation2 + $0x48] sm:$0xff] %vm6954, %v6877
      %6965 = vst.msk [vmem:[#allocation2 + $0x50] sm:$0xff] %vm6954, %v6879
      %6966 = vst.msk [vmem:[#allocation2 + $0x58] sm:$0xff] %vm6954, %v6881
      %6967 = vst.msk [vmem:[#allocation2 + $0x60] sm:$0xff] %vm6954, %v6883
      %6968 = vst.msk [vmem:[#allocation2 + $0x68] sm:$0xff] %vm6954, %v6885
      %6969 = vst.msk [vmem:[#allocation2 + $0x70] sm:$0xff] %vm6954, %v6887
      %6970 = vst.msk [vmem:[#allocation2 + $0x78] sm:$0xff] %vm6954, %v6889
      %6971 = vst.msk [vmem:[#allocation2 + $0x80] sm:$0xff] %vm6954, %v6891
      %6972 = vst.msk [vmem:[#allocation2 + $0x88] sm:$0xff] %vm6954, %v6893
      %6973 = vst.msk [vmem:[#allocation2 + $0x90] sm:$0xff] %vm6954, %v6895
      %6974 = vst.msk [vmem:[#allocation2 + $0x98] sm:$0xff] %vm6954, %v6897
      %6975 = vst.msk [vmem:[#allocation2 + $0xa0] sm:$0xff] %vm6954, %v6899
      %6976 = vst.msk [vmem:[#allocation2 + $0xa8] sm:$0xff] %vm6954, %v6901
      %6977 = vst.msk [vmem:[#allocation2 + $0xb0] sm:$0xff] %vm6954, %v6903
      %6978 = vst.msk [vmem:[#allocation2 + $0xb8] sm:$0xff] %vm6954, %v6905
      %6979 = vst.msk [vmem:[#allocation2 + $0xc0] sm:$0xff] %vm6954, %v6907
      %6980 = vst.msk [vmem:[#allocation2 + $0xc8] sm:$0xff] %vm6954, %v6909
      %6981 = vst.msk [vmem:[#allocation2 + $0xd0] sm:$0xff] %vm6954, %v6911
      %6982 = vst.msk [vmem:[#allocation2 + $0xd8] sm:$0xff] %vm6954, %v6913
      %6983 = vst.msk [vmem:[#allocation2 + $0xe0] sm:$0xff] %vm6954, %v6915
      %6984 = vst.msk [vmem:[#allocation2 + $0xe8] sm:$0xff] %vm6954, %v6917
      %6985 = vst.msk [vmem:[#allocation2 + $0xf0] sm:$0xff] %vm6954, %v6919
      %6986 = vst.msk [vmem:[#allocation2 + $0xf8] sm:$0xff] %vm6954, %v6921
      %v6987 = vld [vmem:[#allocation2] sm:$0xff]
      %v6988 = vld [vmem:[#allocation2 + $0x8] sm:$0xff]
      %v6989 = vld [vmem:[#allocation2 + $0x10] sm:$0xff]
      %v6990 = vld [vmem:[#allocation2 + $0x18] sm:$0xff]
      %v6991 = vld [vmem:[#allocation2 + $0x20] sm:$0xff]
      %v6992 = vld [vmem:[#allocation2 + $0x28] sm:$0xff]
      %v6993 = vld [vmem:[#allocation2 + $0x30] sm:$0xff]
      %v6994 = vld [vmem:[#allocation2 + $0x38] sm:$0xff]
      %v6995 = vld [vmem:[#allocation2 + $0x40] sm:$0xff]
      %v6996 = vld [vmem:[#allocation2 + $0x48] sm:$0xff]
      %v6997 = vld [vmem:[#allocation2 + $0x50] sm:$0xff]
      %v6998 = vld [vmem:[#allocation2 + $0x58] sm:$0xff]
      %v6999 = vld [vmem:[#allocation2 + $0x60] sm:$0xff]
      %v7000 = vld [vmem:[#allocation2 + $0x68] sm:$0xff]
      %v7001 = vld [vmem:[#allocation2 + $0x70] sm:$0xff]
      %v7002 = vld [vmem:[#allocation2 + $0x78] sm:$0xff]
      %v7003 = vld [vmem:[#allocation2 + $0x80] sm:$0xff]
      %v7004 = vld [vmem:[#allocation2 + $0x88] sm:$0xff]
      %v7005 = vld [vmem:[#allocation2 + $0x90] sm:$0xff]
      %v7006 = vld [vmem:[#allocation2 + $0x98] sm:$0xff]
      %v7007 = vld [vmem:[#allocation2 + $0xa0] sm:$0xff]
      %v7008 = vld [vmem:[#allocation2 + $0xa8] sm:$0xff]
      %v7009 = vld [vmem:[#allocation2 + $0xb0] sm:$0xff]
      %v7010 = vld [vmem:[#allocation2 + $0xb8] sm:$0xff]
      %v7011 = vld [vmem:[#allocation2 + $0xc0] sm:$0xff]
      %v7012 = vld [vmem:[#allocation2 + $0xc8] sm:$0xff]
      %v7013 = vld [vmem:[#allocation2 + $0xd0] sm:$0xff]
      %v7014 = vld [vmem:[#allocation2 + $0xd8] sm:$0xff]
      %v7015 = vld [vmem:[#allocation2 + $0xe0] sm:$0xff]
      %v7016 = vld [vmem:[#allocation2 + $0xe8] sm:$0xff]
      %v7017 = vld [vmem:[#allocation2 + $0xf0] sm:$0xff]
      %v7018 = vld [vmem:[#allocation2 + $0xf8] sm:$0xff]
      %v7019 = vld [vmem:[%s1] sm:$0xff]
      %v7020 = vld [vmem:[%s1 + $0x8] sm:$0xff]
      %v7021 = vld [vmem:[%s1 + $0x10] sm:$0xff]
      %v7022 = vld [vmem:[%s1 + $0x18] sm:$0xff]
      %v7023 = vld [vmem:[%s1 + $0x20] sm:$0xff]
      %v7024 = vld [vmem:[%s1 + $0x28] sm:$0xff]
      %v7025 = vld [vmem:[%s1 + $0x30] sm:$0xff]
      %v7026 = vld [vmem:[%s1 + $0x38] sm:$0xff]
      %v7027 = vld [vmem:[%s1 + $0x40] sm:$0xff]
      %v7028 = vld [vmem:[%s1 + $0x48] sm:$0xff]
      %v7029 = vld [vmem:[%s1 + $0x50] sm:$0xff]
      %v7030 = vld [vmem:[%s1 + $0x58] sm:$0xff]
      %v7031 = vld [vmem:[%s1 + $0x60] sm:$0xf]
      %vm7032 = vcmask 818176
      %v7034 = vsel %vm7032, %v6987, 0
      %v7037 = vsel %vm7032, %v6988, 0
      %v7040 = vsel %vm7032, %v6989, 0
      %v7043 = vsel %vm7032, %v6990, 0
      %v7046 = vsel %vm7032, %v6991, 0
      %v7049 = vsel %vm7032, %v6992, 0
      %v7052 = vsel %vm7032, %v6993, 0
      %v7055 = vsel %vm7032, %v6994, 0
      %v7058 = vsel %vm7032, %v6995, 0
      %v7061 = vsel %vm7032, %v6996, 0
      %v7064 = vsel %vm7032, %v6997, 0
      %v7067 = vsel %vm7032, %v6998, 0
      %v7070 = vsel %vm7032, %v6999, 0
      %v7073 = vsel %vm7032, %v7000, 0
      %v7076 = vsel %vm7032, %v7001, 0
      %v7079 = vsel %vm7032, %v7002, 0
      %v7082 = vsel %vm7032, %v7003, 0
      %v7085 = vsel %vm7032, %v7004, 0
      %v7088 = vsel %vm7032, %v7005, 0
      %v7091 = vsel %vm7032, %v7006, 0
      %v7094 = vsel %vm7032, %v7007, 0
      %v7097 = vsel %vm7032, %v7008, 0
      %v7100 = vsel %vm7032, %v7009, 0
      %v7103 = vsel %vm7032, %v7010, 0
      %v7106 = vsel %vm7032, %v7011, 0
      %v7109 = vsel %vm7032, %v7012, 0
      %v7112 = vsel %vm7032, %v7013, 0
      %v7115 = vsel %vm7032, %v7014, 0
      %v7118 = vsel %vm7032, %v7015, 0
      %v7121 = vsel %vm7032, %v7016, 0
      %v7124 = vsel %vm7032, %v7017, 0
      %v7127 = vsel %vm7032, %v7018, 0
      %vm7129 = vcmask 1043456
      %v7131 = vsel %vm7129, %v7031, 0
      %7133 = vmatprep.subr.mxu0 0.0
      %7134 = vmatpush1.msra.mxu0 %v7019
      %7135 = vmatprep.subr.mxu0 0.0
      %7136 = vmatpush1.msra.mxu0 %v7020
      %7137 = vmatprep.subr.mxu0 0.0
      %7138 = vmatpush1.msra.mxu0 %v7021
      %7139 = vmatprep.subr.mxu0 0.0
      %7140 = vmatpush1.msra.mxu0 %v7022
      %7141 = vmatprep.subr.mxu0 0.0
      %7142 = vmatpush1.msra.mxu0 %v7023
      %7143 = vmatprep.subr.mxu0 0.0
      %7144 = vmatpush1.msra.mxu0 %v7024
      %7145 = vmatprep.subr.mxu0 0.0
      %7146 = vmatpush1.msra.mxu0 %v7025
      %7147 = vmatprep.subr.mxu0 0.0
      %7148 = vmatpush1.msra.mxu0 %v7026
      %7149 = vmatprep.subr.mxu0 0.0
      %7150 = vmatpush1.msra.mxu0 %v7027
      %7151 = vmatprep.subr.mxu0 0.0
      %7152 = vmatpush1.msra.mxu0 %v7028
      %7153 = vmatprep.subr.mxu0 0.0
      %7154 = vmatpush1.msra.mxu0 %v7029
      %7155 = vmatprep.subr.mxu0 0.0
      %7156 = vmatpush1.msra.mxu0 %v7030
      %7157 = vmatprep.subr.mxu0 0.0
      %7158 = vmatpush1.msra.mxu0 %v7131
      %7159 = vmatprep.subr.mxu0 0.0
      %7160 = vmatpush1.msra.mxu0 0.0
      %7161 = vmatprep.subr.mxu0 0.0
      %7162 = vmatpush1.msra.mxu0 0.0
      %7163 = vmatprep.subr.mxu0 0.0
      %7164 = vmatpush1.msra.mxu0 0.0
      %7165 = vmatprep.subr.mxu0 0.0
      %7166 = vmatpush1.msra.mxu0 0.0
      %7167 = vmatprep.subr.mxu0 0.0
      %7168 = vmatpush1.msra.mxu0 0.0
      %7169 = vmatprep.subr.mxu0 0.0
      %7170 = vmatpush1.msra.mxu0 0.0
      %7171 = vmatprep.subr.mxu0 0.0
      %7172 = vmatpush1.msra.mxu0 0.0
      %7173 = vmatprep.subr.mxu0 0.0
      %7174 = vmatpush1.msra.mxu0 0.0
      %7175 = vmatprep.subr.mxu0 0.0
      %7176 = vmatpush1.msra.mxu0 0.0
      %7177 = vmatprep.subr.mxu0 0.0
      %7178 = vmatpush1.msra.mxu0 0.0
      %7179 = vmatprep.subr.mxu0 0.0
      %7180 = vmatpush1.msra.mxu0 0.0
      %7181 = vmatprep.subr.mxu0 0.0
      %7182 = vmatpush1.msra.mxu0 0.0
      %7183 = vmatprep.subr.mxu0 0.0
      %7184 = vmatpush1.msra.mxu0 0.0
      %7185 = vmatprep.subr.mxu0 0.0
      %7186 = vmatpush1.msra.mxu0 0.0
      %7187 = vmatprep.subr.mxu0 0.0
      %7188 = vmatpush1.msra.mxu0 0.0
      %7189 = vmatprep.subr.mxu0 0.0
      %7190 = vmatpush1.msra.mxu0 0.0
      %7191 = vmatprep.subr.mxu0 0.0
      %7192 = vmatpush1.msra.mxu0 0.0
      %7193 = vmatprep.subr.mxu0 0.0
      %7194 = vmatpush1.msra.mxu0 0.0
      %7195 = vmatprep.subr.mxu0 0.0
      %7196 = vmatpush1.msra.mxu0 0.0
      %7197 = vmatprep.mubr.f32.mxu0 0.0
      %7198 = vmatmul.mubr.f32.gmra.mrb[0].mxu0 %v7034
      %v7199 = vpop.f32.mrb[0].mxu0
      %v7200 = vadd.f32 0.0, %v7199
      %v7201 = vpop.f32.mrb[0].mxu0
      %7202 = vmatprep.mubr.f32.mxu0 0.0
      %7203 = vmatmul.mubr.f32.gmra.mrb[0].mxu0 %v7037
      %v7204 = vpop.f32.mrb[0].mxu0
      %v7205 = vadd.f32 0.0, %v7204
      %v7206 = vpop.f32.mrb[0].mxu0
      %7207 = vmatprep.mubr.f32.mxu0 0.0
      %7208 = vmatmul.mubr.f32.gmra.mrb[0].mxu0 %v7040
      %v7209 = vpop.f32.mrb[0].mxu0
      %v7210 = vadd.f32 0.0, %v7209
      %v7211 = vpop.f32.mrb[0].mxu0
      %7212 = vmatprep.mubr.f32.mxu0 0.0
      %7213 = vmatmul.mubr.f32.gmra.mrb[0].mxu0 %v7043
      %v7214 = vpop.f32.mrb[0].mxu0
      %v7215 = vadd.f32 0.0, %v7214
      %v7216 = vpop.f32.mrb[0].mxu0
      %7217 = vmatprep.mubr.f32.mxu0 0.0
      %7218 = vmatmul.mubr.f32.gmra.mrb[0].mxu0 %v7046
      %v7219 = vpop.f32.mrb[0].mxu0
      %v7220 = vadd.f32 0.0, %v7219
      %v7221 = vpop.f32.mrb[0].mxu0
      %7222 = vmatprep.mubr.f32.mxu0 0.0
      %7223 = vmatmul.mubr.f32.gmra.mrb[0].mxu0 %v7049
      %v7224 = vpop.f32.mrb[0].mxu0
      %v7225 = vadd.f32 0.0, %v7224
      %v7226 = vpop.f32.mrb[0].mxu0
      %7227 = vmatprep.mubr.f32.mxu0 0.0
      %7228 = vmatmul.mubr.f32.gmra.mrb[0].mxu0 %v7052
      %v7229 = vpop.f32.mrb[0].mxu0
      %v7230 = vadd.f32 0.0, %v7229
      %v7231 = vpop.f32.mrb[0].mxu0
      %7232 = vmatprep.mubr.f32.mxu0 0.0
      %7233 = vmatmul.mubr.f32.gmra.mrb[0].mxu0 %v7055
      %v7234 = vpop.f32.mrb[0].mxu0
      %v7235 = vadd.f32 0.0, %v7234
      %v7236 = vpop.f32.mrb[0].mxu0
      %7237 = vmatprep.mubr.f32.mxu0 0.0
      %7238 = vmatmul.mubr.f32.gmra.mrb[0].mxu0 %v7058
      %v7239 = vpop.f32.mrb[0].mxu0
      %v7240 = vadd.f32 0.0, %v7239
      %v7241 = vpop.f32.mrb[0].mxu0
      %7242 = vmatprep.mubr.f32.mxu0 0.0
      %7243 = vmatmul.mubr.f32.gmra.mrb[0].mxu0 %v7061
      %v7244 = vpop.f32.mrb[0].mxu0
      %v7245 = vadd.f32 0.0, %v7244
      %v7246 = vpop.f32.mrb[0].mxu0
      %7247 = vmatprep.mubr.f32.mxu0 0.0
      %7248 = vmatmul.mubr.f32.gmra.mrb[0].mxu0 %v7064
      %v7249 = vpop.f32.mrb[0].mxu0
      %v7250 = vadd.f32 0.0, %v7249
      %v7251 = vpop.f32.mrb[0].mxu0
      %7252 = vmatprep.mubr.f32.mxu0 0.0
      %7253 = vmatmul.mubr.f32.gmra.mrb[0].mxu0 %v7067
      %v7254 = vpop.f32.mrb[0].mxu0
      %v7255 = vadd.f32 0.0, %v7254
      %v7256 = vpop.f32.mrb[0].mxu0
      %7257 = vmatprep.mubr.f32.mxu0 0.0
      %7258 = vmatmul.mubr.f32.gmra.mrb[0].mxu0 %v7070
      %v7259 = vpop.f32.mrb[0].mxu0
      %v7260 = vadd.f32 0.0, %v7259
      %v7261 = vpop.f32.mrb[0].mxu0
      %7262 = vmatprep.mubr.f32.mxu0 0.0
      %7263 = vmatmul.mubr.f32.gmra.mrb[0].mxu0 %v7073
      %v7264 = vpop.f32.mrb[0].mxu0
      %v7265 = vadd.f32 0.0, %v7264
      %v7266 = vpop.f32.mrb[0].mxu0
      %7267 = vmatprep.mubr.f32.mxu0 0.0
      %7268 = vmatmul.mubr.f32.gmra.mrb[0].mxu0 %v7076
      %v7269 = vpop.f32.mrb[0].mxu0
      %v7270 = vadd.f32 0.0, %v7269
      %v7271 = vpop.f32.mrb[0].mxu0
      %7272 = vmatprep.mubr.f32.mxu0 0.0
      %7273 = vmatmul.mubr.f32.gmra.mrb[0].mxu0 %v7079
      %v7274 = vpop.f32.mrb[0].mxu0
      %v7275 = vadd.f32 0.0, %v7274
      %v7276 = vpop.f32.mrb[0].mxu0
      %7277 = vmatprep.mubr.f32.mxu0 0.0
      %7278 = vmatmul.mubr.f32.gmra.mrb[0].mxu0 %v7082
      %v7279 = vpop.f32.mrb[0].mxu0
      %v7280 = vadd.f32 0.0, %v7279
      %v7281 = vpop.f32.mrb[0].mxu0
      %7282 = vmatprep.mubr.f32.mxu0 0.0
      %7283 = vmatmul.mubr.f32.gmra.mrb[0].mxu0 %v7085
      %v7284 = vpop.f32.mrb[0].mxu0
      %v7285 = vadd.f32 0.0, %v7284
      %v7286 = vpop.f32.mrb[0].mxu0
      %7287 = vmatprep.mubr.f32.mxu0 0.0
      %7288 = vmatmul.mubr.f32.gmra.mrb[0].mxu0 %v7088
      %v7289 = vpop.f32.mrb[0].mxu0
      %v7290 = vadd.f32 0.0, %v7289
      %v7291 = vpop.f32.mrb[0].mxu0
      %7292 = vmatprep.mubr.f32.mxu0 0.0
      %7293 = vmatmul.mubr.f32.gmra.mrb[0].mxu0 %v7091
      %v7294 = vpop.f32.mrb[0].mxu0
      %v7295 = vadd.f32 0.0, %v7294
      %v7296 = vpop.f32.mrb[0].mxu0
      %7297 = vmatprep.mubr.f32.mxu0 0.0
      %7298 = vmatmul.mubr.f32.gmra.mrb[0].mxu0 %v7094
      %v7299 = vpop.f32.mrb[0].mxu0
      %v7300 = vadd.f32 0.0, %v7299
      %v7301 = vpop.f32.mrb[0].mxu0
      %7302 = vmatprep.mubr.f32.mxu0 0.0
      %7303 = vmatmul.mubr.f32.gmra.mrb[0].mxu0 %v7097
      %v7304 = vpop.f32.mrb[0].mxu0
      %v7305 = vadd.f32 0.0, %v7304
      %v7306 = vpop.f32.mrb[0].mxu0
      %7307 = vmatprep.mubr.f32.mxu0 0.0
      %7308 = vmatmul.mubr.f32.gmra.mrb[0].mxu0 %v7100
      %v7309 = vpop.f32.mrb[0].mxu0
      %v7310 = vadd.f32 0.0, %v7309
      %v7311 = vpop.f32.mrb[0].mxu0
      %7312 = vmatprep.mubr.f32.mxu0 0.0
      %7313 = vmatmul.mubr.f32.gmra.mrb[0].mxu0 %v7103
      %v7314 = vpop.f32.mrb[0].mxu0
      %v7315 = vadd.f32 0.0, %v7314
      %v7316 = vpop.f32.mrb[0].mxu0
      %7317 = vmatprep.mubr.f32.mxu0 0.0
      %7318 = vmatmul.mubr.f32.gmra.mrb[0].mxu0 %v7106
      %v7319 = vpop.f32.mrb[0].mxu0
      %v7320 = vadd.f32 0.0, %v7319
      %v7321 = vpop.f32.mrb[0].mxu0
      %7322 = vmatprep.mubr.f32.mxu0 0.0
      %7323 = vmatmul.mubr.f32.gmra.mrb[0].mxu0 %v7109
      %v7324 = vpop.f32.mrb[0].mxu0
      %v7325 = vadd.f32 0.0, %v7324
      %v7326 = vpop.f32.mrb[0].mxu0
      %7327 = vmatprep.mubr.f32.mxu0 0.0
      %7328 = vmatmul.mubr.f32.gmra.mrb[0].mxu0 %v7112
      %v7329 = vpop.f32.mrb[0].mxu0
      %v7330 = vadd.f32 0.0, %v7329
      %v7331 = vpop.f32.mrb[0].mxu0
      %7332 = vmatprep.mubr.f32.mxu0 0.0
      %7333 = vmatmul.mubr.f32.gmra.mrb[0].mxu0 %v7115
      %v7334 = vpop.f32.mrb[0].mxu0
      %v7335 = vadd.f32 0.0, %v7334
      %v7336 = vpop.f32.mrb[0].mxu0
      %7337 = vmatprep.mubr.f32.mxu0 0.0
      %7338 = vmatmul.mubr.f32.gmra.mrb[0].mxu0 %v7118
      %v7339 = vpop.f32.mrb[0].mxu0
      %v7340 = vadd.f32 0.0, %v7339
      %v7341 = vpop.f32.mrb[0].mxu0
      %7342 = vmatprep.mubr.f32.mxu0 0.0
      %7343 = vmatmul.mubr.f32.gmra.mrb[0].mxu0 %v7121
      %v7344 = vpop.f32.mrb[0].mxu0
      %v7345 = vadd.f32 0.0, %v7344
      %v7346 = vpop.f32.mrb[0].mxu0
      %7347 = vmatprep.mubr.f32.mxu0 0.0
      %7348 = vmatmul.mubr.f32.gmra.mrb[0].mxu0 %v7124
      %v7349 = vpop.f32.mrb[0].mxu0
      %v7350 = vadd.f32 0.0, %v7349
      %v7351 = vpop.f32.mrb[0].mxu0
      %7352 = vmatprep.mubr.f32.mxu0 0.0
      %7353 = vmatmul.mubr.f32.gmra.mrb[0].mxu0 %v7127
      %v7354 = vpop.f32.mrb[0].mxu0
      %v7355 = vadd.f32 0.0, %v7354
      %v7356 = vpop.f32.mrb[0].mxu0
      %7357 = vdwg.mxu0
      %7358 = vst.msk [vmem:[%s143] sm:$0xff] %vm7032, %v7200
      %7359 = vst.msk [vmem:[%s143 + $0x8] sm:$0xff] %vm7032, %v7205
      %7360 = vst.msk [vmem:[%s143 + $0x10] sm:$0xff] %vm7032, %v7210
      %7361 = vst.msk [vmem:[%s143 + $0x18] sm:$0xff] %vm7032, %v7215
      %7362 = vst.msk [vmem:[%s143 + $0x20] sm:$0xff] %vm7032, %v7220
      %7363 = vst.msk [vmem:[%s143 + $0x28] sm:$0xff] %vm7032, %v7225
      %7364 = vst.msk [vmem:[%s143 + $0x30] sm:$0xff] %vm7032, %v7230
      %7365 = vst.msk [vmem:[%s143 + $0x38] sm:$0xff] %vm7032, %v7235
      %7366 = vst.msk [vmem:[%s143 + $0x40] sm:$0xff] %vm7032, %v7240
      %7367 = vst.msk [vmem:[%s143 + $0x48] sm:$0xff] %vm7032, %v7245
      %7368 = vst.msk [vmem:[%s143 + $0x50] sm:$0xff] %vm7032, %v7250
      %7369 = vst.msk [vmem:[%s143 + $0x58] sm:$0xff] %vm7032, %v7255
      %7370 = vst.msk [vmem:[%s143 + $0x60] sm:$0xff] %vm7032, %v7260
      %7371 = vst.msk [vmem:[%s143 + $0x68] sm:$0xff] %vm7032, %v7265
      %7372 = vst.msk [vmem:[%s143 + $0x70] sm:$0xff] %vm7032, %v7270
      %7373 = vst.msk [vmem:[%s143 + $0x78] sm:$0xff] %vm7032, %v7275
      %7374 = vst.msk [vmem:[%s143 + $0x80] sm:$0xff] %vm7032, %v7280
      %7375 = vst.msk [vmem:[%s143 + $0x88] sm:$0xff] %vm7032, %v7285
      %7376 = vst.msk [vmem:[%s143 + $0x90] sm:$0xff] %vm7032, %v7290
      %7377 = vst.msk [vmem:[%s143 + $0x98] sm:$0xff] %vm7032, %v7295
      %7378 = vst.msk [vmem:[%s143 + $0xa0] sm:$0xff] %vm7032, %v7300
      %7379 = vst.msk [vmem:[%s143 + $0xa8] sm:$0xff] %vm7032, %v7305
      %7380 = vst.msk [vmem:[%s143 + $0xb0] sm:$0xff] %vm7032, %v7310
      %7381 = vst.msk [vmem:[%s143 + $0xb8] sm:$0xff] %vm7032, %v7315
      %7382 = vst.msk [vmem:[%s143 + $0xc0] sm:$0xff] %vm7032, %v7320
      %7383 = vst.msk [vmem:[%s143 + $0xc8] sm:$0xff] %vm7032, %v7325
      %7384 = vst.msk [vmem:[%s143 + $0xd0] sm:$0xff] %vm7032, %v7330
      %7385 = vst.msk [vmem:[%s143 + $0xd8] sm:$0xff] %vm7032, %v7335
      %7386 = vst.msk [vmem:[%s143 + $0xe0] sm:$0xff] %vm7032, %v7340
      %7387 = vst.msk [vmem:[%s143 + $0xe8] sm:$0xff] %vm7032, %v7345
      %7388 = vst.msk [vmem:[%s143 + $0xf0] sm:$0xff] %vm7032, %v7350
      %7389 = vst.msk [vmem:[%s143 + $0xf8] sm:$0xff] %vm7032, %v7355
      %s7390 = smul.u32 32, %s13
      %p7391 = scmp.lt.s32.totalorder %s7390, 63
      %s7392 = scalar_select %p7391, %s7390, 63
      %s7393 = smul.addr %s7392, 8
      %s7394 = scalar_lea.vmem %s2, %s7393
      // Predicated region
      $region29: #{tpu_custom_call.1} parent=27 // pred_check
        %p7395 = pneg %p78
      $region30: #{tpu_custom_call.1} parent=27 // pred_check_branch
        %7397 = sbr.rel (%p7395) target = $region32
      $region31: #{tpu_custom_call.1} parent=27 // pred_region
        %s7398 = smul.u32 32, %s13
      $region32: #{tpu_custom_call.1} parent=27 // pred_fallthru
        _
    $region28: #{tpu_custom_call.1} parent=5 // pred_fallthru
      _
    %p7399 = scmp.le.s32.totalorder 2, %s8
    // Predicated region
    $region33: #{tpu_custom_call.1} parent=5 // pred_check
      %p7400 = pneg %p7399
    $region34: #{tpu_custom_call.1} parent=5 // pred_check_branch
      %7402 = sbr.rel (%p7400) target = $region36
    $region35: #{tpu_custom_call.1} parent=5 // pred_region
      %s7403 = ssub.s32 %s8, 2
      // Predicated region
      $region37: #{tpu_custom_call.1} parent=35 // pred_check
        %p7404 = pneg %p84
      $region38: #{tpu_custom_call.1} parent=35 // pred_check_branch
        %7406 = sbr.rel (%p7404) target = $region40
      $region39: #{tpu_custom_call.1} parent=35 // pred_region
        %s7407 = smul.u32 32, %s14
        %p7408 = scmp.lt.s32.totalorder %s7407, 63
        %s7409 = scalar_select %p7408, %s7407, 63
        %s7410 = smul.addr %s7409, 8
        %s7411 = scalar_lea.vmem %s2, %s7410
      $region40: #{tpu_custom_call.1} parent=35 // pred_fallthru
        _
    $region36: #{tpu_custom_call.1} parent=5 // pred_fallthru
      _
  $region6: #{tpu_custom_call.1} parent=0 // loop_footer
    %s12 = sadd.s32 1, %s8
  $region7: #{tpu_custom_call.1} parent=0 // loop_footer_branch
    %7 = sbr.rel target = $region3
  $region8: #{tpu_custom_call.1} parent=0 // loop_exit
    _

</llo_original>
